<compile_context>
chip_gen: v7x
topology: tpu7x:2x2x1
jax: 0.10.0
libtpu: 0.0.40
codegen_flags: <defaults>
</compile_context>

<pallas_src>
import functools

import jax
import jax.numpy as jnp
from jax import lax
from jax.experimental import pallas as pl
from jax.experimental.pallas import tpu as pltpu


_PARALLEL_1D = pltpu.CompilerParams(dimension_semantics=("parallel",))
_BF16 = jnp.bfloat16


def _layernorm(x, g, b, eps):
    mu = jnp.mean(x, axis=-1, keepdims=True)
    var = jnp.mean((x - mu) ** 2, axis=-1, keepdims=True)
    return (x - mu) * lax.rsqrt(var + eps) * g + b


# --------------------------------------------------------------------------
# Kernel 1: conv0 (stride==kernel, im2col'd) + GroupNorm(C, C) + GELU
# --------------------------------------------------------------------------

def _conv0_gn_gelu_kernel(eps, x_ref, w_ref, b_ref, g_ref, gb_ref, o_ref):
    x = x_ref[0]                                                  # (S1, k0) f32
    h = jnp.dot(x, w_ref[...], preferred_element_type=jnp.float32) + b_ref[...]
    # GroupNorm(num_groups=C, num_channels=C) on (B, C, S) == per-(batch, chan)
    # normalisation over time -> reduce over the sublane/time axis here.
    mu = jnp.mean(h, axis=0, keepdims=True)
    var = jnp.mean((h - mu) ** 2, axis=0, keepdims=True)
    hn = (h - mu) * lax.rsqrt(var + eps) * g_ref[...] + gb_ref[...]
    o_ref[0] = jax.nn.gelu(hn, approximate=True).astype(o_ref.dtype)


def conv0_gn_gelu(x_col, w, b, g, gb, eps=1e-5):
    B, S1, k0 = x_col.shape
    C = w.shape[1]
    return pl.pallas_call(
        functools.partial(_conv0_gn_gelu_kernel, eps),
        out_shape=jax.ShapeDtypeStruct((B, S1, C), jnp.float32),
        grid=(B,),
        in_specs=[
            pl.BlockSpec((1, S1, k0), lambda i: (i, 0, 0)),
            pl.BlockSpec((k0, C), lambda i: (0, 0)),
            pl.BlockSpec((1, C), lambda i: (0, 0)),
            pl.BlockSpec((1, C), lambda i: (0, 0)),
            pl.BlockSpec((1, C), lambda i: (0, 0)),
        ],
        out_specs=pl.BlockSpec((1, S1, C), lambda i: (i, 0, 0)),
        compiler_params=_PARALLEL_1D,
    )(x_col, w, b.reshape(1, C), g.reshape(1, C), gb.reshape(1, C))


# --------------------------------------------------------------------------
# Kernel 2: conv1 (im2col'd) + GELU + feature-projection LayerNorm + Linear
# --------------------------------------------------------------------------

def _fe_tail_kernel(eps, x_ref, w1_ref, b1_ref, g_ref, gb_ref, w2_ref, b2_ref,
                    o_ref):
    x = x_ref[0]                                                  # (S, k0*C) f32
    h = jnp.dot(x.astype(_BF16), w1_ref[...],
                preferred_element_type=jnp.float32) + b1_ref[...]
    h = jax.nn.gelu(h, approximate=True)
    hn = _layernorm(h, g_ref[...], gb_ref[...], eps)
    y = jnp.dot(hn.astype(_BF16), w2_ref[...],
                preferred_element_type=jnp.float32) + b2_ref[...]
    o_ref[0] = y.astype(o_ref.dtype)


def fe_tail(x, w1, b1, g, gb, w2, b2, eps=1e-5):
    B, S, Kin = x.shape
    C = w1.shape[1]
    H = w2.shape[1]
    return pl.pallas_call(
        functools.partial(_fe_tail_kernel, eps),
        out_shape=jax.ShapeDtypeStruct((B, S, H), jnp.float32),
        grid=(B,),
        in_specs=[
            pl.BlockSpec((1, S, Kin), lambda i: (i, 0, 0)),
            pl.BlockSpec((Kin, C), lambda i: (0, 0)),
            pl.BlockSpec((1, C), lambda i: (0, 0)),
            pl.BlockSpec((1, C), lambda i: (0, 0)),
            pl.BlockSpec((1, C), lambda i: (0, 0)),
            pl.BlockSpec((C, H), lambda i: (0, 0)),
            pl.BlockSpec((1, H), lambda i: (0, 0)),
        ],
        out_specs=pl.BlockSpec((1, S, H), lambda i: (i, 0, 0)),
        compiler_params=_PARALLEL_1D,
    )(x, w1, b1.reshape(1, C), g.reshape(1, C), gb.reshape(1, C),
      w2, b2.reshape(1, H))


# --------------------------------------------------------------------------
# Kernel 3: positional grouped conv ("same" pad) + GELU + residual add.
# The grouped conv is expressed as pk matmuls against block-diagonal (H, H)
# weights on shifted views of the padded activation, formed inside the kernel.
# --------------------------------------------------------------------------

def _pos_conv_kernel(pk, S, H, x_ref, xp_ref, w_ref, b_ref, o_ref):
    xp = xp_ref[0]                                                # (S+2*pad, H)
    acc = jnp.zeros((S, H), jnp.float32)
    for k in range(pk):                                           # static unroll
        acc = acc + jnp.dot(xp[k:k + S, :].astype(_BF16), w_ref[k],
                            preferred_element_type=jnp.float32)
    y = jax.nn.gelu(acc + b_ref[...], approximate=True)
    o_ref[0] = (x_ref[0] + y).astype(o_ref.dtype)


def pos_conv_residual(x, x_pad, w, b):
    B, S, H = x.shape
    pk = w.shape[0]
    Sp = x_pad.shape[1]
    return pl.pallas_call(
        functools.partial(_pos_conv_kernel, pk, S, H),
        out_shape=jax.ShapeDtypeStruct((B, S, H), jnp.float32),
        grid=(B,),
        in_specs=[
            pl.BlockSpec((1, S, H), lambda i: (i, 0, 0)),
            pl.BlockSpec((1, Sp, H), lambda i: (i, 0, 0)),
            pl.BlockSpec((pk, H, H), lambda i: (0, 0, 0)),
            pl.BlockSpec((1, H), lambda i: (0, 0)),
        ],
        out_specs=pl.BlockSpec((1, S, H), lambda i: (i, 0, 0)),
        compiler_params=_PARALLEL_1D,
    )(x, x_pad, w, b.reshape(1, H))


# --------------------------------------------------------------------------
# Kernel 4: fused pre-LN self-attention block
#   LN1 -> fused QKV matmul -> per-head softmax(QK^T)V -> out-proj -> +residual
# --------------------------------------------------------------------------

def _attn_block_kernel(nH, Dh, eps, x_ref, g_ref, b_ref, wqkv_ref, bqkv_ref,
                       wo_ref, bo_ref, o_ref):
    x = x_ref[0]                                                  # (S, H) f32
    H = nH * Dh
    scale = 1.0 / float(Dh) ** 0.5
    xn = _layernorm(x, g_ref[...], b_ref[...], eps)
    qkv = jnp.dot(xn.astype(_BF16), wqkv_ref[...],
                  preferred_element_type=jnp.float32) + bqkv_ref[...]   # (S, 3H)
    heads = []
    for h in range(nH):                                           # static unroll
        q = qkv[:, h * Dh:(h + 1) * Dh]
        k = qkv[:, H + h * Dh:H + (h + 1) * Dh]
        v = qkv[:, 2 * H + h * Dh:2 * H + (h + 1) * Dh]
        # NT matmul: contract last dims, no explicit transpose materialised.
        s = lax.dot_general(q.astype(_BF16), k.astype(_BF16),
                            (((1,), (1,)), ((), ())),
                            preferred_element_type=jnp.float32) * scale
        s = s - jnp.max(s, axis=-1, keepdims=True)
        p = jnp.exp(s)
        p = p * pl.reciprocal(jnp.sum(p, axis=-1, keepdims=True), approx=True)
        heads.append(jnp.dot(p.astype(_BF16), v.astype(_BF16),
                             preferred_element_type=jnp.float32))
    attn = jnp.concatenate(heads, axis=-1)                        # (S, H)
    y = jnp.dot(attn.astype(_BF16), wo_ref[...],
                preferred_element_type=jnp.float32) + bo_ref[...]
    o_ref[0] = (x + y).astype(o_ref.dtype)


def attn_block(x, g, b, wqkv, bqkv, wo, bo, nH, eps=1e-5):
    B, S, H = x.shape
    Dh = H // nH
    return pl.pallas_call(
        functools.partial(_attn_block_kernel, nH, Dh, eps),
        out_shape=jax.ShapeDtypeStruct((B, S, H), jnp.float32),
        grid=(B,),
        in_specs=[
            pl.BlockSpec((1, S, H), lambda i: (i, 0, 0)),
            pl.BlockSpec((1, H), lambda i: (0, 0)),
            pl.BlockSpec((1, H), lambda i: (0, 0)),
            pl.BlockSpec((H, 3 * H), lambda i: (0, 0)),
            pl.BlockSpec((1, 3 * H), lambda i: (0, 0)),
            pl.BlockSpec((H, H), lambda i: (0, 0)),
            pl.BlockSpec((1, H), lambda i: (0, 0)),
        ],
        out_specs=pl.BlockSpec((1, S, H), lambda i: (i, 0, 0)),
        compiler_params=_PARALLEL_1D,
    )(x, g.reshape(1, H), b.reshape(1, H), wqkv, bqkv.reshape(1, 3 * H),
      wo, bo.reshape(1, H))


# --------------------------------------------------------------------------
# Kernel 5: fused pre-LN feed-forward block: LN2 -> FF1 -> GELU -> FF2 -> +res
# --------------------------------------------------------------------------

def _ffn_block_kernel(eps, x_ref, g_ref, b_ref, w1_ref, b1_ref, w2_ref, b2_ref,
                      o_ref):
    x = x_ref[0]                                                  # (S, H) f32
    xn = _layernorm(x, g_ref[...], b_ref[...], eps)
    h = jnp.dot(xn.astype(_BF16), w1_ref[...],
                preferred_element_type=jnp.float32) + b1_ref[...]
    h = jax.nn.gelu(h, approximate=True)
    y = jnp.dot(h.astype(_BF16), w2_ref[...],
                preferred_element_type=jnp.float32) + b2_ref[...]
    o_ref[0] = (x + y).astype(o_ref.dtype)


def ffn_block(x, g, b, w1, b1, w2, b2, eps=1e-5):
    B, S, H = x.shape
    F = w1.shape[1]
    return pl.pallas_call(
        functools.partial(_ffn_block_kernel, eps),
        out_shape=jax.ShapeDtypeStruct((B, S, H), jnp.float32),
        grid=(B,),
        in_specs=[
            pl.BlockSpec((1, S, H), lambda i: (i, 0, 0)),
            pl.BlockSpec((1, H), lambda i: (0, 0)),
            pl.BlockSpec((1, H), lambda i: (0, 0)),
            pl.BlockSpec((H, F), lambda i: (0, 0)),
            pl.BlockSpec((1, F), lambda i: (0, 0)),
            pl.BlockSpec((F, H), lambda i: (0, 0)),
            pl.BlockSpec((1, H), lambda i: (0, 0)),
        ],
        out_specs=pl.BlockSpec((1, S, H), lambda i: (i, 0, 0)),
        compiler_params=_PARALLEL_1D,
    )(x, g.reshape(1, H), b.reshape(1, H), w1, b1.reshape(1, F),
      w2, b2.reshape(1, H))


# --------------------------------------------------------------------------
# Kernel 6: final LayerNorm
# --------------------------------------------------------------------------

def _final_ln_kernel(eps, x_ref, g_ref, b_ref, o_ref):
    o_ref[0] = _layernorm(x_ref[0], g_ref[...], b_ref[...], eps).astype(o_ref.dtype)


def final_layernorm(x, g, b, eps=1e-5):
    B, S, H = x.shape
    return pl.pallas_call(
        functools.partial(_final_ln_kernel, eps),
        out_shape=jax.ShapeDtypeStruct((B, S, H), jnp.float32),
        grid=(B,),
        in_specs=[
            pl.BlockSpec((1, S, H), lambda i: (i, 0, 0)),
            pl.BlockSpec((1, H), lambda i: (0, 0)),
            pl.BlockSpec((1, H), lambda i: (0, 0)),
        ],
        out_specs=pl.BlockSpec((1, S, H), lambda i: (i, 0, 0)),
        compiler_params=_PARALLEL_1D,
    )(x, g.reshape(1, H), b.reshape(1, H))


# --------------------------------------------------------------------------
# Parameter init (deterministic, synthetic). MXU weights stored bf16,
# biases / norm params f32.
# --------------------------------------------------------------------------

def _dense(key, din, dout, scale=0.02, dtype=_BF16):
    w = (jax.random.normal(key, (din, dout), jnp.float32) * scale).astype(dtype)
    b = jnp.zeros((dout,), jnp.float32)
    return w, b


def init_params(key, cfg):
    C, H, F, L = cfg["conv_dim"], cfg["hidden"], cfg["ffn"], cfg["num_layers"]
    k0, pk, G = cfg["fe_kernel"], cfg["pos_kernel"], cfg["pos_groups"]
    Cg = H // G
    keys = jax.random.split(key, 8 + L)
    p = {}
    # conv feature extractor (conv weights in im2col layout: (k*Cin, Cout))
    p["conv0_w"], p["conv0_b"] = _dense(keys[0], k0 * 1, C, dtype=jnp.float32)
    p["gn_g"] = jnp.ones((C,), jnp.float32)
    p["gn_b"] = jnp.zeros((C,), jnp.float32)
    p["conv1_w"], p["conv1_b"] = _dense(keys[1], k0 * C, C)
    # feature projection
    p["fp_ln_g"] = jnp.ones((C,), jnp.float32)
    p["fp_ln_b"] = jnp.zeros((C,), jnp.float32)
    p["fp_w"], p["fp_b"] = _dense(keys[2], C, H)
    # positional grouped conv -> block-diagonal (pk, H, H) weight
    pos_keys = jax.random.split(keys[3], G)
    pos_w = jnp.zeros((pk, H, H), jnp.float32)
    for g in range(G):
        blk = jax.random.normal(pos_keys[g], (pk, Cg, Cg), jnp.float32) * 0.02
        pos_w = pos_w.at[:, g * Cg:(g + 1) * Cg, g * Cg:(g + 1) * Cg].set(blk)
    p["pos_w"] = pos_w.astype(_BF16)
    p["pos_b"] = jnp.zeros((H,), jnp.float32)
    # final layer norm
    p["final_ln_g"] = jnp.ones((H,), jnp.float32)
    p["final_ln_b"] = jnp.zeros((H,), jnp.float32)
    # transformer layers (fused QKV weight)
    layers = []
    for l in range(L):
        lk = jax.random.split(keys[8 + l], 4)
        lp = {}
        lp["ln1_g"] = jnp.ones((H,), jnp.float32)
        lp["ln1_b"] = jnp.zeros((H,), jnp.float32)
        lp["qkv_w"], lp["qkv_b"] = _dense(lk[0], H, 3 * H)
        lp["o_w"], lp["o_b"] = _dense(lk[1], H, H)
        lp["ln2_g"] = jnp.ones((H,), jnp.float32)
        lp["ln2_b"] = jnp.zeros((H,), jnp.float32)
        lp["ff1_w"], lp["ff1_b"] = _dense(lk[2], H, F)
        lp["ff2_w"], lp["ff2_b"] = _dense(lk[3], F, H)
        layers.append(lp)
    p["layers"] = layers
    return p


# --------------------------------------------------------------------------
# Forward pass (= encoder(x).last_hidden_state)
# --------------------------------------------------------------------------

def hubert_forward(params, cfg, x):
    B, T = x.shape
    C, H = cfg["conv_dim"], cfg["hidden"]
    nH = cfg["heads"]
    k0 = cfg["fe_kernel"]
    pk = cfg["pos_kernel"]

    # ---- conv feature extractor -------------------------------------------
    # conv0: Conv1d(1, C, k0, stride=k0) -> GroupNorm(C, C) -> GELU  (fused)
    S1 = T // k0
    h = conv0_gn_gelu(x.reshape(B, S1, k0), params["conv0_w"], params["conv0_b"],
                      params["gn_g"], params["gn_b"])
    # conv1: Conv1d(C, C, k0, stride=k0) -> GELU -> LayerNorm(C) -> Linear(C, H)
    S = S1 // k0
    h = fe_tail(h.reshape(B, S, k0 * C),                        # (k outer, c inner)
                params["conv1_w"], params["conv1_b"],
                params["fp_ln_g"], params["fp_ln_b"],
                params["fp_w"], params["fp_b"])                 # (B, S, H)

    # ---- positional conv embedding (grouped, "same" pad) + GELU + residual -
    pad = pk // 2
    h_pad = jnp.pad(h, ((0, 0), (pad, pad), (0, 0)))
    h = pos_conv_residual(h, h_pad, params["pos_w"], params["pos_b"])

    # ---- transformer layers (pre-LN, HuBERT "stable layer norm" variant) ---
    for lp in params["layers"]:
        h = attn_block(h, lp["ln1_g"], lp["ln1_b"], lp["qkv_w"], lp["qkv_b"],
                       lp["o_w"], lp["o_b"], nH)
        h = ffn_block(h, lp["ln2_g"], lp["ln2_b"], lp["ff1_w"], lp["ff1_b"],
                      lp["ff2_w"], lp["ff2_b"])

    # ---- final layer norm ---------------------------------------------------
    return final_layernorm(h, params["final_ln_g"], params["final_ln_b"])


# --------------------------------------------------------------------------

if __name__ == "__main__":
    cfg = dict(
        conv_dim=128,    # feature-extractor channels (lane-dense)
        hidden=128,      # transformer hidden size   (lane-dense)
        heads=4,
        ffn=256,
        num_layers=2,
        fe_kernel=4,     # two conv layers, kernel == stride == 4 (downsample x16)
        pos_kernel=3,
        pos_groups=2,
    )
    key = jax.random.PRNGKey(0)
    kp, kx = jax.random.split(key)
    params = init_params(kp, cfg)

    B, T = 2, 1024                       # raw audio: (batch, samples)
    x = jax.random.normal(kx, (B, T), jnp.float32)

    fwd = jax.jit(lambda xx: hubert_forward(params, cfg, xx))
    out = fwd(x)
    out = jax.block_until_ready(out)

    expected = (B, T // (cfg["fe_kernel"] ** 2), cfg["hidden"])   # (2, 64, 128)
    assert out.shape == expected, (out.shape, expected)
    assert out.dtype == jnp.float32
    assert bool(jnp.all(jnp.isfinite(out)))
    print("KERNEL_OK")
</pallas_src>

<mosaic_0001>
module attributes {stable_mosaic.version = 11 : i64} {
  func.func @_conv0_gn_gelu_kernel(%arg0: i32, %arg1: memref<1x256x4xf32, #tpu.memory_space<vmem>>, %arg2: memref<4x128xf32, #tpu.memory_space<vmem>>, %arg3: memref<1x128xf32, #tpu.memory_space<vmem>>, %arg4: memref<1x128xf32, #tpu.memory_space<vmem>>, %arg5: memref<1x128xf32, #tpu.memory_space<vmem>>, %arg6: memref<1x256x128xf32, #tpu.memory_space<vmem>>) attributes {dimension_semantics = [#tpu.dimension_semantics<parallel>], iteration_bounds = array<i64: 2>, scalar_prefetch = 0 : i64, scratch_operands = 0 : i64, tpu.core_type = #tpu.core_type<tc>, window_params = [{transform_indices = @transform_0, window_bounds = array<i64: 1, 256, 4>}, {pipeline_mode = #tpu.pipeline_mode<synchronous>, transform_indices = @transform_1, window_bounds = array<i64: 4, 128>}, {pipeline_mode = #tpu.pipeline_mode<synchronous>, transform_indices = @transform_2, window_bounds = array<i64: 1, 128>}, {pipeline_mode = #tpu.pipeline_mode<synchronous>, transform_indices = @transform_3, window_bounds = array<i64: 1, 128>}, {pipeline_mode = #tpu.pipeline_mode<synchronous>, transform_indices = @transform_4, window_bounds = array<i64: 1, 128>}, {transform_indices = @transform_5, window_bounds = array<i64: 1, 256, 128>}]} {
    %c0 = arith.constant 0 : index
    %c0_0 = arith.constant 0 : index
    %c0_1 = arith.constant 0 : index
    %0 = vector.load %arg1[%c0, %c0_0, %c0_1] : memref<1x256x4xf32, #tpu.memory_space<vmem>>, vector<1x256x4xf32>
    %1 = vector.shape_cast %0 : vector<1x256x4xf32> to vector<256x4xf32>
    %c0_2 = arith.constant 0 : index
    %c0_3 = arith.constant 0 : index
    %2 = vector.load %arg2[%c0_2, %c0_3] : memref<4x128xf32, #tpu.memory_space<vmem>>, vector<4x128xf32>
    %cst = arith.constant dense<0.000000e+00> : vector<256x128xf32>
    %3 = tpu.matmul %1, %2, %cst {dimension_numbers = #tpu.dot_dimension_numbers<[1], [0], [0], [1], [0, 0, 1, 1], [], []>} : vector<256x4xf32>, vector<4x128xf32>, vector<256x128xf32> -> vector<256x128xf32>
    %c0_4 = arith.constant 0 : index
    %c0_5 = arith.constant 0 : index
    %4 = vector.load %arg3[%c0_4, %c0_5] : memref<1x128xf32, #tpu.memory_space<vmem>>, vector<1x128xf32>
    %5 = vector.broadcast %4 : vector<1x128xf32> to vector<256x128xf32>
    %6 = arith.addf %3, %5 : vector<256x128xf32>
    %cst_6 = arith.constant dense<0.000000e+00> : vector<128xf32>
    %7 = vector.multi_reduction <add>, %6, %cst_6 [0] : vector<256x128xf32> to vector<128xf32>
    %8 = vector.shape_cast %7 : vector<128xf32> to vector<1x128xf32>
    %cst_7 = arith.constant 2.560000e+02 : f32
    %9 = vector.broadcast %cst_7 : f32 to vector<1x128xf32>
    %10 = arith.divf %8, %9 : vector<1x128xf32>
    %11 = vector.broadcast %10 : vector<1x128xf32> to vector<256x128xf32>
    %12 = arith.subf %6, %11 : vector<256x128xf32>
    %13 = arith.mulf %12, %12 : vector<256x128xf32>
    %cst_8 = arith.constant dense<0.000000e+00> : vector<128xf32>
    %14 = vector.multi_reduction <add>, %13, %cst_8 [0] : vector<256x128xf32> to vector<128xf32>
    %15 = vector.shape_cast %14 : vector<128xf32> to vector<1x128xf32>
    %cst_9 = arith.constant 2.560000e+02 : f32
    %16 = vector.broadcast %cst_9 : f32 to vector<1x128xf32>
    %17 = arith.divf %15, %16 : vector<1x128xf32>
    %18 = vector.broadcast %10 : vector<1x128xf32> to vector<256x128xf32>
    %19 = arith.subf %6, %18 : vector<256x128xf32>
    %cst_10 = arith.constant 9.99999974E-6 : f32
    %20 = vector.broadcast %cst_10 : f32 to vector<1x128xf32>
    %21 = arith.addf %17, %20 : vector<1x128xf32>
    %22 = math.rsqrt %21 : vector<1x128xf32>
    %23 = vector.broadcast %22 : vector<1x128xf32> to vector<256x128xf32>
    %24 = arith.mulf %19, %23 : vector<256x128xf32>
    %c0_11 = arith.constant 0 : index
    %c0_12 = arith.constant 0 : index
    %25 = vector.load %arg4[%c0_11, %c0_12] : memref<1x128xf32, #tpu.memory_space<vmem>>, vector<1x128xf32>
    %26 = vector.broadcast %25 : vector<1x128xf32> to vector<256x128xf32>
    %27 = arith.mulf %24, %26 : vector<256x128xf32>
    %c0_13 = arith.constant 0 : index
    %c0_14 = arith.constant 0 : index
    %28 = vector.load %arg5[%c0_13, %c0_14] : memref<1x128xf32, #tpu.memory_space<vmem>>, vector<1x128xf32>
    %29 = vector.broadcast %28 : vector<1x128xf32> to vector<256x128xf32>
    %30 = arith.addf %27, %29 : vector<256x128xf32>
    %31 = arith.mulf %30, %30 : vector<256x128xf32>
    %32 = arith.mulf %30, %31 : vector<256x128xf32>
    %cst_15 = arith.constant 4.471500e-02 : f32
    %33 = vector.broadcast %cst_15 : f32 to vector<256x128xf32>
    %34 = arith.mulf %33, %32 : vector<256x128xf32>
    %35 = arith.addf %30, %34 : vector<256x128xf32>
    %cst_16 = arith.constant 0.797884583 : f32
    %36 = vector.broadcast %cst_16 : f32 to vector<256x128xf32>
    %37 = arith.mulf %36, %35 : vector<256x128xf32>
    %38 = math.tanh %37 : vector<256x128xf32>
    %cst_17 = arith.constant 1.000000e+00 : f32
    %39 = vector.broadcast %cst_17 : f32 to vector<256x128xf32>
    %40 = arith.addf %39, %38 : vector<256x128xf32>
    %cst_18 = arith.constant 5.000000e-01 : f32
    %41 = vector.broadcast %cst_18 : f32 to vector<256x128xf32>
    %42 = arith.mulf %41, %40 : vector<256x128xf32>
    %43 = arith.mulf %30, %42 : vector<256x128xf32>
    %c0_19 = arith.constant 0 : index
    %c0_20 = arith.constant 0 : index
    %c0_21 = arith.constant 0 : index
    %44 = vector.load %arg6[%c0_19, %c0_20, %c0_21] : memref<1x256x128xf32, #tpu.memory_space<vmem>>, vector<1x256x128xf32>
    %45 = vector.shape_cast %44 : vector<1x256x128xf32> to vector<256x128xf32>
    %46 = vector.shape_cast %43 : vector<256x128xf32> to vector<1x256x128xf32>
    tpu.vector_store %arg6[%c0_19, %c0_20, %c0_21], %46 {strides = array<i32>} : memref<1x256x128xf32, #tpu.memory_space<vmem>>, vector<1x256x128xf32>,
    return
  }
  func.func @transform_0(%arg0: i32) -> (i32, i32, i32) {
    %c0_i32 = arith.constant 0 : i32
    %c0_i32_0 = arith.constant 0 : i32
    %c0_i32_1 = arith.constant 0 : i32
    return %arg0, %c0_i32, %c0_i32_0 : i32, i32, i32
  }
  func.func @transform_1(%arg0: i32) -> (i32, i32) {
    %c0_i32 = arith.constant 0 : i32
    %c0_i32_0 = arith.constant 0 : i32
    %c0_i32_1 = arith.constant 0 : i32
    return %c0_i32, %c0_i32_0 : i32, i32
  }
  func.func @transform_2(%arg0: i32) -> (i32, i32) {
    %c0_i32 = arith.constant 0 : i32
    %c0_i32_0 = arith.constant 0 : i32
    %c0_i32_1 = arith.constant 0 : i32
    return %c0_i32, %c0_i32_0 : i32, i32
  }
  func.func @transform_3(%arg0: i32) -> (i32, i32) {
    %c0_i32 = arith.constant 0 : i32
    %c0_i32_0 = arith.constant 0 : i32
    %c0_i32_1 = arith.constant 0 : i32
    return %c0_i32, %c0_i32_0 : i32, i32
  }
  func.func @transform_4(%arg0: i32) -> (i32, i32) {
    %c0_i32 = arith.constant 0 : i32
    %c0_i32_0 = arith.constant 0 : i32
    %c0_i32_1 = arith.constant 0 : i32
    return %c0_i32, %c0_i32_0 : i32, i32
  }
  func.func @transform_5(%arg0: i32) -> (i32, i32, i32) {
    %c0_i32 = arith.constant 0 : i32
    %c0_i32_0 = arith.constant 0 : i32
    %c0_i32_1 = arith.constant 0 : i32
    return %arg0, %c0_i32, %c0_i32_0 : i32, i32, i32
  }
}

module attributes {stable_mosaic.version = 11 : i64} {
  func.func @_fe_tail_kernel(%arg0: i32, %arg1: memref<1x64x512xf32, #tpu.memory_space<vmem>>, %arg2: memref<512x128xbf16, #tpu.memory_space<vmem>>, %arg3: memref<1x128xf32, #tpu.memory_space<vmem>>, %arg4: memref<1x128xf32, #tpu.memory_space<vmem>>, %arg5: memref<1x128xf32, #tpu.memory_space<vmem>>, %arg6: memref<128x128xbf16, #tpu.memory_space<vmem>>, %arg7: memref<1x128xf32, #tpu.memory_space<vmem>>, %arg8: memref<1x64x128xf32, #tpu.memory_space<vmem>>) attributes {dimension_semantics = [#tpu.dimension_semantics<parallel>], iteration_bounds = array<i64: 2>, scalar_prefetch = 0 : i64, scratch_operands = 0 : i64, tpu.core_type = #tpu.core_type<tc>, window_params = [{transform_indices = @transform_0, window_bounds = array<i64: 1, 64, 512>}, {pipeline_mode = #tpu.pipeline_mode<synchronous>, transform_indices = @transform_1, window_bounds = array<i64: 512, 128>}, {pipeline_mode = #tpu.pipeline_mode<synchronous>, transform_indices = @transform_2, window_bounds = array<i64: 1, 128>}, {pipeline_mode = #tpu.pipeline_mode<synchronous>, transform_indices = @transform_3, window_bounds = array<i64: 1, 128>}, {pipeline_mode = #tpu.pipeline_mode<synchronous>, transform_indices = @transform_4, window_bounds = array<i64: 1, 128>}, {pipeline_mode = #tpu.pipeline_mode<synchronous>, transform_indices = @transform_5, window_bounds = array<i64: 128, 128>}, {pipeline_mode = #tpu.pipeline_mode<synchronous>, transform_indices = @transform_6, window_bounds = array<i64: 1, 128>}, {transform_indices = @transform_7, window_bounds = array<i64: 1, 64, 128>}]} {
    %c0 = arith.constant 0 : index
    %c0_0 = arith.constant 0 : index
    %c0_1 = arith.constant 0 : index
    %0 = vector.load %arg1[%c0, %c0_0, %c0_1] : memref<1x64x512xf32, #tpu.memory_space<vmem>>, vector<1x64x512xf32>
    %1 = vector.shape_cast %0 : vector<1x64x512xf32> to vector<64x512xf32>
    %2 = arith.truncf %1 : vector<64x512xf32> to vector<64x512xbf16>
    %c0_2 = arith.constant 0 : index
    %c0_3 = arith.constant 0 : index
    %3 = vector.load %arg2[%c0_2, %c0_3] : memref<512x128xbf16, #tpu.memory_space<vmem>>, vector<512x128xbf16>
    %cst = arith.constant dense<0.000000e+00> : vector<64x128xf32>
    %4 = tpu.matmul %2, %3, %cst {dimension_numbers = #tpu.dot_dimension_numbers<[1], [0], [0], [1], [0, 0, 1, 1], [], []>} : vector<64x512xbf16>, vector<512x128xbf16>, vector<64x128xf32> -> vector<64x128xf32>
    %c0_4 = arith.constant 0 : index
    %c0_5 = arith.constant 0 : index
    %5 = vector.load %arg3[%c0_4, %c0_5] : memref<1x128xf32, #tpu.memory_space<vmem>>, vector<1x128xf32>
    %6 = vector.broadcast %5 : vector<1x128xf32> to vector<64x128xf32>
    %7 = arith.addf %4, %6 : vector<64x128xf32>
    %8 = arith.mulf %7, %7 : vector<64x128xf32>
    %9 = arith.mulf %7, %8 : vector<64x128xf32>
    %cst_6 = arith.constant 4.471500e-02 : f32
    %10 = vector.broadcast %cst_6 : f32 to vector<64x128xf32>
    %11 = arith.mulf %10, %9 : vector<64x128xf32>
    %12 = arith.addf %7, %11 : vector<64x128xf32>
    %cst_7 = arith.constant 0.797884583 : f32
    %13 = vector.broadcast %cst_7 : f32 to vector<64x128xf32>
    %14 = arith.mulf %13, %12 : vector<64x128xf32>
    %15 = math.tanh %14 : vector<64x128xf32>
    %cst_8 = arith.constant 1.000000e+00 : f32
    %16 = vector.broadcast %cst_8 : f32 to vector<64x128xf32>
    %17 = arith.addf %16, %15 : vector<64x128xf32>
    %cst_9 = arith.constant 5.000000e-01 : f32
    %18 = vector.broadcast %cst_9 : f32 to vector<64x128xf32>
    %19 = arith.mulf %18, %17 : vector<64x128xf32>
    %20 = arith.mulf %7, %19 : vector<64x128xf32>
    %c0_10 = arith.constant 0 : index
    %c0_11 = arith.constant 0 : index
    %21 = vector.load %arg4[%c0_10, %c0_11] : memref<1x128xf32, #tpu.memory_space<vmem>>, vector<1x128xf32>
    %c0_12 = arith.constant 0 : index
    %c0_13 = arith.constant 0 : index
    %22 = vector.load %arg5[%c0_12, %c0_13] : memref<1x128xf32, #tpu.memory_space<vmem>>, vector<1x128xf32>
    %cst_14 = arith.constant dense<0.000000e+00> : vector<64xf32>
    %23 = vector.multi_reduction <add>, %20, %cst_14 [1] : vector<64x128xf32> to vector<64xf32>
    %24 = vector.shape_cast %23 : vector<64xf32> to vector<64x1xf32>
    %cst_15 = arith.constant 1.280000e+02 : f32
    %25 = vector.broadcast %cst_15 : f32 to vector<64x1xf32>
    %26 = arith.divf %24, %25 : vector<64x1xf32>
    %27 = vector.broadcast %26 : vector<64x1xf32> to vector<64x128xf32>
    %28 = arith.subf %20, %27 : vector<64x128xf32>
    %29 = arith.mulf %28, %28 : vector<64x128xf32>
    %cst_16 = arith.constant dense<0.000000e+00> : vector<64xf32>
    %30 = vector.multi_reduction <add>, %29, %cst_16 [1] : vector<64x128xf32> to vector<64xf32>
    %31 = vector.shape_cast %30 : vector<64xf32> to vector<64x1xf32>
    %cst_17 = arith.constant 1.280000e+02 : f32
    %32 = vector.broadcast %cst_17 : f32 to vector<64x1xf32>
    %33 = arith.divf %31, %32 : vector<64x1xf32>
    %34 = vector.broadcast %26 : vector<64x1xf32> to vector<64x128xf32>
    %35 = arith.subf %20, %34 : vector<64x128xf32>
    %cst_18 = arith.constant 9.99999974E-6 : f32
    %36 = vector.broadcast %cst_18 : f32 to vector<64x1xf32>
    %37 = arith.addf %33, %36 : vector<64x1xf32>
    %38 = math.rsqrt %37 : vector<64x1xf32>
    %39 = vector.broadcast %38 : vector<64x1xf32> to vector<64x128xf32>
    %40 = arith.mulf %35, %39 : vector<64x128xf32>
    %41 = vector.broadcast %21 : vector<1x128xf32> to vector<64x128xf32>
    %42 = arith.mulf %40, %41 : vector<64x128xf32>
    %43 = vector.broadcast %22 : vector<1x128xf32> to vector<64x128xf32>
    %44 = arith.addf %42, %43 : vector<64x128xf32>
    %45 = arith.truncf %44 : vector<64x128xf32> to vector<64x128xbf16>
    %c0_19 = arith.constant 0 : index
    %c0_20 = arith.constant 0 : index
    %46 = vector.load %arg6[%c0_19, %c0_20] : memref<128x128xbf16, #tpu.memory_space<vmem>>, vector<128x128xbf16>
    %cst_21 = arith.constant dense<0.000000e+00> : vector<64x128xf32>
    %47 = tpu.matmul %45, %46, %cst_21 {dimension_numbers = #tpu.dot_dimension_numbers<[1], [0], [0], [1], [0, 0, 1, 1], [], []>} : vector<64x128xbf16>, vector<128x128xbf16>, vector<64x128xf32> -> vector<64x128xf32>
    %c0_22 = arith.constant 0 : index
    %c0_23 = arith.constant 0 : index
    %48 = vector.load %arg7[%c0_22, %c0_23] : memref<1x128xf32, #tpu.memory_space<vmem>>, vector<1x128xf32>
    %49 = vector.broadcast %48 : vector<1x128xf32> to vector<64x128xf32>
    %50 = arith.addf %47, %49 : vector<64x128xf32>
    %c0_24 = arith.constant 0 : index
    %c0_25 = arith.constant 0 : index
    %c0_26 = arith.constant 0 : index
    %51 = vector.load %arg8[%c0_24, %c0_25, %c0_26] : memref<1x64x128xf32, #tpu.memory_space<vmem>>, vector<1x64x128xf32>
    %52 = vector.shape_cast %51 : vector<1x64x128xf32> to vector<64x128xf32>
    %53 = vector.shape_cast %50 : vector<64x128xf32> to vector<1x64x128xf32>
    tpu.vector_store %arg8[%c0_24, %c0_25, %c0_26], %53 {strides = array<i32>} : memref<1x64x128xf32, #tpu.memory_space<vmem>>, vector<1x64x128xf32>,
    return
  }
  func.func @transform_0(%arg0: i32) -> (i32, i32, i32) {
    %c0_i32 = arith.constant 0 : i32
    %c0_i32_0 = arith.constant 0 : i32
    %c0_i32_1 = arith.constant 0 : i32
    return %arg0, %c0_i32, %c0_i32_0 : i32, i32, i32
  }
  func.func @transform_1(%arg0: i32) -> (i32, i32) {
    %c0_i32 = arith.constant 0 : i32
    %c0_i32_0 = arith.constant 0 : i32
    %c0_i32_1 = arith.constant 0 : i32
    return %c0_i32, %c0_i32_0 : i32, i32
  }
  func.func @transform_2(%arg0: i32) -> (i32, i32) {
    %c0_i32 = arith.constant 0 : i32
    %c0_i32_0 = arith.constant 0 : i32
    %c0_i32_1 = arith.constant 0 : i32
    return %c0_i32, %c0_i32_0 : i32, i32
  }
  func.func @transform_3(%arg0: i32) -> (i32, i32) {
    %c0_i32 = arith.constant 0 : i32
    %c0_i32_0 = arith.constant 0 : i32
    %c0_i32_1 = arith.constant 0 : i32
    return %c0_i32, %c0_i32_0 : i32, i32
  }
  func.func @transform_4(%arg0: i32) -> (i32, i32) {
    %c0_i32 = arith.constant 0 : i32
    %c0_i32_0 = arith.constant 0 : i32
    %c0_i32_1 = arith.constant 0 : i32
    return %c0_i32, %c0_i32_0 : i32, i32
  }
  func.func @transform_5(%arg0: i32) -> (i32, i32) {
    %c0_i32 = arith.constant 0 : i32
    %c0_i32_0 = arith.constant 0 : i32
    %c0_i32_1 = arith.constant 0 : i32
    return %c0_i32, %c0_i32_0 : i32, i32
  }
  func.func @transform_6(%arg0: i32) -> (i32, i32) {
    %c0_i32 = arith.constant 0 : i32
    %c0_i32_0 = arith.constant 0 : i32
    %c0_i32_1 = arith.constant 0 : i32
    return %c0_i32, %c0_i32_0 : i32, i32
  }
  func.func @transform_7(%arg0: i32) -> (i32, i32, i32) {
    %c0_i32 = arith.constant 0 : i32
    %c0_i32_0 = arith.constant 0 : i32
    %c0_i32_1 = arith.constant 0 : i32
    return %arg0, %c0_i32, %c0_i32_0 : i32, i32, i32
  }
}

module attributes {stable_mosaic.version = 11 : i64} {
  func.func @_pos_conv_kernel(%arg0: i32, %arg1: memref<1x64x128xf32, #tpu.memory_space<vmem>>, %arg2: memref<1x66x128xf32, #tpu.memory_space<vmem>>, %arg3: memref<3x128x128xbf16, #tpu.memory_space<vmem>>, %arg4: memref<1x128xf32, #tpu.memory_space<vmem>>, %arg5: memref<1x64x128xf32, #tpu.memory_space<vmem>>) attributes {dimension_semantics = [#tpu.dimension_semantics<parallel>], iteration_bounds = array<i64: 2>, scalar_prefetch = 0 : i64, scratch_operands = 0 : i64, tpu.core_type = #tpu.core_type<tc>, window_params = [{transform_indices = @transform_0, window_bounds = array<i64: 1, 64, 128>}, {transform_indices = @transform_1, window_bounds = array<i64: 1, 66, 128>}, {pipeline_mode = #tpu.pipeline_mode<synchronous>, transform_indices = @transform_2, window_bounds = array<i64: 3, 128, 128>}, {pipeline_mode = #tpu.pipeline_mode<synchronous>, transform_indices = @transform_3, window_bounds = array<i64: 1, 128>}, {transform_indices = @transform_4, window_bounds = array<i64: 1, 64, 128>}]} {
    %c0 = arith.constant 0 : index
    %c0_0 = arith.constant 0 : index
    %c0_1 = arith.constant 0 : index
    %0 = vector.load %arg2[%c0, %c0_0, %c0_1] : memref<1x66x128xf32, #tpu.memory_space<vmem>>, vector<1x66x128xf32>
    %1 = vector.shape_cast %0 : vector<1x66x128xf32> to vector<66x128xf32>
    %cst = arith.constant 0.000000e+00 : f32
    %2 = vector.broadcast %cst : f32 to vector<64x128xf32>
    %3 = vector.extract_strided_slice %1 {offsets = [0, 0], sizes = [64, 128], strides = [1, 1]} : vector<66x128xf32> to vector<64x128xf32>
    %4 = arith.truncf %3 : vector<64x128xf32> to vector<64x128xbf16>
    %c0_2 = arith.constant 0 : index
    %c0_3 = arith.constant 0 : index
    %c0_4 = arith.constant 0 : index
    %5 = vector.load %arg3[%c0_2, %c0_3, %c0_4] : memref<3x128x128xbf16, #tpu.memory_space<vmem>>, vector<1x128x128xbf16>
    %6 = vector.shape_cast %5 : vector<1x128x128xbf16> to vector<128x128xbf16>
    %cst_5 = arith.constant dense<0.000000e+00> : vector<64x128xf32>
    %7 = tpu.matmul %4, %6, %cst_5 {dimension_numbers = #tpu.dot_dimension_numbers<[1], [0], [0], [1], [0, 0, 1, 1], [], []>} : vector<64x128xbf16>, vector<128x128xbf16>, vector<64x128xf32> -> vector<64x128xf32>
    %8 = arith.addf %2, %7 : vector<64x128xf32>
    %9 = vector.extract_strided_slice %1 {offsets = [1, 0], sizes = [64, 128], strides = [1, 1]} : vector<66x128xf32> to vector<64x128xf32>
    %10 = arith.truncf %9 : vector<64x128xf32> to vector<64x128xbf16>
    %c1 = arith.constant 1 : index
    %c0_6 = arith.constant 0 : index
    %c0_7 = arith.constant 0 : index
    %11 = vector.load %arg3[%c1, %c0_6, %c0_7] : memref<3x128x128xbf16, #tpu.memory_space<vmem>>, vector<1x128x128xbf16>
    %12 = vector.shape_cast %11 : vector<1x128x128xbf16> to vector<128x128xbf16>
    %cst_8 = arith.constant dense<0.000000e+00> : vector<64x128xf32>
    %13 = tpu.matmul %10, %12, %cst_8 {dimension_numbers = #tpu.dot_dimension_numbers<[1], [0], [0], [1], [0, 0, 1, 1], [], []>} : vector<64x128xbf16>, vector<128x128xbf16>, vector<64x128xf32> -> vector<64x128xf32>
    %14 = arith.addf %8, %13 : vector<64x128xf32>
    %15 = vector.extract_strided_slice %1 {offsets = [2, 0], sizes = [64, 128], strides = [1, 1]} : vector<66x128xf32> to vector<64x128xf32>
    %16 = arith.truncf %15 : vector<64x128xf32> to vector<64x128xbf16>
    %c2 = arith.constant 2 : index
    %c0_9 = arith.constant 0 : index
    %c0_10 = arith.constant 0 : index
    %17 = vector.load %arg3[%c2, %c0_9, %c0_10] : memref<3x128x128xbf16, #tpu.memory_space<vmem>>, vector<1x128x128xbf16>
    %18 = vector.shape_cast %17 : vector<1x128x128xbf16> to vector<128x128xbf16>
    %cst_11 = arith.constant dense<0.000000e+00> : vector<64x128xf32>
    %19 = tpu.matmul %16, %18, %cst_11 {dimension_numbers = #tpu.dot_dimension_numbers<[1], [0], [0], [1], [0, 0, 1, 1], [], []>} : vector<64x128xbf16>, vector<128x128xbf16>, vector<64x128xf32> -> vector<64x128xf32>
    %20 = arith.addf %14, %19 : vector<64x128xf32>
    %c0_12 = arith.constant 0 : index
    %c0_13 = arith.constant 0 : index
    %21 = vector.load %arg4[%c0_12, %c0_13] : memref<1x128xf32, #tpu.memory_space<vmem>>, vector<1x128xf32>
    %22 = vector.broadcast %21 : vector<1x128xf32> to vector<64x128xf32>
    %23 = arith.addf %20, %22 : vector<64x128xf32>
    %24 = arith.mulf %23, %23 : vector<64x128xf32>
    %25 = arith.mulf %23, %24 : vector<64x128xf32>
    %cst_14 = arith.constant 4.471500e-02 : f32
    %26 = vector.broadcast %cst_14 : f32 to vector<64x128xf32>
    %27 = arith.mulf %26, %25 : vector<64x128xf32>
    %28 = arith.addf %23, %27 : vector<64x128xf32>
    %cst_15 = arith.constant 0.797884583 : f32
    %29 = vector.broadcast %cst_15 : f32 to vector<64x128xf32>
    %30 = arith.mulf %29, %28 : vector<64x128xf32>
    %31 = math.tanh %30 : vector<64x128xf32>
    %cst_16 = arith.constant 1.000000e+00 : f32
    %32 = vector.broadcast %cst_16 : f32 to vector<64x128xf32>
    %33 = arith.addf %32, %31 : vector<64x128xf32>
    %cst_17 = arith.constant 5.000000e-01 : f32
    %34 = vector.broadcast %cst_17 : f32 to vector<64x128xf32>
    %35 = arith.mulf %34, %33 : vector<64x128xf32>
    %36 = arith.mulf %23, %35 : vector<64x128xf32>
    %c0_18 = arith.constant 0 : index
    %c0_19 = arith.constant 0 : index
    %c0_20 = arith.constant 0 : index
    %37 = vector.load %arg1[%c0_18, %c0_19, %c0_20] : memref<1x64x128xf32, #tpu.memory_space<vmem>>, vector<1x64x128xf32>
    %38 = vector.shape_cast %37 : vector<1x64x128xf32> to vector<64x128xf32>
    %39 = arith.addf %38, %36 : vector<64x128xf32>
    %c0_21 = arith.constant 0 : index
    %c0_22 = arith.constant 0 : index
    %c0_23 = arith.constant 0 : index
    %40 = vector.load %arg5[%c0_21, %c0_22, %c0_23] : memref<1x64x128xf32, #tpu.memory_space<vmem>>, vector<1x64x128xf32>
    %41 = vector.shape_cast %40 : vector<1x64x128xf32> to vector<64x128xf32>
    %42 = vector.shape_cast %39 : vector<64x128xf32> to vector<1x64x128xf32>
    tpu.vector_store %arg5[%c0_21, %c0_22, %c0_23], %42 {strides = array<i32>} : memref<1x64x128xf32, #tpu.memory_space<vmem>>, vector<1x64x128xf32>,
    return
  }
  func.func @transform_0(%arg0: i32) -> (i32, i32, i32) {
    %c0_i32 = arith.constant 0 : i32
    %c0_i32_0 = arith.constant 0 : i32
    %c0_i32_1 = arith.constant 0 : i32
    return %arg0, %c0_i32, %c0_i32_0 : i32, i32, i32
  }
  func.func @transform_1(%arg0: i32) -> (i32, i32, i32) {
    %c0_i32 = arith.constant 0 : i32
    %c0_i32_0 = arith.constant 0 : i32
    %c0_i32_1 = arith.constant 0 : i32
    return %arg0, %c0_i32, %c0_i32_0 : i32, i32, i32
  }
  func.func @transform_2(%arg0: i32) -> (i32, i32, i32) {
    %c0_i32 = arith.constant 0 : i32
    %c0_i32_0 = arith.constant 0 : i32
    %c0_i32_1 = arith.constant 0 : i32
    %c0_i32_2 = arith.constant 0 : i32
    return %c0_i32, %c0_i32_0, %c0_i32_1 : i32, i32, i32
  }
  func.func @transform_3(%arg0: i32) -> (i32, i32) {
    %c0_i32 = arith.constant 0 : i32
    %c0_i32_0 = arith.constant 0 : i32
    %c0_i32_1 = arith.constant 0 : i32
    return %c0_i32, %c0_i32_0 : i32, i32
  }
  func.func @transform_4(%arg0: i32) -> (i32, i32, i32) {
    %c0_i32 = arith.constant 0 : i32
    %c0_i32_0 = arith.constant 0 : i32
    %c0_i32_1 = arith.constant 0 : i32
    return %arg0, %c0_i32, %c0_i32_0 : i32, i32, i32
  }
}

module attributes {stable_mosaic.version = 11 : i64} {
  func.func @_attn_block_kernel(%arg0: i32, %arg1: memref<1x64x128xf32, #tpu.memory_space<vmem>>, %arg2: memref<1x128xf32, #tpu.memory_space<vmem>>, %arg3: memref<1x128xf32, #tpu.memory_space<vmem>>, %arg4: memref<128x384xbf16, #tpu.memory_space<vmem>>, %arg5: memref<1x384xf32, #tpu.memory_space<vmem>>, %arg6: memref<128x128xbf16, #tpu.memory_space<vmem>>, %arg7: memref<1x128xf32, #tpu.memory_space<vmem>>, %arg8: memref<1x64x128xf32, #tpu.memory_space<vmem>>) attributes {dimension_semantics = [#tpu.dimension_semantics<parallel>], iteration_bounds = array<i64: 2>, scalar_prefetch = 0 : i64, scratch_operands = 0 : i64, tpu.core_type = #tpu.core_type<tc>, window_params = [{transform_indices = @transform_0, window_bounds = array<i64: 1, 64, 128>}, {pipeline_mode = #tpu.pipeline_mode<synchronous>, transform_indices = @transform_1, window_bounds = array<i64: 1, 128>}, {pipeline_mode = #tpu.pipeline_mode<synchronous>, transform_indices = @transform_2, window_bounds = array<i64: 1, 128>}, {pipeline_mode = #tpu.pipeline_mode<synchronous>, transform_indices = @transform_3, window_bounds = array<i64: 128, 384>}, {pipeline_mode = #tpu.pipeline_mode<synchronous>, transform_indices = @transform_4, window_bounds = array<i64: 1, 384>}, {pipeline_mode = #tpu.pipeline_mode<synchronous>, transform_indices = @transform_5, window_bounds = array<i64: 128, 128>}, {pipeline_mode = #tpu.pipeline_mode<synchronous>, transform_indices = @transform_6, window_bounds = array<i64: 1, 128>}, {transform_indices = @transform_7, window_bounds = array<i64: 1, 64, 128>}]} {
    %c0 = arith.constant 0 : index
    %c0_0 = arith.constant 0 : index
    %c0_1 = arith.constant 0 : index
    %0 = vector.load %arg1[%c0, %c0_0, %c0_1] : memref<1x64x128xf32, #tpu.memory_space<vmem>>, vector<1x64x128xf32>
    %1 = vector.shape_cast %0 : vector<1x64x128xf32> to vector<64x128xf32>
    %c0_2 = arith.constant 0 : index
    %c0_3 = arith.constant 0 : index
    %2 = vector.load %arg2[%c0_2, %c0_3] : memref<1x128xf32, #tpu.memory_space<vmem>>, vector<1x128xf32>
    %c0_4 = arith.constant 0 : index
    %c0_5 = arith.constant 0 : index
    %3 = vector.load %arg3[%c0_4, %c0_5] : memref<1x128xf32, #tpu.memory_space<vmem>>, vector<1x128xf32>
    %cst = arith.constant dense<0.000000e+00> : vector<64xf32>
    %4 = vector.multi_reduction <add>, %1, %cst [1] : vector<64x128xf32> to vector<64xf32>
    %5 = vector.shape_cast %4 : vector<64xf32> to vector<64x1xf32>
    %cst_6 = arith.constant 1.280000e+02 : f32
    %6 = vector.broadcast %cst_6 : f32 to vector<64x1xf32>
    %7 = arith.divf %5, %6 : vector<64x1xf32>
    %8 = vector.broadcast %7 : vector<64x1xf32> to vector<64x128xf32>
    %9 = arith.subf %1, %8 : vector<64x128xf32>
    %10 = arith.mulf %9, %9 : vector<64x128xf32>
    %cst_7 = arith.constant dense<0.000000e+00> : vector<64xf32>
    %11 = vector.multi_reduction <add>, %10, %cst_7 [1] : vector<64x128xf32> to vector<64xf32>
    %12 = vector.shape_cast %11 : vector<64xf32> to vector<64x1xf32>
    %cst_8 = arith.constant 1.280000e+02 : f32
    %13 = vector.broadcast %cst_8 : f32 to vector<64x1xf32>
    %14 = arith.divf %12, %13 : vector<64x1xf32>
    %15 = vector.broadcast %7 : vector<64x1xf32> to vector<64x128xf32>
    %16 = arith.subf %1, %15 : vector<64x128xf32>
    %cst_9 = arith.constant 9.99999974E-6 : f32
    %17 = vector.broadcast %cst_9 : f32 to vector<64x1xf32>
    %18 = arith.addf %14, %17 : vector<64x1xf32>
    %19 = math.rsqrt %18 : vector<64x1xf32>
    %20 = vector.broadcast %19 : vector<64x1xf32> to vector<64x128xf32>
    %21 = arith.mulf %16, %20 : vector<64x128xf32>
    %22 = vector.broadcast %2 : vector<1x128xf32> to vector<64x128xf32>
    %23 = arith.mulf %21, %22 : vector<64x128xf32>
    %24 = vector.broadcast %3 : vector<1x128xf32> to vector<64x128xf32>
    %25 = arith.addf %23, %24 : vector<64x128xf32>
    %26 = arith.truncf %25 : vector<64x128xf32> to vector<64x128xbf16>
    %c0_10 = arith.constant 0 : index
    %c0_11 = arith.constant 0 : index
    %27 = vector.load %arg4[%c0_10, %c0_11] : memref<128x384xbf16, #tpu.memory_space<vmem>>, vector<128x384xbf16>
    %cst_12 = arith.constant dense<0.000000e+00> : vector<64x384xf32>
    %28 = tpu.matmul %26, %27, %cst_12 {dimension_numbers = #tpu.dot_dimension_numbers<[1], [0], [0], [1], [0, 0, 1, 1], [], []>} : vector<64x128xbf16>, vector<128x384xbf16>, vector<64x384xf32> -> vector<64x384xf32>
    %c0_13 = arith.constant 0 : index
    %c0_14 = arith.constant 0 : index
    %29 = vector.load %arg5[%c0_13, %c0_14] : memref<1x384xf32, #tpu.memory_space<vmem>>, vector<1x384xf32>
    %30 = vector.broadcast %29 : vector<1x384xf32> to vector<64x384xf32>
    %31 = arith.addf %28, %30 : vector<64x384xf32>
    %32 = vector.extract_strided_slice %31 {offsets = [0, 0], sizes = [64, 32], strides = [1, 1]} : vector<64x384xf32> to vector<64x32xf32>
    %33 = vector.extract_strided_slice %31 {offsets = [0, 128], sizes = [64, 32], strides = [1, 1]} : vector<64x384xf32> to vector<64x32xf32>
    %34 = vector.extract_strided_slice %31 {offsets = [0, 256], sizes = [64, 32], strides = [1, 1]} : vector<64x384xf32> to vector<64x32xf32>
    %35 = arith.truncf %32 : vector<64x32xf32> to vector<64x32xbf16>
    %36 = arith.truncf %33 : vector<64x32xf32> to vector<64x32xbf16>
    %cst_15 = arith.constant dense<0.000000e+00> : vector<64x64xf32>
    %37 = tpu.matmul %35, %36, %cst_15 {dimension_numbers = #tpu.dot_dimension_numbers<[1], [1], [0], [0], [0, 0, 1, 0], [], []>} : vector<64x32xbf16>, vector<64x32xbf16>, vector<64x64xf32> -> vector<64x64xf32>
    %cst_16 = arith.constant 0.176776692 : f32
    %38 = vector.broadcast %cst_16 : f32 to vector<64x64xf32>
    %39 = arith.mulf %37, %38 : vector<64x64xf32>
    %cst_17 = arith.constant dense<0xFF800000> : vector<64xf32>
    %40 = vector.multi_reduction <maximumf>, %39, %cst_17 [1] : vector<64x64xf32> to vector<64xf32>
    %41 = vector.shape_cast %40 : vector<64xf32> to vector<64x1xf32>
    %42 = vector.broadcast %41 : vector<64x1xf32> to vector<64x64xf32>
    %43 = arith.subf %39, %42 : vector<64x64xf32>
    %44 = math.exp %43 : vector<64x64xf32>
    %cst_18 = arith.constant dense<0.000000e+00> : vector<64xf32>
    %45 = vector.multi_reduction <add>, %44, %cst_18 [1] : vector<64x64xf32> to vector<64xf32>
    %46 = vector.shape_cast %45 : vector<64xf32> to vector<64x1xf32>
    %47 = tpu.reciprocal %46 {approx = true} : vector<64x1xf32> -> vector<64x1xf32>
    %48 = vector.broadcast %47 : vector<64x1xf32> to vector<64x64xf32>
    %49 = arith.mulf %44, %48 : vector<64x64xf32>
    %50 = arith.truncf %49 : vector<64x64xf32> to vector<64x64xbf16>
    %51 = arith.truncf %34 : vector<64x32xf32> to vector<64x32xbf16>
    %cst_19 = arith.constant dense<0.000000e+00> : vector<64x32xf32>
    %52 = tpu.matmul %50, %51, %cst_19 {dimension_numbers = #tpu.dot_dimension_numbers<[1], [0], [0], [1], [0, 0, 1, 1], [], []>} : vector<64x64xbf16>, vector<64x32xbf16>, vector<64x32xf32> -> vector<64x32xf32>
    %53 = vector.extract_strided_slice %31 {offsets = [0, 32], sizes = [64, 32], strides = [1, 1]} : vector<64x384xf32> to vector<64x32xf32>
    %54 = vector.extract_strided_slice %31 {offsets = [0, 160], sizes = [64, 32], strides = [1, 1]} : vector<64x384xf32> to vector<64x32xf32>
    %55 = vector.extract_strided_slice %31 {offsets = [0, 288], sizes = [64, 32], strides = [1, 1]} : vector<64x384xf32> to vector<64x32xf32>
    %56 = arith.truncf %53 : vector<64x32xf32> to vector<64x32xbf16>
    %57 = arith.truncf %54 : vector<64x32xf32> to vector<64x32xbf16>
    %cst_20 = arith.constant dense<0.000000e+00> : vector<64x64xf32>
    %58 = tpu.matmul %56, %57, %cst_20 {dimension_numbers = #tpu.dot_dimension_numbers<[1], [1], [0], [0], [0, 0, 1, 0], [], []>} : vector<64x32xbf16>, vector<64x32xbf16>, vector<64x64xf32> -> vector<64x64xf32>
    %cst_21 = arith.constant 0.176776692 : f32
    %59 = vector.broadcast %cst_21 : f32 to vector<64x64xf32>
    %60 = arith.mulf %58, %59 : vector<64x64xf32>
    %cst_22 = arith.constant dense<0xFF800000> : vector<64xf32>
    %61 = vector.multi_reduction <maximumf>, %60, %cst_22 [1] : vector<64x64xf32> to vector<64xf32>
    %62 = vector.shape_cast %61 : vector<64xf32> to vector<64x1xf32>
    %63 = vector.broadcast %62 : vector<64x1xf32> to vector<64x64xf32>
    %64 = arith.subf %60, %63 : vector<64x64xf32>
    %65 = math.exp %64 : vector<64x64xf32>
    %cst_23 = arith.constant dense<0.000000e+00> : vector<64xf32>
    %66 = vector.multi_reduction <add>, %65, %cst_23 [1] : vector<64x64xf32> to vector<64xf32>
    %67 = vector.shape_cast %66 : vector<64xf32> to vector<64x1xf32>
    %68 = tpu.reciprocal %67 {approx = true} : vector<64x1xf32> -> vector<64x1xf32>
    %69 = vector.broadcast %68 : vector<64x1xf32> to vector<64x64xf32>
    %70 = arith.mulf %65, %69 : vector<64x64xf32>
    %71 = arith.truncf %70 : vector<64x64xf32> to vector<64x64xbf16>
    %72 = arith.truncf %55 : vector<64x32xf32> to vector<64x32xbf16>
    %cst_24 = arith.constant dense<0.000000e+00> : vector<64x32xf32>
    %73 = tpu.matmul %71, %72, %cst_24 {dimension_numbers = #tpu.dot_dimension_numbers<[1], [0], [0], [1], [0, 0, 1, 1], [], []>} : vector<64x64xbf16>, vector<64x32xbf16>, vector<64x32xf32> -> vector<64x32xf32>
    %74 = vector.extract_strided_slice %31 {offsets = [0, 64], sizes = [64, 32], strides = [1, 1]} : vector<64x384xf32> to vector<64x32xf32>
    %75 = vector.extract_strided_slice %31 {offsets = [0, 192], sizes = [64, 32], strides = [1, 1]} : vector<64x384xf32> to vector<64x32xf32>
    %76 = vector.extract_strided_slice %31 {offsets = [0, 320], sizes = [64, 32], strides = [1, 1]} : vector<64x384xf32> to vector<64x32xf32>
    %77 = arith.truncf %74 : vector<64x32xf32> to vector<64x32xbf16>
    %78 = arith.truncf %75 : vector<64x32xf32> to vector<64x32xbf16>
    %cst_25 = arith.constant dense<0.000000e+00> : vector<64x64xf32>
    %79 = tpu.matmul %77, %78, %cst_25 {dimension_numbers = #tpu.dot_dimension_numbers<[1], [1], [0], [0], [0, 0, 1, 0], [], []>} : vector<64x32xbf16>, vector<64x32xbf16>, vector<64x64xf32> -> vector<64x64xf32>
    %cst_26 = arith.constant 0.176776692 : f32
    %80 = vector.broadcast %cst_26 : f32 to vector<64x64xf32>
    %81 = arith.mulf %79, %80 : vector<64x64xf32>
    %cst_27 = arith.constant dense<0xFF800000> : vector<64xf32>
    %82 = vector.multi_reduction <maximumf>, %81, %cst_27 [1] : vector<64x64xf32> to vector<64xf32>
    %83 = vector.shape_cast %82 : vector<64xf32> to vector<64x1xf32>
    %84 = vector.broadcast %83 : vector<64x1xf32> to vector<64x64xf32>
    %85 = arith.subf %81, %84 : vector<64x64xf32>
    %86 = math.exp %85 : vector<64x64xf32>
    %cst_28 = arith.constant dense<0.000000e+00> : vector<64xf32>
    %87 = vector.multi_reduction <add>, %86, %cst_28 [1] : vector<64x64xf32> to vector<64xf32>
    %88 = vector.shape_cast %87 : vector<64xf32> to vector<64x1xf32>
    %89 = tpu.reciprocal %88 {approx = true} : vector<64x1xf32> -> vector<64x1xf32>
    %90 = vector.broadcast %89 : vector<64x1xf32> to vector<64x64xf32>
    %91 = arith.mulf %86, %90 : vector<64x64xf32>
    %92 = arith.truncf %91 : vector<64x64xf32> to vector<64x64xbf16>
    %93 = arith.truncf %76 : vector<64x32xf32> to vector<64x32xbf16>
    %cst_29 = arith.constant dense<0.000000e+00> : vector<64x32xf32>
    %94 = tpu.matmul %92, %93, %cst_29 {dimension_numbers = #tpu.dot_dimension_numbers<[1], [0], [0], [1], [0, 0, 1, 1], [], []>} : vector<64x64xbf16>, vector<64x32xbf16>, vector<64x32xf32> -> vector<64x32xf32>
    %95 = vector.extract_strided_slice %31 {offsets = [0, 96], sizes = [64, 32], strides = [1, 1]} : vector<64x384xf32> to vector<64x32xf32>
    %96 = vector.extract_strided_slice %31 {offsets = [0, 224], sizes = [64, 32], strides = [1, 1]} : vector<64x384xf32> to vector<64x32xf32>
    %97 = vector.extract_strided_slice %31 {offsets = [0, 352], sizes = [64, 32], strides = [1, 1]} : vector<64x384xf32> to vector<64x32xf32>
    %98 = arith.truncf %95 : vector<64x32xf32> to vector<64x32xbf16>
    %99 = arith.truncf %96 : vector<64x32xf32> to vector<64x32xbf16>
    %cst_30 = arith.constant dense<0.000000e+00> : vector<64x64xf32>
    %100 = tpu.matmul %98, %99, %cst_30 {dimension_numbers = #tpu.dot_dimension_numbers<[1], [1], [0], [0], [0, 0, 1, 0], [], []>} : vector<64x32xbf16>, vector<64x32xbf16>, vector<64x64xf32> -> vector<64x64xf32>
    %cst_31 = arith.constant 0.176776692 : f32
    %101 = vector.broadcast %cst_31 : f32 to vector<64x64xf32>
    %102 = arith.mulf %100, %101 : vector<64x64xf32>
    %cst_32 = arith.constant dense<0xFF800000> : vector<64xf32>
    %103 = vector.multi_reduction <maximumf>, %102, %cst_32 [1] : vector<64x64xf32> to vector<64xf32>
    %104 = vector.shape_cast %103 : vector<64xf32> to vector<64x1xf32>
    %105 = vector.broadcast %104 : vector<64x1xf32> to vector<64x64xf32>
    %106 = arith.subf %102, %105 : vector<64x64xf32>
    %107 = math.exp %106 : vector<64x64xf32>
    %cst_33 = arith.constant dense<0.000000e+00> : vector<64xf32>
    %108 = vector.multi_reduction <add>, %107, %cst_33 [1] : vector<64x64xf32> to vector<64xf32>
    %109 = vector.shape_cast %108 : vector<64xf32> to vector<64x1xf32>
    %110 = tpu.reciprocal %109 {approx = true} : vector<64x1xf32> -> vector<64x1xf32>
    %111 = vector.broadcast %110 : vector<64x1xf32> to vector<64x64xf32>
    %112 = arith.mulf %107, %111 : vector<64x64xf32>
    %113 = arith.truncf %112 : vector<64x64xf32> to vector<64x64xbf16>
    %114 = arith.truncf %97 : vector<64x32xf32> to vector<64x32xbf16>
    %cst_34 = arith.constant dense<0.000000e+00> : vector<64x32xf32>
    %115 = tpu.matmul %113, %114, %cst_34 {dimension_numbers = #tpu.dot_dimension_numbers<[1], [0], [0], [1], [0, 0, 1, 1], [], []>} : vector<64x64xbf16>, vector<64x32xbf16>, vector<64x32xf32> -> vector<64x32xf32>
    %116 = tpu.concatenate %52, %73, %94, %115 in 1 : vector<64x32xf32>, vector<64x32xf32>, vector<64x32xf32>, vector<64x32xf32> -> vector<64x128xf32>
    %117 = arith.truncf %116 : vector<64x128xf32> to vector<64x128xbf16>
    %c0_35 = arith.constant 0 : index
    %c0_36 = arith.constant 0 : index
    %118 = vector.load %arg6[%c0_35, %c0_36] : memref<128x128xbf16, #tpu.memory_space<vmem>>, vector<128x128xbf16>
    %cst_37 = arith.constant dense<0.000000e+00> : vector<64x128xf32>
    %119 = tpu.matmul %117, %118, %cst_37 {dimension_numbers = #tpu.dot_dimension_numbers<[1], [0], [0], [1], [0, 0, 1, 1], [], []>} : vector<64x128xbf16>, vector<128x128xbf16>, vector<64x128xf32> -> vector<64x128xf32>
    %c0_38 = arith.constant 0 : index
    %c0_39 = arith.constant 0 : index
    %120 = vector.load %arg7[%c0_38, %c0_39] : memref<1x128xf32, #tpu.memory_space<vmem>>, vector<1x128xf32>
    %121 = vector.broadcast %120 : vector<1x128xf32> to vector<64x128xf32>
    %122 = arith.addf %119, %121 : vector<64x128xf32>
    %123 = arith.addf %1, %122 : vector<64x128xf32>
    %c0_40 = arith.constant 0 : index
    %c0_41 = arith.constant 0 : index
    %c0_42 = arith.constant 0 : index
    %124 = vector.load %arg8[%c0_40, %c0_41, %c0_42] : memref<1x64x128xf32, #tpu.memory_space<vmem>>, vector<1x64x128xf32>
    %125 = vector.shape_cast %124 : vector<1x64x128xf32> to vector<64x128xf32>
    %126 = vector.shape_cast %123 : vector<64x128xf32> to vector<1x64x128xf32>
    tpu.vector_store %arg8[%c0_40, %c0_41, %c0_42], %126 {strides = array<i32>} : memref<1x64x128xf32, #tpu.memory_space<vmem>>, vector<1x64x128xf32>,
    return
  }
  func.func @transform_0(%arg0: i32) -> (i32, i32, i32) {
    %c0_i32 = arith.constant 0 : i32
    %c0_i32_0 = arith.constant 0 : i32
    %c0_i32_1 = arith.constant 0 : i32
    return %arg0, %c0_i32, %c0_i32_0 : i32, i32, i32
  }
  func.func @transform_1(%arg0: i32) -> (i32, i32) {
    %c0_i32 = arith.constant 0 : i32
    %c0_i32_0 = arith.constant 0 : i32
    %c0_i32_1 = arith.constant 0 : i32
    return %c0_i32, %c0_i32_0 : i32, i32
  }
  func.func @transform_2(%arg0: i32) -> (i32, i32) {
    %c0_i32 = arith.constant 0 : i32
    %c0_i32_0 = arith.constant 0 : i32
    %c0_i32_1 = arith.constant 0 : i32
    return %c0_i32, %c0_i32_0 : i32, i32
  }
  func.func @transform_3(%arg0: i32) -> (i32, i32) {
    %c0_i32 = arith.constant 0 : i32
    %c0_i32_0 = arith.constant 0 : i32
    %c0_i32_1 = arith.constant 0 : i32
    return %c0_i32, %c0_i32_0 : i32, i32
  }
  func.func @transform_4(%arg0: i32) -> (i32, i32) {
    %c0_i32 = arith.constant 0 : i32
    %c0_i32_0 = arith.constant 0 : i32
    %c0_i32_1 = arith.constant 0 : i32
    return %c0_i32, %c0_i32_0 : i32, i32
  }
  func.func @transform_5(%arg0: i32) -> (i32, i32) {
    %c0_i32 = arith.constant 0 : i32
    %c0_i32_0 = arith.constant 0 : i32
    %c0_i32_1 = arith.constant 0 : i32
    return %c0_i32, %c0_i32_0 : i32, i32
  }
  func.func @transform_6(%arg0: i32) -> (i32, i32) {
    %c0_i32 = arith.constant 0 : i32
    %c0_i32_0 = arith.constant 0 : i32
    %c0_i32_1 = arith.constant 0 : i32
    return %c0_i32, %c0_i32_0 : i32, i32
  }
  func.func @transform_7(%arg0: i32) -> (i32, i32, i32) {
    %c0_i32 = arith.constant 0 : i32
    %c0_i32_0 = arith.constant 0 : i32
    %c0_i32_1 = arith.constant 0 : i32
    return %arg0, %c0_i32, %c0_i32_0 : i32, i32, i32
  }
}

module attributes {stable_mosaic.version = 11 : i64} {
  func.func @_final_ln_kernel(%arg0: i32, %arg1: memref<1x64x128xf32, #tpu.memory_space<vmem>>, %arg2: memref<1x128xf32, #tpu.memory_space<vmem>>, %arg3: memref<1x128xf32, #tpu.memory_space<vmem>>, %arg4: memref<1x64x128xf32, #tpu.memory_space<vmem>>) attributes {dimension_semantics = [#tpu.dimension_semantics<parallel>], iteration_bounds = array<i64: 2>, scalar_prefetch = 0 : i64, scratch_operands = 0 : i64, tpu.core_type = #tpu.core_type<tc>, window_params = [{transform_indices = @transform_0, window_bounds = array<i64: 1, 64, 128>}, {pipeline_mode = #tpu.pipeline_mode<synchronous>, transform_indices = @transform_1, window_bounds = array<i64: 1, 128>}, {pipeline_mode = #tpu.pipeline_mode<synchronous>, transform_indices = @transform_2, window_bounds = array<i64: 1, 128>}, {transform_indices = @transform_3, window_bounds = array<i64: 1, 64, 128>}]} {
    %c0 = arith.constant 0 : index
    %c0_0 = arith.constant 0 : index
    %c0_1 = arith.constant 0 : index
    %0 = vector.load %arg1[%c0, %c0_0, %c0_1] : memref<1x64x128xf32, #tpu.memory_space<vmem>>, vector<1x64x128xf32>
    %1 = vector.shape_cast %0 : vector<1x64x128xf32> to vector<64x128xf32>
    %c0_2 = arith.constant 0 : index
    %c0_3 = arith.constant 0 : index
    %2 = vector.load %arg2[%c0_2, %c0_3] : memref<1x128xf32, #tpu.memory_space<vmem>>, vector<1x128xf32>
    %c0_4 = arith.constant 0 : index
    %c0_5 = arith.constant 0 : index
    %3 = vector.load %arg3[%c0_4, %c0_5] : memref<1x128xf32, #tpu.memory_space<vmem>>, vector<1x128xf32>
    %cst = arith.constant dense<0.000000e+00> : vector<64xf32>
    %4 = vector.multi_reduction <add>, %1, %cst [1] : vector<64x128xf32> to vector<64xf32>
    %5 = vector.shape_cast %4 : vector<64xf32> to vector<64x1xf32>
    %cst_6 = arith.constant 1.280000e+02 : f32
    %6 = vector.broadcast %cst_6 : f32 to vector<64x1xf32>
    %7 = arith.divf %5, %6 : vector<64x1xf32>
    %8 = vector.broadcast %7 : vector<64x1xf32> to vector<64x128xf32>
    %9 = arith.subf %1, %8 : vector<64x128xf32>
    %10 = arith.mulf %9, %9 : vector<64x128xf32>
    %cst_7 = arith.constant dense<0.000000e+00> : vector<64xf32>
    %11 = vector.multi_reduction <add>, %10, %cst_7 [1] : vector<64x128xf32> to vector<64xf32>
    %12 = vector.shape_cast %11 : vector<64xf32> to vector<64x1xf32>
    %cst_8 = arith.constant 1.280000e+02 : f32
    %13 = vector.broadcast %cst_8 : f32 to vector<64x1xf32>
    %14 = arith.divf %12, %13 : vector<64x1xf32>
    %15 = vector.broadcast %7 : vector<64x1xf32> to vector<64x128xf32>
    %16 = arith.subf %1, %15 : vector<64x128xf32>
    %cst_9 = arith.constant 9.99999974E-6 : f32
    %17 = vector.broadcast %cst_9 : f32 to vector<64x1xf32>
    %18 = arith.addf %14, %17 : vector<64x1xf32>
    %19 = math.rsqrt %18 : vector<64x1xf32>
    %20 = vector.broadcast %19 : vector<64x1xf32> to vector<64x128xf32>
    %21 = arith.mulf %16, %20 : vector<64x128xf32>
    %22 = vector.broadcast %2 : vector<1x128xf32> to vector<64x128xf32>
    %23 = arith.mulf %21, %22 : vector<64x128xf32>
    %24 = vector.broadcast %3 : vector<1x128xf32> to vector<64x128xf32>
    %25 = arith.addf %23, %24 : vector<64x128xf32>
    %c0_10 = arith.constant 0 : index
    %c0_11 = arith.constant 0 : index
    %c0_12 = arith.constant 0 : index
    %26 = vector.load %arg4[%c0_10, %c0_11, %c0_12] : memref<1x64x128xf32, #tpu.memory_space<vmem>>, vector<1x64x128xf32>
    %27 = vector.shape_cast %26 : vector<1x64x128xf32> to vector<64x128xf32>
    %28 = vector.shape_cast %25 : vector<64x128xf32> to vector<1x64x128xf32>
    tpu.vector_store %arg4[%c0_10, %c0_11, %c0_12], %28 {strides = array<i32>} : memref<1x64x128xf32, #tpu.memory_space<vmem>>, vector<1x64x128xf32>,
    return
  }
  func.func @transform_0(%arg0: i32) -> (i32, i32, i32) {
    %c0_i32 = arith.constant 0 : i32
    %c0_i32_0 = arith.constant 0 : i32
    %c0_i32_1 = arith.constant 0 : i32
    return %arg0, %c0_i32, %c0_i32_0 : i32, i32, i32
  }
  func.func @transform_1(%arg0: i32) -> (i32, i32) {
    %c0_i32 = arith.constant 0 : i32
    %c0_i32_0 = arith.constant 0 : i32
    %c0_i32_1 = arith.constant 0 : i32
    return %c0_i32, %c0_i32_0 : i32, i32
  }
  func.func @transform_2(%arg0: i32) -> (i32, i32) {
    %c0_i32 = arith.constant 0 : i32
    %c0_i32_0 = arith.constant 0 : i32
    %c0_i32_1 = arith.constant 0 : i32
    return %c0_i32, %c0_i32_0 : i32, i32
  }
  func.func @transform_3(%arg0: i32) -> (i32, i32, i32) {
    %c0_i32 = arith.constant 0 : i32
    %c0_i32_0 = arith.constant 0 : i32
    %c0_i32_1 = arith.constant 0 : i32
    return %arg0, %c0_i32, %c0_i32_0 : i32, i32, i32
  }
}

module attributes {stable_mosaic.version = 11 : i64} {
  func.func @_ffn_block_kernel(%arg0: i32, %arg1: memref<1x64x128xf32, #tpu.memory_space<vmem>>, %arg2: memref<1x128xf32, #tpu.memory_space<vmem>>, %arg3: memref<1x128xf32, #tpu.memory_space<vmem>>, %arg4: memref<128x256xbf16, #tpu.memory_space<vmem>>, %arg5: memref<1x256xf32, #tpu.memory_space<vmem>>, %arg6: memref<256x128xbf16, #tpu.memory_space<vmem>>, %arg7: memref<1x128xf32, #tpu.memory_space<vmem>>, %arg8: memref<1x64x128xf32, #tpu.memory_space<vmem>>) attributes {dimension_semantics = [#tpu.dimension_semantics<parallel>], iteration_bounds = array<i64: 2>, scalar_prefetch = 0 : i64, scratch_operands = 0 : i64, tpu.core_type = #tpu.core_type<tc>, window_params = [{transform_indices = @transform_0, window_bounds = array<i64: 1, 64, 128>}, {pipeline_mode = #tpu.pipeline_mode<synchronous>, transform_indices = @transform_1, window_bounds = array<i64: 1, 128>}, {pipeline_mode = #tpu.pipeline_mode<synchronous>, transform_indices = @transform_2, window_bounds = array<i64: 1, 128>}, {pipeline_mode = #tpu.pipeline_mode<synchronous>, transform_indices = @transform_3, window_bounds = array<i64: 128, 256>}, {pipeline_mode = #tpu.pipeline_mode<synchronous>, transform_indices = @transform_4, window_bounds = array<i64: 1, 256>}, {pipeline_mode = #tpu.pipeline_mode<synchronous>, transform_indices = @transform_5, window_bounds = array<i64: 256, 128>}, {pipeline_mode = #tpu.pipeline_mode<synchronous>, transform_indices = @transform_6, window_bounds = array<i64: 1, 128>}, {transform_indices = @transform_7, window_bounds = array<i64: 1, 64, 128>}]} {
    %c0 = arith.constant 0 : index
    %c0_0 = arith.constant 0 : index
    %c0_1 = arith.constant 0 : index
    %0 = vector.load %arg1[%c0, %c0_0, %c0_1] : memref<1x64x128xf32, #tpu.memory_space<vmem>>, vector<1x64x128xf32>
    %1 = vector.shape_cast %0 : vector<1x64x128xf32> to vector<64x128xf32>
    %c0_2 = arith.constant 0 : index
    %c0_3 = arith.constant 0 : index
    %2 = vector.load %arg2[%c0_2, %c0_3] : memref<1x128xf32, #tpu.memory_space<vmem>>, vector<1x128xf32>
    %c0_4 = arith.constant 0 : index
    %c0_5 = arith.constant 0 : index
    %3 = vector.load %arg3[%c0_4, %c0_5] : memref<1x128xf32, #tpu.memory_space<vmem>>, vector<1x128xf32>
    %cst = arith.constant dense<0.000000e+00> : vector<64xf32>
    %4 = vector.multi_reduction <add>, %1, %cst [1] : vector<64x128xf32> to vector<64xf32>
    %5 = vector.shape_cast %4 : vector<64xf32> to vector<64x1xf32>
    %cst_6 = arith.constant 1.280000e+02 : f32
    %6 = vector.broadcast %cst_6 : f32 to vector<64x1xf32>
    %7 = arith.divf %5, %6 : vector<64x1xf32>
    %8 = vector.broadcast %7 : vector<64x1xf32> to vector<64x128xf32>
    %9 = arith.subf %1, %8 : vector<64x128xf32>
    %10 = arith.mulf %9, %9 : vector<64x128xf32>
    %cst_7 = arith.constant dense<0.000000e+00> : vector<64xf32>
    %11 = vector.multi_reduction <add>, %10, %cst_7 [1] : vector<64x128xf32> to vector<64xf32>
    %12 = vector.shape_cast %11 : vector<64xf32> to vector<64x1xf32>
    %cst_8 = arith.constant 1.280000e+02 : f32
    %13 = vector.broadcast %cst_8 : f32 to vector<64x1xf32>
    %14 = arith.divf %12, %13 : vector<64x1xf32>
    %15 = vector.broadcast %7 : vector<64x1xf32> to vector<64x128xf32>
    %16 = arith.subf %1, %15 : vector<64x128xf32>
    %cst_9 = arith.constant 9.99999974E-6 : f32
    %17 = vector.broadcast %cst_9 : f32 to vector<64x1xf32>
    %18 = arith.addf %14, %17 : vector<64x1xf32>
    %19 = math.rsqrt %18 : vector<64x1xf32>
    %20 = vector.broadcast %19 : vector<64x1xf32> to vector<64x128xf32>
    %21 = arith.mulf %16, %20 : vector<64x128xf32>
    %22 = vector.broadcast %2 : vector<1x128xf32> to vector<64x128xf32>
    %23 = arith.mulf %21, %22 : vector<64x128xf32>
    %24 = vector.broadcast %3 : vector<1x128xf32> to vector<64x128xf32>
    %25 = arith.addf %23, %24 : vector<64x128xf32>
    %26 = arith.truncf %25 : vector<64x128xf32> to vector<64x128xbf16>
    %c0_10 = arith.constant 0 : index
    %c0_11 = arith.constant 0 : index
    %27 = vector.load %arg4[%c0_10, %c0_11] : memref<128x256xbf16, #tpu.memory_space<vmem>>, vector<128x256xbf16>
    %cst_12 = arith.constant dense<0.000000e+00> : vector<64x256xf32>
    %28 = tpu.matmul %26, %27, %cst_12 {dimension_numbers = #tpu.dot_dimension_numbers<[1], [0], [0], [1], [0, 0, 1, 1], [], []>} : vector<64x128xbf16>, vector<128x256xbf16>, vector<64x256xf32> -> vector<64x256xf32>
    %c0_13 = arith.constant 0 : index
    %c0_14 = arith.constant 0 : index
    %29 = vector.load %arg5[%c0_13, %c0_14] : memref<1x256xf32, #tpu.memory_space<vmem>>, vector<1x256xf32>
    %30 = vector.broadcast %29 : vector<1x256xf32> to vector<64x256xf32>
    %31 = arith.addf %28, %30 : vector<64x256xf32>
    %32 = arith.mulf %31, %31 : vector<64x256xf32>
    %33 = arith.mulf %31, %32 : vector<64x256xf32>
    %cst_15 = arith.constant 4.471500e-02 : f32
    %34 = vector.broadcast %cst_15 : f32 to vector<64x256xf32>
    %35 = arith.mulf %34, %33 : vector<64x256xf32>
    %36 = arith.addf %31, %35 : vector<64x256xf32>
    %cst_16 = arith.constant 0.797884583 : f32
    %37 = vector.broadcast %cst_16 : f32 to vector<64x256xf32>
    %38 = arith.mulf %37, %36 : vector<64x256xf32>
    %39 = math.tanh %38 : vector<64x256xf32>
    %cst_17 = arith.constant 1.000000e+00 : f32
    %40 = vector.broadcast %cst_17 : f32 to vector<64x256xf32>
    %41 = arith.addf %40, %39 : vector<64x256xf32>
    %cst_18 = arith.constant 5.000000e-01 : f32
    %42 = vector.broadcast %cst_18 : f32 to vector<64x256xf32>
    %43 = arith.mulf %42, %41 : vector<64x256xf32>
    %44 = arith.mulf %31, %43 : vector<64x256xf32>
    %45 = arith.truncf %44 : vector<64x256xf32> to vector<64x256xbf16>
    %c0_19 = arith.constant 0 : index
    %c0_20 = arith.constant 0 : index
    %46 = vector.load %arg6[%c0_19, %c0_20] : memref<256x128xbf16, #tpu.memory_space<vmem>>, vector<256x128xbf16>
    %cst_21 = arith.constant dense<0.000000e+00> : vector<64x128xf32>
    %47 = tpu.matmul %45, %46, %cst_21 {dimension_numbers = #tpu.dot_dimension_numbers<[1], [0], [0], [1], [0, 0, 1, 1], [], []>} : vector<64x256xbf16>, vector<256x128xbf16>, vector<64x128xf32> -> vector<64x128xf32>
    %c0_22 = arith.constant 0 : index
    %c0_23 = arith.constant 0 : index
    %48 = vector.load %arg7[%c0_22, %c0_23] : memref<1x128xf32, #tpu.memory_space<vmem>>, vector<1x128xf32>
    %49 = vector.broadcast %48 : vector<1x128xf32> to vector<64x128xf32>
    %50 = arith.addf %47, %49 : vector<64x128xf32>
    %51 = arith.addf %1, %50 : vector<64x128xf32>
    %c0_24 = arith.constant 0 : index
    %c0_25 = arith.constant 0 : index
    %c0_26 = arith.constant 0 : index
    %52 = vector.load %arg8[%c0_24, %c0_25, %c0_26] : memref<1x64x128xf32, #tpu.memory_space<vmem>>, vector<1x64x128xf32>
    %53 = vector.shape_cast %52 : vector<1x64x128xf32> to vector<64x128xf32>
    %54 = vector.shape_cast %51 : vector<64x128xf32> to vector<1x64x128xf32>
    tpu.vector_store %arg8[%c0_24, %c0_25, %c0_26], %54 {strides = array<i32>} : memref<1x64x128xf32, #tpu.memory_space<vmem>>, vector<1x64x128xf32>,
    return
  }
  func.func @transform_0(%arg0: i32) -> (i32, i32, i32) {
    %c0_i32 = arith.constant 0 : i32
    %c0_i32_0 = arith.constant 0 : i32
    %c0_i32_1 = arith.constant 0 : i32
    return %arg0, %c0_i32, %c0_i32_0 : i32, i32, i32
  }
  func.func @transform_1(%arg0: i32) -> (i32, i32) {
    %c0_i32 = arith.constant 0 : i32
    %c0_i32_0 = arith.constant 0 : i32
    %c0_i32_1 = arith.constant 0 : i32
    return %c0_i32, %c0_i32_0 : i32, i32
  }
  func.func @transform_2(%arg0: i32) -> (i32, i32) {
    %c0_i32 = arith.constant 0 : i32
    %c0_i32_0 = arith.constant 0 : i32
    %c0_i32_1 = arith.constant 0 : i32
    return %c0_i32, %c0_i32_0 : i32, i32
  }
  func.func @transform_3(%arg0: i32) -> (i32, i32) {
    %c0_i32 = arith.constant 0 : i32
    %c0_i32_0 = arith.constant 0 : i32
    %c0_i32_1 = arith.constant 0 : i32
    return %c0_i32, %c0_i32_0 : i32, i32
  }
  func.func @transform_4(%arg0: i32) -> (i32, i32) {
    %c0_i32 = arith.constant 0 : i32
    %c0_i32_0 = arith.constant 0 : i32
    %c0_i32_1 = arith.constant 0 : i32
    return %c0_i32, %c0_i32_0 : i32, i32
  }
  func.func @transform_5(%arg0: i32) -> (i32, i32) {
    %c0_i32 = arith.constant 0 : i32
    %c0_i32_0 = arith.constant 0 : i32
    %c0_i32_1 = arith.constant 0 : i32
    return %c0_i32, %c0_i32_0 : i32, i32
  }
  func.func @transform_6(%arg0: i32) -> (i32, i32) {
    %c0_i32 = arith.constant 0 : i32
    %c0_i32_0 = arith.constant 0 : i32
    %c0_i32_1 = arith.constant 0 : i32
    return %c0_i32, %c0_i32_0 : i32, i32
  }
  func.func @transform_7(%arg0: i32) -> (i32, i32, i32) {
    %c0_i32 = arith.constant 0 : i32
    %c0_i32_0 = arith.constant 0 : i32
    %c0_i32_1 = arith.constant 0 : i32
    return %arg0, %c0_i32, %c0_i32_0 : i32, i32, i32
  }
}

</mosaic_0001>

<llo_original>
// kernel: _lambda_.8
$region0: #{_lambda_.8}
  #allocation0 [shape = 'u32[]', space=smem, size = 0x4, offset = 0x4, fixed_abs, tag = 'smem constant byte address 0x4 - core index']
  #allocation1 [shape = 'u32[144,128]{1,0:T(1,128)}', space=vmem, size = 0x12000, scoped, tag = 'internal scratch']
  %s0 = inlined_call_operand.vmem [shape: f32[2,256,4], index: 0, kind: input, shape index: {}]
  %s1 = inlined_call_operand.vmem [shape: f32[4,128], index: 1, kind: input, shape index: {}]
  %s2 = inlined_call_operand.vmem [shape: f32[1,128], index: 2, kind: input, shape index: {}, may-alias: {2,4}]
  %s3 = inlined_call_operand.vmem [shape: f32[1,128], index: 3, kind: input, shape index: {}]
  %s4 = inlined_call_operand.vmem [shape: f32[1,128], index: 4, kind: input, shape index: {}, may-alias: {2,4}]
  %s5 = inlined_call_operand.vmem [shape: f32[2,256,128], index: 5, kind: output, shape index: {}]
  %s6 = sld [smem:[#allocation0]]
  $region53: #{_lambda_.8} parent=0
    _
  %s8 = ssub.s32 1, %s6
  %s9 = scalar_select 0, %s8, %s6
  loop: start=0, step=1, limit=4
  $region2: #{_lambda_.8} parent=0 // loop_pre_header
    _
  $region3: #{_lambda_.8} parent=0 // loop_header
    %s11 = sphi 0, %s15
    %p12 = scmp.ge.s32.totalorder %s11, 4
    %s21 = sphi 0, %s23
    %s24 = sphi 0, %s21
    %s25 = sphi 0, %s24
    %s41 = sphi 0, %s25
    %s45 = sphi 0, %s45
    %s47 = sphi 0, %s45
    %s48 = sphi 0, %s47
    %s62 = sphi 0, %s48
    %s66 = sphi 0, %s66
    %s68 = sphi 0, %s66
    %s69 = sphi 0, %s68
    %s83 = sphi 0, %s69
    %s87 = sphi 0, %s87
    %s89 = sphi 0, %s87
    %s90 = sphi 0, %s89
    %s104 = sphi 0, %s90
    %s108 = sphi 0, %s108
    %s110 = sphi 0, %s108
    %s111 = sphi 0, %s110
    %s125 = sphi 0, %s111
    %s131 = sphi 0, %s133
    %s134 = sphi 0, %s131
    %s135 = sphi 0, %s134
    %s151 = sphi 0, %s135
  $region4: #{_lambda_.8} parent=0 // loop_header_branch
    %14 = sbr.rel (%p12) target = $region8
  $region5: #{_lambda_.8} parent=0 // loop_body
    %s16 = ssub.s32 %s11, 1
    %s17 = ssub.s32 %s11, 2
    %s18 = sadd.s32 %s11, 1
    %s19 = ssub.s32 %s11, %s18
    %p20 = scmp.eq.s32.totalorder %s19, 0
    %s22 = sadd.s32 %s21, 1
    %s23 = scalar_select %p20, %s21, %s22
    %p26 = pneg %p20
    %p27 = scmp.eq.s32.totalorder %s11, 1
    %p28 = por %p26, %p27
    %p29 = scmp.ne.s32.totalorder %s21, %s24
    %p30 = scmp.eq.s32.totalorder %s11, 0
    %p31 = por %p29, %p30
    %p32 = scmp.ne.s32.totalorder %s21, %s24
    %p33 = scmp.eq.s32.totalorder %s16, 1
    %p34 = por %p32, %p33
    %p35 = scmp.ne.s32.totalorder %s24, %s25
    %p36 = scmp.eq.s32.totalorder %s16, 0
    %p37 = por %p35, %p36
    %p38 = scmp.ne.s32.totalorder %s24, %s25
    %p39 = scmp.eq.s32.totalorder %s17, 1
    %p40 = por %p38, %p39
    %p42 = scmp.ne.s32.totalorder %s25, %s41
    %p43 = scmp.eq.s32.totalorder %s17, 0
    %p44 = por %p42, %p43
    %s46 = sadd.s32 %s45, 1
    %p49 = scmp.eq.s32.totalorder %s11, 1
    %p50 = scmp.ne.s32.totalorder %s45, %s47
    %p51 = scmp.eq.s32.totalorder %s11, 0
    %p52 = por %p50, %p51
    %p53 = scmp.ne.s32.totalorder %s45, %s47
    %p54 = scmp.eq.s32.totalorder %s16, 1
    %p55 = por %p53, %p54
    %p56 = scmp.ne.s32.totalorder %s47, %s48
    %p57 = scmp.eq.s32.totalorder %s16, 0
    %p58 = por %p56, %p57
    %p59 = scmp.ne.s32.totalorder %s47, %s48
    %p60 = scmp.eq.s32.totalorder %s17, 1
    %p61 = por %p59, %p60
    %p63 = scmp.ne.s32.totalorder %s48, %s62
    %p64 = scmp.eq.s32.totalorder %s17, 0
    %p65 = por %p63, %p64
    %s67 = sadd.s32 %s66, 1
    %p70 = scmp.eq.s32.totalorder %s11, 1
    %p71 = scmp.ne.s32.totalorder %s66, %s68
    %p72 = scmp.eq.s32.totalorder %s11, 0
    %p73 = por %p71, %p72
    %p74 = scmp.ne.s32.totalorder %s66, %s68
    %p75 = scmp.eq.s32.totalorder %s16, 1
    %p76 = por %p74, %p75
    %p77 = scmp.ne.s32.totalorder %s68, %s69
    %p78 = scmp.eq.s32.totalorder %s16, 0
    %p79 = por %p77, %p78
    %p80 = scmp.ne.s32.totalorder %s68, %s69
    %p81 = scmp.eq.s32.totalorder %s17, 1
    %p82 = por %p80, %p81
    %p84 = scmp.ne.s32.totalorder %s69, %s83
    %p85 = scmp.eq.s32.totalorder %s17, 0
    %p86 = por %p84, %p85
    %s88 = sadd.s32 %s87, 1
    %p91 = scmp.eq.s32.totalorder %s11, 1
    %p92 = scmp.ne.s32.totalorder %s87, %s89
    %p93 = scmp.eq.s32.totalorder %s11, 0
    %p94 = por %p92, %p93
    %p95 = scmp.ne.s32.totalorder %s87, %s89
    %p96 = scmp.eq.s32.totalorder %s16, 1
    %p97 = por %p95, %p96
    %p98 = scmp.ne.s32.totalorder %s89, %s90
    %p99 = scmp.eq.s32.totalorder %s16, 0
    %p100 = por %p98, %p99
    %p101 = scmp.ne.s32.totalorder %s89, %s90
    %p102 = scmp.eq.s32.totalorder %s17, 1
    %p103 = por %p101, %p102
    %p105 = scmp.ne.s32.totalorder %s90, %s104
    %p106 = scmp.eq.s32.totalorder %s17, 0
    %p107 = por %p105, %p106
    %s109 = sadd.s32 %s108, 1
    %p112 = scmp.eq.s32.totalorder %s11, 1
    %p113 = scmp.ne.s32.totalorder %s108, %s110
    %p114 = scmp.eq.s32.totalorder %s11, 0
    %p115 = por %p113, %p114
    %p116 = scmp.ne.s32.totalorder %s108, %s110
    %p117 = scmp.eq.s32.totalorder %s16, 1
    %p118 = por %p116, %p117
    %p119 = scmp.ne.s32.totalorder %s110, %s111
    %p120 = scmp.eq.s32.totalorder %s16, 0
    %p121 = por %p119, %p120
    %p122 = scmp.ne.s32.totalorder %s110, %s111
    %p123 = scmp.eq.s32.totalorder %s17, 1
    %p124 = por %p122, %p123
    %p126 = scmp.ne.s32.totalorder %s111, %s125
    %p127 = scmp.eq.s32.totalorder %s17, 0
    %p128 = por %p126, %p127
    %s129 = ssub.s32 %s11, %s18
    %p130 = scmp.eq.s32.totalorder %s129, 0
    %s132 = sadd.s32 %s131, 1
    %s133 = scalar_select %p130, %s131, %s132
    %p136 = pneg %p130
    %p137 = scmp.eq.s32.totalorder %s11, 1
    %p138 = por %p136, %p137
    %p139 = scmp.ne.s32.totalorder %s131, %s134
    %p140 = scmp.eq.s32.totalorder %s11, 0
    %p141 = por %p139, %p140
    %p142 = scmp.ne.s32.totalorder %s131, %s134
    %p143 = scmp.eq.s32.totalorder %s16, 1
    %p144 = por %p142, %p143
    %p145 = scmp.ne.s32.totalorder %s134, %s135
    %p146 = scmp.eq.s32.totalorder %s16, 0
    %p147 = por %p145, %p146
    %p148 = scmp.ne.s32.totalorder %s134, %s135
    %p149 = scmp.eq.s32.totalorder %s17, 1
    %p150 = por %p148, %p149
    %p152 = scmp.ne.s32.totalorder %s135, %s151
    %p153 = scmp.eq.s32.totalorder %s17, 0
    %p154 = por %p152, %p153
    %p155 = scmp.le.s32.totalorder 1, %s11
    %p156 = scmp.lt.s32.totalorder %s11, 3
    %p157 = pnand %p155, %p156
    %p158 = pneg %p157
    // Predicated region
    $region9: #{_lambda_.8} parent=5 // pred_check
      _
    $region10: #{_lambda_.8} parent=5 // pred_check_branch
      %160 = sbr.rel (%p157) target = $region12
    $region11: #{_lambda_.8} parent=5 // pred_region
      %s161 = ssub.s32 %s11, 1
      // Predicated region
      $region13: #{_lambda_.8} parent=11 // pred_check
        %p162 = pneg %p58
      $region14: #{_lambda_.8} parent=11 // pred_check_branch
        %164 = sbr.rel (%p162) target = $region16
      $region15: #{_lambda_.8} parent=11 // pred_region
        _
      $region16: #{_lambda_.8} parent=11 // pred_fallthru
        _
      // Predicated region
      $region17: #{_lambda_.8} parent=11 // pred_check
        %p165 = pneg %p79
      $region18: #{_lambda_.8} parent=11 // pred_check_branch
        %167 = sbr.rel (%p165) target = $region20
      $region19: #{_lambda_.8} parent=11 // pred_region
        _
      $region20: #{_lambda_.8} parent=11 // pred_fallthru
        _
      // Predicated region
      $region21: #{_lambda_.8} parent=11 // pred_check
        %p168 = pneg %p100
      $region22: #{_lambda_.8} parent=11 // pred_check_branch
        %170 = sbr.rel (%p168) target = $region24
      $region23: #{_lambda_.8} parent=11 // pred_region
        _
      $region24: #{_lambda_.8} parent=11 // pred_fallthru
        _
      // Predicated region
      $region25: #{_lambda_.8} parent=11 // pred_check
        %p171 = pneg %p121
      $region26: #{_lambda_.8} parent=11 // pred_check_branch
        %173 = sbr.rel (%p171) target = $region28
      $region27: #{_lambda_.8} parent=11 // pred_region
        _
      $region28: #{_lambda_.8} parent=11 // pred_fallthru
        _
    $region12: #{_lambda_.8} parent=5 // pred_fallthru
      _
    %p174 = scmp.lt.s32.totalorder %s11, 2
    // Predicated region
    $region29: #{_lambda_.8} parent=5 // pred_check
      %p175 = pneg %p174
    $region30: #{_lambda_.8} parent=5 // pred_check_branch
      %177 = sbr.rel (%p175) target = $region32
    $region31: #{_lambda_.8} parent=5 // pred_region
      // Predicated region
      $region33: #{_lambda_.8} parent=31 // pred_check
        %p178 = pneg %p31
      $region34: #{_lambda_.8} parent=31 // pred_check_branch
        %180 = sbr.rel (%p178) target = $region36
      $region35: #{_lambda_.8} parent=31 // pred_region
        %p181 = scmp.lt.s32.totalorder %s11, 1
        %s182 = scalar_select %p181, %s11, 1
        %s183 = smul.addr %s182, 32
        %s184 = smul.addr %s183, 8
        %s185 = scalar_lea.vmem %s0, %s184
      $region36: #{_lambda_.8} parent=31 // pred_fallthru
        _
    $region32: #{_lambda_.8} parent=5 // pred_fallthru
      _
    %p186 = scmp.le.s32.totalorder 1, %s11
    %p187 = scmp.lt.s32.totalorder %s11, 3
    %p188 = pnand %p186, %p187
    %p189 = pneg %p188
    // Predicated region
    $region37: #{_lambda_.8} parent=5 // pred_check
      _
    $region38: #{_lambda_.8} parent=5 // pred_check_branch
      %191 = sbr.rel (%p188) target = $region40
    $region39: #{_lambda_.8} parent=5 // pred_region
      %s192 = ssub.s32 %s11, 1
      %p193 = scmp.lt.s32.totalorder %s16, 1
      %s194 = scalar_select %p193, %s16, 1
      %s195 = smul.addr %s194, 32
      %s196 = smul.addr %s195, 8
      %s197 = scalar_lea.vmem %s0, %s196
      %p198 = pneg %p37
      %p199 = pneg %p34
      %p200 = pneg %p58
      %p201 = pneg %p55
      %p202 = pneg %p79
      %p203 = pneg %p76
      %p204 = pneg %p100
      %p205 = pneg %p97
      %p206 = pneg %p121
      %p207 = pneg %p118
      %p208 = pneg %p147
      %p209 = pneg %p144
      %p210 = scmp.lt.s32.totalorder %s16, 1
      %s211 = scalar_select %p210, %s16, 1
      %s212 = smul.addr %s211, 32
      %s213 = smul.addr %s212, 8
      %s214 = scalar_lea.vmem %s5, %s213
      %p215 = scmp.lt.s32.totalorder %s16, 1
      %s216 = scalar_select %p215, %s16, 1
      %s217 = smul.addr %s216, 32
      %s218 = smul.addr %s217, 8
      %s219 = scalar_lea.vmem %s0, %s218
      %p220 = scmp.lt.s32.totalorder %s16, 1
      %s221 = scalar_select %p220, %s16, 1
      %s222 = smul.addr %s221, 32
      %s223 = smul.addr %s222, 8
      %s224 = scalar_lea.vmem %s5, %s223
      %v225 = vld [vmem:[%s219] sm:$0xff]
      %v226 = vld [vmem:[%s219 + $0x8] sm:$0xff]
      %v227 = vld [vmem:[%s219 + $0x10] sm:$0xff]
      %v228 = vld [vmem:[%s219 + $0x18] sm:$0xff]
      %v229 = vld [vmem:[%s219 + $0x20] sm:$0xff]
      %v230 = vld [vmem:[%s219 + $0x28] sm:$0xff]
      %v231 = vld [vmem:[%s219 + $0x30] sm:$0xff]
      %v232 = vld [vmem:[%s219 + $0x38] sm:$0xff]
      %v233 = vld [vmem:[%s219 + $0x40] sm:$0xff]
      %v234 = vld [vmem:[%s219 + $0x48] sm:$0xff]
      %v235 = vld [vmem:[%s219 + $0x50] sm:$0xff]
      %v236 = vld [vmem:[%s219 + $0x58] sm:$0xff]
      %v237 = vld [vmem:[%s219 + $0x60] sm:$0xff]
      %v238 = vld [vmem:[%s219 + $0x68] sm:$0xff]
      %v239 = vld [vmem:[%s219 + $0x70] sm:$0xff]
      %v240 = vld [vmem:[%s219 + $0x78] sm:$0xff]
      %v241 = vld [vmem:[%s219 + $0x80] sm:$0xff]
      %v242 = vld [vmem:[%s219 + $0x88] sm:$0xff]
      %v243 = vld [vmem:[%s219 + $0x90] sm:$0xff]
      %v244 = vld [vmem:[%s219 + $0x98] sm:$0xff]
      %v245 = vld [vmem:[%s219 + $0xa0] sm:$0xff]
      %v246 = vld [vmem:[%s219 + $0xa8] sm:$0xff]
      %v247 = vld [vmem:[%s219 + $0xb0] sm:$0xff]
      %v248 = vld [vmem:[%s219 + $0xb8] sm:$0xff]
      %v249 = vld [vmem:[%s219 + $0xc0] sm:$0xff]
      %v250 = vld [vmem:[%s219 + $0xc8] sm:$0xff]
      %v251 = vld [vmem:[%s219 + $0xd0] sm:$0xff]
      %v252 = vld [vmem:[%s219 + $0xd8] sm:$0xff]
      %v253 = vld [vmem:[%s219 + $0xe0] sm:$0xff]
      %v254 = vld [vmem:[%s219 + $0xe8] sm:$0xff]
      %v255 = vld [vmem:[%s219 + $0xf0] sm:$0xff]
      %v256 = vld [vmem:[%s219 + $0xf8] sm:$0xff]
      %v257 = vld [vmem:[%s1] sm:$0xf]
      %v258 = vld [vmem:[%s2] sm:$0x1]
      %v260 = vlaneseq
      %v261 = vshrl.u32 %v260, 7
      %v262 = vsub.s32 0, %v261
      %v263 = vrot.slane %v258, %v262
      %vm265 = vcmask 31744
      %v267 = vsel %vm265, %v225, 0
      %v270 = vsel %vm265, %v226, 0
      %v273 = vsel %vm265, %v227, 0
      %v276 = vsel %vm265, %v228, 0
      %v279 = vsel %vm265, %v229, 0
      %v282 = vsel %vm265, %v230, 0
      %v285 = vsel %vm265, %v231, 0
      %v288 = vsel %vm265, %v232, 0
      %v291 = vsel %vm265, %v233, 0
      %v294 = vsel %vm265, %v234, 0
      %v297 = vsel %vm265, %v235, 0
      %v300 = vsel %vm265, %v236, 0
      %v303 = vsel %vm265, %v237, 0
      %v306 = vsel %vm265, %v238, 0
      %v309 = vsel %vm265, %v239, 0
      %v312 = vsel %vm265, %v240, 0
      %v315 = vsel %vm265, %v241, 0
      %v318 = vsel %vm265, %v242, 0
      %v321 = vsel %vm265, %v243, 0
      %v324 = vsel %vm265, %v244, 0
      %v327 = vsel %vm265, %v245, 0
      %v330 = vsel %vm265, %v246, 0
      %v333 = vsel %vm265, %v247, 0
      %v336 = vsel %vm265, %v248, 0
      %v339 = vsel %vm265, %v249, 0
      %v342 = vsel %vm265, %v250, 0
      %v345 = vsel %vm265, %v251, 0
      %v348 = vsel %vm265, %v252, 0
      %v351 = vsel %vm265, %v253, 0
      %v354 = vsel %vm265, %v254, 0
      %v357 = vsel %vm265, %v255, 0
      %v360 = vsel %vm265, %v256, 0
      %vm362 = vcmask 1043456
      %v364 = vsel %vm362, %v257, 0
      %366 = vmatprep.subr.mxu0 0.0
      %367 = vmatpush1.msra.mxu0 %v364
      %368 = vmatprep.subr.mxu0 0.0
      %369 = vmatpush1.msra.mxu0 0.0
      %370 = vmatprep.subr.mxu0 0.0
      %371 = vmatpush1.msra.mxu0 0.0
      %372 = vmatprep.subr.mxu0 0.0
      %373 = vmatpush1.msra.mxu0 0.0
      %374 = vmatprep.subr.mxu0 0.0
      %375 = vmatpush1.msra.mxu0 0.0
      %376 = vmatprep.subr.mxu0 0.0
      %377 = vmatpush1.msra.mxu0 0.0
      %378 = vmatprep.subr.mxu0 0.0
      %379 = vmatpush1.msra.mxu0 0.0
      %380 = vmatprep.subr.mxu0 0.0
      %381 = vmatpush1.msra.mxu0 0.0
      %382 = vmatprep.subr.mxu0 0.0
      %383 = vmatpush1.msra.mxu0 0.0
      %384 = vmatprep.subr.mxu0 0.0
      %385 = vmatpush1.msra.mxu0 0.0
      %386 = vmatprep.subr.mxu0 0.0
      %387 = vmatpush1.msra.mxu0 0.0
      %388 = vmatprep.subr.mxu0 0.0
      %389 = vmatpush1.msra.mxu0 0.0
      %390 = vmatprep.subr.mxu0 0.0
      %391 = vmatpush1.msra.mxu0 0.0
      %392 = vmatprep.subr.mxu0 0.0
      %393 = vmatpush1.msra.mxu0 0.0
      %394 = vmatprep.subr.mxu0 0.0
      %395 = vmatpush1.msra.mxu0 0.0
      %396 = vmatprep.subr.mxu0 0.0
      %397 = vmatpush1.msra.mxu0 0.0
      %398 = vmatprep.subr.mxu0 0.0
      %399 = vmatpush1.msra.mxu0 0.0
      %400 = vmatprep.subr.mxu0 0.0
      %401 = vmatpush1.msra.mxu0 0.0
      %402 = vmatprep.subr.mxu0 0.0
      %403 = vmatpush1.msra.mxu0 0.0
      %404 = vmatprep.subr.mxu0 0.0
      %405 = vmatpush1.msra.mxu0 0.0
      %406 = vmatprep.subr.mxu0 0.0
      %407 = vmatpush1.msra.mxu0 0.0
      %408 = vmatprep.subr.mxu0 0.0
      %409 = vmatpush1.msra.mxu0 0.0
      %410 = vmatprep.subr.mxu0 0.0
      %411 = vmatpush1.msra.mxu0 0.0
      %412 = vmatprep.subr.mxu0 0.0
      %413 = vmatpush1.msra.mxu0 0.0
      %414 = vmatprep.subr.mxu0 0.0
      %415 = vmatpush1.msra.mxu0 0.0
      %416 = vmatprep.subr.mxu0 0.0
      %417 = vmatpush1.msra.mxu0 0.0
      %418 = vmatprep.subr.mxu0 0.0
      %419 = vmatpush1.msra.mxu0 0.0
      %420 = vmatprep.subr.mxu0 0.0
      %421 = vmatpush1.msra.mxu0 0.0
      %422 = vmatprep.subr.mxu0 0.0
      %423 = vmatpush1.msra.mxu0 0.0
      %424 = vmatprep.subr.mxu0 0.0
      %425 = vmatpush1.msra.mxu0 0.0
      %426 = vmatprep.subr.mxu0 0.0
      %427 = vmatpush1.msra.mxu0 0.0
      %428 = vmatprep.subr.mxu0 0.0
      %429 = vmatpush1.msra.mxu0 0.0
      %430 = vmatprep.mubr.f32.mxu0 0.0
      %431 = vmatmul.mubr.f32.gmra.mrb[0].mxu0 %v267
      %v432 = vpop.f32.mrb[0].mxu0
      %v433 = vadd.f32 %v263, %v432
      %v434 = vpop.f32.mrb[0].mxu0
      %435 = vmatprep.mubr.f32.mxu0 0.0
      %436 = vmatmul.mubr.f32.gmra.mrb[0].mxu0 %v270
      %v437 = vpop.f32.mrb[0].mxu0
      %v438 = vadd.f32 %v263, %v437
      %v439 = vpop.f32.mrb[0].mxu0
      %440 = vmatprep.mubr.f32.mxu0 0.0
      %441 = vmatmul.mubr.f32.gmra.mrb[0].mxu0 %v273
      %v442 = vpop.f32.mrb[0].mxu0
      %v443 = vadd.f32 %v263, %v442
      %v444 = vpop.f32.mrb[0].mxu0
      %445 = vmatprep.mubr.f32.mxu0 0.0
      %446 = vmatmul.mubr.f32.gmra.mrb[0].mxu0 %v276
      %v447 = vpop.f32.mrb[0].mxu0
      %v448 = vadd.f32 %v263, %v447
      %v449 = vpop.f32.mrb[0].mxu0
      %450 = vmatprep.mubr.f32.mxu0 0.0
      %451 = vmatmul.mubr.f32.gmra.mrb[0].mxu0 %v279
      %v452 = vpop.f32.mrb[0].mxu0
      %v453 = vadd.f32 %v263, %v452
      %v454 = vpop.f32.mrb[0].mxu0
      %455 = vmatprep.mubr.f32.mxu0 0.0
      %456 = vmatmul.mubr.f32.gmra.mrb[0].mxu0 %v282
      %v457 = vpop.f32.mrb[0].mxu0
      %v458 = vadd.f32 %v263, %v457
      %v459 = vpop.f32.mrb[0].mxu0
      %460 = vmatprep.mubr.f32.mxu0 0.0
      %461 = vmatmul.mubr.f32.gmra.mrb[0].mxu0 %v285
      %v462 = vpop.f32.mrb[0].mxu0
      %v463 = vadd.f32 %v263, %v462
      %v464 = vpop.f32.mrb[0].mxu0
      %465 = vmatprep.mubr.f32.mxu0 0.0
      %466 = vmatmul.mubr.f32.gmra.mrb[0].mxu0 %v288
      %v467 = vpop.f32.mrb[0].mxu0
      %v468 = vadd.f32 %v263, %v467
      %v469 = vpop.f32.mrb[0].mxu0
      %470 = vmatprep.mubr.f32.mxu0 0.0
      %471 = vmatmul.mubr.f32.gmra.mrb[0].mxu0 %v291
      %v472 = vpop.f32.mrb[0].mxu0
      %v473 = vadd.f32 %v263, %v472
      %v474 = vpop.f32.mrb[0].mxu0
      %475 = vmatprep.mubr.f32.mxu0 0.0
      %476 = vmatmul.mubr.f32.gmra.mrb[0].mxu0 %v294
      %v477 = vpop.f32.mrb[0].mxu0
      %v478 = vadd.f32 %v263, %v477
      %v479 = vpop.f32.mrb[0].mxu0
      %480 = vmatprep.mubr.f32.mxu0 0.0
      %481 = vmatmul.mubr.f32.gmra.mrb[0].mxu0 %v297
      %v482 = vpop.f32.mrb[0].mxu0
      %v483 = vadd.f32 %v263, %v482
      %v484 = vpop.f32.mrb[0].mxu0
      %485 = vmatprep.mubr.f32.mxu0 0.0
      %486 = vmatmul.mubr.f32.gmra.mrb[0].mxu0 %v300
      %v487 = vpop.f32.mrb[0].mxu0
      %v488 = vadd.f32 %v263, %v487
      %v489 = vpop.f32.mrb[0].mxu0
      %490 = vmatprep.mubr.f32.mxu0 0.0
      %491 = vmatmul.mubr.f32.gmra.mrb[0].mxu0 %v303
      %v492 = vpop.f32.mrb[0].mxu0
      %v493 = vadd.f32 %v263, %v492
      %v494 = vpop.f32.mrb[0].mxu0
      %495 = vmatprep.mubr.f32.mxu0 0.0
      %496 = vmatmul.mubr.f32.gmra.mrb[0].mxu0 %v306
      %v497 = vpop.f32.mrb[0].mxu0
      %v498 = vadd.f32 %v263, %v497
      %v499 = vpop.f32.mrb[0].mxu0
      %500 = vmatprep.mubr.f32.mxu0 0.0
      %501 = vmatmul.mubr.f32.gmra.mrb[0].mxu0 %v309
      %v502 = vpop.f32.mrb[0].mxu0
      %v503 = vadd.f32 %v263, %v502
      %v504 = vpop.f32.mrb[0].mxu0
      %505 = vmatprep.mubr.f32.mxu0 0.0
      %506 = vmatmul.mubr.f32.gmra.mrb[0].mxu0 %v312
      %v507 = vpop.f32.mrb[0].mxu0
      %v508 = vadd.f32 %v263, %v507
      %v509 = vpop.f32.mrb[0].mxu0
      %510 = vmatprep.mubr.f32.mxu0 0.0
      %511 = vmatmul.mubr.f32.gmra.mrb[0].mxu0 %v315
      %v512 = vpop.f32.mrb[0].mxu0
      %v513 = vadd.f32 %v263, %v512
      %v514 = vpop.f32.mrb[0].mxu0
      %515 = vmatprep.mubr.f32.mxu0 0.0
      %516 = vmatmul.mubr.f32.gmra.mrb[0].mxu0 %v318
      %v517 = vpop.f32.mrb[0].mxu0
      %v518 = vadd.f32 %v263, %v517
      %v519 = vpop.f32.mrb[0].mxu0
      %520 = vmatprep.mubr.f32.mxu0 0.0
      %521 = vmatmul.mubr.f32.gmra.mrb[0].mxu0 %v321
      %v522 = vpop.f32.mrb[0].mxu0
      %v523 = vadd.f32 %v263, %v522
      %v524 = vpop.f32.mrb[0].mxu0
      %525 = vmatprep.mubr.f32.mxu0 0.0
      %526 = vmatmul.mubr.f32.gmra.mrb[0].mxu0 %v324
      %v527 = vpop.f32.mrb[0].mxu0
      %v528 = vadd.f32 %v263, %v527
      %v529 = vpop.f32.mrb[0].mxu0
      %530 = vmatprep.mubr.f32.mxu0 0.0
      %531 = vmatmul.mubr.f32.gmra.mrb[0].mxu0 %v327
      %v532 = vpop.f32.mrb[0].mxu0
      %v533 = vadd.f32 %v263, %v532
      %v534 = vpop.f32.mrb[0].mxu0
      %535 = vmatprep.mubr.f32.mxu0 0.0
      %536 = vmatmul.mubr.f32.gmra.mrb[0].mxu0 %v330
      %v537 = vpop.f32.mrb[0].mxu0
      %v538 = vadd.f32 %v263, %v537
      %v539 = vpop.f32.mrb[0].mxu0
      %540 = vmatprep.mubr.f32.mxu0 0.0
      %541 = vmatmul.mubr.f32.gmra.mrb[0].mxu0 %v333
      %v542 = vpop.f32.mrb[0].mxu0
      %v543 = vadd.f32 %v263, %v542
      %v544 = vpop.f32.mrb[0].mxu0
      %545 = vmatprep.mubr.f32.mxu0 0.0
      %546 = vmatmul.mubr.f32.gmra.mrb[0].mxu0 %v336
      %v547 = vpop.f32.mrb[0].mxu0
      %v548 = vadd.f32 %v263, %v547
      %v549 = vpop.f32.mrb[0].mxu0
      %550 = vmatprep.mubr.f32.mxu0 0.0
      %551 = vmatmul.mubr.f32.gmra.mrb[0].mxu0 %v339
      %v552 = vpop.f32.mrb[0].mxu0
      %v553 = vadd.f32 %v263, %v552
      %v554 = vpop.f32.mrb[0].mxu0
      %555 = vmatprep.mubr.f32.mxu0 0.0
      %556 = vmatmul.mubr.f32.gmra.mrb[0].mxu0 %v342
      %v557 = vpop.f32.mrb[0].mxu0
      %v558 = vadd.f32 %v263, %v557
      %v559 = vpop.f32.mrb[0].mxu0
      %560 = vmatprep.mubr.f32.mxu0 0.0
      %561 = vmatmul.mubr.f32.gmra.mrb[0].mxu0 %v345
      %v562 = vpop.f32.mrb[0].mxu0
      %v563 = vadd.f32 %v263, %v562
      %v564 = vpop.f32.mrb[0].mxu0
      %565 = vmatprep.mubr.f32.mxu0 0.0
      %566 = vmatmul.mubr.f32.gmra.mrb[0].mxu0 %v348
      %v567 = vpop.f32.mrb[0].mxu0
      %v568 = vadd.f32 %v263, %v567
      %v569 = vpop.f32.mrb[0].mxu0
      %570 = vmatprep.mubr.f32.mxu0 0.0
      %571 = vmatmul.mubr.f32.gmra.mrb[0].mxu0 %v351
      %v572 = vpop.f32.mrb[0].mxu0
      %v573 = vadd.f32 %v263, %v572
      %v574 = vpop.f32.mrb[0].mxu0
      %575 = vmatprep.mubr.f32.mxu0 0.0
      %576 = vmatmul.mubr.f32.gmra.mrb[0].mxu0 %v354
      %v577 = vpop.f32.mrb[0].mxu0
      %v578 = vadd.f32 %v263, %v577
      %v579 = vpop.f32.mrb[0].mxu0
      %580 = vmatprep.mubr.f32.mxu0 0.0
      %581 = vmatmul.mubr.f32.gmra.mrb[0].mxu0 %v357
      %v582 = vpop.f32.mrb[0].mxu0
      %v583 = vadd.f32 %v263, %v582
      %v584 = vpop.f32.mrb[0].mxu0
      %585 = vmatprep.mubr.f32.mxu0 0.0
      %586 = vmatmul.mubr.f32.gmra.mrb[0].mxu0 %v360
      %v587 = vpop.f32.mrb[0].mxu0
      %v588 = vadd.f32 %v263, %v587
      %v589 = vpop.f32.mrb[0].mxu0
      %590 = vdwg.mxu0
      %v591 = vadd.f32 %v433, %v438
      %v592 = vadd.f32 %v591, %v443
      %v593 = vadd.f32 %v592, %v448
      %v594 = vadd.f32 %v593, %v453
      %v595 = vadd.f32 %v594, %v458
      %v596 = vadd.f32 %v595, %v463
      %v597 = vadd.f32 %v596, %v468
      %v598 = vadd.f32 %v597, %v473
      %v599 = vadd.f32 %v598, %v478
      %v600 = vadd.f32 %v599, %v483
      %v601 = vadd.f32 %v600, %v488
      %v602 = vadd.f32 %v601, %v493
      %v603 = vadd.f32 %v602, %v498
      %v604 = vadd.f32 %v603, %v503
      %v605 = vadd.f32 %v604, %v508
      %v606 = vadd.f32 %v605, %v513
      %v607 = vadd.f32 %v606, %v518
      %v608 = vadd.f32 %v607, %v523
      %v609 = vadd.f32 %v608, %v528
      %v610 = vadd.f32 %v609, %v533
      %v611 = vadd.f32 %v610, %v538
      %v612 = vadd.f32 %v611, %v543
      %v613 = vadd.f32 %v612, %v548
      %v614 = vadd.f32 %v613, %v553
      %v615 = vadd.f32 %v614, %v558
      %v616 = vadd.f32 %v615, %v563
      %v617 = vadd.f32 %v616, %v568
      %v618 = vadd.f32 %v617, %v573
      %v619 = vadd.f32 %v618, %v578
      %v620 = vadd.f32 %v619, %v583
      %v621 = vadd.f32 %v620, %v588
      %v622 = vrot.slane %v621, 4
      %v623 = vadd.f32 %v621, %v622
      %v624 = vrot.slane %v623, 2
      %v625 = vadd.f32 %v623, %v624
      %v626 = vrot.slane %v625, 1
      %v627 = vadd.f32 %v625, %v626
      %v628 = vrcp.pop 256.0
      %v629 = vmul.f32 %v627, %v628
      %v630 = vsub.f32 %v433, %v629
      %v631 = vsub.f32 %v438, %v629
      %v632 = vsub.f32 %v443, %v629
      %v633 = vsub.f32 %v448, %v629
      %v634 = vsub.f32 %v453, %v629
      %v635 = vsub.f32 %v458, %v629
      %v636 = vsub.f32 %v463, %v629
      %v637 = vsub.f32 %v468, %v629
      %v638 = vsub.f32 %v473, %v629
      %v639 = vsub.f32 %v478, %v629
      %v640 = vsub.f32 %v483, %v629
      %v641 = vsub.f32 %v488, %v629
      %v642 = vsub.f32 %v493, %v629
      %v643 = vsub.f32 %v498, %v629
      %v644 = vsub.f32 %v503, %v629
      %v645 = vsub.f32 %v508, %v629
      %v646 = vsub.f32 %v513, %v629
      %v647 = vsub.f32 %v518, %v629
      %v648 = vsub.f32 %v523, %v629
      %v649 = vsub.f32 %v528, %v629
      %v650 = vsub.f32 %v533, %v629
      %v651 = vsub.f32 %v538, %v629
      %v652 = vsub.f32 %v543, %v629
      %v653 = vsub.f32 %v548, %v629
      %v654 = vsub.f32 %v553, %v629
      %v655 = vsub.f32 %v558, %v629
      %v656 = vsub.f32 %v563, %v629
      %v657 = vsub.f32 %v568, %v629
      %v658 = vsub.f32 %v573, %v629
      %v659 = vsub.f32 %v578, %v629
      %v660 = vsub.f32 %v583, %v629
      %v661 = vsub.f32 %v588, %v629
      %v662 = vmul.f32 %v630, %v630
      %v663 = vmul.f32 %v631, %v631
      %v664 = vmul.f32 %v632, %v632
      %v665 = vmul.f32 %v633, %v633
      %v666 = vmul.f32 %v634, %v634
      %v667 = vmul.f32 %v635, %v635
      %v668 = vmul.f32 %v636, %v636
      %v669 = vmul.f32 %v637, %v637
      %v670 = vmul.f32 %v638, %v638
      %v671 = vmul.f32 %v639, %v639
      %v672 = vmul.f32 %v640, %v640
      %v673 = vmul.f32 %v641, %v641
      %v674 = vmul.f32 %v642, %v642
      %v675 = vmul.f32 %v643, %v643
      %v676 = vmul.f32 %v644, %v644
      %v677 = vmul.f32 %v645, %v645
      %v678 = vmul.f32 %v646, %v646
      %v679 = vmul.f32 %v647, %v647
      %v680 = vmul.f32 %v648, %v648
      %v681 = vmul.f32 %v649, %v649
      %v682 = vmul.f32 %v650, %v650
      %v683 = vmul.f32 %v651, %v651
      %v684 = vmul.f32 %v652, %v652
      %v685 = vmul.f32 %v653, %v653
      %v686 = vmul.f32 %v654, %v654
      %v687 = vmul.f32 %v655, %v655
      %v688 = vmul.f32 %v656, %v656
      %v689 = vmul.f32 %v657, %v657
      %v690 = vmul.f32 %v658, %v658
      %v691 = vmul.f32 %v659, %v659
      %v692 = vmul.f32 %v660, %v660
      %v693 = vmul.f32 %v661, %v661
      %v694 = vadd.f32 %v662, %v663
      %v695 = vadd.f32 %v694, %v664
      %v696 = vadd.f32 %v695, %v665
      %v697 = vadd.f32 %v696, %v666
      %v698 = vadd.f32 %v697, %v667
      %v699 = vadd.f32 %v698, %v668
      %v700 = vadd.f32 %v699, %v669
      %v701 = vadd.f32 %v700, %v670
      %v702 = vadd.f32 %v701, %v671
      %v703 = vadd.f32 %v702, %v672
      %v704 = vadd.f32 %v703, %v673
      %v705 = vadd.f32 %v704, %v674
      %v706 = vadd.f32 %v705, %v675
      %v707 = vadd.f32 %v706, %v676
      %v708 = vadd.f32 %v707, %v677
      %v709 = vadd.f32 %v708, %v678
      %v710 = vadd.f32 %v709, %v679
      %v711 = vadd.f32 %v710, %v680
      %v712 = vadd.f32 %v711, %v681
      %v713 = vadd.f32 %v712, %v682
      %v714 = vadd.f32 %v713, %v683
      %v715 = vadd.f32 %v714, %v684
      %v716 = vadd.f32 %v715, %v685
      %v717 = vadd.f32 %v716, %v686
      %v718 = vadd.f32 %v717, %v687
      %v719 = vadd.f32 %v718, %v688
      %v720 = vadd.f32 %v719, %v689
      %v721 = vadd.f32 %v720, %v690
      %v722 = vadd.f32 %v721, %v691
      %v723 = vadd.f32 %v722, %v692
      %v724 = vadd.f32 %v723, %v693
      %v725 = vrot.slane %v724, 4
      %v726 = vadd.f32 %v724, %v725
      %v727 = vrot.slane %v726, 2
      %v728 = vadd.f32 %v726, %v727
      %v729 = vrot.slane %v728, 1
      %v730 = vadd.f32 %v728, %v729
      %v731 = vmul.f32 %v730, %v628
      %v732 = vadd.f32 %v731, 1e-05
      %v733 = vrsqrt.pop %v732
      %v734 = vmul.f32 %v630, %v733
      %v735 = vmul.f32 %v631, %v733
      %v736 = vmul.f32 %v632, %v733
      %v737 = vmul.f32 %v633, %v733
      %v738 = vmul.f32 %v634, %v733
      %v739 = vmul.f32 %v635, %v733
      %v740 = vmul.f32 %v636, %v733
      %v741 = vmul.f32 %v637, %v733
      %v742 = vmul.f32 %v638, %v733
      %v743 = vmul.f32 %v639, %v733
      %v744 = vmul.f32 %v640, %v733
      %v745 = vmul.f32 %v641, %v733
      %v746 = vmul.f32 %v642, %v733
      %v747 = vmul.f32 %v643, %v733
      %v748 = vmul.f32 %v644, %v733
      %v749 = vmul.f32 %v645, %v733
      %v750 = vmul.f32 %v646, %v733
      %v751 = vmul.f32 %v647, %v733
      %v752 = vmul.f32 %v648, %v733
      %v753 = vmul.f32 %v649, %v733
      %v754 = vmul.f32 %v650, %v733
      %v755 = vmul.f32 %v651, %v733
      %v756 = vmul.f32 %v652, %v733
      %v757 = vmul.f32 %v653, %v733
      %v758 = vmul.f32 %v654, %v733
      %v759 = vmul.f32 %v655, %v733
      %v760 = vmul.f32 %v656, %v733
      %v761 = vmul.f32 %v657, %v733
      %v762 = vmul.f32 %v658, %v733
      %v763 = vmul.f32 %v659, %v733
      %v764 = vmul.f32 %v660, %v733
      %v765 = vmul.f32 %v661, %v733
      %v766 = vld [vmem:[%s3] sm:$0x1]
      %v768 = vlaneseq
      %v769 = vshrl.u32 %v768, 7
      %v770 = vsub.s32 0, %v769
      %v771 = vrot.slane %v766, %v770
      %v773 = vmul.f32 %v734, %v771
      %v774 = vmul.f32 %v735, %v771
      %v775 = vmul.f32 %v736, %v771
      %v776 = vmul.f32 %v737, %v771
      %v777 = vmul.f32 %v738, %v771
      %v778 = vmul.f32 %v739, %v771
      %v779 = vmul.f32 %v740, %v771
      %v780 = vmul.f32 %v741, %v771
      %v781 = vmul.f32 %v742, %v771
      %v782 = vmul.f32 %v743, %v771
      %v783 = vmul.f32 %v744, %v771
      %v784 = vmul.f32 %v745, %v771
      %v785 = vmul.f32 %v746, %v771
      %v786 = vmul.f32 %v747, %v771
      %v787 = vmul.f32 %v748, %v771
      %v788 = vmul.f32 %v749, %v771
      %v789 = vmul.f32 %v750, %v771
      %v790 = vmul.f32 %v751, %v771
      %v791 = vmul.f32 %v752, %v771
      %v792 = vmul.f32 %v753, %v771
      %v793 = vmul.f32 %v754, %v771
      %v794 = vmul.f32 %v755, %v771
      %v795 = vmul.f32 %v756, %v771
      %v796 = vmul.f32 %v757, %v771
      %v797 = vmul.f32 %v758, %v771
      %v798 = vmul.f32 %v759, %v771
      %v799 = vmul.f32 %v760, %v771
      %v800 = vmul.f32 %v761, %v771
      %v801 = vmul.f32 %v762, %v771
      %v802 = vmul.f32 %v763, %v771
      %v803 = vmul.f32 %v764, %v771
      %v804 = vmul.f32 %v765, %v771
      %v805 = vld [vmem:[%s4] sm:$0x1]
      %v807 = vlaneseq
      %v808 = vshrl.u32 %v807, 7
      %v809 = vsub.s32 0, %v808
      %v810 = vrot.slane %v805, %v809
      %v812 = vadd.f32 %v773, %v810
      %v813 = vadd.f32 %v774, %v810
      %v814 = vadd.f32 %v775, %v810
      %v815 = vadd.f32 %v776, %v810
      %v816 = vadd.f32 %v777, %v810
      %v817 = vadd.f32 %v778, %v810
      %v818 = vadd.f32 %v779, %v810
      %v819 = vadd.f32 %v780, %v810
      %v820 = vadd.f32 %v781, %v810
      %v821 = vadd.f32 %v782, %v810
      %v822 = vadd.f32 %v783, %v810
      %v823 = vadd.f32 %v784, %v810
      %v824 = vadd.f32 %v785, %v810
      %v825 = vadd.f32 %v786, %v810
      %v826 = vadd.f32 %v787, %v810
      %v827 = vadd.f32 %v788, %v810
      %v828 = vadd.f32 %v789, %v810
      %v829 = vadd.f32 %v790, %v810
      %v830 = vadd.f32 %v791, %v810
      %v831 = vadd.f32 %v792, %v810
      %v832 = vadd.f32 %v793, %v810
      %v833 = vadd.f32 %v794, %v810
      %v834 = vadd.f32 %v795, %v810
      %v835 = vadd.f32 %v796, %v810
      %v836 = vadd.f32 %v797, %v810
      %v837 = vadd.f32 %v798, %v810
      %v838 = vadd.f32 %v799, %v810
      %v839 = vadd.f32 %v800, %v810
      %v840 = vadd.f32 %v801, %v810
      %v841 = vadd.f32 %v802, %v810
      %v842 = vadd.f32 %v803, %v810
      %v843 = vadd.f32 %v804, %v810
      %v844 = vmul.f32 %v812, %v812
      %v845 = vmul.f32 %v813, %v813
      %v846 = vmul.f32 %v814, %v814
      %v847 = vmul.f32 %v815, %v815
      %v848 = vmul.f32 %v816, %v816
      %v849 = vmul.f32 %v817, %v817
      %v850 = vmul.f32 %v818, %v818
      %v851 = vmul.f32 %v819, %v819
      %v852 = vmul.f32 %v820, %v820
      %v853 = vmul.f32 %v821, %v821
      %v854 = vmul.f32 %v822, %v822
      %v855 = vmul.f32 %v823, %v823
      %v856 = vmul.f32 %v824, %v824
      %v857 = vmul.f32 %v825, %v825
      %v858 = vmul.f32 %v826, %v826
      %v859 = vmul.f32 %v827, %v827
      %v860 = vmul.f32 %v828, %v828
      %v861 = vmul.f32 %v829, %v829
      %v862 = vmul.f32 %v830, %v830
      %v863 = vmul.f32 %v831, %v831
      %v864 = vmul.f32 %v832, %v832
      %v865 = vmul.f32 %v833, %v833
      %v866 = vmul.f32 %v834, %v834
      %v867 = vmul.f32 %v835, %v835
      %v868 = vmul.f32 %v836, %v836
      %v869 = vmul.f32 %v837, %v837
      %v870 = vmul.f32 %v838, %v838
      %v871 = vmul.f32 %v839, %v839
      %v872 = vmul.f32 %v840, %v840
      %v873 = vmul.f32 %v841, %v841
      %v874 = vmul.f32 %v842, %v842
      %v875 = vmul.f32 %v843, %v843
      %v876 = vmul.f32 %v812, %v844
      %v877 = vmul.f32 %v813, %v845
      %v878 = vmul.f32 %v814, %v846
      %v879 = vmul.f32 %v815, %v847
      %v880 = vmul.f32 %v816, %v848
      %v881 = vmul.f32 %v817, %v849
      %v882 = vmul.f32 %v818, %v850
      %v883 = vmul.f32 %v819, %v851
      %v884 = vmul.f32 %v820, %v852
      %v885 = vmul.f32 %v821, %v853
      %v886 = vmul.f32 %v822, %v854
      %v887 = vmul.f32 %v823, %v855
      %v888 = vmul.f32 %v824, %v856
      %v889 = vmul.f32 %v825, %v857
      %v890 = vmul.f32 %v826, %v858
      %v891 = vmul.f32 %v827, %v859
      %v892 = vmul.f32 %v828, %v860
      %v893 = vmul.f32 %v829, %v861
      %v894 = vmul.f32 %v830, %v862
      %v895 = vmul.f32 %v831, %v863
      %v896 = vmul.f32 %v832, %v864
      %v897 = vmul.f32 %v833, %v865
      %v898 = vmul.f32 %v834, %v866
      %v899 = vmul.f32 %v835, %v867
      %v900 = vmul.f32 %v836, %v868
      %v901 = vmul.f32 %v837, %v869
      %v902 = vmul.f32 %v838, %v870
      %v903 = vmul.f32 %v839, %v871
      %v904 = vmul.f32 %v840, %v872
      %v905 = vmul.f32 %v841, %v873
      %v906 = vmul.f32 %v842, %v874
      %v907 = vmul.f32 %v843, %v875
      %v908 = vmul.f32 %v876, 0.044715
      %v909 = vmul.f32 %v877, 0.044715
      %v910 = vmul.f32 %v878, 0.044715
      %v911 = vmul.f32 %v879, 0.044715
      %v912 = vmul.f32 %v880, 0.044715
      %v913 = vmul.f32 %v881, 0.044715
      %v914 = vmul.f32 %v882, 0.044715
      %v915 = vmul.f32 %v883, 0.044715
      %v916 = vmul.f32 %v884, 0.044715
      %v917 = vmul.f32 %v885, 0.044715
      %v918 = vmul.f32 %v886, 0.044715
      %v919 = vmul.f32 %v887, 0.044715
      %v920 = vmul.f32 %v888, 0.044715
      %v921 = vmul.f32 %v889, 0.044715
      %v922 = vmul.f32 %v890, 0.044715
      %v923 = vmul.f32 %v891, 0.044715
      %v924 = vmul.f32 %v892, 0.044715
      %v925 = vmul.f32 %v893, 0.044715
      %v926 = vmul.f32 %v894, 0.044715
      %v927 = vmul.f32 %v895, 0.044715
      %v928 = vmul.f32 %v896, 0.044715
      %v929 = vmul.f32 %v897, 0.044715
      %v930 = vmul.f32 %v898, 0.044715
      %v931 = vmul.f32 %v899, 0.044715
      %v932 = vmul.f32 %v900, 0.044715
      %v933 = vmul.f32 %v901, 0.044715
      %v934 = vmul.f32 %v902, 0.044715
      %v935 = vmul.f32 %v903, 0.044715
      %v936 = vmul.f32 %v904, 0.044715
      %v937 = vmul.f32 %v905, 0.044715
      %v938 = vmul.f32 %v906, 0.044715
      %v939 = vmul.f32 %v907, 0.044715
      %v940 = vadd.f32 %v812, %v908
      %v941 = vadd.f32 %v813, %v909
      %v942 = vadd.f32 %v814, %v910
      %v943 = vadd.f32 %v815, %v911
      %v944 = vadd.f32 %v816, %v912
      %v945 = vadd.f32 %v817, %v913
      %v946 = vadd.f32 %v818, %v914
      %v947 = vadd.f32 %v819, %v915
      %v948 = vadd.f32 %v820, %v916
      %v949 = vadd.f32 %v821, %v917
      %v950 = vadd.f32 %v822, %v918
      %v951 = vadd.f32 %v823, %v919
      %v952 = vadd.f32 %v824, %v920
      %v953 = vadd.f32 %v825, %v921
      %v954 = vadd.f32 %v826, %v922
      %v955 = vadd.f32 %v827, %v923
      %v956 = vadd.f32 %v828, %v924
      %v957 = vadd.f32 %v829, %v925
      %v958 = vadd.f32 %v830, %v926
      %v959 = vadd.f32 %v831, %v927
      %v960 = vadd.f32 %v832, %v928
      %v961 = vadd.f32 %v833, %v929
      %v962 = vadd.f32 %v834, %v930
      %v963 = vadd.f32 %v835, %v931
      %v964 = vadd.f32 %v836, %v932
      %v965 = vadd.f32 %v837, %v933
      %v966 = vadd.f32 %v838, %v934
      %v967 = vadd.f32 %v839, %v935
      %v968 = vadd.f32 %v840, %v936
      %v969 = vadd.f32 %v841, %v937
      %v970 = vadd.f32 %v842, %v938
      %v971 = vadd.f32 %v843, %v939
      %v972 = vmul.f32 %v940, 0.7978846
      %v973 = vmul.f32 %v941, 0.7978846
      %v974 = vmul.f32 %v942, 0.7978846
      %v975 = vmul.f32 %v943, 0.7978846
      %v976 = vmul.f32 %v944, 0.7978846
      %v977 = vmul.f32 %v945, 0.7978846
      %v978 = vmul.f32 %v946, 0.7978846
      %v979 = vmul.f32 %v947, 0.7978846
      %v980 = vmul.f32 %v948, 0.7978846
      %v981 = vmul.f32 %v949, 0.7978846
      %v982 = vmul.f32 %v950, 0.7978846
      %v983 = vmul.f32 %v951, 0.7978846
      %v984 = vmul.f32 %v952, 0.7978846
      %v985 = vmul.f32 %v953, 0.7978846
      %v986 = vmul.f32 %v954, 0.7978846
      %v987 = vmul.f32 %v955, 0.7978846
      %v988 = vmul.f32 %v956, 0.7978846
      %v989 = vmul.f32 %v957, 0.7978846
      %v990 = vmul.f32 %v958, 0.7978846
      %v991 = vmul.f32 %v959, 0.7978846
      %v992 = vmul.f32 %v960, 0.7978846
      %v993 = vmul.f32 %v961, 0.7978846
      %v994 = vmul.f32 %v962, 0.7978846
      %v995 = vmul.f32 %v963, 0.7978846
      %v996 = vmul.f32 %v964, 0.7978846
      %v997 = vmul.f32 %v965, 0.7978846
      %v998 = vmul.f32 %v966, 0.7978846
      %v999 = vmul.f32 %v967, 0.7978846
      %v1000 = vmul.f32 %v968, 0.7978846
      %v1001 = vmul.f32 %v969, 0.7978846
      %v1002 = vmul.f32 %v970, 0.7978846
      %v1003 = vmul.f32 %v971, 0.7978846
      %v1004 = vtanh.pop %v972
      %v1005 = vtanh.pop %v973
      %v1006 = vtanh.pop %v974
      %v1007 = vtanh.pop %v975
      %v1008 = vtanh.pop %v976
      %v1009 = vtanh.pop %v977
      %v1010 = vtanh.pop %v978
      %v1011 = vtanh.pop %v979
      %v1012 = vtanh.pop %v980
      %v1013 = vtanh.pop %v981
      %v1014 = vtanh.pop %v982
      %v1015 = vtanh.pop %v983
      %v1016 = vtanh.pop %v984
      %v1017 = vtanh.pop %v985
      %v1018 = vtanh.pop %v986
      %v1019 = vtanh.pop %v987
      %v1020 = vtanh.pop %v988
      %v1021 = vtanh.pop %v989
      %v1022 = vtanh.pop %v990
      %v1023 = vtanh.pop %v991
      %v1024 = vtanh.pop %v992
      %v1025 = vtanh.pop %v993
      %v1026 = vtanh.pop %v994
      %v1027 = vtanh.pop %v995
      %v1028 = vtanh.pop %v996
      %v1029 = vtanh.pop %v997
      %v1030 = vtanh.pop %v998
      %v1031 = vtanh.pop %v999
      %v1032 = vtanh.pop %v1000
      %v1033 = vtanh.pop %v1001
      %v1034 = vtanh.pop %v1002
      %v1035 = vtanh.pop %v1003
      %v1036 = vadd.f32 %v1004, 1.0
      %v1037 = vadd.f32 %v1005, 1.0
      %v1038 = vadd.f32 %v1006, 1.0
      %v1039 = vadd.f32 %v1007, 1.0
      %v1040 = vadd.f32 %v1008, 1.0
      %v1041 = vadd.f32 %v1009, 1.0
      %v1042 = vadd.f32 %v1010, 1.0
      %v1043 = vadd.f32 %v1011, 1.0
      %v1044 = vadd.f32 %v1012, 1.0
      %v1045 = vadd.f32 %v1013, 1.0
      %v1046 = vadd.f32 %v1014, 1.0
      %v1047 = vadd.f32 %v1015, 1.0
      %v1048 = vadd.f32 %v1016, 1.0
      %v1049 = vadd.f32 %v1017, 1.0
      %v1050 = vadd.f32 %v1018, 1.0
      %v1051 = vadd.f32 %v1019, 1.0
      %v1052 = vadd.f32 %v1020, 1.0
      %v1053 = vadd.f32 %v1021, 1.0
      %v1054 = vadd.f32 %v1022, 1.0
      %v1055 = vadd.f32 %v1023, 1.0
      %v1056 = vadd.f32 %v1024, 1.0
      %v1057 = vadd.f32 %v1025, 1.0
      %v1058 = vadd.f32 %v1026, 1.0
      %v1059 = vadd.f32 %v1027, 1.0
      %v1060 = vadd.f32 %v1028, 1.0
      %v1061 = vadd.f32 %v1029, 1.0
      %v1062 = vadd.f32 %v1030, 1.0
      %v1063 = vadd.f32 %v1031, 1.0
      %v1064 = vadd.f32 %v1032, 1.0
      %v1065 = vadd.f32 %v1033, 1.0
      %v1066 = vadd.f32 %v1034, 1.0
      %v1067 = vadd.f32 %v1035, 1.0
      %v1068 = vmul.f32 %v1036, 0.5
      %v1069 = vmul.f32 %v1037, 0.5
      %v1070 = vmul.f32 %v1038, 0.5
      %v1071 = vmul.f32 %v1039, 0.5
      %v1072 = vmul.f32 %v1040, 0.5
      %v1073 = vmul.f32 %v1041, 0.5
      %v1074 = vmul.f32 %v1042, 0.5
      %v1075 = vmul.f32 %v1043, 0.5
      %v1076 = vmul.f32 %v1044, 0.5
      %v1077 = vmul.f32 %v1045, 0.5
      %v1078 = vmul.f32 %v1046, 0.5
      %v1079 = vmul.f32 %v1047, 0.5
      %v1080 = vmul.f32 %v1048, 0.5
      %v1081 = vmul.f32 %v1049, 0.5
      %v1082 = vmul.f32 %v1050, 0.5
      %v1083 = vmul.f32 %v1051, 0.5
      %v1084 = vmul.f32 %v1052, 0.5
      %v1085 = vmul.f32 %v1053, 0.5
      %v1086 = vmul.f32 %v1054, 0.5
      %v1087 = vmul.f32 %v1055, 0.5
      %v1088 = vmul.f32 %v1056, 0.5
      %v1089 = vmul.f32 %v1057, 0.5
      %v1090 = vmul.f32 %v1058, 0.5
      %v1091 = vmul.f32 %v1059, 0.5
      %v1092 = vmul.f32 %v1060, 0.5
      %v1093 = vmul.f32 %v1061, 0.5
      %v1094 = vmul.f32 %v1062, 0.5
      %v1095 = vmul.f32 %v1063, 0.5
      %v1096 = vmul.f32 %v1064, 0.5
      %v1097 = vmul.f32 %v1065, 0.5
      %v1098 = vmul.f32 %v1066, 0.5
      %v1099 = vmul.f32 %v1067, 0.5
      %v1100 = vmul.f32 %v812, %v1068
      %v1101 = vmul.f32 %v813, %v1069
      %v1102 = vmul.f32 %v814, %v1070
      %v1103 = vmul.f32 %v815, %v1071
      %v1104 = vmul.f32 %v816, %v1072
      %v1105 = vmul.f32 %v817, %v1073
      %v1106 = vmul.f32 %v818, %v1074
      %v1107 = vmul.f32 %v819, %v1075
      %v1108 = vmul.f32 %v820, %v1076
      %v1109 = vmul.f32 %v821, %v1077
      %v1110 = vmul.f32 %v822, %v1078
      %v1111 = vmul.f32 %v823, %v1079
      %v1112 = vmul.f32 %v824, %v1080
      %v1113 = vmul.f32 %v825, %v1081
      %v1114 = vmul.f32 %v826, %v1082
      %v1115 = vmul.f32 %v827, %v1083
      %v1116 = vmul.f32 %v828, %v1084
      %v1117 = vmul.f32 %v829, %v1085
      %v1118 = vmul.f32 %v830, %v1086
      %v1119 = vmul.f32 %v831, %v1087
      %v1120 = vmul.f32 %v832, %v1088
      %v1121 = vmul.f32 %v833, %v1089
      %v1122 = vmul.f32 %v834, %v1090
      %v1123 = vmul.f32 %v835, %v1091
      %v1124 = vmul.f32 %v836, %v1092
      %v1125 = vmul.f32 %v837, %v1093
      %v1126 = vmul.f32 %v838, %v1094
      %v1127 = vmul.f32 %v839, %v1095
      %v1128 = vmul.f32 %v840, %v1096
      %v1129 = vmul.f32 %v841, %v1097
      %v1130 = vmul.f32 %v842, %v1098
      %v1131 = vmul.f32 %v843, %v1099
      %1132 = vst [vmem:[%s224] sm:$0xff] %v1100
      %1133 = vst [vmem:[%s224 + $0x8] sm:$0xff] %v1101
      %1134 = vst [vmem:[%s224 + $0x10] sm:$0xff] %v1102
      %1135 = vst [vmem:[%s224 + $0x18] sm:$0xff] %v1103
      %1136 = vst [vmem:[%s224 + $0x20] sm:$0xff] %v1104
      %1137 = vst [vmem:[%s224 + $0x28] sm:$0xff] %v1105
      %1138 = vst [vmem:[%s224 + $0x30] sm:$0xff] %v1106
      %1139 = vst [vmem:[%s224 + $0x38] sm:$0xff] %v1107
      %1140 = vst [vmem:[%s224 + $0x40] sm:$0xff] %v1108
      %1141 = vst [vmem:[%s224 + $0x48] sm:$0xff] %v1109
      %1142 = vst [vmem:[%s224 + $0x50] sm:$0xff] %v1110
      %1143 = vst [vmem:[%s224 + $0x58] sm:$0xff] %v1111
      %1144 = vst [vmem:[%s224 + $0x60] sm:$0xff] %v1112
      %1145 = vst [vmem:[%s224 + $0x68] sm:$0xff] %v1113
      %1146 = vst [vmem:[%s224 + $0x70] sm:$0xff] %v1114
      %1147 = vst [vmem:[%s224 + $0x78] sm:$0xff] %v1115
      %1148 = vst [vmem:[%s224 + $0x80] sm:$0xff] %v1116
      %1149 = vst [vmem:[%s224 + $0x88] sm:$0xff] %v1117
      %1150 = vst [vmem:[%s224 + $0x90] sm:$0xff] %v1118
      %1151 = vst [vmem:[%s224 + $0x98] sm:$0xff] %v1119
      %1152 = vst [vmem:[%s224 + $0xa0] sm:$0xff] %v1120
      %1153 = vst [vmem:[%s224 + $0xa8] sm:$0xff] %v1121
      %1154 = vst [vmem:[%s224 + $0xb0] sm:$0xff] %v1122
      %1155 = vst [vmem:[%s224 + $0xb8] sm:$0xff] %v1123
      %1156 = vst [vmem:[%s224 + $0xc0] sm:$0xff] %v1124
      %1157 = vst [vmem:[%s224 + $0xc8] sm:$0xff] %v1125
      %1158 = vst [vmem:[%s224 + $0xd0] sm:$0xff] %v1126
      %1159 = vst [vmem:[%s224 + $0xd8] sm:$0xff] %v1127
      %1160 = vst [vmem:[%s224 + $0xe0] sm:$0xff] %v1128
      %1161 = vst [vmem:[%s224 + $0xe8] sm:$0xff] %v1129
      %1162 = vst [vmem:[%s224 + $0xf0] sm:$0xff] %v1130
      %1163 = vst [vmem:[%s224 + $0xf8] sm:$0xff] %v1131
      %p1164 = scmp.lt.s32.totalorder %s16, 1
      %s1165 = scalar_select %p1164, %s16, 1
      %s1166 = smul.addr %s1165, 32
      %s1167 = smul.addr %s1166, 8
      %s1168 = scalar_lea.vmem %s5, %s1167
      // Predicated region
      $region41: #{_lambda_.8} parent=39 // pred_check
        %p1169 = pneg %p144
      $region42: #{_lambda_.8} parent=39 // pred_check_branch
        %1171 = sbr.rel (%p1169) target = $region44
      $region43: #{_lambda_.8} parent=39 // pred_region
        _
      $region44: #{_lambda_.8} parent=39 // pred_fallthru
        _
    $region40: #{_lambda_.8} parent=5 // pred_fallthru
      _
    %p1172 = scmp.le.s32.totalorder 2, %s11
    // Predicated region
    $region45: #{_lambda_.8} parent=5 // pred_check
      %p1173 = pneg %p1172
    $region46: #{_lambda_.8} parent=5 // pred_check_branch
      %1175 = sbr.rel (%p1173) target = $region48
    $region47: #{_lambda_.8} parent=5 // pred_region
      %s1176 = ssub.s32 %s11, 2
      // Predicated region
      $region49: #{_lambda_.8} parent=47 // pred_check
        %p1177 = pneg %p150
      $region50: #{_lambda_.8} parent=47 // pred_check_branch
        %1179 = sbr.rel (%p1177) target = $region52
      $region51: #{_lambda_.8} parent=47 // pred_region
        %p1180 = scmp.lt.s32.totalorder %s17, 1
        %s1181 = scalar_select %p1180, %s17, 1
        %s1182 = smul.addr %s1181, 32
        %s1183 = smul.addr %s1182, 8
        %s1184 = scalar_lea.vmem %s5, %s1183
      $region52: #{_lambda_.8} parent=47 // pred_fallthru
        _
    $region48: #{_lambda_.8} parent=5 // pred_fallthru
      _
  $region6: #{_lambda_.8} parent=0 // loop_footer
    %s15 = sadd.s32 1, %s11
  $region7: #{_lambda_.8} parent=0 // loop_footer_branch
    %10 = sbr.rel target = $region3
  $region8: #{_lambda_.8} parent=0 // loop_exit
    _

// kernel: _lambda_.10
$region0: #{_lambda_.10}
  #allocation0 [shape = 'u32[]', space=smem, size = 0x4, offset = 0x4, fixed_abs, tag = 'smem constant byte address 0x4 - core index']
  #allocation1 [shape = 'u32[144,128]{1,0:T(1,128)}', space=vmem, size = 0x12000, scoped, tag = 'internal scratch']
  %s0 = inlined_call_operand.vmem [shape: f32[2,64,128], index: 0, kind: input, shape index: {}]
  %s1 = inlined_call_operand.vmem [shape: f32[2,66,128], index: 1, kind: input, shape index: {}]
  %s2 = inlined_call_operand.vmem [shape: bf16[3,128,128], index: 2, kind: input, shape index: {}]
  %s3 = inlined_call_operand.vmem [shape: f32[1,128], index: 3, kind: input, shape index: {}]
  %s4 = inlined_call_operand.vmem [shape: f32[2,64,128], index: 4, kind: output, shape index: {}]
  %s5 = sld [smem:[#allocation0]]
  $region49: #{_lambda_.10} parent=0
    _
  %s7 = ssub.s32 1, %s5
  %s8 = scalar_select 0, %s7, %s5
  loop: start=0, step=1, limit=4
  $region2: #{_lambda_.10} parent=0 // loop_pre_header
    _
  $region3: #{_lambda_.10} parent=0 // loop_header
    %s10 = sphi 0, %s14
    %p11 = scmp.ge.s32.totalorder %s10, 4
    %s20 = sphi 0, %s22
    %s23 = sphi 0, %s20
    %s24 = sphi 0, %s23
    %s40 = sphi 0, %s24
    %s46 = sphi 0, %s48
    %s49 = sphi 0, %s46
    %s50 = sphi 0, %s49
    %s66 = sphi 0, %s50
    %s70 = sphi 0, %s70
    %s72 = sphi 0, %s70
    %s73 = sphi 0, %s72
    %s87 = sphi 0, %s73
    %s91 = sphi 0, %s91
    %s93 = sphi 0, %s91
    %s94 = sphi 0, %s93
    %s108 = sphi 0, %s94
    %s114 = sphi 0, %s116
    %s117 = sphi 0, %s114
    %s118 = sphi 0, %s117
    %s134 = sphi 0, %s118
  $region4: #{_lambda_.10} parent=0 // loop_header_branch
    %13 = sbr.rel (%p11) target = $region8
  $region5: #{_lambda_.10} parent=0 // loop_body
    %s15 = ssub.s32 %s10, 1
    %s16 = ssub.s32 %s10, 2
    %s17 = sadd.s32 %s10, 1
    %s18 = ssub.s32 %s10, %s17
    %p19 = scmp.eq.s32.totalorder %s18, 0
    %s21 = sadd.s32 %s20, 1
    %s22 = scalar_select %p19, %s20, %s21
    %p25 = pneg %p19
    %p26 = scmp.eq.s32.totalorder %s10, 1
    %p27 = por %p25, %p26
    %p28 = scmp.ne.s32.totalorder %s20, %s23
    %p29 = scmp.eq.s32.totalorder %s10, 0
    %p30 = por %p28, %p29
    %p31 = scmp.ne.s32.totalorder %s20, %s23
    %p32 = scmp.eq.s32.totalorder %s15, 1
    %p33 = por %p31, %p32
    %p34 = scmp.ne.s32.totalorder %s23, %s24
    %p35 = scmp.eq.s32.totalorder %s15, 0
    %p36 = por %p34, %p35
    %p37 = scmp.ne.s32.totalorder %s23, %s24
    %p38 = scmp.eq.s32.totalorder %s16, 1
    %p39 = por %p37, %p38
    %p41 = scmp.ne.s32.totalorder %s24, %s40
    %p42 = scmp.eq.s32.totalorder %s16, 0
    %p43 = por %p41, %p42
    %s44 = ssub.s32 %s10, %s17
    %p45 = scmp.eq.s32.totalorder %s44, 0
    %s47 = sadd.s32 %s46, 1
    %s48 = scalar_select %p45, %s46, %s47
    %p51 = pneg %p45
    %p52 = scmp.eq.s32.totalorder %s10, 1
    %p53 = por %p51, %p52
    %p54 = scmp.ne.s32.totalorder %s46, %s49
    %p55 = scmp.eq.s32.totalorder %s10, 0
    %p56 = por %p54, %p55
    %p57 = scmp.ne.s32.totalorder %s46, %s49
    %p58 = scmp.eq.s32.totalorder %s15, 1
    %p59 = por %p57, %p58
    %p60 = scmp.ne.s32.totalorder %s49, %s50
    %p61 = scmp.eq.s32.totalorder %s15, 0
    %p62 = por %p60, %p61
    %p63 = scmp.ne.s32.totalorder %s49, %s50
    %p64 = scmp.eq.s32.totalorder %s16, 1
    %p65 = por %p63, %p64
    %p67 = scmp.ne.s32.totalorder %s50, %s66
    %p68 = scmp.eq.s32.totalorder %s16, 0
    %p69 = por %p67, %p68
    %s71 = sadd.s32 %s70, 1
    %p74 = scmp.eq.s32.totalorder %s10, 1
    %p75 = scmp.ne.s32.totalorder %s70, %s72
    %p76 = scmp.eq.s32.totalorder %s10, 0
    %p77 = por %p75, %p76
    %p78 = scmp.ne.s32.totalorder %s70, %s72
    %p79 = scmp.eq.s32.totalorder %s15, 1
    %p80 = por %p78, %p79
    %p81 = scmp.ne.s32.totalorder %s72, %s73
    %p82 = scmp.eq.s32.totalorder %s15, 0
    %p83 = por %p81, %p82
    %p84 = scmp.ne.s32.totalorder %s72, %s73
    %p85 = scmp.eq.s32.totalorder %s16, 1
    %p86 = por %p84, %p85
    %p88 = scmp.ne.s32.totalorder %s73, %s87
    %p89 = scmp.eq.s32.totalorder %s16, 0
    %p90 = por %p88, %p89
    %s92 = sadd.s32 %s91, 1
    %p95 = scmp.eq.s32.totalorder %s10, 1
    %p96 = scmp.ne.s32.totalorder %s91, %s93
    %p97 = scmp.eq.s32.totalorder %s10, 0
    %p98 = por %p96, %p97
    %p99 = scmp.ne.s32.totalorder %s91, %s93
    %p100 = scmp.eq.s32.totalorder %s15, 1
    %p101 = por %p99, %p100
    %p102 = scmp.ne.s32.totalorder %s93, %s94
    %p103 = scmp.eq.s32.totalorder %s15, 0
    %p104 = por %p102, %p103
    %p105 = scmp.ne.s32.totalorder %s93, %s94
    %p106 = scmp.eq.s32.totalorder %s16, 1
    %p107 = por %p105, %p106
    %p109 = scmp.ne.s32.totalorder %s94, %s108
    %p110 = scmp.eq.s32.totalorder %s16, 0
    %p111 = por %p109, %p110
    %s112 = ssub.s32 %s10, %s17
    %p113 = scmp.eq.s32.totalorder %s112, 0
    %s115 = sadd.s32 %s114, 1
    %s116 = scalar_select %p113, %s114, %s115
    %p119 = pneg %p113
    %p120 = scmp.eq.s32.totalorder %s10, 1
    %p121 = por %p119, %p120
    %p122 = scmp.ne.s32.totalorder %s114, %s117
    %p123 = scmp.eq.s32.totalorder %s10, 0
    %p124 = por %p122, %p123
    %p125 = scmp.ne.s32.totalorder %s114, %s117
    %p126 = scmp.eq.s32.totalorder %s15, 1
    %p127 = por %p125, %p126
    %p128 = scmp.ne.s32.totalorder %s117, %s118
    %p129 = scmp.eq.s32.totalorder %s15, 0
    %p130 = por %p128, %p129
    %p131 = scmp.ne.s32.totalorder %s117, %s118
    %p132 = scmp.eq.s32.totalorder %s16, 1
    %p133 = por %p131, %p132
    %p135 = scmp.ne.s32.totalorder %s118, %s134
    %p136 = scmp.eq.s32.totalorder %s16, 0
    %p137 = por %p135, %p136
    %p138 = scmp.le.s32.totalorder 1, %s10
    %p139 = scmp.lt.s32.totalorder %s10, 3
    %p140 = pnand %p138, %p139
    %p141 = pneg %p140
    // Predicated region
    $region9: #{_lambda_.10} parent=5 // pred_check
      _
    $region10: #{_lambda_.10} parent=5 // pred_check_branch
      %143 = sbr.rel (%p140) target = $region12
    $region11: #{_lambda_.10} parent=5 // pred_region
      %s144 = ssub.s32 %s10, 1
      // Predicated region
      $region13: #{_lambda_.10} parent=11 // pred_check
        %p145 = pneg %p83
      $region14: #{_lambda_.10} parent=11 // pred_check_branch
        %147 = sbr.rel (%p145) target = $region16
      $region15: #{_lambda_.10} parent=11 // pred_region
        _
      $region16: #{_lambda_.10} parent=11 // pred_fallthru
        _
      // Predicated region
      $region17: #{_lambda_.10} parent=11 // pred_check
        %p148 = pneg %p104
      $region18: #{_lambda_.10} parent=11 // pred_check_branch
        %150 = sbr.rel (%p148) target = $region20
      $region19: #{_lambda_.10} parent=11 // pred_region
        _
      $region20: #{_lambda_.10} parent=11 // pred_fallthru
        _
    $region12: #{_lambda_.10} parent=5 // pred_fallthru
      _
    %p151 = scmp.lt.s32.totalorder %s10, 2
    // Predicated region
    $region21: #{_lambda_.10} parent=5 // pred_check
      %p152 = pneg %p151
    $region22: #{_lambda_.10} parent=5 // pred_check_branch
      %154 = sbr.rel (%p152) target = $region24
    $region23: #{_lambda_.10} parent=5 // pred_region
      // Predicated region
      $region25: #{_lambda_.10} parent=23 // pred_check
        %p155 = pneg %p30
      $region26: #{_lambda_.10} parent=23 // pred_check_branch
        %157 = sbr.rel (%p155) target = $region28
      $region27: #{_lambda_.10} parent=23 // pred_region
        %p158 = scmp.lt.s32.totalorder %s10, 1
        %s159 = scalar_select %p158, %s10, 1
        %s160 = smul.addr %s159, 8
        %s161 = smul.addr %s160, 8
        %s162 = scalar_lea.vmem %s0, %s161
      $region28: #{_lambda_.10} parent=23 // pred_fallthru
        _
      // Predicated region
      $region29: #{_lambda_.10} parent=23 // pred_check
        %p163 = pneg %p56
      $region30: #{_lambda_.10} parent=23 // pred_check_branch
        %165 = sbr.rel (%p163) target = $region32
      $region31: #{_lambda_.10} parent=23 // pred_region
        %p166 = scmp.lt.s32.totalorder %s10, 1
        %s167 = scalar_select %p166, %s10, 1
        %s168 = smul.addr %s167, 9
        %s169 = smul.addr %s168, 8
        %s170 = scalar_lea.vmem %s1, %s169
      $region32: #{_lambda_.10} parent=23 // pred_fallthru
        _
    $region24: #{_lambda_.10} parent=5 // pred_fallthru
      _
    %p171 = scmp.le.s32.totalorder 1, %s10
    %p172 = scmp.lt.s32.totalorder %s10, 3
    %p173 = pnand %p171, %p172
    %p174 = pneg %p173
    // Predicated region
    $region33: #{_lambda_.10} parent=5 // pred_check
      _
    $region34: #{_lambda_.10} parent=5 // pred_check_branch
      %176 = sbr.rel (%p173) target = $region36
    $region35: #{_lambda_.10} parent=5 // pred_region
      %s177 = ssub.s32 %s10, 1
      %p178 = scmp.lt.s32.totalorder %s15, 1
      %s179 = scalar_select %p178, %s15, 1
      %s180 = smul.addr %s179, 8
      %s181 = smul.addr %s180, 8
      %s182 = scalar_lea.vmem %s0, %s181
      %p183 = pneg %p36
      %p184 = pneg %p33
      %p185 = scmp.lt.s32.totalorder %s15, 1
      %s186 = scalar_select %p185, %s15, 1
      %s187 = smul.addr %s186, 9
      %s188 = smul.addr %s187, 8
      %s189 = scalar_lea.vmem %s1, %s188
      %p190 = pneg %p62
      %p191 = pneg %p59
      %p192 = pneg %p83
      %p193 = pneg %p80
      %p194 = pneg %p104
      %p195 = pneg %p101
      %p196 = pneg %p130
      %p197 = pneg %p127
      %p198 = scmp.lt.s32.totalorder %s15, 1
      %s199 = scalar_select %p198, %s15, 1
      %s200 = smul.addr %s199, 8
      %s201 = smul.addr %s200, 8
      %s202 = scalar_lea.vmem %s4, %s201
      %p203 = scmp.lt.s32.totalorder %s15, 1
      %s204 = scalar_select %p203, %s15, 1
      %s205 = smul.addr %s204, 8
      %s206 = smul.addr %s205, 8
      %s207 = scalar_lea.vmem %s0, %s206
      %p208 = scmp.lt.s32.totalorder %s15, 1
      %s209 = scalar_select %p208, %s15, 1
      %s210 = smul.addr %s209, 9
      %s211 = smul.addr %s210, 8
      %s212 = scalar_lea.vmem %s1, %s211
      %p213 = scmp.lt.s32.totalorder %s15, 1
      %s214 = scalar_select %p213, %s15, 1
      %s215 = smul.addr %s214, 8
      %s216 = smul.addr %s215, 8
      %s217 = scalar_lea.vmem %s4, %s216
      %v219 = vld [vmem:[%s212] sm:$0xff]
      %v220 = vld [vmem:[%s212 + $0x8] sm:$0xff]
      %v221 = vld [vmem:[%s212 + $0x10] sm:$0xff]
      %v222 = vld [vmem:[%s212 + $0x18] sm:$0xff]
      %v223 = vld [vmem:[%s212 + $0x20] sm:$0xff]
      %v224 = vld [vmem:[%s212 + $0x28] sm:$0xff]
      %v225 = vld [vmem:[%s212 + $0x30] sm:$0xff]
      %v226 = vld [vmem:[%s212 + $0x38] sm:$0xff]
      %v227 = vld [vmem:[%s212 + $0x40] sm:$0x3]
      %v228 = vpack.c.bf16 %v220, %v219
      %v229 = vpack.c.bf16 %v222, %v221
      %v230 = vpack.c.bf16 %v224, %v223
      %v231 = vpack.c.bf16 %v226, %v225
      %v232 = vld [vmem:[%s2] sm:$0xf]
      %v233 = vld [vmem:[%s2 + $0x4] sm:$0xf]
      %v234 = vld [vmem:[%s2 + $0x8] sm:$0xf]
      %v235 = vld [vmem:[%s2 + $0xc] sm:$0xf]
      %v236 = vld [vmem:[%s2 + $0x10] sm:$0xf]
      %v237 = vld [vmem:[%s2 + $0x14] sm:$0xf]
      %v238 = vld [vmem:[%s2 + $0x18] sm:$0xf]
      %v239 = vld [vmem:[%s2 + $0x1c] sm:$0xf]
      %v240 = vld [vmem:[%s2 + $0x20] sm:$0xf]
      %v241 = vld [vmem:[%s2 + $0x24] sm:$0xf]
      %v242 = vld [vmem:[%s2 + $0x28] sm:$0xf]
      %v243 = vld [vmem:[%s2 + $0x2c] sm:$0xf]
      %v244 = vld [vmem:[%s2 + $0x30] sm:$0xf]
      %v245 = vld [vmem:[%s2 + $0x34] sm:$0xf]
      %v246 = vld [vmem:[%s2 + $0x38] sm:$0xf]
      %v247 = vld [vmem:[%s2 + $0x3c] sm:$0xf]
      %v248 = vpack.c.bf16 %v227, %v227
      %s249 = scalar_lea.vmem %s2, 64
      %v250 = vld [vmem:[%s249] sm:$0xf]
      %v251 = vld [vmem:[%s249 + $0x4] sm:$0xf]
      %v252 = vld [vmem:[%s249 + $0x8] sm:$0xf]
      %v253 = vld [vmem:[%s249 + $0xc] sm:$0xf]
      %v254 = vld [vmem:[%s249 + $0x10] sm:$0xf]
      %v255 = vld [vmem:[%s249 + $0x14] sm:$0xf]
      %v256 = vld [vmem:[%s249 + $0x18] sm:$0xf]
      %v257 = vld [vmem:[%s249 + $0x1c] sm:$0xf]
      %v258 = vld [vmem:[%s249 + $0x20] sm:$0xf]
      %v259 = vld [vmem:[%s249 + $0x24] sm:$0xf]
      %v260 = vld [vmem:[%s249 + $0x28] sm:$0xf]
      %v261 = vld [vmem:[%s249 + $0x2c] sm:$0xf]
      %v262 = vld [vmem:[%s249 + $0x30] sm:$0xf]
      %v263 = vld [vmem:[%s249 + $0x34] sm:$0xf]
      %v264 = vld [vmem:[%s249 + $0x38] sm:$0xf]
      %v265 = vld [vmem:[%s249 + $0x3c] sm:$0xf]
      %vm266 = vsmask.f32 7424
      %v268 = vshrl.u32 %v228, 16
      %v270 = vshll.u32 %v228, 16
      %v272 = vrot.slane %v270, 1
      %v273 = vor.u32 %v268, %v272
      %v275 = vshll.u32 %v229, 16
      %v277 = vrot.slane %v275, 1
      %v278 = vsel %vm266, %v273, %v277
      %v279 = vshrl.u32 %v229, 16
      %v281 = vor.u32 %v279, %v277
      %v283 = vshll.u32 %v230, 16
      %v285 = vrot.slane %v283, 1
      %v286 = vsel %vm266, %v281, %v285
      %v287 = vshrl.u32 %v230, 16
      %v289 = vor.u32 %v287, %v285
      %v291 = vshll.u32 %v231, 16
      %v293 = vrot.slane %v291, 1
      %v294 = vsel %vm266, %v289, %v293
      %v295 = vshrl.u32 %v231, 16
      %v297 = vor.u32 %v295, %v293
      %v299 = vshll.u32 %v248, 16
      %v301 = vrot.slane %v299, 1
      %v302 = vsel %vm266, %v297, %v301
      %v323 = vunpack.c.l.b16 %v250
      %v324 = vunpack.c.l.b16 %v251
      %v325 = vunpack.c.l.b16 %v252
      %v326 = vunpack.c.l.b16 %v253
      %v327 = vunpack.c.l.b16 %v254
      %v328 = vunpack.c.l.b16 %v255
      %v329 = vunpack.c.l.b16 %v256
      %v330 = vunpack.c.l.b16 %v257
      %v331 = vunpack.c.l.b16 %v258
      %v332 = vunpack.c.l.b16 %v259
      %v333 = vunpack.c.l.b16 %v260
      %v334 = vunpack.c.l.b16 %v261
      %v335 = vunpack.c.l.b16 %v262
      %v336 = vunpack.c.l.b16 %v263
      %v337 = vunpack.c.l.b16 %v264
      %v338 = vunpack.c.l.b16 %v265
      %v339 = vpack.c.b16 %v324, %v323
      %v340 = vpack.c.b16 %v326, %v325
      %v341 = vpack.c.b16 %v328, %v327
      %v342 = vpack.c.b16 %v330, %v329
      %v343 = vpack.c.b16 %v332, %v331
      %v344 = vpack.c.b16 %v334, %v333
      %v345 = vpack.c.b16 %v336, %v335
      %v346 = vpack.c.b16 %v338, %v337
      %355 = vmatprep.subr.bf16.mxu0 0
      %356 = vmatpush1.bf16.msra.mxu0 %v339
      %357 = vmatprep.subr.bf16.mxu0 0
      %358 = vmatpush1.bf16.msra.mxu0 %v340
      %359 = vmatprep.subr.bf16.mxu0 0
      %360 = vmatpush1.bf16.msra.mxu0 %v341
      %361 = vmatprep.subr.bf16.mxu0 0
      %362 = vmatpush1.bf16.msra.mxu0 %v342
      %363 = vmatprep.subr.bf16.mxu0 0
      %364 = vmatpush1.bf16.msra.mxu0 %v343
      %365 = vmatprep.subr.bf16.mxu0 0
      %366 = vmatpush1.bf16.msra.mxu0 %v344
      %367 = vmatprep.subr.bf16.mxu0 0
      %368 = vmatpush1.bf16.msra.mxu0 %v345
      %369 = vmatprep.subr.bf16.mxu0 0
      %370 = vmatpush1.bf16.msra.mxu0 %v346
      %371 = vmatprep.subr.bf16.mxu0 0
      %372 = vmatpush1.bf16.msra.mxu0 0
      %373 = vmatprep.subr.bf16.mxu0 0
      %374 = vmatpush1.bf16.msra.mxu0 0
      %375 = vmatprep.subr.bf16.mxu0 0
      %376 = vmatpush1.bf16.msra.mxu0 0
      %377 = vmatprep.subr.bf16.mxu0 0
      %378 = vmatpush1.bf16.msra.mxu0 0
      %379 = vmatprep.subr.bf16.mxu0 0
      %380 = vmatpush1.bf16.msra.mxu0 0
      %381 = vmatprep.subr.bf16.mxu0 0
      %382 = vmatpush1.bf16.msra.mxu0 0
      %383 = vmatprep.subr.bf16.mxu0 0
      %384 = vmatpush1.bf16.msra.mxu0 0
      %385 = vmatprep.subr.bf16.mxu0 0
      %386 = vmatpush1.bf16.msra.mxu0 0
      %387 = vmatprep.mubr.bf16.mxu0 0
      %388 = vmatmul.mubr.bf16.gmra.mrb[0].mxu0 %v278
      %v389 = vpop.f32.mrb[0].mxu0
      %v390 = vadd.f32 0.0, %v389
      %v391 = vpop.f32.mrb[0].mxu0
      %v392 = vpop.f32.mrb[0].mxu0
      %v393 = vadd.f32 0.0, %v392
      %v394 = vpop.f32.mrb[0].mxu0
      %395 = vmatprep.mubr.bf16.mxu0 0
      %396 = vmatmul.mubr.bf16.gmra.mrb[0].mxu0 %v286
      %v397 = vpop.f32.mrb[0].mxu0
      %v398 = vadd.f32 0.0, %v397
      %v399 = vpop.f32.mrb[0].mxu0
      %v400 = vpop.f32.mrb[0].mxu0
      %v401 = vadd.f32 0.0, %v400
      %v402 = vpop.f32.mrb[0].mxu0
      %403 = vmatprep.mubr.bf16.mxu0 0
      %404 = vmatmul.mubr.bf16.gmra.mrb[0].mxu0 %v294
      %v405 = vpop.f32.mrb[0].mxu0
      %v406 = vadd.f32 0.0, %v405
      %v407 = vpop.f32.mrb[0].mxu0
      %v408 = vpop.f32.mrb[0].mxu0
      %v409 = vadd.f32 0.0, %v408
      %v410 = vpop.f32.mrb[0].mxu0
      %411 = vmatprep.mubr.bf16.mxu0 0
      %412 = vmatmul.mubr.bf16.gmra.mrb[0].mxu0 %v302
      %v413 = vpop.f32.mrb[0].mxu0
      %v414 = vadd.f32 0.0, %v413
      %v415 = vpop.f32.mrb[0].mxu0
      %v416 = vpop.f32.mrb[0].mxu0
      %v417 = vadd.f32 0.0, %v416
      %v418 = vpop.f32.mrb[0].mxu0
      %419 = vdwg.mxu0
      %v436 = vunpack.c.l.b16 %v232
      %v437 = vunpack.c.l.b16 %v233
      %v438 = vunpack.c.l.b16 %v234
      %v439 = vunpack.c.l.b16 %v235
      %v440 = vunpack.c.l.b16 %v236
      %v441 = vunpack.c.l.b16 %v237
      %v442 = vunpack.c.l.b16 %v238
      %v443 = vunpack.c.l.b16 %v239
      %v444 = vunpack.c.l.b16 %v240
      %v445 = vunpack.c.l.b16 %v241
      %v446 = vunpack.c.l.b16 %v242
      %v447 = vunpack.c.l.b16 %v243
      %v448 = vunpack.c.l.b16 %v244
      %v449 = vunpack.c.l.b16 %v245
      %v450 = vunpack.c.l.b16 %v246
      %v451 = vunpack.c.l.b16 %v247
      %v452 = vpack.c.b16 %v437, %v436
      %v453 = vpack.c.b16 %v439, %v438
      %v454 = vpack.c.b16 %v441, %v440
      %v455 = vpack.c.b16 %v443, %v442
      %v456 = vpack.c.b16 %v445, %v444
      %v457 = vpack.c.b16 %v447, %v446
      %v458 = vpack.c.b16 %v449, %v448
      %v459 = vpack.c.b16 %v451, %v450
      %468 = vmatprep.subr.bf16.mxu0 0
      %469 = vmatpush1.bf16.msra.mxu0 %v452
      %470 = vmatprep.subr.bf16.mxu0 0
      %471 = vmatpush1.bf16.msra.mxu0 %v453
      %472 = vmatprep.subr.bf16.mxu0 0
      %473 = vmatpush1.bf16.msra.mxu0 %v454
      %474 = vmatprep.subr.bf16.mxu0 0
      %475 = vmatpush1.bf16.msra.mxu0 %v455
      %476 = vmatprep.subr.bf16.mxu0 0
      %477 = vmatpush1.bf16.msra.mxu0 %v456
      %478 = vmatprep.subr.bf16.mxu0 0
      %479 = vmatpush1.bf16.msra.mxu0 %v457
      %480 = vmatprep.subr.bf16.mxu0 0
      %481 = vmatpush1.bf16.msra.mxu0 %v458
      %482 = vmatprep.subr.bf16.mxu0 0
      %483 = vmatpush1.bf16.msra.mxu0 %v459
      %484 = vmatprep.subr.bf16.mxu0 0
      %485 = vmatpush1.bf16.msra.mxu0 0
      %486 = vmatprep.subr.bf16.mxu0 0
      %487 = vmatpush1.bf16.msra.mxu0 0
      %488 = vmatprep.subr.bf16.mxu0 0
      %489 = vmatpush1.bf16.msra.mxu0 0
      %490 = vmatprep.subr.bf16.mxu0 0
      %491 = vmatpush1.bf16.msra.mxu0 0
      %492 = vmatprep.subr.bf16.mxu0 0
      %493 = vmatpush1.bf16.msra.mxu0 0
      %494 = vmatprep.subr.bf16.mxu0 0
      %495 = vmatpush1.bf16.msra.mxu0 0
      %496 = vmatprep.subr.bf16.mxu0 0
      %497 = vmatpush1.bf16.msra.mxu0 0
      %498 = vmatprep.subr.bf16.mxu0 0
      %499 = vmatpush1.bf16.msra.mxu0 0
      %500 = vmatprep.mubr.bf16.mxu0 0
      %501 = vmatmul.mubr.bf16.gmra.mrb[0].mxu0 %v228
      %v502 = vpop.f32.mrb[0].mxu0
      %v503 = vadd.f32 %v390, %v502
      %v504 = vpop.f32.mrb[0].mxu0
      %v505 = vpop.f32.mrb[0].mxu0
      %v506 = vadd.f32 %v393, %v505
      %v507 = vpop.f32.mrb[0].mxu0
      %508 = vmatprep.mubr.bf16.mxu0 0
      %509 = vmatmul.mubr.bf16.gmra.mrb[0].mxu0 %v229
      %v510 = vpop.f32.mrb[0].mxu0
      %v511 = vadd.f32 %v398, %v510
      %v512 = vpop.f32.mrb[0].mxu0
      %v513 = vpop.f32.mrb[0].mxu0
      %v514 = vadd.f32 %v401, %v513
      %v515 = vpop.f32.mrb[0].mxu0
      %516 = vmatprep.mubr.bf16.mxu0 0
      %517 = vmatmul.mubr.bf16.gmra.mrb[0].mxu0 %v230
      %v518 = vpop.f32.mrb[0].mxu0
      %v519 = vadd.f32 %v406, %v518
      %v520 = vpop.f32.mrb[0].mxu0
      %v521 = vpop.f32.mrb[0].mxu0
      %v522 = vadd.f32 %v409, %v521
      %v523 = vpop.f32.mrb[0].mxu0
      %524 = vmatprep.mubr.bf16.mxu0 0
      %525 = vmatmul.mubr.bf16.gmra.mrb[0].mxu0 %v231
      %v526 = vpop.f32.mrb[0].mxu0
      %v527 = vadd.f32 %v414, %v526
      %v528 = vpop.f32.mrb[0].mxu0
      %v529 = vpop.f32.mrb[0].mxu0
      %v530 = vadd.f32 %v417, %v529
      %v531 = vpop.f32.mrb[0].mxu0
      %532 = vdwg.mxu0
      %s533 = scalar_lea.vmem %s2, 128
      %v534 = vld [vmem:[%s533] sm:$0xf]
      %v535 = vld [vmem:[%s533 + $0x4] sm:$0xf]
      %v536 = vld [vmem:[%s533 + $0x8] sm:$0xf]
      %v537 = vld [vmem:[%s533 + $0xc] sm:$0xf]
      %v538 = vld [vmem:[%s533 + $0x10] sm:$0xf]
      %v539 = vld [vmem:[%s533 + $0x14] sm:$0xf]
      %v540 = vld [vmem:[%s533 + $0x18] sm:$0xf]
      %v541 = vld [vmem:[%s533 + $0x1c] sm:$0xf]
      %v542 = vld [vmem:[%s533 + $0x20] sm:$0xf]
      %v543 = vld [vmem:[%s533 + $0x24] sm:$0xf]
      %v544 = vld [vmem:[%s533 + $0x28] sm:$0xf]
      %v545 = vld [vmem:[%s533 + $0x2c] sm:$0xf]
      %v546 = vld [vmem:[%s533 + $0x30] sm:$0xf]
      %v547 = vld [vmem:[%s533 + $0x34] sm:$0xf]
      %v548 = vld [vmem:[%s533 + $0x38] sm:$0xf]
      %v549 = vld [vmem:[%s533 + $0x3c] sm:$0xf]
      %vm555 = vcmask 1046528
      %v556 = vrot.slane %v228, 1
      %v557 = vrot.slane %v229, 1
      %v558 = vsel %vm555, %v556, %v557
      %v559 = vrot.slane %v230, 1
      %v560 = vsel %vm555, %v557, %v559
      %v561 = vrot.slane %v231, 1
      %v562 = vsel %vm555, %v559, %v561
      %v563 = vrot.slane %v248, 1
      %v564 = vsel %vm555, %v561, %v563
      %v585 = vunpack.c.l.b16 %v534
      %v586 = vunpack.c.l.b16 %v535
      %v587 = vunpack.c.l.b16 %v536
      %v588 = vunpack.c.l.b16 %v537
      %v589 = vunpack.c.l.b16 %v538
      %v590 = vunpack.c.l.b16 %v539
      %v591 = vunpack.c.l.b16 %v540
      %v592 = vunpack.c.l.b16 %v541
      %v593 = vunpack.c.l.b16 %v542
      %v594 = vunpack.c.l.b16 %v543
      %v595 = vunpack.c.l.b16 %v544
      %v596 = vunpack.c.l.b16 %v545
      %v597 = vunpack.c.l.b16 %v546
      %v598 = vunpack.c.l.b16 %v547
      %v599 = vunpack.c.l.b16 %v548
      %v600 = vunpack.c.l.b16 %v549
      %v601 = vpack.c.b16 %v586, %v585
      %v602 = vpack.c.b16 %v588, %v587
      %v603 = vpack.c.b16 %v590, %v589
      %v604 = vpack.c.b16 %v592, %v591
      %v605 = vpack.c.b16 %v594, %v593
      %v606 = vpack.c.b16 %v596, %v595
      %v607 = vpack.c.b16 %v598, %v597
      %v608 = vpack.c.b16 %v600, %v599
      %617 = vmatprep.subr.bf16.mxu0 0
      %618 = vmatpush1.bf16.msra.mxu0 %v601
      %619 = vmatprep.subr.bf16.mxu0 0
      %620 = vmatpush1.bf16.msra.mxu0 %v602
      %621 = vmatprep.subr.bf16.mxu0 0
      %622 = vmatpush1.bf16.msra.mxu0 %v603
      %623 = vmatprep.subr.bf16.mxu0 0
      %624 = vmatpush1.bf16.msra.mxu0 %v604
      %625 = vmatprep.subr.bf16.mxu0 0
      %626 = vmatpush1.bf16.msra.mxu0 %v605
      %627 = vmatprep.subr.bf16.mxu0 0
      %628 = vmatpush1.bf16.msra.mxu0 %v606
      %629 = vmatprep.subr.bf16.mxu0 0
      %630 = vmatpush1.bf16.msra.mxu0 %v607
      %631 = vmatprep.subr.bf16.mxu0 0
      %632 = vmatpush1.bf16.msra.mxu0 %v608
      %633 = vmatprep.subr.bf16.mxu0 0
      %634 = vmatpush1.bf16.msra.mxu0 0
      %635 = vmatprep.subr.bf16.mxu0 0
      %636 = vmatpush1.bf16.msra.mxu0 0
      %637 = vmatprep.subr.bf16.mxu0 0
      %638 = vmatpush1.bf16.msra.mxu0 0
      %639 = vmatprep.subr.bf16.mxu0 0
      %640 = vmatpush1.bf16.msra.mxu0 0
      %641 = vmatprep.subr.bf16.mxu0 0
      %642 = vmatpush1.bf16.msra.mxu0 0
      %643 = vmatprep.subr.bf16.mxu0 0
      %644 = vmatpush1.bf16.msra.mxu0 0
      %645 = vmatprep.subr.bf16.mxu0 0
      %646 = vmatpush1.bf16.msra.mxu0 0
      %647 = vmatprep.subr.bf16.mxu0 0
      %648 = vmatpush1.bf16.msra.mxu0 0
      %649 = vmatprep.mubr.bf16.mxu0 0
      %650 = vmatmul.mubr.bf16.gmra.mrb[0].mxu0 %v558
      %v651 = vpop.f32.mrb[0].mxu0
      %v652 = vadd.f32 0.0, %v651
      %v653 = vpop.f32.mrb[0].mxu0
      %v654 = vpop.f32.mrb[0].mxu0
      %v655 = vadd.f32 0.0, %v654
      %v656 = vpop.f32.mrb[0].mxu0
      %657 = vmatprep.mubr.bf16.mxu0 0
      %658 = vmatmul.mubr.bf16.gmra.mrb[0].mxu0 %v560
      %v659 = vpop.f32.mrb[0].mxu0
      %v660 = vadd.f32 0.0, %v659
      %v661 = vpop.f32.mrb[0].mxu0
      %v662 = vpop.f32.mrb[0].mxu0
      %v663 = vadd.f32 0.0, %v662
      %v664 = vpop.f32.mrb[0].mxu0
      %665 = vmatprep.mubr.bf16.mxu0 0
      %666 = vmatmul.mubr.bf16.gmra.mrb[0].mxu0 %v562
      %v667 = vpop.f32.mrb[0].mxu0
      %v668 = vadd.f32 0.0, %v667
      %v669 = vpop.f32.mrb[0].mxu0
      %v670 = vpop.f32.mrb[0].mxu0
      %v671 = vadd.f32 0.0, %v670
      %v672 = vpop.f32.mrb[0].mxu0
      %673 = vmatprep.mubr.bf16.mxu0 0
      %674 = vmatmul.mubr.bf16.gmra.mrb[0].mxu0 %v564
      %v675 = vpop.f32.mrb[0].mxu0
      %v676 = vadd.f32 0.0, %v675
      %v677 = vpop.f32.mrb[0].mxu0
      %v678 = vpop.f32.mrb[0].mxu0
      %v679 = vadd.f32 0.0, %v678
      %v680 = vpop.f32.mrb[0].mxu0
      %681 = vdwg.mxu0
      %v682 = vadd.f32 %v503, %v652
      %v683 = vadd.f32 %v506, %v655
      %v684 = vadd.f32 %v511, %v660
      %v685 = vadd.f32 %v514, %v663
      %v686 = vadd.f32 %v519, %v668
      %v687 = vadd.f32 %v522, %v671
      %v688 = vadd.f32 %v527, %v676
      %v689 = vadd.f32 %v530, %v679
      %v690 = vld [vmem:[%s3] sm:$0x1]
      %v692 = vlaneseq
      %v693 = vshrl.u32 %v692, 7
      %v694 = vsub.s32 0, %v693
      %v695 = vrot.slane %v690, %v694
      %v697 = vadd.f32 %v682, %v695
      %v698 = vadd.f32 %v683, %v695
      %v699 = vadd.f32 %v684, %v695
      %v700 = vadd.f32 %v685, %v695
      %v701 = vadd.f32 %v686, %v695
      %v702 = vadd.f32 %v687, %v695
      %v703 = vadd.f32 %v688, %v695
      %v704 = vadd.f32 %v689, %v695
      %v705 = vmul.f32 %v697, %v697
      %v706 = vmul.f32 %v698, %v698
      %v707 = vmul.f32 %v699, %v699
      %v708 = vmul.f32 %v700, %v700
      %v709 = vmul.f32 %v701, %v701
      %v710 = vmul.f32 %v702, %v702
      %v711 = vmul.f32 %v703, %v703
      %v712 = vmul.f32 %v704, %v704
      %v713 = vmul.f32 %v697, %v705
      %v714 = vmul.f32 %v698, %v706
      %v715 = vmul.f32 %v699, %v707
      %v716 = vmul.f32 %v700, %v708
      %v717 = vmul.f32 %v701, %v709
      %v718 = vmul.f32 %v702, %v710
      %v719 = vmul.f32 %v703, %v711
      %v720 = vmul.f32 %v704, %v712
      %v721 = vmul.f32 %v713, 0.044715
      %v722 = vmul.f32 %v714, 0.044715
      %v723 = vmul.f32 %v715, 0.044715
      %v724 = vmul.f32 %v716, 0.044715
      %v725 = vmul.f32 %v717, 0.044715
      %v726 = vmul.f32 %v718, 0.044715
      %v727 = vmul.f32 %v719, 0.044715
      %v728 = vmul.f32 %v720, 0.044715
      %v729 = vadd.f32 %v697, %v721
      %v730 = vadd.f32 %v698, %v722
      %v731 = vadd.f32 %v699, %v723
      %v732 = vadd.f32 %v700, %v724
      %v733 = vadd.f32 %v701, %v725
      %v734 = vadd.f32 %v702, %v726
      %v735 = vadd.f32 %v703, %v727
      %v736 = vadd.f32 %v704, %v728
      %v737 = vmul.f32 %v729, 0.7978846
      %v738 = vmul.f32 %v730, 0.7978846
      %v739 = vmul.f32 %v731, 0.7978846
      %v740 = vmul.f32 %v732, 0.7978846
      %v741 = vmul.f32 %v733, 0.7978846
      %v742 = vmul.f32 %v734, 0.7978846
      %v743 = vmul.f32 %v735, 0.7978846
      %v744 = vmul.f32 %v736, 0.7978846
      %v745 = vtanh.pop %v737
      %v746 = vtanh.pop %v738
      %v747 = vtanh.pop %v739
      %v748 = vtanh.pop %v740
      %v749 = vtanh.pop %v741
      %v750 = vtanh.pop %v742
      %v751 = vtanh.pop %v743
      %v752 = vtanh.pop %v744
      %v753 = vadd.f32 %v745, 1.0
      %v754 = vadd.f32 %v746, 1.0
      %v755 = vadd.f32 %v747, 1.0
      %v756 = vadd.f32 %v748, 1.0
      %v757 = vadd.f32 %v749, 1.0
      %v758 = vadd.f32 %v750, 1.0
      %v759 = vadd.f32 %v751, 1.0
      %v760 = vadd.f32 %v752, 1.0
      %v761 = vmul.f32 %v753, 0.5
      %v762 = vmul.f32 %v754, 0.5
      %v763 = vmul.f32 %v755, 0.5
      %v764 = vmul.f32 %v756, 0.5
      %v765 = vmul.f32 %v757, 0.5
      %v766 = vmul.f32 %v758, 0.5
      %v767 = vmul.f32 %v759, 0.5
      %v768 = vmul.f32 %v760, 0.5
      %v769 = vmul.f32 %v697, %v761
      %v770 = vmul.f32 %v698, %v762
      %v771 = vmul.f32 %v699, %v763
      %v772 = vmul.f32 %v700, %v764
      %v773 = vmul.f32 %v701, %v765
      %v774 = vmul.f32 %v702, %v766
      %v775 = vmul.f32 %v703, %v767
      %v776 = vmul.f32 %v704, %v768
      %v777 = vld [vmem:[%s207] sm:$0xff]
      %v778 = vld [vmem:[%s207 + $0x8] sm:$0xff]
      %v779 = vld [vmem:[%s207 + $0x10] sm:$0xff]
      %v780 = vld [vmem:[%s207 + $0x18] sm:$0xff]
      %v781 = vld [vmem:[%s207 + $0x20] sm:$0xff]
      %v782 = vld [vmem:[%s207 + $0x28] sm:$0xff]
      %v783 = vld [vmem:[%s207 + $0x30] sm:$0xff]
      %v784 = vld [vmem:[%s207 + $0x38] sm:$0xff]
      %v785 = vadd.f32 %v777, %v769
      %v786 = vadd.f32 %v778, %v770
      %v787 = vadd.f32 %v779, %v771
      %v788 = vadd.f32 %v780, %v772
      %v789 = vadd.f32 %v781, %v773
      %v790 = vadd.f32 %v782, %v774
      %v791 = vadd.f32 %v783, %v775
      %v792 = vadd.f32 %v784, %v776
      %793 = vst [vmem:[%s217] sm:$0xff] %v785
      %794 = vst [vmem:[%s217 + $0x8] sm:$0xff] %v786
      %795 = vst [vmem:[%s217 + $0x10] sm:$0xff] %v787
      %796 = vst [vmem:[%s217 + $0x18] sm:$0xff] %v788
      %797 = vst [vmem:[%s217 + $0x20] sm:$0xff] %v789
      %798 = vst [vmem:[%s217 + $0x28] sm:$0xff] %v790
      %799 = vst [vmem:[%s217 + $0x30] sm:$0xff] %v791
      %800 = vst [vmem:[%s217 + $0x38] sm:$0xff] %v792
      %p801 = scmp.lt.s32.totalorder %s15, 1
      %s802 = scalar_select %p801, %s15, 1
      %s803 = smul.addr %s802, 8
      %s804 = smul.addr %s803, 8
      %s805 = scalar_lea.vmem %s4, %s804
      // Predicated region
      $region37: #{_lambda_.10} parent=35 // pred_check
        %p806 = pneg %p127
      $region38: #{_lambda_.10} parent=35 // pred_check_branch
        %808 = sbr.rel (%p806) target = $region40
      $region39: #{_lambda_.10} parent=35 // pred_region
        _
      $region40: #{_lambda_.10} parent=35 // pred_fallthru
        _
    $region36: #{_lambda_.10} parent=5 // pred_fallthru
      _
    %p809 = scmp.le.s32.totalorder 2, %s10
    // Predicated region
    $region41: #{_lambda_.10} parent=5 // pred_check
      %p810 = pneg %p809
    $region42: #{_lambda_.10} parent=5 // pred_check_branch
      %812 = sbr.rel (%p810) target = $region44
    $region43: #{_lambda_.10} parent=5 // pred_region
      %s813 = ssub.s32 %s10, 2
      // Predicated region
      $region45: #{_lambda_.10} parent=43 // pred_check
        %p814 = pneg %p133
      $region46: #{_lambda_.10} parent=43 // pred_check_branch
        %816 = sbr.rel (%p814) target = $region48
      $region47: #{_lambda_.10} parent=43 // pred_region
        %p817 = scmp.lt.s32.totalorder %s16, 1
        %s818 = scalar_select %p817, %s16, 1
        %s819 = smul.addr %s818, 8
        %s820 = smul.addr %s819, 8
        %s821 = scalar_lea.vmem %s4, %s820
      $region48: #{_lambda_.10} parent=43 // pred_fallthru
        _
    $region44: #{_lambda_.10} parent=5 // pred_fallthru
      _
  $region6: #{_lambda_.10} parent=0 // loop_footer
    %s14 = sadd.s32 1, %s10
  $region7: #{_lambda_.10} parent=0 // loop_footer_branch
    %9 = sbr.rel target = $region3
  $region8: #{_lambda_.10} parent=0 // loop_exit
    _

// kernel: _lambda_.9
$region0: #{_lambda_.9}
  #allocation0 [shape = 'u32[]', space=smem, size = 0x4, offset = 0x4, fixed_abs, tag = 'smem constant byte address 0x4 - core index']
  #allocation1 [shape = 'u32[144,128]{1,0:T(1,128)}', space=vmem, size = 0x12000, scoped, tag = 'internal scratch']
  %s0 = inlined_call_operand.vmem [shape: f32[2,64,512], index: 0, kind: input, shape index: {}]
  %s1 = inlined_call_operand.vmem [shape: bf16[512,128], index: 1, kind: input, shape index: {}]
  %s2 = inlined_call_operand.vmem [shape: f32[1,128], index: 2, kind: input, shape index: {}, may-alias: {2,4,6}]
  %s3 = inlined_call_operand.vmem [shape: f32[1,128], index: 3, kind: input, shape index: {}]
  %s4 = inlined_call_operand.vmem [shape: f32[1,128], index: 4, kind: input, shape index: {}, may-alias: {2,4,6}]
  %s5 = inlined_call_operand.vmem [shape: bf16[128,128], index: 5, kind: input, shape index: {}]
  %s6 = inlined_call_operand.vmem [shape: f32[1,128], index: 6, kind: input, shape index: {}, may-alias: {2,4,6}]
  %s7 = inlined_call_operand.vmem [shape: f32[2,64,128], index: 7, kind: output, shape index: {}]
  %s8 = sld [smem:[#allocation0]]
  $region61: #{_lambda_.9} parent=0
    _
  %s10 = ssub.s32 1, %s8
  %s11 = scalar_select 0, %s10, %s8
  loop: start=0, step=1, limit=4
  $region2: #{_lambda_.9} parent=0 // loop_pre_header
    _
  $region3: #{_lambda_.9} parent=0 // loop_header
    %s13 = sphi 0, %s17
    %p14 = scmp.ge.s32.totalorder %s13, 4
    %s23 = sphi 0, %s25
    %s26 = sphi 0, %s23
    %s27 = sphi 0, %s26
    %s43 = sphi 0, %s27
    %s47 = sphi 0, %s47
    %s49 = sphi 0, %s47
    %s50 = sphi 0, %s49
    %s64 = sphi 0, %s50
    %s68 = sphi 0, %s68
    %s70 = sphi 0, %s68
    %s71 = sphi 0, %s70
    %s85 = sphi 0, %s71
    %s89 = sphi 0, %s89
    %s91 = sphi 0, %s89
    %s92 = sphi 0, %s91
    %s106 = sphi 0, %s92
    %s110 = sphi 0, %s110
    %s112 = sphi 0, %s110
    %s113 = sphi 0, %s112
    %s127 = sphi 0, %s113
    %s131 = sphi 0, %s131
    %s133 = sphi 0, %s131
    %s134 = sphi 0, %s133
    %s148 = sphi 0, %s134
    %s152 = sphi 0, %s152
    %s154 = sphi 0, %s152
    %s155 = sphi 0, %s154
    %s169 = sphi 0, %s155
    %s175 = sphi 0, %s177
    %s178 = sphi 0, %s175
    %s179 = sphi 0, %s178
    %s195 = sphi 0, %s179
  $region4: #{_lambda_.9} parent=0 // loop_header_branch
    %16 = sbr.rel (%p14) target = $region8
  $region5: #{_lambda_.9} parent=0 // loop_body
    %s18 = ssub.s32 %s13, 1
    %s19 = ssub.s32 %s13, 2
    %s20 = sadd.s32 %s13, 1
    %s21 = ssub.s32 %s13, %s20
    %p22 = scmp.eq.s32.totalorder %s21, 0
    %s24 = sadd.s32 %s23, 1
    %s25 = scalar_select %p22, %s23, %s24
    %p28 = pneg %p22
    %p29 = scmp.eq.s32.totalorder %s13, 1
    %p30 = por %p28, %p29
    %p31 = scmp.ne.s32.totalorder %s23, %s26
    %p32 = scmp.eq.s32.totalorder %s13, 0
    %p33 = por %p31, %p32
    %p34 = scmp.ne.s32.totalorder %s23, %s26
    %p35 = scmp.eq.s32.totalorder %s18, 1
    %p36 = por %p34, %p35
    %p37 = scmp.ne.s32.totalorder %s26, %s27
    %p38 = scmp.eq.s32.totalorder %s18, 0
    %p39 = por %p37, %p38
    %p40 = scmp.ne.s32.totalorder %s26, %s27
    %p41 = scmp.eq.s32.totalorder %s19, 1
    %p42 = por %p40, %p41
    %p44 = scmp.ne.s32.totalorder %s27, %s43
    %p45 = scmp.eq.s32.totalorder %s19, 0
    %p46 = por %p44, %p45
    %s48 = sadd.s32 %s47, 1
    %p51 = scmp.eq.s32.totalorder %s13, 1
    %p52 = scmp.ne.s32.totalorder %s47, %s49
    %p53 = scmp.eq.s32.totalorder %s13, 0
    %p54 = por %p52, %p53
    %p55 = scmp.ne.s32.totalorder %s47, %s49
    %p56 = scmp.eq.s32.totalorder %s18, 1
    %p57 = por %p55, %p56
    %p58 = scmp.ne.s32.totalorder %s49, %s50
    %p59 = scmp.eq.s32.totalorder %s18, 0
    %p60 = por %p58, %p59
    %p61 = scmp.ne.s32.totalorder %s49, %s50
    %p62 = scmp.eq.s32.totalorder %s19, 1
    %p63 = por %p61, %p62
    %p65 = scmp.ne.s32.totalorder %s50, %s64
    %p66 = scmp.eq.s32.totalorder %s19, 0
    %p67 = por %p65, %p66
    %s69 = sadd.s32 %s68, 1
    %p72 = scmp.eq.s32.totalorder %s13, 1
    %p73 = scmp.ne.s32.totalorder %s68, %s70
    %p74 = scmp.eq.s32.totalorder %s13, 0
    %p75 = por %p73, %p74
    %p76 = scmp.ne.s32.totalorder %s68, %s70
    %p77 = scmp.eq.s32.totalorder %s18, 1
    %p78 = por %p76, %p77
    %p79 = scmp.ne.s32.totalorder %s70, %s71
    %p80 = scmp.eq.s32.totalorder %s18, 0
    %p81 = por %p79, %p80
    %p82 = scmp.ne.s32.totalorder %s70, %s71
    %p83 = scmp.eq.s32.totalorder %s19, 1
    %p84 = por %p82, %p83
    %p86 = scmp.ne.s32.totalorder %s71, %s85
    %p87 = scmp.eq.s32.totalorder %s19, 0
    %p88 = por %p86, %p87
    %s90 = sadd.s32 %s89, 1
    %p93 = scmp.eq.s32.totalorder %s13, 1
    %p94 = scmp.ne.s32.totalorder %s89, %s91
    %p95 = scmp.eq.s32.totalorder %s13, 0
    %p96 = por %p94, %p95
    %p97 = scmp.ne.s32.totalorder %s89, %s91
    %p98 = scmp.eq.s32.totalorder %s18, 1
    %p99 = por %p97, %p98
    %p100 = scmp.ne.s32.totalorder %s91, %s92
    %p101 = scmp.eq.s32.totalorder %s18, 0
    %p102 = por %p100, %p101
    %p103 = scmp.ne.s32.totalorder %s91, %s92
    %p104 = scmp.eq.s32.totalorder %s19, 1
    %p105 = por %p103, %p104
    %p107 = scmp.ne.s32.totalorder %s92, %s106
    %p108 = scmp.eq.s32.totalorder %s19, 0
    %p109 = por %p107, %p108
    %s111 = sadd.s32 %s110, 1
    %p114 = scmp.eq.s32.totalorder %s13, 1
    %p115 = scmp.ne.s32.totalorder %s110, %s112
    %p116 = scmp.eq.s32.totalorder %s13, 0
    %p117 = por %p115, %p116
    %p118 = scmp.ne.s32.totalorder %s110, %s112
    %p119 = scmp.eq.s32.totalorder %s18, 1
    %p120 = por %p118, %p119
    %p121 = scmp.ne.s32.totalorder %s112, %s113
    %p122 = scmp.eq.s32.totalorder %s18, 0
    %p123 = por %p121, %p122
    %p124 = scmp.ne.s32.totalorder %s112, %s113
    %p125 = scmp.eq.s32.totalorder %s19, 1
    %p126 = por %p124, %p125
    %p128 = scmp.ne.s32.totalorder %s113, %s127
    %p129 = scmp.eq.s32.totalorder %s19, 0
    %p130 = por %p128, %p129
    %s132 = sadd.s32 %s131, 1
    %p135 = scmp.eq.s32.totalorder %s13, 1
    %p136 = scmp.ne.s32.totalorder %s131, %s133
    %p137 = scmp.eq.s32.totalorder %s13, 0
    %p138 = por %p136, %p137
    %p139 = scmp.ne.s32.totalorder %s131, %s133
    %p140 = scmp.eq.s32.totalorder %s18, 1
    %p141 = por %p139, %p140
    %p142 = scmp.ne.s32.totalorder %s133, %s134
    %p143 = scmp.eq.s32.totalorder %s18, 0
    %p144 = por %p142, %p143
    %p145 = scmp.ne.s32.totalorder %s133, %s134
    %p146 = scmp.eq.s32.totalorder %s19, 1
    %p147 = por %p145, %p146
    %p149 = scmp.ne.s32.totalorder %s134, %s148
    %p150 = scmp.eq.s32.totalorder %s19, 0
    %p151 = por %p149, %p150
    %s153 = sadd.s32 %s152, 1
    %p156 = scmp.eq.s32.totalorder %s13, 1
    %p157 = scmp.ne.s32.totalorder %s152, %s154
    %p158 = scmp.eq.s32.totalorder %s13, 0
    %p159 = por %p157, %p158
    %p160 = scmp.ne.s32.totalorder %s152, %s154
    %p161 = scmp.eq.s32.totalorder %s18, 1
    %p162 = por %p160, %p161
    %p163 = scmp.ne.s32.totalorder %s154, %s155
    %p164 = scmp.eq.s32.totalorder %s18, 0
    %p165 = por %p163, %p164
    %p166 = scmp.ne.s32.totalorder %s154, %s155
    %p167 = scmp.eq.s32.totalorder %s19, 1
    %p168 = por %p166, %p167
    %p170 = scmp.ne.s32.totalorder %s155, %s169
    %p171 = scmp.eq.s32.totalorder %s19, 0
    %p172 = por %p170, %p171
    %s173 = ssub.s32 %s13, %s20
    %p174 = scmp.eq.s32.totalorder %s173, 0
    %s176 = sadd.s32 %s175, 1
    %s177 = scalar_select %p174, %s175, %s176
    %p180 = pneg %p174
    %p181 = scmp.eq.s32.totalorder %s13, 1
    %p182 = por %p180, %p181
    %p183 = scmp.ne.s32.totalorder %s175, %s178
    %p184 = scmp.eq.s32.totalorder %s13, 0
    %p185 = por %p183, %p184
    %p186 = scmp.ne.s32.totalorder %s175, %s178
    %p187 = scmp.eq.s32.totalorder %s18, 1
    %p188 = por %p186, %p187
    %p189 = scmp.ne.s32.totalorder %s178, %s179
    %p190 = scmp.eq.s32.totalorder %s18, 0
    %p191 = por %p189, %p190
    %p192 = scmp.ne.s32.totalorder %s178, %s179
    %p193 = scmp.eq.s32.totalorder %s19, 1
    %p194 = por %p192, %p193
    %p196 = scmp.ne.s32.totalorder %s179, %s195
    %p197 = scmp.eq.s32.totalorder %s19, 0
    %p198 = por %p196, %p197
    %p199 = scmp.le.s32.totalorder 1, %s13
    %p200 = scmp.lt.s32.totalorder %s13, 3
    %p201 = pnand %p199, %p200
    %p202 = pneg %p201
    // Predicated region
    $region9: #{_lambda_.9} parent=5 // pred_check
      _
    $region10: #{_lambda_.9} parent=5 // pred_check_branch
      %204 = sbr.rel (%p201) target = $region12
    $region11: #{_lambda_.9} parent=5 // pred_region
      %s205 = ssub.s32 %s13, 1
      // Predicated region
      $region13: #{_lambda_.9} parent=11 // pred_check
        %p206 = pneg %p60
      $region14: #{_lambda_.9} parent=11 // pred_check_branch
        %208 = sbr.rel (%p206) target = $region16
      $region15: #{_lambda_.9} parent=11 // pred_region
        _
      $region16: #{_lambda_.9} parent=11 // pred_fallthru
        _
      // Predicated region
      $region17: #{_lambda_.9} parent=11 // pred_check
        %p209 = pneg %p81
      $region18: #{_lambda_.9} parent=11 // pred_check_branch
        %211 = sbr.rel (%p209) target = $region20
      $region19: #{_lambda_.9} parent=11 // pred_region
        _
      $region20: #{_lambda_.9} parent=11 // pred_fallthru
        _
      // Predicated region
      $region21: #{_lambda_.9} parent=11 // pred_check
        %p212 = pneg %p102
      $region22: #{_lambda_.9} parent=11 // pred_check_branch
        %214 = sbr.rel (%p212) target = $region24
      $region23: #{_lambda_.9} parent=11 // pred_region
        _
      $region24: #{_lambda_.9} parent=11 // pred_fallthru
        _
      // Predicated region
      $region25: #{_lambda_.9} parent=11 // pred_check
        %p215 = pneg %p123
      $region26: #{_lambda_.9} parent=11 // pred_check_branch
        %217 = sbr.rel (%p215) target = $region28
      $region27: #{_lambda_.9} parent=11 // pred_region
        _
      $region28: #{_lambda_.9} parent=11 // pred_fallthru
        _
      // Predicated region
      $region29: #{_lambda_.9} parent=11 // pred_check
        %p218 = pneg %p144
      $region30: #{_lambda_.9} parent=11 // pred_check_branch
        %220 = sbr.rel (%p218) target = $region32
      $region31: #{_lambda_.9} parent=11 // pred_region
        _
      $region32: #{_lambda_.9} parent=11 // pred_fallthru
        _
      // Predicated region
      $region33: #{_lambda_.9} parent=11 // pred_check
        %p221 = pneg %p165
      $region34: #{_lambda_.9} parent=11 // pred_check_branch
        %223 = sbr.rel (%p221) target = $region36
      $region35: #{_lambda_.9} parent=11 // pred_region
        _
      $region36: #{_lambda_.9} parent=11 // pred_fallthru
        _
    $region12: #{_lambda_.9} parent=5 // pred_fallthru
      _
    %p224 = scmp.lt.s32.totalorder %s13, 2
    // Predicated region
    $region37: #{_lambda_.9} parent=5 // pred_check
      %p225 = pneg %p224
    $region38: #{_lambda_.9} parent=5 // pred_check_branch
      %227 = sbr.rel (%p225) target = $region40
    $region39: #{_lambda_.9} parent=5 // pred_region
      // Predicated region
      $region41: #{_lambda_.9} parent=39 // pred_check
        %p228 = pneg %p33
      $region42: #{_lambda_.9} parent=39 // pred_check_branch
        %230 = sbr.rel (%p228) target = $region44
      $region43: #{_lambda_.9} parent=39 // pred_region
        %p231 = scmp.lt.s32.totalorder %s13, 1
        %s232 = scalar_select %p231, %s13, 1
        %s233 = smul.addr %s232, 32
        %s234 = smul.addr %s233, 8
        %s235 = scalar_lea.vmem %s0, %s234
      $region44: #{_lambda_.9} parent=39 // pred_fallthru
        _
    $region40: #{_lambda_.9} parent=5 // pred_fallthru
      _
    %p236 = scmp.le.s32.totalorder 1, %s13
    %p237 = scmp.lt.s32.totalorder %s13, 3
    %p238 = pnand %p236, %p237
    %p239 = pneg %p238
    // Predicated region
    $region45: #{_lambda_.9} parent=5 // pred_check
      _
    $region46: #{_lambda_.9} parent=5 // pred_check_branch
      %241 = sbr.rel (%p238) target = $region48
    $region47: #{_lambda_.9} parent=5 // pred_region
      %s242 = ssub.s32 %s13, 1
      %p243 = scmp.lt.s32.totalorder %s18, 1
      %s244 = scalar_select %p243, %s18, 1
      %s245 = smul.addr %s244, 32
      %s246 = smul.addr %s245, 8
      %s247 = scalar_lea.vmem %s0, %s246
      %p248 = pneg %p39
      %p249 = pneg %p36
      %p250 = pneg %p60
      %p251 = pneg %p57
      %p252 = pneg %p81
      %p253 = pneg %p78
      %p254 = pneg %p102
      %p255 = pneg %p99
      %p256 = pneg %p123
      %p257 = pneg %p120
      %p258 = pneg %p144
      %p259 = pneg %p141
      %p260 = pneg %p165
      %p261 = pneg %p162
      %p262 = pneg %p191
      %p263 = pneg %p188
      %p264 = scmp.lt.s32.totalorder %s18, 1
      %s265 = scalar_select %p264, %s18, 1
      %s266 = smul.addr %s265, 8
      %s267 = smul.addr %s266, 8
      %s268 = scalar_lea.vmem %s7, %s267
      %p269 = scmp.lt.s32.totalorder %s18, 1
      %s270 = scalar_select %p269, %s18, 1
      %s271 = smul.addr %s270, 32
      %s272 = smul.addr %s271, 8
      %s273 = scalar_lea.vmem %s0, %s272
      %p274 = scmp.lt.s32.totalorder %s18, 1
      %s275 = scalar_select %p274, %s18, 1
      %s276 = smul.addr %s275, 8
      %s277 = smul.addr %s276, 8
      %s278 = scalar_lea.vmem %s7, %s277
      %v280 = vld [vmem:[%s273] sm:$0xff]
      %v281 = vld [vmem:[%s273 + $0x8] sm:$0xff]
      %v282 = vld [vmem:[%s273 + $0x10] sm:$0xff]
      %v283 = vld [vmem:[%s273 + $0x18] sm:$0xff]
      %v284 = vld [vmem:[%s273 + $0x20] sm:$0xff]
      %v285 = vld [vmem:[%s273 + $0x28] sm:$0xff]
      %v286 = vld [vmem:[%s273 + $0x30] sm:$0xff]
      %v287 = vld [vmem:[%s273 + $0x38] sm:$0xff]
      %v288 = vld [vmem:[%s273 + $0x40] sm:$0xff]
      %v289 = vld [vmem:[%s273 + $0x48] sm:$0xff]
      %v290 = vld [vmem:[%s273 + $0x50] sm:$0xff]
      %v291 = vld [vmem:[%s273 + $0x58] sm:$0xff]
      %v292 = vld [vmem:[%s273 + $0x60] sm:$0xff]
      %v293 = vld [vmem:[%s273 + $0x68] sm:$0xff]
      %v294 = vld [vmem:[%s273 + $0x70] sm:$0xff]
      %v295 = vld [vmem:[%s273 + $0x78] sm:$0xff]
      %v296 = vld [vmem:[%s273 + $0x80] sm:$0xff]
      %v297 = vld [vmem:[%s273 + $0x88] sm:$0xff]
      %v298 = vld [vmem:[%s273 + $0x90] sm:$0xff]
      %v299 = vld [vmem:[%s273 + $0x98] sm:$0xff]
      %v300 = vld [vmem:[%s273 + $0xa0] sm:$0xff]
      %v301 = vld [vmem:[%s273 + $0xa8] sm:$0xff]
      %v302 = vld [vmem:[%s273 + $0xb0] sm:$0xff]
      %v303 = vld [vmem:[%s273 + $0xb8] sm:$0xff]
      %v304 = vld [vmem:[%s273 + $0xc0] sm:$0xff]
      %v305 = vld [vmem:[%s273 + $0xc8] sm:$0xff]
      %v306 = vld [vmem:[%s273 + $0xd0] sm:$0xff]
      %v307 = vld [vmem:[%s273 + $0xd8] sm:$0xff]
      %v308 = vld [vmem:[%s273 + $0xe0] sm:$0xff]
      %v309 = vld [vmem:[%s273 + $0xe8] sm:$0xff]
      %v310 = vld [vmem:[%s273 + $0xf0] sm:$0xff]
      %v311 = vld [vmem:[%s273 + $0xf8] sm:$0xff]
      %v312 = vpack.c.bf16 %v284, %v280
      %v313 = vpack.c.bf16 %v285, %v281
      %v314 = vpack.c.bf16 %v286, %v282
      %v315 = vpack.c.bf16 %v287, %v283
      %v316 = vpack.c.bf16 %v292, %v288
      %v317 = vpack.c.bf16 %v293, %v289
      %v318 = vpack.c.bf16 %v294, %v290
      %v319 = vpack.c.bf16 %v295, %v291
      %v320 = vpack.c.bf16 %v300, %v296
      %v321 = vpack.c.bf16 %v301, %v297
      %v322 = vpack.c.bf16 %v302, %v298
      %v323 = vpack.c.bf16 %v303, %v299
      %v324 = vpack.c.bf16 %v308, %v304
      %v325 = vpack.c.bf16 %v309, %v305
      %v326 = vpack.c.bf16 %v310, %v306
      %v327 = vpack.c.bf16 %v311, %v307
      %v328 = vld [vmem:[%s1] sm:$0xf]
      %v329 = vld [vmem:[%s1 + $0x4] sm:$0xf]
      %v330 = vld [vmem:[%s1 + $0x8] sm:$0xf]
      %v331 = vld [vmem:[%s1 + $0xc] sm:$0xf]
      %v332 = vld [vmem:[%s1 + $0x10] sm:$0xf]
      %v333 = vld [vmem:[%s1 + $0x14] sm:$0xf]
      %v334 = vld [vmem:[%s1 + $0x18] sm:$0xf]
      %v335 = vld [vmem:[%s1 + $0x1c] sm:$0xf]
      %v336 = vld [vmem:[%s1 + $0x20] sm:$0xf]
      %v337 = vld [vmem:[%s1 + $0x24] sm:$0xf]
      %v338 = vld [vmem:[%s1 + $0x28] sm:$0xf]
      %v339 = vld [vmem:[%s1 + $0x2c] sm:$0xf]
      %v340 = vld [vmem:[%s1 + $0x30] sm:$0xf]
      %v341 = vld [vmem:[%s1 + $0x34] sm:$0xf]
      %v342 = vld [vmem:[%s1 + $0x38] sm:$0xf]
      %v343 = vld [vmem:[%s1 + $0x3c] sm:$0xf]
      %v344 = vld [vmem:[%s1 + $0x40] sm:$0xf]
      %v345 = vld [vmem:[%s1 + $0x44] sm:$0xf]
      %v346 = vld [vmem:[%s1 + $0x48] sm:$0xf]
      %v347 = vld [vmem:[%s1 + $0x4c] sm:$0xf]
      %v348 = vld [vmem:[%s1 + $0x50] sm:$0xf]
      %v349 = vld [vmem:[%s1 + $0x54] sm:$0xf]
      %v350 = vld [vmem:[%s1 + $0x58] sm:$0xf]
      %v351 = vld [vmem:[%s1 + $0x5c] sm:$0xf]
      %v352 = vld [vmem:[%s1 + $0x60] sm:$0xf]
      %v353 = vld [vmem:[%s1 + $0x64] sm:$0xf]
      %v354 = vld [vmem:[%s1 + $0x68] sm:$0xf]
      %v355 = vld [vmem:[%s1 + $0x6c] sm:$0xf]
      %v356 = vld [vmem:[%s1 + $0x70] sm:$0xf]
      %v357 = vld [vmem:[%s1 + $0x74] sm:$0xf]
      %v358 = vld [vmem:[%s1 + $0x78] sm:$0xf]
      %v359 = vld [vmem:[%s1 + $0x7c] sm:$0xf]
      %v360 = vld [vmem:[%s1 + $0x80] sm:$0xf]
      %v361 = vld [vmem:[%s1 + $0x84] sm:$0xf]
      %v362 = vld [vmem:[%s1 + $0x88] sm:$0xf]
      %v363 = vld [vmem:[%s1 + $0x8c] sm:$0xf]
      %v364 = vld [vmem:[%s1 + $0x90] sm:$0xf]
      %v365 = vld [vmem:[%s1 + $0x94] sm:$0xf]
      %v366 = vld [vmem:[%s1 + $0x98] sm:$0xf]
      %v367 = vld [vmem:[%s1 + $0x9c] sm:$0xf]
      %v368 = vld [vmem:[%s1 + $0xa0] sm:$0xf]
      %v369 = vld [vmem:[%s1 + $0xa4] sm:$0xf]
      %v370 = vld [vmem:[%s1 + $0xa8] sm:$0xf]
      %v371 = vld [vmem:[%s1 + $0xac] sm:$0xf]
      %v372 = vld [vmem:[%s1 + $0xb0] sm:$0xf]
      %v373 = vld [vmem:[%s1 + $0xb4] sm:$0xf]
      %v374 = vld [vmem:[%s1 + $0xb8] sm:$0xf]
      %v375 = vld [vmem:[%s1 + $0xbc] sm:$0xf]
      %v376 = vld [vmem:[%s1 + $0xc0] sm:$0xf]
      %v377 = vld [vmem:[%s1 + $0xc4] sm:$0xf]
      %v378 = vld [vmem:[%s1 + $0xc8] sm:$0xf]
      %v379 = vld [vmem:[%s1 + $0xcc] sm:$0xf]
      %v380 = vld [vmem:[%s1 + $0xd0] sm:$0xf]
      %v381 = vld [vmem:[%s1 + $0xd4] sm:$0xf]
      %v382 = vld [vmem:[%s1 + $0xd8] sm:$0xf]
      %v383 = vld [vmem:[%s1 + $0xdc] sm:$0xf]
      %v384 = vld [vmem:[%s1 + $0xe0] sm:$0xf]
      %v385 = vld [vmem:[%s1 + $0xe4] sm:$0xf]
      %v386 = vld [vmem:[%s1 + $0xe8] sm:$0xf]
      %v387 = vld [vmem:[%s1 + $0xec] sm:$0xf]
      %v388 = vld [vmem:[%s1 + $0xf0] sm:$0xf]
      %v389 = vld [vmem:[%s1 + $0xf4] sm:$0xf]
      %v390 = vld [vmem:[%s1 + $0xf8] sm:$0xf]
      %v391 = vld [vmem:[%s1 + $0xfc] sm:$0xf]
      %v392 = vld [vmem:[%s2] sm:$0x1]
      %v394 = vlaneseq
      %v395 = vshrl.u32 %v394, 7
      %v396 = vsub.s32 0, %v395
      %v397 = vrot.slane %v392, %v396
      %v463 = vunpack.c.l.b16 %v328
      %v464 = vunpack.c.l.b16 %v329
      %v465 = vunpack.c.l.b16 %v330
      %v466 = vunpack.c.l.b16 %v331
      %v467 = vunpack.c.l.b16 %v332
      %v468 = vunpack.c.l.b16 %v333
      %v469 = vunpack.c.l.b16 %v334
      %v470 = vunpack.c.l.b16 %v335
      %v471 = vunpack.c.l.b16 %v336
      %v472 = vunpack.c.l.b16 %v337
      %v473 = vunpack.c.l.b16 %v338
      %v474 = vunpack.c.l.b16 %v339
      %v475 = vunpack.c.l.b16 %v340
      %v476 = vunpack.c.l.b16 %v341
      %v477 = vunpack.c.l.b16 %v342
      %v478 = vunpack.c.l.b16 %v343
      %v479 = vunpack.c.l.b16 %v344
      %v480 = vunpack.c.l.b16 %v345
      %v481 = vunpack.c.l.b16 %v346
      %v482 = vunpack.c.l.b16 %v347
      %v483 = vunpack.c.l.b16 %v348
      %v484 = vunpack.c.l.b16 %v349
      %v485 = vunpack.c.l.b16 %v350
      %v486 = vunpack.c.l.b16 %v351
      %v487 = vunpack.c.l.b16 %v352
      %v488 = vunpack.c.l.b16 %v353
      %v489 = vunpack.c.l.b16 %v354
      %v490 = vunpack.c.l.b16 %v355
      %v491 = vunpack.c.l.b16 %v356
      %v492 = vunpack.c.l.b16 %v357
      %v493 = vunpack.c.l.b16 %v358
      %v494 = vunpack.c.l.b16 %v359
      %v495 = vunpack.c.l.b16 %v360
      %v496 = vunpack.c.l.b16 %v361
      %v497 = vunpack.c.l.b16 %v362
      %v498 = vunpack.c.l.b16 %v363
      %v499 = vunpack.c.l.b16 %v364
      %v500 = vunpack.c.l.b16 %v365
      %v501 = vunpack.c.l.b16 %v366
      %v502 = vunpack.c.l.b16 %v367
      %v503 = vunpack.c.l.b16 %v368
      %v504 = vunpack.c.l.b16 %v369
      %v505 = vunpack.c.l.b16 %v370
      %v506 = vunpack.c.l.b16 %v371
      %v507 = vunpack.c.l.b16 %v372
      %v508 = vunpack.c.l.b16 %v373
      %v509 = vunpack.c.l.b16 %v374
      %v510 = vunpack.c.l.b16 %v375
      %v511 = vunpack.c.l.b16 %v376
      %v512 = vunpack.c.l.b16 %v377
      %v513 = vunpack.c.l.b16 %v378
      %v514 = vunpack.c.l.b16 %v379
      %v515 = vunpack.c.l.b16 %v380
      %v516 = vunpack.c.l.b16 %v381
      %v517 = vunpack.c.l.b16 %v382
      %v518 = vunpack.c.l.b16 %v383
      %v519 = vunpack.c.l.b16 %v384
      %v520 = vunpack.c.l.b16 %v385
      %v521 = vunpack.c.l.b16 %v386
      %v522 = vunpack.c.l.b16 %v387
      %v523 = vunpack.c.l.b16 %v388
      %v524 = vunpack.c.l.b16 %v389
      %v525 = vunpack.c.l.b16 %v390
      %v526 = vunpack.c.l.b16 %v391
      %v527 = vpack.c.b16 %v464, %v463
      %v528 = vpack.c.b16 %v466, %v465
      %v529 = vpack.c.b16 %v468, %v467
      %v530 = vpack.c.b16 %v470, %v469
      %v531 = vpack.c.b16 %v472, %v471
      %v532 = vpack.c.b16 %v474, %v473
      %v533 = vpack.c.b16 %v476, %v475
      %v534 = vpack.c.b16 %v478, %v477
      %v535 = vpack.c.b16 %v480, %v479
      %v536 = vpack.c.b16 %v482, %v481
      %v537 = vpack.c.b16 %v484, %v483
      %v538 = vpack.c.b16 %v486, %v485
      %v539 = vpack.c.b16 %v488, %v487
      %v540 = vpack.c.b16 %v490, %v489
      %v541 = vpack.c.b16 %v492, %v491
      %v542 = vpack.c.b16 %v494, %v493
      %v543 = vpack.c.b16 %v496, %v495
      %v544 = vpack.c.b16 %v498, %v497
      %v545 = vpack.c.b16 %v500, %v499
      %v546 = vpack.c.b16 %v502, %v501
      %v547 = vpack.c.b16 %v504, %v503
      %v548 = vpack.c.b16 %v506, %v505
      %v549 = vpack.c.b16 %v508, %v507
      %v550 = vpack.c.b16 %v510, %v509
      %v551 = vpack.c.b16 %v512, %v511
      %v552 = vpack.c.b16 %v514, %v513
      %v553 = vpack.c.b16 %v516, %v515
      %v554 = vpack.c.b16 %v518, %v517
      %v555 = vpack.c.b16 %v520, %v519
      %v556 = vpack.c.b16 %v522, %v521
      %v557 = vpack.c.b16 %v524, %v523
      %v558 = vpack.c.b16 %v526, %v525
      %591 = vmatprep.subr.bf16.mxu0 0
      %592 = vmatpush1.bf16.msra.mxu0 %v527
      %593 = vmatprep.subr.bf16.mxu0 0
      %594 = vmatpush1.bf16.msra.mxu0 %v528
      %595 = vmatprep.subr.bf16.mxu0 0
      %596 = vmatpush1.bf16.msra.mxu0 %v529
      %597 = vmatprep.subr.bf16.mxu0 0
      %598 = vmatpush1.bf16.msra.mxu0 %v530
      %599 = vmatprep.subr.bf16.mxu0 0
      %600 = vmatpush1.bf16.msra.mxu0 %v531
      %601 = vmatprep.subr.bf16.mxu0 0
      %602 = vmatpush1.bf16.msra.mxu0 %v532
      %603 = vmatprep.subr.bf16.mxu0 0
      %604 = vmatpush1.bf16.msra.mxu0 %v533
      %605 = vmatprep.subr.bf16.mxu0 0
      %606 = vmatpush1.bf16.msra.mxu0 %v534
      %607 = vmatprep.subr.bf16.mxu0 0
      %608 = vmatpush1.bf16.msra.mxu0 %v535
      %609 = vmatprep.subr.bf16.mxu0 0
      %610 = vmatpush1.bf16.msra.mxu0 %v536
      %611 = vmatprep.subr.bf16.mxu0 0
      %612 = vmatpush1.bf16.msra.mxu0 %v537
      %613 = vmatprep.subr.bf16.mxu0 0
      %614 = vmatpush1.bf16.msra.mxu0 %v538
      %615 = vmatprep.subr.bf16.mxu0 0
      %616 = vmatpush1.bf16.msra.mxu0 %v539
      %617 = vmatprep.subr.bf16.mxu0 0
      %618 = vmatpush1.bf16.msra.mxu0 %v540
      %619 = vmatprep.subr.bf16.mxu0 0
      %620 = vmatpush1.bf16.msra.mxu0 %v541
      %621 = vmatprep.subr.bf16.mxu0 0
      %622 = vmatpush1.bf16.msra.mxu0 %v542
      %623 = vmatprep.mubr.bf16.mxu0 %v313
      %624 = vmatmul.mubr.bf16.gmra.mrb[0].mxu0 %v312
      %v625 = vpop.f32.mrb[0].mxu0
      %v626 = vadd.f32 %v397, %v625
      %v627 = vpop.f32.mrb[0].mxu0
      %v628 = vpop.f32.mrb[0].mxu0
      %v629 = vadd.f32 %v397, %v628
      %v630 = vpop.f32.mrb[0].mxu0
      %631 = vmatprep.mubr.bf16.mxu0 %v317
      %632 = vmatmul.mubr.bf16.gmra.mrb[0].mxu0 %v316
      %v633 = vpop.f32.mrb[0].mxu0
      %v634 = vadd.f32 %v397, %v633
      %v635 = vpop.f32.mrb[0].mxu0
      %v636 = vpop.f32.mrb[0].mxu0
      %v637 = vadd.f32 %v397, %v636
      %v638 = vpop.f32.mrb[0].mxu0
      %639 = vmatprep.mubr.bf16.mxu0 %v321
      %640 = vmatmul.mubr.bf16.gmra.mrb[0].mxu0 %v320
      %v641 = vpop.f32.mrb[0].mxu0
      %v642 = vadd.f32 %v397, %v641
      %v643 = vpop.f32.mrb[0].mxu0
      %v644 = vpop.f32.mrb[0].mxu0
      %v645 = vadd.f32 %v397, %v644
      %v646 = vpop.f32.mrb[0].mxu0
      %647 = vmatprep.mubr.bf16.mxu0 %v325
      %648 = vmatmul.mubr.bf16.gmra.mrb[0].mxu0 %v324
      %v649 = vpop.f32.mrb[0].mxu0
      %v650 = vadd.f32 %v397, %v649
      %v651 = vpop.f32.mrb[0].mxu0
      %v652 = vpop.f32.mrb[0].mxu0
      %v653 = vadd.f32 %v397, %v652
      %v654 = vpop.f32.mrb[0].mxu0
      %655 = vdwg.mxu0
      %656 = vmatprep.subr.bf16.mxu0 0
      %657 = vmatpush1.bf16.msra.mxu0 %v543
      %658 = vmatprep.subr.bf16.mxu0 0
      %659 = vmatpush1.bf16.msra.mxu0 %v544
      %660 = vmatprep.subr.bf16.mxu0 0
      %661 = vmatpush1.bf16.msra.mxu0 %v545
      %662 = vmatprep.subr.bf16.mxu0 0
      %663 = vmatpush1.bf16.msra.mxu0 %v546
      %664 = vmatprep.subr.bf16.mxu0 0
      %665 = vmatpush1.bf16.msra.mxu0 %v547
      %666 = vmatprep.subr.bf16.mxu0 0
      %667 = vmatpush1.bf16.msra.mxu0 %v548
      %668 = vmatprep.subr.bf16.mxu0 0
      %669 = vmatpush1.bf16.msra.mxu0 %v549
      %670 = vmatprep.subr.bf16.mxu0 0
      %671 = vmatpush1.bf16.msra.mxu0 %v550
      %672 = vmatprep.subr.bf16.mxu0 0
      %673 = vmatpush1.bf16.msra.mxu0 %v551
      %674 = vmatprep.subr.bf16.mxu0 0
      %675 = vmatpush1.bf16.msra.mxu0 %v552
      %676 = vmatprep.subr.bf16.mxu0 0
      %677 = vmatpush1.bf16.msra.mxu0 %v553
      %678 = vmatprep.subr.bf16.mxu0 0
      %679 = vmatpush1.bf16.msra.mxu0 %v554
      %680 = vmatprep.subr.bf16.mxu0 0
      %681 = vmatpush1.bf16.msra.mxu0 %v555
      %682 = vmatprep.subr.bf16.mxu0 0
      %683 = vmatpush1.bf16.msra.mxu0 %v556
      %684 = vmatprep.subr.bf16.mxu0 0
      %685 = vmatpush1.bf16.msra.mxu0 %v557
      %686 = vmatprep.subr.bf16.mxu0 0
      %687 = vmatpush1.bf16.msra.mxu0 %v558
      %688 = vmatprep.mubr.bf16.mxu0 %v315
      %689 = vmatmul.mubr.bf16.gmra.mrb[0].mxu0 %v314
      %v690 = vpop.f32.mrb[0].mxu0
      %v691 = vadd.f32 %v626, %v690
      %v692 = vpop.f32.mrb[0].mxu0
      %v693 = vpop.f32.mrb[0].mxu0
      %v694 = vadd.f32 %v629, %v693
      %v695 = vpop.f32.mrb[0].mxu0
      %696 = vmatprep.mubr.bf16.mxu0 %v319
      %697 = vmatmul.mubr.bf16.gmra.mrb[0].mxu0 %v318
      %v698 = vpop.f32.mrb[0].mxu0
      %v699 = vadd.f32 %v634, %v698
      %v700 = vpop.f32.mrb[0].mxu0
      %v701 = vpop.f32.mrb[0].mxu0
      %v702 = vadd.f32 %v637, %v701
      %v703 = vpop.f32.mrb[0].mxu0
      %704 = vmatprep.mubr.bf16.mxu0 %v323
      %705 = vmatmul.mubr.bf16.gmra.mrb[0].mxu0 %v322
      %v706 = vpop.f32.mrb[0].mxu0
      %v707 = vadd.f32 %v642, %v706
      %v708 = vpop.f32.mrb[0].mxu0
      %v709 = vpop.f32.mrb[0].mxu0
      %v710 = vadd.f32 %v645, %v709
      %v711 = vpop.f32.mrb[0].mxu0
      %712 = vmatprep.mubr.bf16.mxu0 %v327
      %713 = vmatmul.mubr.bf16.gmra.mrb[0].mxu0 %v326
      %v714 = vpop.f32.mrb[0].mxu0
      %v715 = vadd.f32 %v650, %v714
      %v716 = vpop.f32.mrb[0].mxu0
      %v717 = vpop.f32.mrb[0].mxu0
      %v718 = vadd.f32 %v653, %v717
      %v719 = vpop.f32.mrb[0].mxu0
      %720 = vdwg.mxu0
      %v721 = vmul.f32 %v691, %v691
      %v722 = vmul.f32 %v694, %v694
      %v723 = vmul.f32 %v699, %v699
      %v724 = vmul.f32 %v702, %v702
      %v725 = vmul.f32 %v707, %v707
      %v726 = vmul.f32 %v710, %v710
      %v727 = vmul.f32 %v715, %v715
      %v728 = vmul.f32 %v718, %v718
      %v729 = vmul.f32 %v691, %v721
      %v730 = vmul.f32 %v694, %v722
      %v731 = vmul.f32 %v699, %v723
      %v732 = vmul.f32 %v702, %v724
      %v733 = vmul.f32 %v707, %v725
      %v734 = vmul.f32 %v710, %v726
      %v735 = vmul.f32 %v715, %v727
      %v736 = vmul.f32 %v718, %v728
      %v737 = vmul.f32 %v729, 0.044715
      %v738 = vmul.f32 %v730, 0.044715
      %v739 = vmul.f32 %v731, 0.044715
      %v740 = vmul.f32 %v732, 0.044715
      %v741 = vmul.f32 %v733, 0.044715
      %v742 = vmul.f32 %v734, 0.044715
      %v743 = vmul.f32 %v735, 0.044715
      %v744 = vmul.f32 %v736, 0.044715
      %v745 = vadd.f32 %v691, %v737
      %v746 = vadd.f32 %v694, %v738
      %v747 = vadd.f32 %v699, %v739
      %v748 = vadd.f32 %v702, %v740
      %v749 = vadd.f32 %v707, %v741
      %v750 = vadd.f32 %v710, %v742
      %v751 = vadd.f32 %v715, %v743
      %v752 = vadd.f32 %v718, %v744
      %v753 = vmul.f32 %v745, 0.7978846
      %v754 = vmul.f32 %v746, 0.7978846
      %v755 = vmul.f32 %v747, 0.7978846
      %v756 = vmul.f32 %v748, 0.7978846
      %v757 = vmul.f32 %v749, 0.7978846
      %v758 = vmul.f32 %v750, 0.7978846
      %v759 = vmul.f32 %v751, 0.7978846
      %v760 = vmul.f32 %v752, 0.7978846
      %v761 = vtanh.pop %v753
      %v762 = vtanh.pop %v754
      %v763 = vtanh.pop %v755
      %v764 = vtanh.pop %v756
      %v765 = vtanh.pop %v757
      %v766 = vtanh.pop %v758
      %v767 = vtanh.pop %v759
      %v768 = vtanh.pop %v760
      %v769 = vadd.f32 %v761, 1.0
      %v770 = vadd.f32 %v762, 1.0
      %v771 = vadd.f32 %v763, 1.0
      %v772 = vadd.f32 %v764, 1.0
      %v773 = vadd.f32 %v765, 1.0
      %v774 = vadd.f32 %v766, 1.0
      %v775 = vadd.f32 %v767, 1.0
      %v776 = vadd.f32 %v768, 1.0
      %v777 = vmul.f32 %v769, 0.5
      %v778 = vmul.f32 %v770, 0.5
      %v779 = vmul.f32 %v771, 0.5
      %v780 = vmul.f32 %v772, 0.5
      %v781 = vmul.f32 %v773, 0.5
      %v782 = vmul.f32 %v774, 0.5
      %v783 = vmul.f32 %v775, 0.5
      %v784 = vmul.f32 %v776, 0.5
      %v785 = vmul.f32 %v691, %v777
      %v786 = vmul.f32 %v694, %v778
      %v787 = vmul.f32 %v699, %v779
      %v788 = vmul.f32 %v702, %v780
      %v789 = vmul.f32 %v707, %v781
      %v790 = vmul.f32 %v710, %v782
      %v791 = vmul.f32 %v715, %v783
      %v792 = vmul.f32 %v718, %v784
      %v793 = vld [vmem:[%s3] sm:$0x1]
      %v794 = vld [vmem:[%s4] sm:$0x1]
      %795 = vadd.xlane.f32.xlu0 %v785
      %v796 = vpop.xlane.xlu0 %795
      %797 = vadd.xlane.f32.xlu0 %v786
      %v798 = vpop.xlane.xlu0 %797
      %799 = vadd.xlane.f32.xlu0 %v787
      %v800 = vpop.xlane.xlu0 %799
      %801 = vadd.xlane.f32.xlu0 %v788
      %v802 = vpop.xlane.xlu0 %801
      %803 = vadd.xlane.f32.xlu0 %v789
      %v804 = vpop.xlane.xlu0 %803
      %805 = vadd.xlane.f32.xlu0 %v790
      %v806 = vpop.xlane.xlu0 %805
      %807 = vadd.xlane.f32.xlu0 %v791
      %v808 = vpop.xlane.xlu0 %807
      %809 = vadd.xlane.f32.xlu0 %v792
      %v810 = vpop.xlane.xlu0 %809
      %v811 = vrcp.pop 128.0
      %v812 = vmul.f32 %v796, %v811
      %v813 = vmul.f32 %v798, %v811
      %v814 = vmul.f32 %v800, %v811
      %v815 = vmul.f32 %v802, %v811
      %v816 = vmul.f32 %v804, %v811
      %v817 = vmul.f32 %v806, %v811
      %v818 = vmul.f32 %v808, %v811
      %v819 = vmul.f32 %v810, %v811
      %v820 = vsub.f32 %v785, %v812
      %v821 = vsub.f32 %v786, %v813
      %v822 = vsub.f32 %v787, %v814
      %v823 = vsub.f32 %v788, %v815
      %v824 = vsub.f32 %v789, %v816
      %v825 = vsub.f32 %v790, %v817
      %v826 = vsub.f32 %v791, %v818
      %v827 = vsub.f32 %v792, %v819
      %v828 = vmul.f32 %v820, %v820
      %v829 = vmul.f32 %v821, %v821
      %v830 = vmul.f32 %v822, %v822
      %v831 = vmul.f32 %v823, %v823
      %v832 = vmul.f32 %v824, %v824
      %v833 = vmul.f32 %v825, %v825
      %v834 = vmul.f32 %v826, %v826
      %v835 = vmul.f32 %v827, %v827
      %836 = vadd.xlane.f32.xlu0 %v828
      %v837 = vpop.xlane.xlu0 %836
      %838 = vadd.xlane.f32.xlu0 %v829
      %v839 = vpop.xlane.xlu0 %838
      %840 = vadd.xlane.f32.xlu0 %v830
      %v841 = vpop.xlane.xlu0 %840
      %842 = vadd.xlane.f32.xlu0 %v831
      %v843 = vpop.xlane.xlu0 %842
      %844 = vadd.xlane.f32.xlu0 %v832
      %v845 = vpop.xlane.xlu0 %844
      %846 = vadd.xlane.f32.xlu0 %v833
      %v847 = vpop.xlane.xlu0 %846
      %848 = vadd.xlane.f32.xlu0 %v834
      %v849 = vpop.xlane.xlu0 %848
      %850 = vadd.xlane.f32.xlu0 %v835
      %v851 = vpop.xlane.xlu0 %850
      %v852 = vmul.f32 %v837, %v811
      %v853 = vmul.f32 %v839, %v811
      %v854 = vmul.f32 %v841, %v811
      %v855 = vmul.f32 %v843, %v811
      %v856 = vmul.f32 %v845, %v811
      %v857 = vmul.f32 %v847, %v811
      %v858 = vmul.f32 %v849, %v811
      %v859 = vmul.f32 %v851, %v811
      %v860 = vadd.f32 %v852, 1e-05
      %v861 = vadd.f32 %v853, 1e-05
      %v862 = vadd.f32 %v854, 1e-05
      %v863 = vadd.f32 %v855, 1e-05
      %v864 = vadd.f32 %v856, 1e-05
      %v865 = vadd.f32 %v857, 1e-05
      %v866 = vadd.f32 %v858, 1e-05
      %v867 = vadd.f32 %v859, 1e-05
      %v868 = vrsqrt.pop %v860
      %v869 = vrsqrt.pop %v861
      %v870 = vrsqrt.pop %v862
      %v871 = vrsqrt.pop %v863
      %v872 = vrsqrt.pop %v864
      %v873 = vrsqrt.pop %v865
      %v874 = vrsqrt.pop %v866
      %v875 = vrsqrt.pop %v867
      %v876 = vmul.f32 %v820, %v868
      %v877 = vmul.f32 %v821, %v869
      %v878 = vmul.f32 %v822, %v870
      %v879 = vmul.f32 %v823, %v871
      %v880 = vmul.f32 %v824, %v872
      %v881 = vmul.f32 %v825, %v873
      %v882 = vmul.f32 %v826, %v874
      %v883 = vmul.f32 %v827, %v875
      %v885 = vlaneseq
      %v886 = vshrl.u32 %v885, 7
      %v887 = vsub.s32 0, %v886
      %v888 = vrot.slane %v793, %v887
      %v890 = vmul.f32 %v876, %v888
      %v891 = vmul.f32 %v877, %v888
      %v892 = vmul.f32 %v878, %v888
      %v893 = vmul.f32 %v879, %v888
      %v894 = vmul.f32 %v880, %v888
      %v895 = vmul.f32 %v881, %v888
      %v896 = vmul.f32 %v882, %v888
      %v897 = vmul.f32 %v883, %v888
      %v899 = vlaneseq
      %v900 = vshrl.u32 %v899, 7
      %v901 = vsub.s32 0, %v900
      %v902 = vrot.slane %v794, %v901
      %v904 = vadd.f32 %v890, %v902
      %v905 = vadd.f32 %v891, %v902
      %v906 = vadd.f32 %v892, %v902
      %v907 = vadd.f32 %v893, %v902
      %v908 = vadd.f32 %v894, %v902
      %v909 = vadd.f32 %v895, %v902
      %v910 = vadd.f32 %v896, %v902
      %v911 = vadd.f32 %v897, %v902
      %v912 = vpack.c.bf16 %v905, %v904
      %v913 = vpack.c.bf16 %v907, %v906
      %v914 = vpack.c.bf16 %v909, %v908
      %v915 = vpack.c.bf16 %v911, %v910
      %v916 = vld [vmem:[%s5] sm:$0xf]
      %v917 = vld [vmem:[%s5 + $0x4] sm:$0xf]
      %v918 = vld [vmem:[%s5 + $0x8] sm:$0xf]
      %v919 = vld [vmem:[%s5 + $0xc] sm:$0xf]
      %v920 = vld [vmem:[%s5 + $0x10] sm:$0xf]
      %v921 = vld [vmem:[%s5 + $0x14] sm:$0xf]
      %v922 = vld [vmem:[%s5 + $0x18] sm:$0xf]
      %v923 = vld [vmem:[%s5 + $0x1c] sm:$0xf]
      %v924 = vld [vmem:[%s5 + $0x20] sm:$0xf]
      %v925 = vld [vmem:[%s5 + $0x24] sm:$0xf]
      %v926 = vld [vmem:[%s5 + $0x28] sm:$0xf]
      %v927 = vld [vmem:[%s5 + $0x2c] sm:$0xf]
      %v928 = vld [vmem:[%s5 + $0x30] sm:$0xf]
      %v929 = vld [vmem:[%s5 + $0x34] sm:$0xf]
      %v930 = vld [vmem:[%s5 + $0x38] sm:$0xf]
      %v931 = vld [vmem:[%s5 + $0x3c] sm:$0xf]
      %v932 = vld [vmem:[%s6] sm:$0x1]
      %v934 = vlaneseq
      %v935 = vshrl.u32 %v934, 7
      %v936 = vsub.s32 0, %v935
      %v937 = vrot.slane %v932, %v936
      %v955 = vunpack.c.l.b16 %v916
      %v956 = vunpack.c.l.b16 %v917
      %v957 = vunpack.c.l.b16 %v918
      %v958 = vunpack.c.l.b16 %v919
      %v959 = vunpack.c.l.b16 %v920
      %v960 = vunpack.c.l.b16 %v921
      %v961 = vunpack.c.l.b16 %v922
      %v962 = vunpack.c.l.b16 %v923
      %v963 = vunpack.c.l.b16 %v924
      %v964 = vunpack.c.l.b16 %v925
      %v965 = vunpack.c.l.b16 %v926
      %v966 = vunpack.c.l.b16 %v927
      %v967 = vunpack.c.l.b16 %v928
      %v968 = vunpack.c.l.b16 %v929
      %v969 = vunpack.c.l.b16 %v930
      %v970 = vunpack.c.l.b16 %v931
      %v971 = vpack.c.b16 %v956, %v955
      %v972 = vpack.c.b16 %v958, %v957
      %v973 = vpack.c.b16 %v960, %v959
      %v974 = vpack.c.b16 %v962, %v961
      %v975 = vpack.c.b16 %v964, %v963
      %v976 = vpack.c.b16 %v966, %v965
      %v977 = vpack.c.b16 %v968, %v967
      %v978 = vpack.c.b16 %v970, %v969
      %987 = vmatprep.subr.bf16.mxu0 0
      %988 = vmatpush1.bf16.msra.mxu0 %v971
      %989 = vmatprep.subr.bf16.mxu0 0
      %990 = vmatpush1.bf16.msra.mxu0 %v972
      %991 = vmatprep.subr.bf16.mxu0 0
      %992 = vmatpush1.bf16.msra.mxu0 %v973
      %993 = vmatprep.subr.bf16.mxu0 0
      %994 = vmatpush1.bf16.msra.mxu0 %v974
      %995 = vmatprep.subr.bf16.mxu0 0
      %996 = vmatpush1.bf16.msra.mxu0 %v975
      %997 = vmatprep.subr.bf16.mxu0 0
      %998 = vmatpush1.bf16.msra.mxu0 %v976
      %999 = vmatprep.subr.bf16.mxu0 0
      %1000 = vmatpush1.bf16.msra.mxu0 %v977
      %1001 = vmatprep.subr.bf16.mxu0 0
      %1002 = vmatpush1.bf16.msra.mxu0 %v978
      %1003 = vmatprep.subr.bf16.mxu0 0
      %1004 = vmatpush1.bf16.msra.mxu0 0
      %1005 = vmatprep.subr.bf16.mxu0 0
      %1006 = vmatpush1.bf16.msra.mxu0 0
      %1007 = vmatprep.subr.bf16.mxu0 0
      %1008 = vmatpush1.bf16.msra.mxu0 0
      %1009 = vmatprep.subr.bf16.mxu0 0
      %1010 = vmatpush1.bf16.msra.mxu0 0
      %1011 = vmatprep.subr.bf16.mxu0 0
      %1012 = vmatpush1.bf16.msra.mxu0 0
      %1013 = vmatprep.subr.bf16.mxu0 0
      %1014 = vmatpush1.bf16.msra.mxu0 0
      %1015 = vmatprep.subr.bf16.mxu0 0
      %1016 = vmatpush1.bf16.msra.mxu0 0
      %1017 = vmatprep.subr.bf16.mxu0 0
      %1018 = vmatpush1.bf16.msra.mxu0 0
      %1019 = vmatprep.mubr.bf16.mxu0 0
      %1020 = vmatmul.mubr.bf16.gmra.mrb[0].mxu0 %v912
      %v1021 = vpop.f32.mrb[0].mxu0
      %v1022 = vadd.f32 %v937, %v1021
      %v1023 = vpop.f32.mrb[0].mxu0
      %v1024 = vpop.f32.mrb[0].mxu0
      %v1025 = vadd.f32 %v937, %v1024
      %v1026 = vpop.f32.mrb[0].mxu0
      %1027 = vmatprep.mubr.bf16.mxu0 0
      %1028 = vmatmul.mubr.bf16.gmra.mrb[0].mxu0 %v913
      %v1029 = vpop.f32.mrb[0].mxu0
      %v1030 = vadd.f32 %v937, %v1029
      %v1031 = vpop.f32.mrb[0].mxu0
      %v1032 = vpop.f32.mrb[0].mxu0
      %v1033 = vadd.f32 %v937, %v1032
      %v1034 = vpop.f32.mrb[0].mxu0
      %1035 = vmatprep.mubr.bf16.mxu0 0
      %1036 = vmatmul.mubr.bf16.gmra.mrb[0].mxu0 %v914
      %v1037 = vpop.f32.mrb[0].mxu0
      %v1038 = vadd.f32 %v937, %v1037
      %v1039 = vpop.f32.mrb[0].mxu0
      %v1040 = vpop.f32.mrb[0].mxu0
      %v1041 = vadd.f32 %v937, %v1040
      %v1042 = vpop.f32.mrb[0].mxu0
      %1043 = vmatprep.mubr.bf16.mxu0 0
      %1044 = vmatmul.mubr.bf16.gmra.mrb[0].mxu0 %v915
      %v1045 = vpop.f32.mrb[0].mxu0
      %v1046 = vadd.f32 %v937, %v1045
      %v1047 = vpop.f32.mrb[0].mxu0
      %v1048 = vpop.f32.mrb[0].mxu0
      %v1049 = vadd.f32 %v937, %v1048
      %v1050 = vpop.f32.mrb[0].mxu0
      %1051 = vdwg.mxu0
      %1052 = vst [vmem:[%s278] sm:$0xff] %v1022
      %1053 = vst [vmem:[%s278 + $0x8] sm:$0xff] %v1025
      %1054 = vst [vmem:[%s278 + $0x10] sm:$0xff] %v1030
      %1055 = vst [vmem:[%s278 + $0x18] sm:$0xff] %v1033
      %1056 = vst [vmem:[%s278 + $0x20] sm:$0xff] %v1038
      %1057 = vst [vmem:[%s278 + $0x28] sm:$0xff] %v1041
      %1058 = vst [vmem:[%s278 + $0x30] sm:$0xff] %v1046
      %1059 = vst [vmem:[%s278 + $0x38] sm:$0xff] %v1049
      %p1060 = scmp.lt.s32.totalorder %s18, 1
      %s1061 = scalar_select %p1060, %s18, 1
      %s1062 = smul.addr %s1061, 8
      %s1063 = smul.addr %s1062, 8
      %s1064 = scalar_lea.vmem %s7, %s1063
      // Predicated region
      $region49: #{_lambda_.9} parent=47 // pred_check
        %p1065 = pneg %p188
      $region50: #{_lambda_.9} parent=47 // pred_check_branch
        %1067 = sbr.rel (%p1065) target = $region52
      $region51: #{_lambda_.9} parent=47 // pred_region
        _
      $region52: #{_lambda_.9} parent=47 // pred_fallthru
        _
    $region48: #{_lambda_.9} parent=5 // pred_fallthru
      _
    %p1068 = scmp.le.s32.totalorder 2, %s13
    // Predicated region
    $region53: #{_lambda_.9} parent=5 // pred_check
      %p1069 = pneg %p1068
    $region54: #{_lambda_.9} parent=5 // pred_check_branch
      %1071 = sbr.rel (%p1069) target = $region56
    $region55: #{_lambda_.9} parent=5 // pred_region
      %s1072 = ssub.s32 %s13, 2
      // Predicated region
      $region57: #{_lambda_.9} parent=55 // pred_check
        %p1073 = pneg %p194
      $region58: #{_lambda_.9} parent=55 // pred_check_branch
        %1075 = sbr.rel (%p1073) target = $region60
      $region59: #{_lambda_.9} parent=55 // pred_region
        %p1076 = scmp.lt.s32.totalorder %s19, 1
        %s1077 = scalar_select %p1076, %s19, 1
        %s1078 = smul.addr %s1077, 8
        %s1079 = smul.addr %s1078, 8
        %s1080 = scalar_lea.vmem %s7, %s1079
      $region60: #{_lambda_.9} parent=55 // pred_fallthru
        _
    $region56: #{_lambda_.9} parent=5 // pred_fallthru
      _
  $region6: #{_lambda_.9} parent=0 // loop_footer
    %s17 = sadd.s32 1, %s13
  $region7: #{_lambda_.9} parent=0 // loop_footer_branch
    %12 = sbr.rel target = $region3
  $region8: #{_lambda_.9} parent=0 // loop_exit
    _

// kernel: _lambda_.15
$region0: #{_lambda_.15}
  #allocation0 [shape = 'u32[]', space=smem, size = 0x4, offset = 0x4, fixed_abs, tag = 'smem constant byte address 0x4 - core index']
  #allocation1 [shape = 'u32[144,128]{1,0:T(1,128)}', space=vmem, size = 0x12000, scoped, tag = 'internal scratch']
  %s0 = inlined_call_operand.vmem [shape: f32[2,64,128], index: 0, kind: input, shape index: {}]
  %s1 = inlined_call_operand.vmem [shape: f32[1,128], index: 1, kind: input, shape index: {}]
  %s2 = inlined_call_operand.vmem [shape: f32[1,128], index: 2, kind: input, shape index: {}]
  %s3 = inlined_call_operand.hbm [shape: f32[2,64,128], index: 3, kind: output, shape index: {}]
  %s4 = sld [smem:[#allocation0]]
  $region45: #{_lambda_.15} parent=0
    _
  %s6 = ssub.s32 1, %s4
  %s7 = scalar_select 0, %s6, %s4
  $region1: #{_lambda_.15} parent=0
    #allocation2 [shape = 'u8[65536]{0}', space=vmem, size = 0x10000, scoped, tag = 'output window, operand 0']
    #allocation3 [shape = 's32[2]{0}', space=sflag, size = 0x8, scoped, tag = 'scoped memory for _lambda_.15']
    %8 = vsyncpa [#allocation3], 0
    %s9 = scalar_lea.sflag [#allocation3], 1
    %10 = vsyncpa %s9, 0
    loop: start=0, step=1, limit=4
    $region2: #{_lambda_.15} parent=1 // loop_pre_header
      _
    $region3: #{_lambda_.15} parent=1 // loop_header
      %s12 = sphi 0, %s16
      %p13 = scmp.ge.s32.totalorder %s12, 4
      %s22 = sphi 0, %s24
      %s25 = sphi 0, %s22
      %s26 = sphi 0, %s25
      %s42 = sphi 0, %s26
      %s46 = sphi 0, %s46
      %s48 = sphi 0, %s46
      %s49 = sphi 0, %s48
      %s63 = sphi 0, %s49
      %s67 = sphi 0, %s67
      %s69 = sphi 0, %s67
      %s70 = sphi 0, %s69
      %s84 = sphi 0, %s70
      %s90 = sphi 0, %s92
      %s93 = sphi 0, %s90
      %s94 = sphi 0, %s93
      %s110 = sphi 0, %s94
    $region4: #{_lambda_.15} parent=1 // loop_header_branch
      %15 = sbr.rel (%p13) target = $region8
    $region5: #{_lambda_.15} parent=1 // loop_body
      %s17 = ssub.s32 %s12, 1
      %s18 = ssub.s32 %s12, 2
      %s19 = sadd.s32 %s12, 1
      %s20 = ssub.s32 %s12, %s19
      %p21 = scmp.eq.s32.totalorder %s20, 0
      %s23 = sadd.s32 %s22, 1
      %s24 = scalar_select %p21, %s22, %s23
      %p27 = pneg %p21
      %p28 = scmp.eq.s32.totalorder %s12, 1
      %p29 = por %p27, %p28
      %p30 = scmp.ne.s32.totalorder %s22, %s25
      %p31 = scmp.eq.s32.totalorder %s12, 0
      %p32 = por %p30, %p31
      %p33 = scmp.ne.s32.totalorder %s22, %s25
      %p34 = scmp.eq.s32.totalorder %s17, 1
      %p35 = por %p33, %p34
      %p36 = scmp.ne.s32.totalorder %s25, %s26
      %p37 = scmp.eq.s32.totalorder %s17, 0
      %p38 = por %p36, %p37
      %p39 = scmp.ne.s32.totalorder %s25, %s26
      %p40 = scmp.eq.s32.totalorder %s18, 1
      %p41 = por %p39, %p40
      %p43 = scmp.ne.s32.totalorder %s26, %s42
      %p44 = scmp.eq.s32.totalorder %s18, 0
      %p45 = por %p43, %p44
      %s47 = sadd.s32 %s46, 1
      %p50 = scmp.eq.s32.totalorder %s12, 1
      %p51 = scmp.ne.s32.totalorder %s46, %s48
      %p52 = scmp.eq.s32.totalorder %s12, 0
      %p53 = por %p51, %p52
      %p54 = scmp.ne.s32.totalorder %s46, %s48
      %p55 = scmp.eq.s32.totalorder %s17, 1
      %p56 = por %p54, %p55
      %p57 = scmp.ne.s32.totalorder %s48, %s49
      %p58 = scmp.eq.s32.totalorder %s17, 0
      %p59 = por %p57, %p58
      %p60 = scmp.ne.s32.totalorder %s48, %s49
      %p61 = scmp.eq.s32.totalorder %s18, 1
      %p62 = por %p60, %p61
      %p64 = scmp.ne.s32.totalorder %s49, %s63
      %p65 = scmp.eq.s32.totalorder %s18, 0
      %p66 = por %p64, %p65
      %s68 = sadd.s32 %s67, 1
      %p71 = scmp.eq.s32.totalorder %s12, 1
      %p72 = scmp.ne.s32.totalorder %s67, %s69
      %p73 = scmp.eq.s32.totalorder %s12, 0
      %p74 = por %p72, %p73
      %p75 = scmp.ne.s32.totalorder %s67, %s69
      %p76 = scmp.eq.s32.totalorder %s17, 1
      %p77 = por %p75, %p76
      %p78 = scmp.ne.s32.totalorder %s69, %s70
      %p79 = scmp.eq.s32.totalorder %s17, 0
      %p80 = por %p78, %p79
      %p81 = scmp.ne.s32.totalorder %s69, %s70
      %p82 = scmp.eq.s32.totalorder %s18, 1
      %p83 = por %p81, %p82
      %p85 = scmp.ne.s32.totalorder %s70, %s84
      %p86 = scmp.eq.s32.totalorder %s18, 0
      %p87 = por %p85, %p86
      %s88 = ssub.s32 %s12, %s19
      %p89 = scmp.eq.s32.totalorder %s88, 0
      %s91 = sadd.s32 %s90, 1
      %s92 = scalar_select %p89, %s90, %s91
      %p95 = pneg %p89
      %p96 = scmp.eq.s32.totalorder %s12, 1
      %p97 = por %p95, %p96
      %p98 = scmp.ne.s32.totalorder %s90, %s93
      %p99 = scmp.eq.s32.totalorder %s12, 0
      %p100 = por %p98, %p99
      %p101 = scmp.ne.s32.totalorder %s90, %s93
      %p102 = scmp.eq.s32.totalorder %s17, 1
      %p103 = por %p101, %p102
      %p104 = scmp.ne.s32.totalorder %s93, %s94
      %p105 = scmp.eq.s32.totalorder %s17, 0
      %p106 = por %p104, %p105
      %p107 = scmp.ne.s32.totalorder %s93, %s94
      %p108 = scmp.eq.s32.totalorder %s18, 1
      %p109 = por %p107, %p108
      %p111 = scmp.ne.s32.totalorder %s94, %s110
      %p112 = scmp.eq.s32.totalorder %s18, 0
      %p113 = por %p111, %p112
      %p114 = scmp.le.s32.totalorder 1, %s12
      %p115 = scmp.lt.s32.totalorder %s12, 3
      %p116 = pnand %p114, %p115
      %p117 = pneg %p116
      // Predicated region
      $region9: #{_lambda_.15} parent=5 // pred_check
        _
      $region10: #{_lambda_.15} parent=5 // pred_check_branch
        %119 = sbr.rel (%p116) target = $region12
      $region11: #{_lambda_.15} parent=5 // pred_region
        %s120 = ssub.s32 %s12, 1
        // Predicated region
        $region13: #{_lambda_.15} parent=11 // pred_check
          %p121 = pneg %p59
        $region14: #{_lambda_.15} parent=11 // pred_check_branch
          %123 = sbr.rel (%p121) target = $region16
        $region15: #{_lambda_.15} parent=11 // pred_region
          _
        $region16: #{_lambda_.15} parent=11 // pred_fallthru
          _
        // Predicated region
        $region17: #{_lambda_.15} parent=11 // pred_check
          %p124 = pneg %p80
        $region18: #{_lambda_.15} parent=11 // pred_check_branch
          %126 = sbr.rel (%p124) target = $region20
        $region19: #{_lambda_.15} parent=11 // pred_region
          _
        $region20: #{_lambda_.15} parent=11 // pred_fallthru
          _
      $region12: #{_lambda_.15} parent=5 // pred_fallthru
        _
      %p127 = scmp.lt.s32.totalorder %s12, 2
      // Predicated region
      $region21: #{_lambda_.15} parent=5 // pred_check
        %p128 = pneg %p127
      $region22: #{_lambda_.15} parent=5 // pred_check_branch
        %130 = sbr.rel (%p128) target = $region24
      $region23: #{_lambda_.15} parent=5 // pred_region
        // Predicated region
        $region25: #{_lambda_.15} parent=23 // pred_check
          %p131 = pneg %p32
        $region26: #{_lambda_.15} parent=23 // pred_check_branch
          %133 = sbr.rel (%p131) target = $region28
        $region27: #{_lambda_.15} parent=23 // pred_region
          %p134 = scmp.lt.s32.totalorder %s12, 1
          %s135 = scalar_select %p134, %s12, 1
          %s136 = smul.addr %s135, 8
          %s137 = smul.addr %s136, 8
          %s138 = scalar_lea.vmem %s0, %s137
        $region28: #{_lambda_.15} parent=23 // pred_fallthru
          _
      $region24: #{_lambda_.15} parent=5 // pred_fallthru
        _
      %p139 = scmp.le.s32.totalorder 1, %s12
      %p140 = scmp.lt.s32.totalorder %s12, 3
      %p141 = pnand %p139, %p140
      %p142 = pneg %p141
      // Predicated region
      $region29: #{_lambda_.15} parent=5 // pred_check
        _
      $region30: #{_lambda_.15} parent=5 // pred_check_branch
        %144 = sbr.rel (%p141) target = $region32
      $region31: #{_lambda_.15} parent=5 // pred_region
        %s145 = ssub.s32 %s12, 1
        %p146 = scmp.lt.s32.totalorder %s17, 1
        %s147 = scalar_select %p146, %s17, 1
        %s148 = smul.addr %s147, 8
        %s149 = smul.addr %s148, 8
        %s150 = scalar_lea.vmem %s0, %s149
        %p151 = pneg %p38
        %p152 = pneg %p35
        %p153 = pneg %p59
        %p154 = pneg %p56
        %p155 = pneg %p80
        %p156 = pneg %p77
        %p157 = pneg %p106
        %p158 = pneg %p103
        %s159 = sand.u32 %s93, 1
        %s160 = scalar_lea.sflag [#allocation3], %s159
        %s161 = sand.u32 %s93, 1
        %s162 = smul.addr %s161, 64
        %s163 = scalar_lea.vmem [#allocation2], %s162
        %p164 = scmp.lt.s32.totalorder %s17, 1
        %s165 = scalar_select %p164, %s17, 1
        %s166 = smul.addr %s165, 8
        %s167 = smul.addr %s166, 8
        %s168 = scalar_lea.vmem %s0, %s167
        %v169 = vld [vmem:[%s168] sm:$0xff]
        %v170 = vld [vmem:[%s168 + $0x8] sm:$0xff]
        %v171 = vld [vmem:[%s168 + $0x10] sm:$0xff]
        %v172 = vld [vmem:[%s168 + $0x18] sm:$0xff]
        %v173 = vld [vmem:[%s168 + $0x20] sm:$0xff]
        %v174 = vld [vmem:[%s168 + $0x28] sm:$0xff]
        %v175 = vld [vmem:[%s168 + $0x30] sm:$0xff]
        %v176 = vld [vmem:[%s168 + $0x38] sm:$0xff]
        %v177 = vld [vmem:[%s1] sm:$0x1]
        %v178 = vld [vmem:[%s2] sm:$0x1]
        %179 = vadd.xlane.f32.xlu0 %v169
        %v180 = vpop.xlane.xlu0 %179
        %181 = vadd.xlane.f32.xlu0 %v170
        %v182 = vpop.xlane.xlu0 %181
        %183 = vadd.xlane.f32.xlu0 %v171
        %v184 = vpop.xlane.xlu0 %183
        %185 = vadd.xlane.f32.xlu0 %v172
        %v186 = vpop.xlane.xlu0 %185
        %187 = vadd.xlane.f32.xlu0 %v173
        %v188 = vpop.xlane.xlu0 %187
        %189 = vadd.xlane.f32.xlu0 %v174
        %v190 = vpop.xlane.xlu0 %189
        %191 = vadd.xlane.f32.xlu0 %v175
        %v192 = vpop.xlane.xlu0 %191
        %193 = vadd.xlane.f32.xlu0 %v176
        %v194 = vpop.xlane.xlu0 %193
        %v195 = vrcp.pop 128.0
        %v196 = vmul.f32 %v180, %v195
        %v197 = vmul.f32 %v182, %v195
        %v198 = vmul.f32 %v184, %v195
        %v199 = vmul.f32 %v186, %v195
        %v200 = vmul.f32 %v188, %v195
        %v201 = vmul.f32 %v190, %v195
        %v202 = vmul.f32 %v192, %v195
        %v203 = vmul.f32 %v194, %v195
        %v204 = vsub.f32 %v169, %v196
        %v205 = vsub.f32 %v170, %v197
        %v206 = vsub.f32 %v171, %v198
        %v207 = vsub.f32 %v172, %v199
        %v208 = vsub.f32 %v173, %v200
        %v209 = vsub.f32 %v174, %v201
        %v210 = vsub.f32 %v175, %v202
        %v211 = vsub.f32 %v176, %v203
        %v212 = vmul.f32 %v204, %v204
        %v213 = vmul.f32 %v205, %v205
        %v214 = vmul.f32 %v206, %v206
        %v215 = vmul.f32 %v207, %v207
        %v216 = vmul.f32 %v208, %v208
        %v217 = vmul.f32 %v209, %v209
        %v218 = vmul.f32 %v210, %v210
        %v219 = vmul.f32 %v211, %v211
        %220 = vadd.xlane.f32.xlu0 %v212
        %v221 = vpop.xlane.xlu0 %220
        %222 = vadd.xlane.f32.xlu0 %v213
        %v223 = vpop.xlane.xlu0 %222
        %224 = vadd.xlane.f32.xlu0 %v214
        %v225 = vpop.xlane.xlu0 %224
        %226 = vadd.xlane.f32.xlu0 %v215
        %v227 = vpop.xlane.xlu0 %226
        %228 = vadd.xlane.f32.xlu0 %v216
        %v229 = vpop.xlane.xlu0 %228
        %230 = vadd.xlane.f32.xlu0 %v217
        %v231 = vpop.xlane.xlu0 %230
        %232 = vadd.xlane.f32.xlu0 %v218
        %v233 = vpop.xlane.xlu0 %232
        %234 = vadd.xlane.f32.xlu0 %v219
        %v235 = vpop.xlane.xlu0 %234
        %v236 = vmul.f32 %v221, %v195
        %v237 = vmul.f32 %v223, %v195
        %v238 = vmul.f32 %v225, %v195
        %v239 = vmul.f32 %v227, %v195
        %v240 = vmul.f32 %v229, %v195
        %v241 = vmul.f32 %v231, %v195
        %v242 = vmul.f32 %v233, %v195
        %v243 = vmul.f32 %v235, %v195
        %v244 = vadd.f32 %v236, 1e-05
        %v245 = vadd.f32 %v237, 1e-05
        %v246 = vadd.f32 %v238, 1e-05
        %v247 = vadd.f32 %v239, 1e-05
        %v248 = vadd.f32 %v240, 1e-05
        %v249 = vadd.f32 %v241, 1e-05
        %v250 = vadd.f32 %v242, 1e-05
        %v251 = vadd.f32 %v243, 1e-05
        %v252 = vrsqrt.pop %v244
        %v253 = vrsqrt.pop %v245
        %v254 = vrsqrt.pop %v246
        %v255 = vrsqrt.pop %v247
        %v256 = vrsqrt.pop %v248
        %v257 = vrsqrt.pop %v249
        %v258 = vrsqrt.pop %v250
        %v259 = vrsqrt.pop %v251
        %v260 = vmul.f32 %v204, %v252
        %v261 = vmul.f32 %v205, %v253
        %v262 = vmul.f32 %v206, %v254
        %v263 = vmul.f32 %v207, %v255
        %v264 = vmul.f32 %v208, %v256
        %v265 = vmul.f32 %v209, %v257
        %v266 = vmul.f32 %v210, %v258
        %v267 = vmul.f32 %v211, %v259
        %v269 = vlaneseq
        %v270 = vshrl.u32 %v269, 7
        %v271 = vsub.s32 0, %v270
        %v272 = vrot.slane %v177, %v271
        %v274 = vmul.f32 %v260, %v272
        %v275 = vmul.f32 %v261, %v272
        %v276 = vmul.f32 %v262, %v272
        %v277 = vmul.f32 %v263, %v272
        %v278 = vmul.f32 %v264, %v272
        %v279 = vmul.f32 %v265, %v272
        %v280 = vmul.f32 %v266, %v272
        %v281 = vmul.f32 %v267, %v272
        %v283 = vlaneseq
        %v284 = vshrl.u32 %v283, 7
        %v285 = vsub.s32 0, %v284
        %v286 = vrot.slane %v178, %v285
        %v288 = vadd.f32 %v274, %v286
        %v289 = vadd.f32 %v275, %v286
        %v290 = vadd.f32 %v276, %v286
        %v291 = vadd.f32 %v277, %v286
        %v292 = vadd.f32 %v278, %v286
        %v293 = vadd.f32 %v279, %v286
        %v294 = vadd.f32 %v280, %v286
        %v295 = vadd.f32 %v281, %v286
        %296 = vst [vmem:[%s163] sm:$0xff] %v288
        %297 = vst [vmem:[%s163 + $0x8] sm:$0xff] %v289
        %298 = vst [vmem:[%s163 + $0x10] sm:$0xff] %v290
        %299 = vst [vmem:[%s163 + $0x18] sm:$0xff] %v291
        %300 = vst [vmem:[%s163 + $0x20] sm:$0xff] %v292
        %301 = vst [vmem:[%s163 + $0x28] sm:$0xff] %v293
        %302 = vst [vmem:[%s163 + $0x30] sm:$0xff] %v294
        %303 = vst [vmem:[%s163 + $0x38] sm:$0xff] %v295
        %s304 = sand.u32 %s93, 1
        %s305 = scalar_lea.sflag [#allocation3], %s304
        %s306 = sand.u32 %s93, 1
        %s307 = smul.addr %s306, 64
        %s308 = scalar_lea.vmem [#allocation2], %s307
        // Predicated region
        $region33: #{_lambda_.15} parent=31 // pred_check
          %p309 = pneg %p103
        $region34: #{_lambda_.15} parent=31 // pred_check_branch
          %311 = sbr.rel (%p309) target = $region36
        $region35: #{_lambda_.15} parent=31 // pred_region
          %s313 = ssub.s32 1024, 1024
          %314 = vsyncadd %s305, %s313
          %s315 = smul.addr %s17, 8
          %s316 = smul.addr %s315, 128
          %s317 = scalar_lea.hbm %s3, %s316
          %s318 = sshll.u32 %s308, 4
          %s319 = int_to_ptr.vmem [resolvable:$true] %s318
          %324 = dma.vmem_to_hbm [thread:$0]  %s319, 1024, %s317, %s305, 128, 128, 8
        $region36: #{_lambda_.15} parent=31 // pred_fallthru
          _
      $region32: #{_lambda_.15} parent=5 // pred_fallthru
        _
      %p325 = scmp.le.s32.totalorder 2, %s12
      // Predicated region
      $region37: #{_lambda_.15} parent=5 // pred_check
        %p326 = pneg %p325
      $region38: #{_lambda_.15} parent=5 // pred_check_branch
        %328 = sbr.rel (%p326) target = $region40
      $region39: #{_lambda_.15} parent=5 // pred_region
        %s329 = ssub.s32 %s12, 2
        // Predicated region
        $region41: #{_lambda_.15} parent=39 // pred_check
          %p330 = pneg %p109
        $region42: #{_lambda_.15} parent=39 // pred_check_branch
          %332 = sbr.rel (%p330) target = $region44
        $region43: #{_lambda_.15} parent=39 // pred_region
          %s333 = sand.u32 %s94, 1
          %s334 = scalar_lea.sflag [#allocation3], %s333
          %s335 = sand.u32 %s94, 1
          %s336 = smul.addr %s335, 64
          %s337 = scalar_lea.vmem [#allocation2], %s336
          %338 = dma.done %s334, 1024
        $region44: #{_lambda_.15} parent=39 // pred_fallthru
          _
      $region40: #{_lambda_.15} parent=5 // pred_fallthru
        _
    $region6: #{_lambda_.15} parent=1 // loop_footer
      %s16 = sadd.s32 1, %s12
    $region7: #{_lambda_.15} parent=1 // loop_footer_branch
      %11 = sbr.rel target = $region3
    $region8: #{_lambda_.15} parent=1 // loop_exit
      _
    %339 = vsyncpa [#allocation3], 1
    %s340 = scalar_lea.sflag [#allocation3], 1
    %341 = vsyncpa %s340, 1

// kernel: _lambda_.11
$region0: #{_lambda_.11}
  #allocation0 [shape = 'u32[]', space=smem, size = 0x4, offset = 0x4, fixed_abs, tag = 'smem constant byte address 0x4 - core index']
  #allocation1 [shape = 'u32[144,128]{1,0:T(1,128)}', space=vmem, size = 0x12000, scoped, tag = 'internal scratch']
  %s0 = inlined_call_operand.vmem [shape: f32[2,64,128], index: 0, kind: input, shape index: {}]
  %s1 = inlined_call_operand.vmem [shape: f32[1,128], index: 1, kind: input, shape index: {}]
  %s2 = inlined_call_operand.vmem [shape: f32[1,128], index: 2, kind: input, shape index: {}, may-alias: {2,6}]
  %s3 = inlined_call_operand.vmem [shape: bf16[128,384], index: 3, kind: input, shape index: {}]
  %s4 = inlined_call_operand.vmem [shape: f32[1,384], index: 4, kind: input, shape index: {}]
  %s5 = inlined_call_operand.vmem [shape: bf16[128,128], index: 5, kind: input, shape index: {}]
  %s6 = inlined_call_operand.vmem [shape: f32[1,128], index: 6, kind: input, shape index: {}, may-alias: {2,6}]
  %s7 = inlined_call_operand.vmem [shape: f32[2,64,128], index: 7, kind: output, shape index: {}]
  %s8 = sld [smem:[#allocation0]]
  $region61: #{_lambda_.11} parent=0
    _
  %s10 = ssub.s32 1, %s8
  %s11 = scalar_select 0, %s10, %s8
  loop: start=0, step=1, limit=4
  $region2: #{_lambda_.11} parent=0 // loop_pre_header
    _
  $region3: #{_lambda_.11} parent=0 // loop_header
    %s13 = sphi 0, %s17
    %p14 = scmp.ge.s32.totalorder %s13, 4
    %s23 = sphi 0, %s25
    %s26 = sphi 0, %s23
    %s27 = sphi 0, %s26
    %s43 = sphi 0, %s27
    %s47 = sphi 0, %s47
    %s49 = sphi 0, %s47
    %s50 = sphi 0, %s49
    %s64 = sphi 0, %s50
    %s68 = sphi 0, %s68
    %s70 = sphi 0, %s68
    %s71 = sphi 0, %s70
    %s85 = sphi 0, %s71
    %s89 = sphi 0, %s89
    %s91 = sphi 0, %s89
    %s92 = sphi 0, %s91
    %s106 = sphi 0, %s92
    %s110 = sphi 0, %s110
    %s112 = sphi 0, %s110
    %s113 = sphi 0, %s112
    %s127 = sphi 0, %s113
    %s131 = sphi 0, %s131
    %s133 = sphi 0, %s131
    %s134 = sphi 0, %s133
    %s148 = sphi 0, %s134
    %s152 = sphi 0, %s152
    %s154 = sphi 0, %s152
    %s155 = sphi 0, %s154
    %s169 = sphi 0, %s155
    %s175 = sphi 0, %s177
    %s178 = sphi 0, %s175
    %s179 = sphi 0, %s178
    %s195 = sphi 0, %s179
  $region4: #{_lambda_.11} parent=0 // loop_header_branch
    %16 = sbr.rel (%p14) target = $region8
  $region5: #{_lambda_.11} parent=0 // loop_body
    %s18 = ssub.s32 %s13, 1
    %s19 = ssub.s32 %s13, 2
    %s20 = sadd.s32 %s13, 1
    %s21 = ssub.s32 %s13, %s20
    %p22 = scmp.eq.s32.totalorder %s21, 0
    %s24 = sadd.s32 %s23, 1
    %s25 = scalar_select %p22, %s23, %s24
    %p28 = pneg %p22
    %p29 = scmp.eq.s32.totalorder %s13, 1
    %p30 = por %p28, %p29
    %p31 = scmp.ne.s32.totalorder %s23, %s26
    %p32 = scmp.eq.s32.totalorder %s13, 0
    %p33 = por %p31, %p32
    %p34 = scmp.ne.s32.totalorder %s23, %s26
    %p35 = scmp.eq.s32.totalorder %s18, 1
    %p36 = por %p34, %p35
    %p37 = scmp.ne.s32.totalorder %s26, %s27
    %p38 = scmp.eq.s32.totalorder %s18, 0
    %p39 = por %p37, %p38
    %p40 = scmp.ne.s32.totalorder %s26, %s27
    %p41 = scmp.eq.s32.totalorder %s19, 1
    %p42 = por %p40, %p41
    %p44 = scmp.ne.s32.totalorder %s27, %s43
    %p45 = scmp.eq.s32.totalorder %s19, 0
    %p46 = por %p44, %p45
    %s48 = sadd.s32 %s47, 1
    %p51 = scmp.eq.s32.totalorder %s13, 1
    %p52 = scmp.ne.s32.totalorder %s47, %s49
    %p53 = scmp.eq.s32.totalorder %s13, 0
    %p54 = por %p52, %p53
    %p55 = scmp.ne.s32.totalorder %s47, %s49
    %p56 = scmp.eq.s32.totalorder %s18, 1
    %p57 = por %p55, %p56
    %p58 = scmp.ne.s32.totalorder %s49, %s50
    %p59 = scmp.eq.s32.totalorder %s18, 0
    %p60 = por %p58, %p59
    %p61 = scmp.ne.s32.totalorder %s49, %s50
    %p62 = scmp.eq.s32.totalorder %s19, 1
    %p63 = por %p61, %p62
    %p65 = scmp.ne.s32.totalorder %s50, %s64
    %p66 = scmp.eq.s32.totalorder %s19, 0
    %p67 = por %p65, %p66
    %s69 = sadd.s32 %s68, 1
    %p72 = scmp.eq.s32.totalorder %s13, 1
    %p73 = scmp.ne.s32.totalorder %s68, %s70
    %p74 = scmp.eq.s32.totalorder %s13, 0
    %p75 = por %p73, %p74
    %p76 = scmp.ne.s32.totalorder %s68, %s70
    %p77 = scmp.eq.s32.totalorder %s18, 1
    %p78 = por %p76, %p77
    %p79 = scmp.ne.s32.totalorder %s70, %s71
    %p80 = scmp.eq.s32.totalorder %s18, 0
    %p81 = por %p79, %p80
    %p82 = scmp.ne.s32.totalorder %s70, %s71
    %p83 = scmp.eq.s32.totalorder %s19, 1
    %p84 = por %p82, %p83
    %p86 = scmp.ne.s32.totalorder %s71, %s85
    %p87 = scmp.eq.s32.totalorder %s19, 0
    %p88 = por %p86, %p87
    %s90 = sadd.s32 %s89, 1
    %p93 = scmp.eq.s32.totalorder %s13, 1
    %p94 = scmp.ne.s32.totalorder %s89, %s91
    %p95 = scmp.eq.s32.totalorder %s13, 0
    %p96 = por %p94, %p95
    %p97 = scmp.ne.s32.totalorder %s89, %s91
    %p98 = scmp.eq.s32.totalorder %s18, 1
    %p99 = por %p97, %p98
    %p100 = scmp.ne.s32.totalorder %s91, %s92
    %p101 = scmp.eq.s32.totalorder %s18, 0
    %p102 = por %p100, %p101
    %p103 = scmp.ne.s32.totalorder %s91, %s92
    %p104 = scmp.eq.s32.totalorder %s19, 1
    %p105 = por %p103, %p104
    %p107 = scmp.ne.s32.totalorder %s92, %s106
    %p108 = scmp.eq.s32.totalorder %s19, 0
    %p109 = por %p107, %p108
    %s111 = sadd.s32 %s110, 1
    %p114 = scmp.eq.s32.totalorder %s13, 1
    %p115 = scmp.ne.s32.totalorder %s110, %s112
    %p116 = scmp.eq.s32.totalorder %s13, 0
    %p117 = por %p115, %p116
    %p118 = scmp.ne.s32.totalorder %s110, %s112
    %p119 = scmp.eq.s32.totalorder %s18, 1
    %p120 = por %p118, %p119
    %p121 = scmp.ne.s32.totalorder %s112, %s113
    %p122 = scmp.eq.s32.totalorder %s18, 0
    %p123 = por %p121, %p122
    %p124 = scmp.ne.s32.totalorder %s112, %s113
    %p125 = scmp.eq.s32.totalorder %s19, 1
    %p126 = por %p124, %p125
    %p128 = scmp.ne.s32.totalorder %s113, %s127
    %p129 = scmp.eq.s32.totalorder %s19, 0
    %p130 = por %p128, %p129
    %s132 = sadd.s32 %s131, 1
    %p135 = scmp.eq.s32.totalorder %s13, 1
    %p136 = scmp.ne.s32.totalorder %s131, %s133
    %p137 = scmp.eq.s32.totalorder %s13, 0
    %p138 = por %p136, %p137
    %p139 = scmp.ne.s32.totalorder %s131, %s133
    %p140 = scmp.eq.s32.totalorder %s18, 1
    %p141 = por %p139, %p140
    %p142 = scmp.ne.s32.totalorder %s133, %s134
    %p143 = scmp.eq.s32.totalorder %s18, 0
    %p144 = por %p142, %p143
    %p145 = scmp.ne.s32.totalorder %s133, %s134
    %p146 = scmp.eq.s32.totalorder %s19, 1
    %p147 = por %p145, %p146
    %p149 = scmp.ne.s32.totalorder %s134, %s148
    %p150 = scmp.eq.s32.totalorder %s19, 0
    %p151 = por %p149, %p150
    %s153 = sadd.s32 %s152, 1
    %p156 = scmp.eq.s32.totalorder %s13, 1
    %p157 = scmp.ne.s32.totalorder %s152, %s154
    %p158 = scmp.eq.s32.totalorder %s13, 0
    %p159 = por %p157, %p158
    %p160 = scmp.ne.s32.totalorder %s152, %s154
    %p161 = scmp.eq.s32.totalorder %s18, 1
    %p162 = por %p160, %p161
    %p163 = scmp.ne.s32.totalorder %s154, %s155
    %p164 = scmp.eq.s32.totalorder %s18, 0
    %p165 = por %p163, %p164
    %p166 = scmp.ne.s32.totalorder %s154, %s155
    %p167 = scmp.eq.s32.totalorder %s19, 1
    %p168 = por %p166, %p167
    %p170 = scmp.ne.s32.totalorder %s155, %s169
    %p171 = scmp.eq.s32.totalorder %s19, 0
    %p172 = por %p170, %p171
    %s173 = ssub.s32 %s13, %s20
    %p174 = scmp.eq.s32.totalorder %s173, 0
    %s176 = sadd.s32 %s175, 1
    %s177 = scalar_select %p174, %s175, %s176
    %p180 = pneg %p174
    %p181 = scmp.eq.s32.totalorder %s13, 1
    %p182 = por %p180, %p181
    %p183 = scmp.ne.s32.totalorder %s175, %s178
    %p184 = scmp.eq.s32.totalorder %s13, 0
    %p185 = por %p183, %p184
    %p186 = scmp.ne.s32.totalorder %s175, %s178
    %p187 = scmp.eq.s32.totalorder %s18, 1
    %p188 = por %p186, %p187
    %p189 = scmp.ne.s32.totalorder %s178, %s179
    %p190 = scmp.eq.s32.totalorder %s18, 0
    %p191 = por %p189, %p190
    %p192 = scmp.ne.s32.totalorder %s178, %s179
    %p193 = scmp.eq.s32.totalorder %s19, 1
    %p194 = por %p192, %p193
    %p196 = scmp.ne.s32.totalorder %s179, %s195
    %p197 = scmp.eq.s32.totalorder %s19, 0
    %p198 = por %p196, %p197
    %p199 = scmp.le.s32.totalorder 1, %s13
    %p200 = scmp.lt.s32.totalorder %s13, 3
    %p201 = pnand %p199, %p200
    %p202 = pneg %p201
    // Predicated region
    $region9: #{_lambda_.11} parent=5 // pred_check
      _
    $region10: #{_lambda_.11} parent=5 // pred_check_branch
      %204 = sbr.rel (%p201) target = $region12
    $region11: #{_lambda_.11} parent=5 // pred_region
      %s205 = ssub.s32 %s13, 1
      // Predicated region
      $region13: #{_lambda_.11} parent=11 // pred_check
        %p206 = pneg %p60
      $region14: #{_lambda_.11} parent=11 // pred_check_branch
        %208 = sbr.rel (%p206) target = $region16
      $region15: #{_lambda_.11} parent=11 // pred_region
        _
      $region16: #{_lambda_.11} parent=11 // pred_fallthru
        _
      // Predicated region
      $region17: #{_lambda_.11} parent=11 // pred_check
        %p209 = pneg %p81
      $region18: #{_lambda_.11} parent=11 // pred_check_branch
        %211 = sbr.rel (%p209) target = $region20
      $region19: #{_lambda_.11} parent=11 // pred_region
        _
      $region20: #{_lambda_.11} parent=11 // pred_fallthru
        _
      // Predicated region
      $region21: #{_lambda_.11} parent=11 // pred_check
        %p212 = pneg %p102
      $region22: #{_lambda_.11} parent=11 // pred_check_branch
        %214 = sbr.rel (%p212) target = $region24
      $region23: #{_lambda_.11} parent=11 // pred_region
        _
      $region24: #{_lambda_.11} parent=11 // pred_fallthru
        _
      // Predicated region
      $region25: #{_lambda_.11} parent=11 // pred_check
        %p215 = pneg %p123
      $region26: #{_lambda_.11} parent=11 // pred_check_branch
        %217 = sbr.rel (%p215) target = $region28
      $region27: #{_lambda_.11} parent=11 // pred_region
        _
      $region28: #{_lambda_.11} parent=11 // pred_fallthru
        _
      // Predicated region
      $region29: #{_lambda_.11} parent=11 // pred_check
        %p218 = pneg %p144
      $region30: #{_lambda_.11} parent=11 // pred_check_branch
        %220 = sbr.rel (%p218) target = $region32
      $region31: #{_lambda_.11} parent=11 // pred_region
        _
      $region32: #{_lambda_.11} parent=11 // pred_fallthru
        _
      // Predicated region
      $region33: #{_lambda_.11} parent=11 // pred_check
        %p221 = pneg %p165
      $region34: #{_lambda_.11} parent=11 // pred_check_branch
        %223 = sbr.rel (%p221) target = $region36
      $region35: #{_lambda_.11} parent=11 // pred_region
        _
      $region36: #{_lambda_.11} parent=11 // pred_fallthru
        _
    $region12: #{_lambda_.11} parent=5 // pred_fallthru
      _
    %p224 = scmp.lt.s32.totalorder %s13, 2
    // Predicated region
    $region37: #{_lambda_.11} parent=5 // pred_check
      %p225 = pneg %p224
    $region38: #{_lambda_.11} parent=5 // pred_check_branch
      %227 = sbr.rel (%p225) target = $region40
    $region39: #{_lambda_.11} parent=5 // pred_region
      // Predicated region
      $region41: #{_lambda_.11} parent=39 // pred_check
        %p228 = pneg %p33
      $region42: #{_lambda_.11} parent=39 // pred_check_branch
        %230 = sbr.rel (%p228) target = $region44
      $region43: #{_lambda_.11} parent=39 // pred_region
        %p231 = scmp.lt.s32.totalorder %s13, 1
        %s232 = scalar_select %p231, %s13, 1
        %s233 = smul.addr %s232, 8
        %s234 = smul.addr %s233, 8
        %s235 = scalar_lea.vmem %s0, %s234
      $region44: #{_lambda_.11} parent=39 // pred_fallthru
        _
    $region40: #{_lambda_.11} parent=5 // pred_fallthru
      _
    %p236 = scmp.le.s32.totalorder 1, %s13
    %p237 = scmp.lt.s32.totalorder %s13, 3
    %p238 = pnand %p236, %p237
    %p239 = pneg %p238
    // Predicated region
    $region45: #{_lambda_.11} parent=5 // pred_check
      _
    $region46: #{_lambda_.11} parent=5 // pred_check_branch
      %241 = sbr.rel (%p238) target = $region48
    $region47: #{_lambda_.11} parent=5 // pred_region
      %s242 = ssub.s32 %s13, 1
      %p243 = scmp.lt.s32.totalorder %s18, 1
      %s244 = scalar_select %p243, %s18, 1
      %s245 = smul.addr %s244, 8
      %s246 = smul.addr %s245, 8
      %s247 = scalar_lea.vmem %s0, %s246
      %p248 = pneg %p39
      %p249 = pneg %p36
      %p250 = pneg %p60
      %p251 = pneg %p57
      %p252 = pneg %p81
      %p253 = pneg %p78
      %p254 = pneg %p102
      %p255 = pneg %p99
      %p256 = pneg %p123
      %p257 = pneg %p120
      %p258 = pneg %p144
      %p259 = pneg %p141
      %p260 = pneg %p165
      %p261 = pneg %p162
      %p262 = pneg %p191
      %p263 = pneg %p188
      %p264 = scmp.lt.s32.totalorder %s18, 1
      %s265 = scalar_select %p264, %s18, 1
      %s266 = smul.addr %s265, 8
      %s267 = smul.addr %s266, 8
      %s268 = scalar_lea.vmem %s7, %s267
      %p269 = scmp.lt.s32.totalorder %s18, 1
      %s270 = scalar_select %p269, %s18, 1
      %s271 = smul.addr %s270, 8
      %s272 = smul.addr %s271, 8
      %s273 = scalar_lea.vmem %s0, %s272
      %p274 = scmp.lt.s32.totalorder %s18, 1
      %s275 = scalar_select %p274, %s18, 1
      %s276 = smul.addr %s275, 8
      %s277 = smul.addr %s276, 8
      %s278 = scalar_lea.vmem %s7, %s277
      %v280 = vld [vmem:[%s273] sm:$0xff]
      %v281 = vld [vmem:[%s273 + $0x8] sm:$0xff]
      %v282 = vld [vmem:[%s273 + $0x10] sm:$0xff]
      %v283 = vld [vmem:[%s273 + $0x18] sm:$0xff]
      %v284 = vld [vmem:[%s273 + $0x20] sm:$0xff]
      %v285 = vld [vmem:[%s273 + $0x28] sm:$0xff]
      %v286 = vld [vmem:[%s273 + $0x30] sm:$0xff]
      %v287 = vld [vmem:[%s273 + $0x38] sm:$0xff]
      %v288 = vld [vmem:[%s1] sm:$0x1]
      %v289 = vld [vmem:[%s2] sm:$0x1]
      %290 = vadd.xlane.f32.xlu0 %v280
      %v291 = vpop.xlane.xlu0 %290
      %292 = vadd.xlane.f32.xlu0 %v281
      %v293 = vpop.xlane.xlu0 %292
      %294 = vadd.xlane.f32.xlu0 %v282
      %v295 = vpop.xlane.xlu0 %294
      %296 = vadd.xlane.f32.xlu0 %v283
      %v297 = vpop.xlane.xlu0 %296
      %298 = vadd.xlane.f32.xlu0 %v284
      %v299 = vpop.xlane.xlu0 %298
      %300 = vadd.xlane.f32.xlu0 %v285
      %v301 = vpop.xlane.xlu0 %300
      %302 = vadd.xlane.f32.xlu0 %v286
      %v303 = vpop.xlane.xlu0 %302
      %304 = vadd.xlane.f32.xlu0 %v287
      %v305 = vpop.xlane.xlu0 %304
      %v306 = vrcp.pop 128.0
      %v307 = vmul.f32 %v291, %v306
      %v308 = vmul.f32 %v293, %v306
      %v309 = vmul.f32 %v295, %v306
      %v310 = vmul.f32 %v297, %v306
      %v311 = vmul.f32 %v299, %v306
      %v312 = vmul.f32 %v301, %v306
      %v313 = vmul.f32 %v303, %v306
      %v314 = vmul.f32 %v305, %v306
      %v315 = vsub.f32 %v280, %v307
      %v316 = vsub.f32 %v281, %v308
      %v317 = vsub.f32 %v282, %v309
      %v318 = vsub.f32 %v283, %v310
      %v319 = vsub.f32 %v284, %v311
      %v320 = vsub.f32 %v285, %v312
      %v321 = vsub.f32 %v286, %v313
      %v322 = vsub.f32 %v287, %v314
      %v323 = vmul.f32 %v315, %v315
      %v324 = vmul.f32 %v316, %v316
      %v325 = vmul.f32 %v317, %v317
      %v326 = vmul.f32 %v318, %v318
      %v327 = vmul.f32 %v319, %v319
      %v328 = vmul.f32 %v320, %v320
      %v329 = vmul.f32 %v321, %v321
      %v330 = vmul.f32 %v322, %v322
      %331 = vadd.xlane.f32.xlu0 %v323
      %v332 = vpop.xlane.xlu0 %331
      %333 = vadd.xlane.f32.xlu0 %v324
      %v334 = vpop.xlane.xlu0 %333
      %335 = vadd.xlane.f32.xlu0 %v325
      %v336 = vpop.xlane.xlu0 %335
      %337 = vadd.xlane.f32.xlu0 %v326
      %v338 = vpop.xlane.xlu0 %337
      %339 = vadd.xlane.f32.xlu0 %v327
      %v340 = vpop.xlane.xlu0 %339
      %341 = vadd.xlane.f32.xlu0 %v328
      %v342 = vpop.xlane.xlu0 %341
      %343 = vadd.xlane.f32.xlu0 %v329
      %v344 = vpop.xlane.xlu0 %343
      %345 = vadd.xlane.f32.xlu0 %v330
      %v346 = vpop.xlane.xlu0 %345
      %v347 = vmul.f32 %v332, %v306
      %v348 = vmul.f32 %v334, %v306
      %v349 = vmul.f32 %v336, %v306
      %v350 = vmul.f32 %v338, %v306
      %v351 = vmul.f32 %v340, %v306
      %v352 = vmul.f32 %v342, %v306
      %v353 = vmul.f32 %v344, %v306
      %v354 = vmul.f32 %v346, %v306
      %v355 = vadd.f32 %v347, 1e-05
      %v356 = vadd.f32 %v348, 1e-05
      %v357 = vadd.f32 %v349, 1e-05
      %v358 = vadd.f32 %v350, 1e-05
      %v359 = vadd.f32 %v351, 1e-05
      %v360 = vadd.f32 %v352, 1e-05
      %v361 = vadd.f32 %v353, 1e-05
      %v362 = vadd.f32 %v354, 1e-05
      %v363 = vrsqrt.pop %v355
      %v364 = vrsqrt.pop %v356
      %v365 = vrsqrt.pop %v357
      %v366 = vrsqrt.pop %v358
      %v367 = vrsqrt.pop %v359
      %v368 = vrsqrt.pop %v360
      %v369 = vrsqrt.pop %v361
      %v370 = vrsqrt.pop %v362
      %v371 = vmul.f32 %v315, %v363
      %v372 = vmul.f32 %v316, %v364
      %v373 = vmul.f32 %v317, %v365
      %v374 = vmul.f32 %v318, %v366
      %v375 = vmul.f32 %v319, %v367
      %v376 = vmul.f32 %v320, %v368
      %v377 = vmul.f32 %v321, %v369
      %v378 = vmul.f32 %v322, %v370
      %v380 = vlaneseq
      %v381 = vshrl.u32 %v380, 7
      %v382 = vsub.s32 0, %v381
      %v383 = vrot.slane %v288, %v382
      %v385 = vmul.f32 %v371, %v383
      %v386 = vmul.f32 %v372, %v383
      %v387 = vmul.f32 %v373, %v383
      %v388 = vmul.f32 %v374, %v383
      %v389 = vmul.f32 %v375, %v383
      %v390 = vmul.f32 %v376, %v383
      %v391 = vmul.f32 %v377, %v383
      %v392 = vmul.f32 %v378, %v383
      %v394 = vlaneseq
      %v395 = vshrl.u32 %v394, 7
      %v396 = vsub.s32 0, %v395
      %v397 = vrot.slane %v289, %v396
      %v399 = vadd.f32 %v385, %v397
      %v400 = vadd.f32 %v386, %v397
      %v401 = vadd.f32 %v387, %v397
      %v402 = vadd.f32 %v388, %v397
      %v403 = vadd.f32 %v389, %v397
      %v404 = vadd.f32 %v390, %v397
      %v405 = vadd.f32 %v391, %v397
      %v406 = vadd.f32 %v392, %v397
      %v407 = vpack.c.bf16 %v400, %v399
      %v408 = vpack.c.bf16 %v402, %v401
      %v409 = vpack.c.bf16 %v404, %v403
      %v410 = vpack.c.bf16 %v406, %v405
      %v411 = vld [vmem:[%s3] sm:$0xff]
      %v412 = vld [vmem:[%s3 + $0x8] sm:$0xf]
      %v413 = vld [vmem:[%s3 + $0xc] sm:$0xff]
      %v414 = vld [vmem:[%s3 + $0x14] sm:$0xf]
      %v415 = vld [vmem:[%s3 + $0x18] sm:$0xff]
      %v416 = vld [vmem:[%s3 + $0x20] sm:$0xf]
      %v417 = vld [vmem:[%s3 + $0x24] sm:$0xff]
      %v418 = vld [vmem:[%s3 + $0x2c] sm:$0xf]
      %v419 = vld [vmem:[%s3 + $0x30] sm:$0xff]
      %v420 = vld [vmem:[%s3 + $0x38] sm:$0xf]
      %v421 = vld [vmem:[%s3 + $0x3c] sm:$0xff]
      %v422 = vld [vmem:[%s3 + $0x44] sm:$0xf]
      %v423 = vld [vmem:[%s3 + $0x48] sm:$0xff]
      %v424 = vld [vmem:[%s3 + $0x50] sm:$0xf]
      %v425 = vld [vmem:[%s3 + $0x54] sm:$0xff]
      %v426 = vld [vmem:[%s3 + $0x5c] sm:$0xf]
      %v427 = vld [vmem:[%s3 + $0x60] sm:$0xff]
      %v428 = vld [vmem:[%s3 + $0x68] sm:$0xf]
      %v429 = vld [vmem:[%s3 + $0x6c] sm:$0xff]
      %v430 = vld [vmem:[%s3 + $0x74] sm:$0xf]
      %v431 = vld [vmem:[%s3 + $0x78] sm:$0xff]
      %v432 = vld [vmem:[%s3 + $0x80] sm:$0xf]
      %v433 = vld [vmem:[%s3 + $0x84] sm:$0xff]
      %v434 = vld [vmem:[%s3 + $0x8c] sm:$0xf]
      %v435 = vld [vmem:[%s3 + $0x90] sm:$0xff]
      %v436 = vld [vmem:[%s3 + $0x98] sm:$0xf]
      %v437 = vld [vmem:[%s3 + $0x9c] sm:$0xff]
      %v438 = vld [vmem:[%s3 + $0xa4] sm:$0xf]
      %v439 = vld [vmem:[%s3 + $0xa8] sm:$0xff]
      %v440 = vld [vmem:[%s3 + $0xb0] sm:$0xf]
      %v441 = vld [vmem:[%s3 + $0xb4] sm:$0xff]
      %v442 = vld [vmem:[%s3 + $0xbc] sm:$0xf]
      %v443 = vld [vmem:[%s4] sm:$0x7]
      %v445 = vlaneseq
      %v446 = vshrl.u32 %v445, 7
      %v447 = vsub.s32 0, %v446
      %v448 = vrot.slane %v443, %v447
      %v449 = vlaneseq
      %v450 = vshrl.u32 %v449, 7
      %v451 = vsub.s32 1, %v450
      %v452 = vrot.slane %v443, %v451
      %v453 = vlaneseq
      %v454 = vshrl.u32 %v453, 7
      %v455 = vsub.s32 2, %v454
      %v456 = vrot.slane %v443, %v455
      %v492 = vunpack.c.l.b16 %v411
      %v493 = vunpack.c.h.b16 %v411
      %v494 = vunpack.c.l.b16 %v412
      %v495 = vunpack.c.l.b16 %v413
      %v496 = vunpack.c.h.b16 %v413
      %v497 = vunpack.c.l.b16 %v414
      %v498 = vunpack.c.l.b16 %v415
      %v499 = vunpack.c.h.b16 %v415
      %v500 = vunpack.c.l.b16 %v416
      %v501 = vunpack.c.l.b16 %v417
      %v502 = vunpack.c.h.b16 %v417
      %v503 = vunpack.c.l.b16 %v418
      %v504 = vunpack.c.l.b16 %v419
      %v505 = vunpack.c.h.b16 %v419
      %v506 = vunpack.c.l.b16 %v420
      %v507 = vunpack.c.l.b16 %v421
      %v508 = vunpack.c.h.b16 %v421
      %v509 = vunpack.c.l.b16 %v422
      %v510 = vunpack.c.l.b16 %v423
      %v511 = vunpack.c.h.b16 %v423
      %v512 = vunpack.c.l.b16 %v424
      %v513 = vunpack.c.l.b16 %v425
      %v514 = vunpack.c.h.b16 %v425
      %v515 = vunpack.c.l.b16 %v426
      %v516 = vunpack.c.l.b16 %v427
      %v517 = vunpack.c.h.b16 %v427
      %v518 = vunpack.c.l.b16 %v428
      %v519 = vunpack.c.l.b16 %v429
      %v520 = vunpack.c.h.b16 %v429
      %v521 = vunpack.c.l.b16 %v430
      %v522 = vunpack.c.l.b16 %v431
      %v523 = vunpack.c.h.b16 %v431
      %v524 = vunpack.c.l.b16 %v432
      %v525 = vunpack.c.l.b16 %v433
      %v526 = vunpack.c.h.b16 %v433
      %v527 = vunpack.c.l.b16 %v434
      %v528 = vunpack.c.l.b16 %v435
      %v529 = vunpack.c.h.b16 %v435
      %v530 = vunpack.c.l.b16 %v436
      %v531 = vunpack.c.l.b16 %v437
      %v532 = vunpack.c.h.b16 %v437
      %v533 = vunpack.c.l.b16 %v438
      %v534 = vunpack.c.l.b16 %v439
      %v535 = vunpack.c.h.b16 %v439
      %v536 = vunpack.c.l.b16 %v440
      %v537 = vunpack.c.l.b16 %v441
      %v538 = vunpack.c.h.b16 %v441
      %v539 = vunpack.c.l.b16 %v442
      %v540 = vpack.c.b16 %v495, %v492
      %v541 = vpack.c.b16 %v496, %v493
      %v542 = vpack.c.b16 %v497, %v494
      %v543 = vpack.c.b16 %v501, %v498
      %v544 = vpack.c.b16 %v502, %v499
      %v545 = vpack.c.b16 %v503, %v500
      %v546 = vpack.c.b16 %v507, %v504
      %v547 = vpack.c.b16 %v508, %v505
      %v548 = vpack.c.b16 %v509, %v506
      %v549 = vpack.c.b16 %v513, %v510
      %v550 = vpack.c.b16 %v514, %v511
      %v551 = vpack.c.b16 %v515, %v512
      %v552 = vpack.c.b16 %v519, %v516
      %v553 = vpack.c.b16 %v520, %v517
      %v554 = vpack.c.b16 %v521, %v518
      %v555 = vpack.c.b16 %v525, %v522
      %v556 = vpack.c.b16 %v526, %v523
      %v557 = vpack.c.b16 %v527, %v524
      %v558 = vpack.c.b16 %v531, %v528
      %v559 = vpack.c.b16 %v532, %v529
      %v560 = vpack.c.b16 %v533, %v530
      %v561 = vpack.c.b16 %v537, %v534
      %v562 = vpack.c.b16 %v538, %v535
      %v563 = vpack.c.b16 %v539, %v536
      %588 = vmatprep.subr.bf16.mxu0 %v541
      %589 = vmatpush1.bf16.msra.mxu0 %v540
      %590 = vmatprep.subr.bf16.mxu0 %v544
      %591 = vmatpush1.bf16.msra.mxu0 %v543
      %592 = vmatprep.subr.bf16.mxu0 %v547
      %593 = vmatpush1.bf16.msra.mxu0 %v546
      %594 = vmatprep.subr.bf16.mxu0 %v550
      %595 = vmatpush1.bf16.msra.mxu0 %v549
      %596 = vmatprep.subr.bf16.mxu0 %v553
      %597 = vmatpush1.bf16.msra.mxu0 %v552
      %598 = vmatprep.subr.bf16.mxu0 %v556
      %599 = vmatpush1.bf16.msra.mxu0 %v555
      %600 = vmatprep.subr.bf16.mxu0 %v559
      %601 = vmatpush1.bf16.msra.mxu0 %v558
      %602 = vmatprep.subr.bf16.mxu0 %v562
      %603 = vmatpush1.bf16.msra.mxu0 %v561
      %604 = vmatprep.subr.bf16.mxu0 0
      %605 = vmatpush1.bf16.msra.mxu0 0
      %606 = vmatprep.subr.bf16.mxu0 0
      %607 = vmatpush1.bf16.msra.mxu0 0
      %608 = vmatprep.subr.bf16.mxu0 0
      %609 = vmatpush1.bf16.msra.mxu0 0
      %610 = vmatprep.subr.bf16.mxu0 0
      %611 = vmatpush1.bf16.msra.mxu0 0
      %612 = vmatprep.subr.bf16.mxu0 0
      %613 = vmatpush1.bf16.msra.mxu0 0
      %614 = vmatprep.subr.bf16.mxu0 0
      %615 = vmatpush1.bf16.msra.mxu0 0
      %616 = vmatprep.subr.bf16.mxu0 0
      %617 = vmatpush1.bf16.msra.mxu0 0
      %618 = vmatprep.subr.bf16.mxu0 0
      %619 = vmatpush1.bf16.msra.mxu0 0
      %620 = vmatprep.mubr.bf16.mxu0 0
      %621 = vmatmul.mubr.bf16.gmra.mrb[0].mxu0 %v407
      %v622 = vpop.f32.mrb[0].mxu0
      %v623 = vadd.f32 %v448, %v622
      %v624 = vpop.f32.mrb[0].mxu0
      %v625 = vadd.f32 %v452, %v624
      %v626 = vpop.f32.mrb[0].mxu0
      %v627 = vadd.f32 %v448, %v626
      %v628 = vpop.f32.mrb[0].mxu0
      %v629 = vadd.f32 %v452, %v628
      %630 = vmatprep.mubr.bf16.mxu0 0
      %631 = vmatmul.mubr.bf16.gmra.mrb[0].mxu0 %v408
      %v632 = vpop.f32.mrb[0].mxu0
      %v633 = vadd.f32 %v448, %v632
      %v634 = vpop.f32.mrb[0].mxu0
      %v635 = vadd.f32 %v452, %v634
      %v636 = vpop.f32.mrb[0].mxu0
      %v637 = vadd.f32 %v448, %v636
      %v638 = vpop.f32.mrb[0].mxu0
      %v639 = vadd.f32 %v452, %v638
      %640 = vmatprep.mubr.bf16.mxu0 0
      %641 = vmatmul.mubr.bf16.gmra.mrb[0].mxu0 %v409
      %v642 = vpop.f32.mrb[0].mxu0
      %v643 = vadd.f32 %v448, %v642
      %v644 = vpop.f32.mrb[0].mxu0
      %v645 = vadd.f32 %v452, %v644
      %v646 = vpop.f32.mrb[0].mxu0
      %v647 = vadd.f32 %v448, %v646
      %v648 = vpop.f32.mrb[0].mxu0
      %v649 = vadd.f32 %v452, %v648
      %650 = vmatprep.mubr.bf16.mxu0 0
      %651 = vmatmul.mubr.bf16.gmra.mrb[0].mxu0 %v410
      %v652 = vpop.f32.mrb[0].mxu0
      %v653 = vadd.f32 %v448, %v652
      %v654 = vpop.f32.mrb[0].mxu0
      %v655 = vadd.f32 %v452, %v654
      %v656 = vpop.f32.mrb[0].mxu0
      %v657 = vadd.f32 %v448, %v656
      %v658 = vpop.f32.mrb[0].mxu0
      %v659 = vadd.f32 %v452, %v658
      %660 = vdwg.mxu0
      %661 = vmatprep.subr.bf16.mxu0 0
      %662 = vmatpush1.bf16.msra.mxu0 %v542
      %663 = vmatprep.subr.bf16.mxu0 0
      %664 = vmatpush1.bf16.msra.mxu0 %v545
      %665 = vmatprep.subr.bf16.mxu0 0
      %666 = vmatpush1.bf16.msra.mxu0 %v548
      %667 = vmatprep.subr.bf16.mxu0 0
      %668 = vmatpush1.bf16.msra.mxu0 %v551
      %669 = vmatprep.subr.bf16.mxu0 0
      %670 = vmatpush1.bf16.msra.mxu0 %v554
      %671 = vmatprep.subr.bf16.mxu0 0
      %672 = vmatpush1.bf16.msra.mxu0 %v557
      %673 = vmatprep.subr.bf16.mxu0 0
      %674 = vmatpush1.bf16.msra.mxu0 %v560
      %675 = vmatprep.subr.bf16.mxu0 0
      %676 = vmatpush1.bf16.msra.mxu0 %v563
      %677 = vmatprep.subr.bf16.mxu0 0
      %678 = vmatpush1.bf16.msra.mxu0 0
      %679 = vmatprep.subr.bf16.mxu0 0
      %680 = vmatpush1.bf16.msra.mxu0 0
      %681 = vmatprep.subr.bf16.mxu0 0
      %682 = vmatpush1.bf16.msra.mxu0 0
      %683 = vmatprep.subr.bf16.mxu0 0
      %684 = vmatpush1.bf16.msra.mxu0 0
      %685 = vmatprep.subr.bf16.mxu0 0
      %686 = vmatpush1.bf16.msra.mxu0 0
      %687 = vmatprep.subr.bf16.mxu0 0
      %688 = vmatpush1.bf16.msra.mxu0 0
      %689 = vmatprep.subr.bf16.mxu0 0
      %690 = vmatpush1.bf16.msra.mxu0 0
      %691 = vmatprep.subr.bf16.mxu0 0
      %692 = vmatpush1.bf16.msra.mxu0 0
      %693 = vmatprep.mubr.bf16.mxu0 0
      %694 = vmatmul.mubr.bf16.gmra.mrb[0].mxu0 %v407
      %v695 = vpop.f32.mrb[0].mxu0
      %v696 = vadd.f32 %v456, %v695
      %v697 = vpop.f32.mrb[0].mxu0
      %v698 = vpop.f32.mrb[0].mxu0
      %v699 = vadd.f32 %v456, %v698
      %v700 = vpop.f32.mrb[0].mxu0
      %701 = vmatprep.mubr.bf16.mxu0 0
      %702 = vmatmul.mubr.bf16.gmra.mrb[0].mxu0 %v408
      %v703 = vpop.f32.mrb[0].mxu0
      %v704 = vadd.f32 %v456, %v703
      %v705 = vpop.f32.mrb[0].mxu0
      %v706 = vpop.f32.mrb[0].mxu0
      %v707 = vadd.f32 %v456, %v706
      %v708 = vpop.f32.mrb[0].mxu0
      %709 = vmatprep.mubr.bf16.mxu0 0
      %710 = vmatmul.mubr.bf16.gmra.mrb[0].mxu0 %v409
      %v711 = vpop.f32.mrb[0].mxu0
      %v712 = vadd.f32 %v456, %v711
      %v713 = vpop.f32.mrb[0].mxu0
      %v714 = vpop.f32.mrb[0].mxu0
      %v715 = vadd.f32 %v456, %v714
      %v716 = vpop.f32.mrb[0].mxu0
      %717 = vmatprep.mubr.bf16.mxu0 0
      %718 = vmatmul.mubr.bf16.gmra.mrb[0].mxu0 %v410
      %v719 = vpop.f32.mrb[0].mxu0
      %v720 = vadd.f32 %v456, %v719
      %v721 = vpop.f32.mrb[0].mxu0
      %v722 = vpop.f32.mrb[0].mxu0
      %v723 = vadd.f32 %v456, %v722
      %v724 = vpop.f32.mrb[0].mxu0
      %725 = vdwg.mxu0
      %v726 = vpack.c.bf16 %v627, %v623
      %v727 = vpack.c.bf16 %v637, %v633
      %v728 = vpack.c.bf16 %v647, %v643
      %v729 = vpack.c.bf16 %v657, %v653
      %v730 = vpack.c.bf16 %v629, %v625
      %v731 = vpack.c.bf16 %v639, %v635
      %v732 = vpack.c.bf16 %v649, %v645
      %v733 = vpack.c.bf16 %v659, %v655
      %vm734 = vcmask 261120
      %v736 = vsel %vm734, %v726, 0
      %v739 = vsel %vm734, %v727, 0
      %v742 = vsel %vm734, %v728, 0
      %v745 = vsel %vm734, %v729, 0
      %v748 = vsel %vm734, %v730, 0
      %v751 = vsel %vm734, %v731, 0
      %v754 = vsel %vm734, %v732, 0
      %v757 = vsel %vm734, %v733, 0
      %759 = vmatprep.subr.bf16.mxu0 0
      %760 = vmatpush1.bf16.xpose.msra.mxu0 %v748
      %761 = vmatprep.subr.bf16.mxu0 0
      %762 = vmatpush1.bf16.xpose.msra.mxu0 %v751
      %763 = vmatprep.subr.bf16.mxu0 0
      %764 = vmatpush1.bf16.xpose.msra.mxu0 %v754
      %765 = vmatprep.subr.bf16.mxu0 0
      %766 = vmatpush1.bf16.xpose.msra.mxu0 %v757
      %767 = vmatprep.subr.bf16.mxu0 0
      %768 = vmatpush1.bf16.xpose.msra.mxu0 0
      %769 = vmatprep.subr.bf16.mxu0 0
      %770 = vmatpush1.bf16.xpose.msra.mxu0 0
      %771 = vmatprep.subr.bf16.mxu0 0
      %772 = vmatpush1.bf16.xpose.msra.mxu0 0
      %773 = vmatprep.subr.bf16.mxu0 0
      %774 = vmatpush1.bf16.xpose.msra.mxu0 0
      %775 = vmatprep.subr.bf16.mxu0 0
      %776 = vmatpush1.bf16.xpose.msra.mxu0 0
      %777 = vmatprep.subr.bf16.mxu0 0
      %778 = vmatpush1.bf16.xpose.msra.mxu0 0
      %779 = vmatprep.subr.bf16.mxu0 0
      %780 = vmatpush1.bf16.xpose.msra.mxu0 0
      %781 = vmatprep.subr.bf16.mxu0 0
      %782 = vmatpush1.bf16.xpose.msra.mxu0 0
      %783 = vmatprep.subr.bf16.mxu0 0
      %784 = vmatpush1.bf16.xpose.msra.mxu0 0
      %785 = vmatprep.subr.bf16.mxu0 0
      %786 = vmatpush1.bf16.xpose.msra.mxu0 0
      %787 = vmatprep.subr.bf16.mxu0 0
      %788 = vmatpush1.bf16.xpose.msra.mxu0 0
      %789 = vmatprep.subr.bf16.mxu0 0
      %790 = vmatpush1.bf16.xpose.msra.mxu0 0
      %791 = vmatprep.mubr.bf16.mxu0 0
      %792 = vmatmul.mubr.bf16.gmra.mrb[0].mxu0 %v736
      %v793 = vpop.f32.mrb[0].mxu0
      %v794 = vadd.f32 0.0, %v793
      %v795 = vpop.f32.mrb[0].mxu0
      %v796 = vpop.f32.mrb[0].mxu0
      %v797 = vadd.f32 0.0, %v796
      %v798 = vpop.f32.mrb[0].mxu0
      %799 = vmatprep.mubr.bf16.mxu0 0
      %800 = vmatmul.mubr.bf16.gmra.mrb[0].mxu0 %v739
      %v801 = vpop.f32.mrb[0].mxu0
      %v802 = vadd.f32 0.0, %v801
      %v803 = vpop.f32.mrb[0].mxu0
      %v804 = vpop.f32.mrb[0].mxu0
      %v805 = vadd.f32 0.0, %v804
      %v806 = vpop.f32.mrb[0].mxu0
      %807 = vmatprep.mubr.bf16.mxu0 0
      %808 = vmatmul.mubr.bf16.gmra.mrb[0].mxu0 %v742
      %v809 = vpop.f32.mrb[0].mxu0
      %v810 = vadd.f32 0.0, %v809
      %v811 = vpop.f32.mrb[0].mxu0
      %v812 = vpop.f32.mrb[0].mxu0
      %v813 = vadd.f32 0.0, %v812
      %v814 = vpop.f32.mrb[0].mxu0
      %815 = vmatprep.mubr.bf16.mxu0 0
      %816 = vmatmul.mubr.bf16.gmra.mrb[0].mxu0 %v745
      %v817 = vpop.f32.mrb[0].mxu0
      %v818 = vadd.f32 0.0, %v817
      %v819 = vpop.f32.mrb[0].mxu0
      %v820 = vpop.f32.mrb[0].mxu0
      %v821 = vadd.f32 0.0, %v820
      %v822 = vpop.f32.mrb[0].mxu0
      %823 = vdwg.mxu0
      %v824 = vmul.f32 %v794, 0.17677669
      %v825 = vmul.f32 %v797, 0.17677669
      %v826 = vmul.f32 %v802, 0.17677669
      %v827 = vmul.f32 %v805, 0.17677669
      %v828 = vmul.f32 %v810, 0.17677669
      %v829 = vmul.f32 %v813, 0.17677669
      %v830 = vmul.f32 %v818, 0.17677669
      %v831 = vmul.f32 %v821, 0.17677669
      %vm832 = vcmask 523264
      %v833 = vsel %vm832, %v824, -inf
      %834 = vmax.xlane.f32.xlu0 %v833
      %v835 = vpop.xlane.xlu0 %834
      %v836 = vsel %vm832, %v825, -inf
      %837 = vmax.xlane.f32.xlu0 %v836
      %v838 = vpop.xlane.xlu0 %837
      %v839 = vsel %vm832, %v826, -inf
      %840 = vmax.xlane.f32.xlu0 %v839
      %v841 = vpop.xlane.xlu0 %840
      %v842 = vsel %vm832, %v827, -inf
      %843 = vmax.xlane.f32.xlu0 %v842
      %v844 = vpop.xlane.xlu0 %843
      %v845 = vsel %vm832, %v828, -inf
      %846 = vmax.xlane.f32.xlu0 %v845
      %v847 = vpop.xlane.xlu0 %846
      %v848 = vsel %vm832, %v829, -inf
      %849 = vmax.xlane.f32.xlu0 %v848
      %v850 = vpop.xlane.xlu0 %849
      %v851 = vsel %vm832, %v830, -inf
      %852 = vmax.xlane.f32.xlu0 %v851
      %v853 = vpop.xlane.xlu0 %852
      %v854 = vsel %vm832, %v831, -inf
      %855 = vmax.xlane.f32.xlu0 %v854
      %v856 = vpop.xlane.xlu0 %855
      %v857 = vsub.f32 %v824, %v835
      %v858 = vsub.f32 %v825, %v838
      %v859 = vsub.f32 %v826, %v841
      %v860 = vsub.f32 %v827, %v844
      %v861 = vsub.f32 %v828, %v847
      %v862 = vsub.f32 %v829, %v850
      %v863 = vsub.f32 %v830, %v853
      %v864 = vsub.f32 %v831, %v856
      %v865 = vmul.f32 %v857, 1.442695
      %v866 = vpow.pop %v865
      %v867 = vmul.f32 %v858, 1.442695
      %v868 = vpow.pop %v867
      %v869 = vmul.f32 %v859, 1.442695
      %v870 = vpow.pop %v869
      %v871 = vmul.f32 %v860, 1.442695
      %v872 = vpow.pop %v871
      %v873 = vmul.f32 %v861, 1.442695
      %v874 = vpow.pop %v873
      %v875 = vmul.f32 %v862, 1.442695
      %v876 = vpow.pop %v875
      %v877 = vmul.f32 %v863, 1.442695
      %v878 = vpow.pop %v877
      %v879 = vmul.f32 %v864, 1.442695
      %v880 = vpow.pop %v879
      %v881 = vsel %vm832, %v866, 0.0
      %882 = vadd.xlane.f32.xlu0 %v881
      %v883 = vpop.xlane.xlu0 %882
      %v884 = vsel %vm832, %v868, 0.0
      %885 = vadd.xlane.f32.xlu0 %v884
      %v886 = vpop.xlane.xlu0 %885
      %v887 = vsel %vm832, %v870, 0.0
      %888 = vadd.xlane.f32.xlu0 %v887
      %v889 = vpop.xlane.xlu0 %888
      %v890 = vsel %vm832, %v872, 0.0
      %891 = vadd.xlane.f32.xlu0 %v890
      %v892 = vpop.xlane.xlu0 %891
      %v893 = vsel %vm832, %v874, 0.0
      %894 = vadd.xlane.f32.xlu0 %v893
      %v895 = vpop.xlane.xlu0 %894
      %v896 = vsel %vm832, %v876, 0.0
      %897 = vadd.xlane.f32.xlu0 %v896
      %v898 = vpop.xlane.xlu0 %897
      %v899 = vsel %vm832, %v878, 0.0
      %900 = vadd.xlane.f32.xlu0 %v899
      %v901 = vpop.xlane.xlu0 %900
      %v902 = vsel %vm832, %v880, 0.0
      %903 = vadd.xlane.f32.xlu0 %v902
      %v904 = vpop.xlane.xlu0 %903
      %v905 = vrcp.pop %v883
      %v906 = vrcp.pop %v886
      %v907 = vrcp.pop %v889
      %v908 = vrcp.pop %v892
      %v909 = vrcp.pop %v895
      %v910 = vrcp.pop %v898
      %v911 = vrcp.pop %v901
      %v912 = vrcp.pop %v904
      %v913 = vmul.f32 %v866, %v905
      %v914 = vmul.f32 %v868, %v906
      %v915 = vmul.f32 %v870, %v907
      %v916 = vmul.f32 %v872, %v908
      %v917 = vmul.f32 %v874, %v909
      %v918 = vmul.f32 %v876, %v910
      %v919 = vmul.f32 %v878, %v911
      %v920 = vmul.f32 %v880, %v912
      %v921 = vpack.c.bf16 %v914, %v913
      %v922 = vpack.c.bf16 %v916, %v915
      %v923 = vpack.c.bf16 %v918, %v917
      %v924 = vpack.c.bf16 %v920, %v919
      %v925 = vpack.c.bf16 %v699, %v696
      %v926 = vpack.c.bf16 %v707, %v704
      %v927 = vpack.c.bf16 %v715, %v712
      %v928 = vpack.c.bf16 %v723, %v720
      %v930 = vsel %vm832, %v921, 0
      %v933 = vsel %vm832, %v922, 0
      %v936 = vsel %vm832, %v923, 0
      %v939 = vsel %vm832, %v924, 0
      %941 = vmatprep.subr.bf16.mxu0 0
      %942 = vmatpush1.bf16.msra.mxu0 %v925
      %943 = vmatprep.subr.bf16.mxu0 0
      %944 = vmatpush1.bf16.msra.mxu0 %v926
      %945 = vmatprep.subr.bf16.mxu0 0
      %946 = vmatpush1.bf16.msra.mxu0 %v927
      %947 = vmatprep.subr.bf16.mxu0 0
      %948 = vmatpush1.bf16.msra.mxu0 %v928
      %949 = vmatprep.subr.bf16.mxu0 0
      %950 = vmatpush1.bf16.msra.mxu0 0
      %951 = vmatprep.subr.bf16.mxu0 0
      %952 = vmatpush1.bf16.msra.mxu0 0
      %953 = vmatprep.subr.bf16.mxu0 0
      %954 = vmatpush1.bf16.msra.mxu0 0
      %955 = vmatprep.subr.bf16.mxu0 0
      %956 = vmatpush1.bf16.msra.mxu0 0
      %957 = vmatprep.subr.bf16.mxu0 0
      %958 = vmatpush1.bf16.msra.mxu0 0
      %959 = vmatprep.subr.bf16.mxu0 0
      %960 = vmatpush1.bf16.msra.mxu0 0
      %961 = vmatprep.subr.bf16.mxu0 0
      %962 = vmatpush1.bf16.msra.mxu0 0
      %963 = vmatprep.subr.bf16.mxu0 0
      %964 = vmatpush1.bf16.msra.mxu0 0
      %965 = vmatprep.subr.bf16.mxu0 0
      %966 = vmatpush1.bf16.msra.mxu0 0
      %967 = vmatprep.subr.bf16.mxu0 0
      %968 = vmatpush1.bf16.msra.mxu0 0
      %969 = vmatprep.subr.bf16.mxu0 0
      %970 = vmatpush1.bf16.msra.mxu0 0
      %971 = vmatprep.subr.bf16.mxu0 0
      %972 = vmatpush1.bf16.msra.mxu0 0
      %973 = vmatprep.mubr.bf16.mxu0 0
      %974 = vmatmul.mubr.bf16.gmra.mrb[0].mxu0 %v930
      %v975 = vpop.f32.mrb[0].mxu0
      %v976 = vadd.f32 0.0, %v975
      %v977 = vpop.f32.mrb[0].mxu0
      %v978 = vpop.f32.mrb[0].mxu0
      %v979 = vadd.f32 0.0, %v978
      %v980 = vpop.f32.mrb[0].mxu0
      %981 = vmatprep.mubr.bf16.mxu0 0
      %982 = vmatmul.mubr.bf16.gmra.mrb[0].mxu0 %v933
      %v983 = vpop.f32.mrb[0].mxu0
      %v984 = vadd.f32 0.0, %v983
      %v985 = vpop.f32.mrb[0].mxu0
      %v986 = vpop.f32.mrb[0].mxu0
      %v987 = vadd.f32 0.0, %v986
      %v988 = vpop.f32.mrb[0].mxu0
      %989 = vmatprep.mubr.bf16.mxu0 0
      %990 = vmatmul.mubr.bf16.gmra.mrb[0].mxu0 %v936
      %v991 = vpop.f32.mrb[0].mxu0
      %v992 = vadd.f32 0.0, %v991
      %v993 = vpop.f32.mrb[0].mxu0
      %v994 = vpop.f32.mrb[0].mxu0
      %v995 = vadd.f32 0.0, %v994
      %v996 = vpop.f32.mrb[0].mxu0
      %997 = vmatprep.mubr.bf16.mxu0 0
      %998 = vmatmul.mubr.bf16.gmra.mrb[0].mxu0 %v939
      %v999 = vpop.f32.mrb[0].mxu0
      %v1000 = vadd.f32 0.0, %v999
      %v1001 = vpop.f32.mrb[0].mxu0
      %v1002 = vpop.f32.mrb[0].mxu0
      %v1003 = vadd.f32 0.0, %v1002
      %v1004 = vpop.f32.mrb[0].mxu0
      %1005 = vdwg.mxu0
      %1010 = vrot.lane.b32.xlu0 %v726, 96
      %v1011 = vpop.permute.xlu0 %1010
      %1012 = vrot.lane.b32.xlu0 %v727, 96
      %v1013 = vpop.permute.xlu0 %1012
      %1014 = vrot.lane.b32.xlu0 %v728, 96
      %v1015 = vpop.permute.xlu0 %1014
      %1016 = vrot.lane.b32.xlu0 %v729, 96
      %v1017 = vpop.permute.xlu0 %1016
      %1022 = vrot.lane.b32.xlu0 %v730, 96
      %v1023 = vpop.permute.xlu0 %1022
      %1024 = vrot.lane.b32.xlu0 %v731, 96
      %v1025 = vpop.permute.xlu0 %1024
      %1026 = vrot.lane.b32.xlu0 %v732, 96
      %v1027 = vpop.permute.xlu0 %1026
      %1028 = vrot.lane.b32.xlu0 %v733, 96
      %v1029 = vpop.permute.xlu0 %1028
      %v1031 = vsel %vm734, %v1011, 0
      %v1034 = vsel %vm734, %v1013, 0
      %v1037 = vsel %vm734, %v1015, 0
      %v1040 = vsel %vm734, %v1017, 0
      %v1043 = vsel %vm734, %v1023, 0
      %v1046 = vsel %vm734, %v1025, 0
      %v1049 = vsel %vm734, %v1027, 0
      %v1052 = vsel %vm734, %v1029, 0
      %1054 = vmatprep.subr.bf16.mxu0 0
      %1055 = vmatpush1.bf16.xpose.msra.mxu0 %v1043
      %1056 = vmatprep.subr.bf16.mxu0 0
      %1057 = vmatpush1.bf16.xpose.msra.mxu0 %v1046
      %1058 = vmatprep.subr.bf16.mxu0 0
      %1059 = vmatpush1.bf16.xpose.msra.mxu0 %v1049
      %1060 = vmatprep.subr.bf16.mxu0 0
      %1061 = vmatpush1.bf16.xpose.msra.mxu0 %v1052
      %1062 = vmatprep.subr.bf16.mxu0 0
      %1063 = vmatpush1.bf16.xpose.msra.mxu0 0
      %1064 = vmatprep.subr.bf16.mxu0 0
      %1065 = vmatpush1.bf16.xpose.msra.mxu0 0
      %1066 = vmatprep.subr.bf16.mxu0 0
      %1067 = vmatpush1.bf16.xpose.msra.mxu0 0
      %1068 = vmatprep.subr.bf16.mxu0 0
      %1069 = vmatpush1.bf16.xpose.msra.mxu0 0
      %1070 = vmatprep.subr.bf16.mxu0 0
      %1071 = vmatpush1.bf16.xpose.msra.mxu0 0
      %1072 = vmatprep.subr.bf16.mxu0 0
      %1073 = vmatpush1.bf16.xpose.msra.mxu0 0
      %1074 = vmatprep.subr.bf16.mxu0 0
      %1075 = vmatpush1.bf16.xpose.msra.mxu0 0
      %1076 = vmatprep.subr.bf16.mxu0 0
      %1077 = vmatpush1.bf16.xpose.msra.mxu0 0
      %1078 = vmatprep.subr.bf16.mxu0 0
      %1079 = vmatpush1.bf16.xpose.msra.mxu0 0
      %1080 = vmatprep.subr.bf16.mxu0 0
      %1081 = vmatpush1.bf16.xpose.msra.mxu0 0
      %1082 = vmatprep.subr.bf16.mxu0 0
      %1083 = vmatpush1.bf16.xpose.msra.mxu0 0
      %1084 = vmatprep.subr.bf16.mxu0 0
      %1085 = vmatpush1.bf16.xpose.msra.mxu0 0
      %1086 = vmatprep.mubr.bf16.mxu0 0
      %1087 = vmatmul.mubr.bf16.gmra.mrb[0].mxu0 %v1031
      %v1088 = vpop.f32.mrb[0].mxu0
      %v1089 = vadd.f32 0.0, %v1088
      %v1090 = vpop.f32.mrb[0].mxu0
      %v1091 = vpop.f32.mrb[0].mxu0
      %v1092 = vadd.f32 0.0, %v1091
      %v1093 = vpop.f32.mrb[0].mxu0
      %1094 = vmatprep.mubr.bf16.mxu0 0
      %1095 = vmatmul.mubr.bf16.gmra.mrb[0].mxu0 %v1034
      %v1096 = vpop.f32.mrb[0].mxu0
      %v1097 = vadd.f32 0.0, %v1096
      %v1098 = vpop.f32.mrb[0].mxu0
      %v1099 = vpop.f32.mrb[0].mxu0
      %v1100 = vadd.f32 0.0, %v1099
      %v1101 = vpop.f32.mrb[0].mxu0
      %1102 = vmatprep.mubr.bf16.mxu0 0
      %1103 = vmatmul.mubr.bf16.gmra.mrb[0].mxu0 %v1037
      %v1104 = vpop.f32.mrb[0].mxu0
      %v1105 = vadd.f32 0.0, %v1104
      %v1106 = vpop.f32.mrb[0].mxu0
      %v1107 = vpop.f32.mrb[0].mxu0
      %v1108 = vadd.f32 0.0, %v1107
      %v1109 = vpop.f32.mrb[0].mxu0
      %1110 = vmatprep.mubr.bf16.mxu0 0
      %1111 = vmatmul.mubr.bf16.gmra.mrb[0].mxu0 %v1040
      %v1112 = vpop.f32.mrb[0].mxu0
      %v1113 = vadd.f32 0.0, %v1112
      %v1114 = vpop.f32.mrb[0].mxu0
      %v1115 = vpop.f32.mrb[0].mxu0
      %v1116 = vadd.f32 0.0, %v1115
      %v1117 = vpop.f32.mrb[0].mxu0
      %1118 = vdwg.mxu0
      %v1119 = vmul.f32 %v1089, 0.17677669
      %v1120 = vmul.f32 %v1092, 0.17677669
      %v1121 = vmul.f32 %v1097, 0.17677669
      %v1122 = vmul.f32 %v1100, 0.17677669
      %v1123 = vmul.f32 %v1105, 0.17677669
      %v1124 = vmul.f32 %v1108, 0.17677669
      %v1125 = vmul.f32 %v1113, 0.17677669
      %v1126 = vmul.f32 %v1116, 0.17677669
      %v1127 = vsel %vm832, %v1119, -inf
      %1128 = vmax.xlane.f32.xlu0 %v1127
      %v1129 = vpop.xlane.xlu0 %1128
      %v1130 = vsel %vm832, %v1120, -inf
      %1131 = vmax.xlane.f32.xlu0 %v1130
      %v1132 = vpop.xlane.xlu0 %1131
      %v1133 = vsel %vm832, %v1121, -inf
      %1134 = vmax.xlane.f32.xlu0 %v1133
      %v1135 = vpop.xlane.xlu0 %1134
      %v1136 = vsel %vm832, %v1122, -inf
      %1137 = vmax.xlane.f32.xlu0 %v1136
      %v1138 = vpop.xlane.xlu0 %1137
      %v1139 = vsel %vm832, %v1123, -inf
      %1140 = vmax.xlane.f32.xlu0 %v1139
      %v1141 = vpop.xlane.xlu0 %1140
      %v1142 = vsel %vm832, %v1124, -inf
      %1143 = vmax.xlane.f32.xlu0 %v1142
      %v1144 = vpop.xlane.xlu0 %1143
      %v1145 = vsel %vm832, %v1125, -inf
      %1146 = vmax.xlane.f32.xlu0 %v1145
      %v1147 = vpop.xlane.xlu0 %1146
      %v1148 = vsel %vm832, %v1126, -inf
      %1149 = vmax.xlane.f32.xlu0 %v1148
      %v1150 = vpop.xlane.xlu0 %1149
      %v1151 = vsub.f32 %v1119, %v1129
      %v1152 = vsub.f32 %v1120, %v1132
      %v1153 = vsub.f32 %v1121, %v1135
      %v1154 = vsub.f32 %v1122, %v1138
      %v1155 = vsub.f32 %v1123, %v1141
      %v1156 = vsub.f32 %v1124, %v1144
      %v1157 = vsub.f32 %v1125, %v1147
      %v1158 = vsub.f32 %v1126, %v1150
      %v1159 = vmul.f32 %v1151, 1.442695
      %v1160 = vpow.pop %v1159
      %v1161 = vmul.f32 %v1152, 1.442695
      %v1162 = vpow.pop %v1161
      %v1163 = vmul.f32 %v1153, 1.442695
      %v1164 = vpow.pop %v1163
      %v1165 = vmul.f32 %v1154, 1.442695
      %v1166 = vpow.pop %v1165
      %v1167 = vmul.f32 %v1155, 1.442695
      %v1168 = vpow.pop %v1167
      %v1169 = vmul.f32 %v1156, 1.442695
      %v1170 = vpow.pop %v1169
      %v1171 = vmul.f32 %v1157, 1.442695
      %v1172 = vpow.pop %v1171
      %v1173 = vmul.f32 %v1158, 1.442695
      %v1174 = vpow.pop %v1173
      %v1175 = vsel %vm832, %v1160, 0.0
      %1176 = vadd.xlane.f32.xlu0 %v1175
      %v1177 = vpop.xlane.xlu0 %1176
      %v1178 = vsel %vm832, %v1162, 0.0
      %1179 = vadd.xlane.f32.xlu0 %v1178
      %v1180 = vpop.xlane.xlu0 %1179
      %v1181 = vsel %vm832, %v1164, 0.0
      %1182 = vadd.xlane.f32.xlu0 %v1181
      %v1183 = vpop.xlane.xlu0 %1182
      %v1184 = vsel %vm832, %v1166, 0.0
      %1185 = vadd.xlane.f32.xlu0 %v1184
      %v1186 = vpop.xlane.xlu0 %1185
      %v1187 = vsel %vm832, %v1168, 0.0
      %1188 = vadd.xlane.f32.xlu0 %v1187
      %v1189 = vpop.xlane.xlu0 %1188
      %v1190 = vsel %vm832, %v1170, 0.0
      %1191 = vadd.xlane.f32.xlu0 %v1190
      %v1192 = vpop.xlane.xlu0 %1191
      %v1193 = vsel %vm832, %v1172, 0.0
      %1194 = vadd.xlane.f32.xlu0 %v1193
      %v1195 = vpop.xlane.xlu0 %1194
      %v1196 = vsel %vm832, %v1174, 0.0
      %1197 = vadd.xlane.f32.xlu0 %v1196
      %v1198 = vpop.xlane.xlu0 %1197
      %v1199 = vrcp.pop %v1177
      %v1200 = vrcp.pop %v1180
      %v1201 = vrcp.pop %v1183
      %v1202 = vrcp.pop %v1186
      %v1203 = vrcp.pop %v1189
      %v1204 = vrcp.pop %v1192
      %v1205 = vrcp.pop %v1195
      %v1206 = vrcp.pop %v1198
      %v1207 = vmul.f32 %v1160, %v1199
      %v1208 = vmul.f32 %v1162, %v1200
      %v1209 = vmul.f32 %v1164, %v1201
      %v1210 = vmul.f32 %v1166, %v1202
      %v1211 = vmul.f32 %v1168, %v1203
      %v1212 = vmul.f32 %v1170, %v1204
      %v1213 = vmul.f32 %v1172, %v1205
      %v1214 = vmul.f32 %v1174, %v1206
      %v1215 = vpack.c.bf16 %v1208, %v1207
      %v1216 = vpack.c.bf16 %v1210, %v1209
      %v1217 = vpack.c.bf16 %v1212, %v1211
      %v1218 = vpack.c.bf16 %v1214, %v1213
      %1223 = vrot.lane.b32.xlu0 %v925, 96
      %v1224 = vpop.permute.xlu0 %1223
      %1225 = vrot.lane.b32.xlu0 %v926, 96
      %v1226 = vpop.permute.xlu0 %1225
      %1227 = vrot.lane.b32.xlu0 %v927, 96
      %v1228 = vpop.permute.xlu0 %1227
      %1229 = vrot.lane.b32.xlu0 %v928, 96
      %v1230 = vpop.permute.xlu0 %1229
      %v1236 = vsel %vm832, %v1215, 0
      %v1239 = vsel %vm832, %v1216, 0
      %v1242 = vsel %vm832, %v1217, 0
      %v1245 = vsel %vm832, %v1218, 0
      %1247 = vmatprep.subr.bf16.mxu0 0
      %1248 = vmatpush1.bf16.msra.mxu0 %v1224
      %1249 = vmatprep.subr.bf16.mxu0 0
      %1250 = vmatpush1.bf16.msra.mxu0 %v1226
      %1251 = vmatprep.subr.bf16.mxu0 0
      %1252 = vmatpush1.bf16.msra.mxu0 %v1228
      %1253 = vmatprep.subr.bf16.mxu0 0
      %1254 = vmatpush1.bf16.msra.mxu0 %v1230
      %1255 = vmatprep.subr.bf16.mxu0 0
      %1256 = vmatpush1.bf16.msra.mxu0 0
      %1257 = vmatprep.subr.bf16.mxu0 0
      %1258 = vmatpush1.bf16.msra.mxu0 0
      %1259 = vmatprep.subr.bf16.mxu0 0
      %1260 = vmatpush1.bf16.msra.mxu0 0
      %1261 = vmatprep.subr.bf16.mxu0 0
      %1262 = vmatpush1.bf16.msra.mxu0 0
      %1263 = vmatprep.subr.bf16.mxu0 0
      %1264 = vmatpush1.bf16.msra.mxu0 0
      %1265 = vmatprep.subr.bf16.mxu0 0
      %1266 = vmatpush1.bf16.msra.mxu0 0
      %1267 = vmatprep.subr.bf16.mxu0 0
      %1268 = vmatpush1.bf16.msra.mxu0 0
      %1269 = vmatprep.subr.bf16.mxu0 0
      %1270 = vmatpush1.bf16.msra.mxu0 0
      %1271 = vmatprep.subr.bf16.mxu0 0
      %1272 = vmatpush1.bf16.msra.mxu0 0
      %1273 = vmatprep.subr.bf16.mxu0 0
      %1274 = vmatpush1.bf16.msra.mxu0 0
      %1275 = vmatprep.subr.bf16.mxu0 0
      %1276 = vmatpush1.bf16.msra.mxu0 0
      %1277 = vmatprep.subr.bf16.mxu0 0
      %1278 = vmatpush1.bf16.msra.mxu0 0
      %1279 = vmatprep.mubr.bf16.mxu0 0
      %1280 = vmatmul.mubr.bf16.gmra.mrb[0].mxu0 %v1236
      %v1281 = vpop.f32.mrb[0].mxu0
      %v1282 = vadd.f32 0.0, %v1281
      %v1283 = vpop.f32.mrb[0].mxu0
      %v1284 = vpop.f32.mrb[0].mxu0
      %v1285 = vadd.f32 0.0, %v1284
      %v1286 = vpop.f32.mrb[0].mxu0
      %1287 = vmatprep.mubr.bf16.mxu0 0
      %1288 = vmatmul.mubr.bf16.gmra.mrb[0].mxu0 %v1239
      %v1289 = vpop.f32.mrb[0].mxu0
      %v1290 = vadd.f32 0.0, %v1289
      %v1291 = vpop.f32.mrb[0].mxu0
      %v1292 = vpop.f32.mrb[0].mxu0
      %v1293 = vadd.f32 0.0, %v1292
      %v1294 = vpop.f32.mrb[0].mxu0
      %1295 = vmatprep.mubr.bf16.mxu0 0
      %1296 = vmatmul.mubr.bf16.gmra.mrb[0].mxu0 %v1242
      %v1297 = vpop.f32.mrb[0].mxu0
      %v1298 = vadd.f32 0.0, %v1297
      %v1299 = vpop.f32.mrb[0].mxu0
      %v1300 = vpop.f32.mrb[0].mxu0
      %v1301 = vadd.f32 0.0, %v1300
      %v1302 = vpop.f32.mrb[0].mxu0
      %1303 = vmatprep.mubr.bf16.mxu0 0
      %1304 = vmatmul.mubr.bf16.gmra.mrb[0].mxu0 %v1245
      %v1305 = vpop.f32.mrb[0].mxu0
      %v1306 = vadd.f32 0.0, %v1305
      %v1307 = vpop.f32.mrb[0].mxu0
      %v1308 = vpop.f32.mrb[0].mxu0
      %v1309 = vadd.f32 0.0, %v1308
      %v1310 = vpop.f32.mrb[0].mxu0
      %1311 = vdwg.mxu0
      %1312 = vrot.lane.b32.xlu0 %v726, 64
      %v1313 = vpop.permute.xlu0 %1312
      %1314 = vrot.lane.b32.xlu0 %v727, 64
      %v1315 = vpop.permute.xlu0 %1314
      %1316 = vrot.lane.b32.xlu0 %v728, 64
      %v1317 = vpop.permute.xlu0 %1316
      %1318 = vrot.lane.b32.xlu0 %v729, 64
      %v1319 = vpop.permute.xlu0 %1318
      %1320 = vrot.lane.b32.xlu0 %v730, 64
      %v1321 = vpop.permute.xlu0 %1320
      %1322 = vrot.lane.b32.xlu0 %v731, 64
      %v1323 = vpop.permute.xlu0 %1322
      %1324 = vrot.lane.b32.xlu0 %v732, 64
      %v1325 = vpop.permute.xlu0 %1324
      %1326 = vrot.lane.b32.xlu0 %v733, 64
      %v1327 = vpop.permute.xlu0 %1326
      %v1329 = vsel %vm734, %v1313, 0
      %v1332 = vsel %vm734, %v1315, 0
      %v1335 = vsel %vm734, %v1317, 0
      %v1338 = vsel %vm734, %v1319, 0
      %v1341 = vsel %vm734, %v1321, 0
      %v1344 = vsel %vm734, %v1323, 0
      %v1347 = vsel %vm734, %v1325, 0
      %v1350 = vsel %vm734, %v1327, 0
      %1352 = vmatprep.subr.bf16.mxu0 0
      %1353 = vmatpush1.bf16.xpose.msra.mxu0 %v1341
      %1354 = vmatprep.subr.bf16.mxu0 0
      %1355 = vmatpush1.bf16.xpose.msra.mxu0 %v1344
      %1356 = vmatprep.subr.bf16.mxu0 0
      %1357 = vmatpush1.bf16.xpose.msra.mxu0 %v1347
      %1358 = vmatprep.subr.bf16.mxu0 0
      %1359 = vmatpush1.bf16.xpose.msra.mxu0 %v1350
      %1360 = vmatprep.subr.bf16.mxu0 0
      %1361 = vmatpush1.bf16.xpose.msra.mxu0 0
      %1362 = vmatprep.subr.bf16.mxu0 0
      %1363 = vmatpush1.bf16.xpose.msra.mxu0 0
      %1364 = vmatprep.subr.bf16.mxu0 0
      %1365 = vmatpush1.bf16.xpose.msra.mxu0 0
      %1366 = vmatprep.subr.bf16.mxu0 0
      %1367 = vmatpush1.bf16.xpose.msra.mxu0 0
      %1368 = vmatprep.subr.bf16.mxu0 0
      %1369 = vmatpush1.bf16.xpose.msra.mxu0 0
      %1370 = vmatprep.subr.bf16.mxu0 0
      %1371 = vmatpush1.bf16.xpose.msra.mxu0 0
      %1372 = vmatprep.subr.bf16.mxu0 0
      %1373 = vmatpush1.bf16.xpose.msra.mxu0 0
      %1374 = vmatprep.subr.bf16.mxu0 0
      %1375 = vmatpush1.bf16.xpose.msra.mxu0 0
      %1376 = vmatprep.subr.bf16.mxu0 0
      %1377 = vmatpush1.bf16.xpose.msra.mxu0 0
      %1378 = vmatprep.subr.bf16.mxu0 0
      %1379 = vmatpush1.bf16.xpose.msra.mxu0 0
      %1380 = vmatprep.subr.bf16.mxu0 0
      %1381 = vmatpush1.bf16.xpose.msra.mxu0 0
      %1382 = vmatprep.subr.bf16.mxu0 0
      %1383 = vmatpush1.bf16.xpose.msra.mxu0 0
      %1384 = vmatprep.mubr.bf16.mxu0 0
      %1385 = vmatmul.mubr.bf16.gmra.mrb[0].mxu0 %v1329
      %v1386 = vpop.f32.mrb[0].mxu0
      %v1387 = vadd.f32 0.0, %v1386
      %v1388 = vpop.f32.mrb[0].mxu0
      %v1389 = vpop.f32.mrb[0].mxu0
      %v1390 = vadd.f32 0.0, %v1389
      %v1391 = vpop.f32.mrb[0].mxu0
      %1392 = vmatprep.mubr.bf16.mxu0 0
      %1393 = vmatmul.mubr.bf16.gmra.mrb[0].mxu0 %v1332
      %v1394 = vpop.f32.mrb[0].mxu0
      %v1395 = vadd.f32 0.0, %v1394
      %v1396 = vpop.f32.mrb[0].mxu0
      %v1397 = vpop.f32.mrb[0].mxu0
      %v1398 = vadd.f32 0.0, %v1397
      %v1399 = vpop.f32.mrb[0].mxu0
      %1400 = vmatprep.mubr.bf16.mxu0 0
      %1401 = vmatmul.mubr.bf16.gmra.mrb[0].mxu0 %v1335
      %v1402 = vpop.f32.mrb[0].mxu0
      %v1403 = vadd.f32 0.0, %v1402
      %v1404 = vpop.f32.mrb[0].mxu0
      %v1405 = vpop.f32.mrb[0].mxu0
      %v1406 = vadd.f32 0.0, %v1405
      %v1407 = vpop.f32.mrb[0].mxu0
      %1408 = vmatprep.mubr.bf16.mxu0 0
      %1409 = vmatmul.mubr.bf16.gmra.mrb[0].mxu0 %v1338
      %v1410 = vpop.f32.mrb[0].mxu0
      %v1411 = vadd.f32 0.0, %v1410
      %v1412 = vpop.f32.mrb[0].mxu0
      %v1413 = vpop.f32.mrb[0].mxu0
      %v1414 = vadd.f32 0.0, %v1413
      %v1415 = vpop.f32.mrb[0].mxu0
      %1416 = vdwg.mxu0
      %v1417 = vmul.f32 %v1387, 0.17677669
      %v1418 = vmul.f32 %v1390, 0.17677669
      %v1419 = vmul.f32 %v1395, 0.17677669
      %v1420 = vmul.f32 %v1398, 0.17677669
      %v1421 = vmul.f32 %v1403, 0.17677669
      %v1422 = vmul.f32 %v1406, 0.17677669
      %v1423 = vmul.f32 %v1411, 0.17677669
      %v1424 = vmul.f32 %v1414, 0.17677669
      %v1425 = vsel %vm832, %v1417, -inf
      %1426 = vmax.xlane.f32.xlu0 %v1425
      %v1427 = vpop.xlane.xlu0 %1426
      %v1428 = vsel %vm832, %v1418, -inf
      %1429 = vmax.xlane.f32.xlu0 %v1428
      %v1430 = vpop.xlane.xlu0 %1429
      %v1431 = vsel %vm832, %v1419, -inf
      %1432 = vmax.xlane.f32.xlu0 %v1431
      %v1433 = vpop.xlane.xlu0 %1432
      %v1434 = vsel %vm832, %v1420, -inf
      %1435 = vmax.xlane.f32.xlu0 %v1434
      %v1436 = vpop.xlane.xlu0 %1435
      %v1437 = vsel %vm832, %v1421, -inf
      %1438 = vmax.xlane.f32.xlu0 %v1437
      %v1439 = vpop.xlane.xlu0 %1438
      %v1440 = vsel %vm832, %v1422, -inf
      %1441 = vmax.xlane.f32.xlu0 %v1440
      %v1442 = vpop.xlane.xlu0 %1441
      %v1443 = vsel %vm832, %v1423, -inf
      %1444 = vmax.xlane.f32.xlu0 %v1443
      %v1445 = vpop.xlane.xlu0 %1444
      %v1446 = vsel %vm832, %v1424, -inf
      %1447 = vmax.xlane.f32.xlu0 %v1446
      %v1448 = vpop.xlane.xlu0 %1447
      %v1449 = vsub.f32 %v1417, %v1427
      %v1450 = vsub.f32 %v1418, %v1430
      %v1451 = vsub.f32 %v1419, %v1433
      %v1452 = vsub.f32 %v1420, %v1436
      %v1453 = vsub.f32 %v1421, %v1439
      %v1454 = vsub.f32 %v1422, %v1442
      %v1455 = vsub.f32 %v1423, %v1445
      %v1456 = vsub.f32 %v1424, %v1448
      %v1457 = vmul.f32 %v1449, 1.442695
      %v1458 = vpow.pop %v1457
      %v1459 = vmul.f32 %v1450, 1.442695
      %v1460 = vpow.pop %v1459
      %v1461 = vmul.f32 %v1451, 1.442695
      %v1462 = vpow.pop %v1461
      %v1463 = vmul.f32 %v1452, 1.442695
      %v1464 = vpow.pop %v1463
      %v1465 = vmul.f32 %v1453, 1.442695
      %v1466 = vpow.pop %v1465
      %v1467 = vmul.f32 %v1454, 1.442695
      %v1468 = vpow.pop %v1467
      %v1469 = vmul.f32 %v1455, 1.442695
      %v1470 = vpow.pop %v1469
      %v1471 = vmul.f32 %v1456, 1.442695
      %v1472 = vpow.pop %v1471
      %v1473 = vsel %vm832, %v1458, 0.0
      %1474 = vadd.xlane.f32.xlu0 %v1473
      %v1475 = vpop.xlane.xlu0 %1474
      %v1476 = vsel %vm832, %v1460, 0.0
      %1477 = vadd.xlane.f32.xlu0 %v1476
      %v1478 = vpop.xlane.xlu0 %1477
      %v1479 = vsel %vm832, %v1462, 0.0
      %1480 = vadd.xlane.f32.xlu0 %v1479
      %v1481 = vpop.xlane.xlu0 %1480
      %v1482 = vsel %vm832, %v1464, 0.0
      %1483 = vadd.xlane.f32.xlu0 %v1482
      %v1484 = vpop.xlane.xlu0 %1483
      %v1485 = vsel %vm832, %v1466, 0.0
      %1486 = vadd.xlane.f32.xlu0 %v1485
      %v1487 = vpop.xlane.xlu0 %1486
      %v1488 = vsel %vm832, %v1468, 0.0
      %1489 = vadd.xlane.f32.xlu0 %v1488
      %v1490 = vpop.xlane.xlu0 %1489
      %v1491 = vsel %vm832, %v1470, 0.0
      %1492 = vadd.xlane.f32.xlu0 %v1491
      %v1493 = vpop.xlane.xlu0 %1492
      %v1494 = vsel %vm832, %v1472, 0.0
      %1495 = vadd.xlane.f32.xlu0 %v1494
      %v1496 = vpop.xlane.xlu0 %1495
      %v1497 = vrcp.pop %v1475
      %v1498 = vrcp.pop %v1478
      %v1499 = vrcp.pop %v1481
      %v1500 = vrcp.pop %v1484
      %v1501 = vrcp.pop %v1487
      %v1502 = vrcp.pop %v1490
      %v1503 = vrcp.pop %v1493
      %v1504 = vrcp.pop %v1496
      %v1505 = vmul.f32 %v1458, %v1497
      %v1506 = vmul.f32 %v1460, %v1498
      %v1507 = vmul.f32 %v1462, %v1499
      %v1508 = vmul.f32 %v1464, %v1500
      %v1509 = vmul.f32 %v1466, %v1501
      %v1510 = vmul.f32 %v1468, %v1502
      %v1511 = vmul.f32 %v1470, %v1503
      %v1512 = vmul.f32 %v1472, %v1504
      %v1513 = vpack.c.bf16 %v1506, %v1505
      %v1514 = vpack.c.bf16 %v1508, %v1507
      %v1515 = vpack.c.bf16 %v1510, %v1509
      %v1516 = vpack.c.bf16 %v1512, %v1511
      %1517 = vrot.lane.b32.xlu0 %v925, 64
      %v1518 = vpop.permute.xlu0 %1517
      %1519 = vrot.lane.b32.xlu0 %v926, 64
      %v1520 = vpop.permute.xlu0 %1519
      %1521 = vrot.lane.b32.xlu0 %v927, 64
      %v1522 = vpop.permute.xlu0 %1521
      %1523 = vrot.lane.b32.xlu0 %v928, 64
      %v1524 = vpop.permute.xlu0 %1523
      %v1530 = vsel %vm832, %v1513, 0
      %v1533 = vsel %vm832, %v1514, 0
      %v1536 = vsel %vm832, %v1515, 0
      %v1539 = vsel %vm832, %v1516, 0
      %1541 = vmatprep.subr.bf16.mxu0 0
      %1542 = vmatpush1.bf16.msra.mxu0 %v1518
      %1543 = vmatprep.subr.bf16.mxu0 0
      %1544 = vmatpush1.bf16.msra.mxu0 %v1520
      %1545 = vmatprep.subr.bf16.mxu0 0
      %1546 = vmatpush1.bf16.msra.mxu0 %v1522
      %1547 = vmatprep.subr.bf16.mxu0 0
      %1548 = vmatpush1.bf16.msra.mxu0 %v1524
      %1549 = vmatprep.subr.bf16.mxu0 0
      %1550 = vmatpush1.bf16.msra.mxu0 0
      %1551 = vmatprep.subr.bf16.mxu0 0
      %1552 = vmatpush1.bf16.msra.mxu0 0
      %1553 = vmatprep.subr.bf16.mxu0 0
      %1554 = vmatpush1.bf16.msra.mxu0 0
      %1555 = vmatprep.subr.bf16.mxu0 0
      %1556 = vmatpush1.bf16.msra.mxu0 0
      %1557 = vmatprep.subr.bf16.mxu0 0
      %1558 = vmatpush1.bf16.msra.mxu0 0
      %1559 = vmatprep.subr.bf16.mxu0 0
      %1560 = vmatpush1.bf16.msra.mxu0 0
      %1561 = vmatprep.subr.bf16.mxu0 0
      %1562 = vmatpush1.bf16.msra.mxu0 0
      %1563 = vmatprep.subr.bf16.mxu0 0
      %1564 = vmatpush1.bf16.msra.mxu0 0
      %1565 = vmatprep.subr.bf16.mxu0 0
      %1566 = vmatpush1.bf16.msra.mxu0 0
      %1567 = vmatprep.subr.bf16.mxu0 0
      %1568 = vmatpush1.bf16.msra.mxu0 0
      %1569 = vmatprep.subr.bf16.mxu0 0
      %1570 = vmatpush1.bf16.msra.mxu0 0
      %1571 = vmatprep.subr.bf16.mxu0 0
      %1572 = vmatpush1.bf16.msra.mxu0 0
      %1573 = vmatprep.mubr.bf16.mxu0 0
      %1574 = vmatmul.mubr.bf16.gmra.mrb[0].mxu0 %v1530
      %v1575 = vpop.f32.mrb[0].mxu0
      %v1576 = vadd.f32 0.0, %v1575
      %v1577 = vpop.f32.mrb[0].mxu0
      %v1578 = vpop.f32.mrb[0].mxu0
      %v1579 = vadd.f32 0.0, %v1578
      %v1580 = vpop.f32.mrb[0].mxu0
      %1581 = vmatprep.mubr.bf16.mxu0 0
      %1582 = vmatmul.mubr.bf16.gmra.mrb[0].mxu0 %v1533
      %v1583 = vpop.f32.mrb[0].mxu0
      %v1584 = vadd.f32 0.0, %v1583
      %v1585 = vpop.f32.mrb[0].mxu0
      %v1586 = vpop.f32.mrb[0].mxu0
      %v1587 = vadd.f32 0.0, %v1586
      %v1588 = vpop.f32.mrb[0].mxu0
      %1589 = vmatprep.mubr.bf16.mxu0 0
      %1590 = vmatmul.mubr.bf16.gmra.mrb[0].mxu0 %v1536
      %v1591 = vpop.f32.mrb[0].mxu0
      %v1592 = vadd.f32 0.0, %v1591
      %v1593 = vpop.f32.mrb[0].mxu0
      %v1594 = vpop.f32.mrb[0].mxu0
      %v1595 = vadd.f32 0.0, %v1594
      %v1596 = vpop.f32.mrb[0].mxu0
      %1597 = vmatprep.mubr.bf16.mxu0 0
      %1598 = vmatmul.mubr.bf16.gmra.mrb[0].mxu0 %v1539
      %v1599 = vpop.f32.mrb[0].mxu0
      %v1600 = vadd.f32 0.0, %v1599
      %v1601 = vpop.f32.mrb[0].mxu0
      %v1602 = vpop.f32.mrb[0].mxu0
      %v1603 = vadd.f32 0.0, %v1602
      %v1604 = vpop.f32.mrb[0].mxu0
      %1605 = vdwg.mxu0
      %1606 = vrot.lane.b32.xlu0 %v726, 32
      %v1607 = vpop.permute.xlu0 %1606
      %1608 = vrot.lane.b32.xlu0 %v727, 32
      %v1609 = vpop.permute.xlu0 %1608
      %1610 = vrot.lane.b32.xlu0 %v728, 32
      %v1611 = vpop.permute.xlu0 %1610
      %1612 = vrot.lane.b32.xlu0 %v729, 32
      %v1613 = vpop.permute.xlu0 %1612
      %1614 = vrot.lane.b32.xlu0 %v730, 32
      %v1615 = vpop.permute.xlu0 %1614
      %1616 = vrot.lane.b32.xlu0 %v731, 32
      %v1617 = vpop.permute.xlu0 %1616
      %1618 = vrot.lane.b32.xlu0 %v732, 32
      %v1619 = vpop.permute.xlu0 %1618
      %1620 = vrot.lane.b32.xlu0 %v733, 32
      %v1621 = vpop.permute.xlu0 %1620
      %v1623 = vsel %vm734, %v1607, 0
      %v1626 = vsel %vm734, %v1609, 0
      %v1629 = vsel %vm734, %v1611, 0
      %v1632 = vsel %vm734, %v1613, 0
      %v1635 = vsel %vm734, %v1615, 0
      %v1638 = vsel %vm734, %v1617, 0
      %v1641 = vsel %vm734, %v1619, 0
      %v1644 = vsel %vm734, %v1621, 0
      %1646 = vmatprep.subr.bf16.mxu0 0
      %1647 = vmatpush1.bf16.xpose.msra.mxu0 %v1635
      %1648 = vmatprep.subr.bf16.mxu0 0
      %1649 = vmatpush1.bf16.xpose.msra.mxu0 %v1638
      %1650 = vmatprep.subr.bf16.mxu0 0
      %1651 = vmatpush1.bf16.xpose.msra.mxu0 %v1641
      %1652 = vmatprep.subr.bf16.mxu0 0
      %1653 = vmatpush1.bf16.xpose.msra.mxu0 %v1644
      %1654 = vmatprep.subr.bf16.mxu0 0
      %1655 = vmatpush1.bf16.xpose.msra.mxu0 0
      %1656 = vmatprep.subr.bf16.mxu0 0
      %1657 = vmatpush1.bf16.xpose.msra.mxu0 0
      %1658 = vmatprep.subr.bf16.mxu0 0
      %1659 = vmatpush1.bf16.xpose.msra.mxu0 0
      %1660 = vmatprep.subr.bf16.mxu0 0
      %1661 = vmatpush1.bf16.xpose.msra.mxu0 0
      %1662 = vmatprep.subr.bf16.mxu0 0
      %1663 = vmatpush1.bf16.xpose.msra.mxu0 0
      %1664 = vmatprep.subr.bf16.mxu0 0
      %1665 = vmatpush1.bf16.xpose.msra.mxu0 0
      %1666 = vmatprep.subr.bf16.mxu0 0
      %1667 = vmatpush1.bf16.xpose.msra.mxu0 0
      %1668 = vmatprep.subr.bf16.mxu0 0
      %1669 = vmatpush1.bf16.xpose.msra.mxu0 0
      %1670 = vmatprep.subr.bf16.mxu0 0
      %1671 = vmatpush1.bf16.xpose.msra.mxu0 0
      %1672 = vmatprep.subr.bf16.mxu0 0
      %1673 = vmatpush1.bf16.xpose.msra.mxu0 0
      %1674 = vmatprep.subr.bf16.mxu0 0
      %1675 = vmatpush1.bf16.xpose.msra.mxu0 0
      %1676 = vmatprep.subr.bf16.mxu0 0
      %1677 = vmatpush1.bf16.xpose.msra.mxu0 0
      %1678 = vmatprep.mubr.bf16.mxu0 0
      %1679 = vmatmul.mubr.bf16.gmra.mrb[0].mxu0 %v1623
      %v1680 = vpop.f32.mrb[0].mxu0
      %v1681 = vadd.f32 0.0, %v1680
      %v1682 = vpop.f32.mrb[0].mxu0
      %v1683 = vpop.f32.mrb[0].mxu0
      %v1684 = vadd.f32 0.0, %v1683
      %v1685 = vpop.f32.mrb[0].mxu0
      %1686 = vmatprep.mubr.bf16.mxu0 0
      %1687 = vmatmul.mubr.bf16.gmra.mrb[0].mxu0 %v1626
      %v1688 = vpop.f32.mrb[0].mxu0
      %v1689 = vadd.f32 0.0, %v1688
      %v1690 = vpop.f32.mrb[0].mxu0
      %v1691 = vpop.f32.mrb[0].mxu0
      %v1692 = vadd.f32 0.0, %v1691
      %v1693 = vpop.f32.mrb[0].mxu0
      %1694 = vmatprep.mubr.bf16.mxu0 0
      %1695 = vmatmul.mubr.bf16.gmra.mrb[0].mxu0 %v1629
      %v1696 = vpop.f32.mrb[0].mxu0
      %v1697 = vadd.f32 0.0, %v1696
      %v1698 = vpop.f32.mrb[0].mxu0
      %v1699 = vpop.f32.mrb[0].mxu0
      %v1700 = vadd.f32 0.0, %v1699
      %v1701 = vpop.f32.mrb[0].mxu0
      %1702 = vmatprep.mubr.bf16.mxu0 0
      %1703 = vmatmul.mubr.bf16.gmra.mrb[0].mxu0 %v1632
      %v1704 = vpop.f32.mrb[0].mxu0
      %v1705 = vadd.f32 0.0, %v1704
      %v1706 = vpop.f32.mrb[0].mxu0
      %v1707 = vpop.f32.mrb[0].mxu0
      %v1708 = vadd.f32 0.0, %v1707
      %v1709 = vpop.f32.mrb[0].mxu0
      %1710 = vdwg.mxu0
      %v1711 = vmul.f32 %v1681, 0.17677669
      %v1712 = vmul.f32 %v1684, 0.17677669
      %v1713 = vmul.f32 %v1689, 0.17677669
      %v1714 = vmul.f32 %v1692, 0.17677669
      %v1715 = vmul.f32 %v1697, 0.17677669
      %v1716 = vmul.f32 %v1700, 0.17677669
      %v1717 = vmul.f32 %v1705, 0.17677669
      %v1718 = vmul.f32 %v1708, 0.17677669
      %v1719 = vsel %vm832, %v1711, -inf
      %1720 = vmax.xlane.f32.xlu0 %v1719
      %v1721 = vpop.xlane.xlu0 %1720
      %v1722 = vsel %vm832, %v1712, -inf
      %1723 = vmax.xlane.f32.xlu0 %v1722
      %v1724 = vpop.xlane.xlu0 %1723
      %v1725 = vsel %vm832, %v1713, -inf
      %1726 = vmax.xlane.f32.xlu0 %v1725
      %v1727 = vpop.xlane.xlu0 %1726
      %v1728 = vsel %vm832, %v1714, -inf
      %1729 = vmax.xlane.f32.xlu0 %v1728
      %v1730 = vpop.xlane.xlu0 %1729
      %v1731 = vsel %vm832, %v1715, -inf
      %1732 = vmax.xlane.f32.xlu0 %v1731
      %v1733 = vpop.xlane.xlu0 %1732
      %v1734 = vsel %vm832, %v1716, -inf
      %1735 = vmax.xlane.f32.xlu0 %v1734
      %v1736 = vpop.xlane.xlu0 %1735
      %v1737 = vsel %vm832, %v1717, -inf
      %1738 = vmax.xlane.f32.xlu0 %v1737
      %v1739 = vpop.xlane.xlu0 %1738
      %v1740 = vsel %vm832, %v1718, -inf
      %1741 = vmax.xlane.f32.xlu0 %v1740
      %v1742 = vpop.xlane.xlu0 %1741
      %v1743 = vsub.f32 %v1711, %v1721
      %v1744 = vsub.f32 %v1712, %v1724
      %v1745 = vsub.f32 %v1713, %v1727
      %v1746 = vsub.f32 %v1714, %v1730
      %v1747 = vsub.f32 %v1715, %v1733
      %v1748 = vsub.f32 %v1716, %v1736
      %v1749 = vsub.f32 %v1717, %v1739
      %v1750 = vsub.f32 %v1718, %v1742
      %v1751 = vmul.f32 %v1743, 1.442695
      %v1752 = vpow.pop %v1751
      %v1753 = vmul.f32 %v1744, 1.442695
      %v1754 = vpow.pop %v1753
      %v1755 = vmul.f32 %v1745, 1.442695
      %v1756 = vpow.pop %v1755
      %v1757 = vmul.f32 %v1746, 1.442695
      %v1758 = vpow.pop %v1757
      %v1759 = vmul.f32 %v1747, 1.442695
      %v1760 = vpow.pop %v1759
      %v1761 = vmul.f32 %v1748, 1.442695
      %v1762 = vpow.pop %v1761
      %v1763 = vmul.f32 %v1749, 1.442695
      %v1764 = vpow.pop %v1763
      %v1765 = vmul.f32 %v1750, 1.442695
      %v1766 = vpow.pop %v1765
      %v1767 = vsel %vm832, %v1752, 0.0
      %1768 = vadd.xlane.f32.xlu0 %v1767
      %v1769 = vpop.xlane.xlu0 %1768
      %v1770 = vsel %vm832, %v1754, 0.0
      %1771 = vadd.xlane.f32.xlu0 %v1770
      %v1772 = vpop.xlane.xlu0 %1771
      %v1773 = vsel %vm832, %v1756, 0.0
      %1774 = vadd.xlane.f32.xlu0 %v1773
      %v1775 = vpop.xlane.xlu0 %1774
      %v1776 = vsel %vm832, %v1758, 0.0
      %1777 = vadd.xlane.f32.xlu0 %v1776
      %v1778 = vpop.xlane.xlu0 %1777
      %v1779 = vsel %vm832, %v1760, 0.0
      %1780 = vadd.xlane.f32.xlu0 %v1779
      %v1781 = vpop.xlane.xlu0 %1780
      %v1782 = vsel %vm832, %v1762, 0.0
      %1783 = vadd.xlane.f32.xlu0 %v1782
      %v1784 = vpop.xlane.xlu0 %1783
      %v1785 = vsel %vm832, %v1764, 0.0
      %1786 = vadd.xlane.f32.xlu0 %v1785
      %v1787 = vpop.xlane.xlu0 %1786
      %v1788 = vsel %vm832, %v1766, 0.0
      %1789 = vadd.xlane.f32.xlu0 %v1788
      %v1790 = vpop.xlane.xlu0 %1789
      %v1791 = vrcp.pop %v1769
      %v1792 = vrcp.pop %v1772
      %v1793 = vrcp.pop %v1775
      %v1794 = vrcp.pop %v1778
      %v1795 = vrcp.pop %v1781
      %v1796 = vrcp.pop %v1784
      %v1797 = vrcp.pop %v1787
      %v1798 = vrcp.pop %v1790
      %v1799 = vmul.f32 %v1752, %v1791
      %v1800 = vmul.f32 %v1754, %v1792
      %v1801 = vmul.f32 %v1756, %v1793
      %v1802 = vmul.f32 %v1758, %v1794
      %v1803 = vmul.f32 %v1760, %v1795
      %v1804 = vmul.f32 %v1762, %v1796
      %v1805 = vmul.f32 %v1764, %v1797
      %v1806 = vmul.f32 %v1766, %v1798
      %v1807 = vpack.c.bf16 %v1800, %v1799
      %v1808 = vpack.c.bf16 %v1802, %v1801
      %v1809 = vpack.c.bf16 %v1804, %v1803
      %v1810 = vpack.c.bf16 %v1806, %v1805
      %1811 = vrot.lane.b32.xlu0 %v925, 32
      %v1812 = vpop.permute.xlu0 %1811
      %1813 = vrot.lane.b32.xlu0 %v926, 32
      %v1814 = vpop.permute.xlu0 %1813
      %1815 = vrot.lane.b32.xlu0 %v927, 32
      %v1816 = vpop.permute.xlu0 %1815
      %1817 = vrot.lane.b32.xlu0 %v928, 32
      %v1818 = vpop.permute.xlu0 %1817
      %v1824 = vsel %vm832, %v1807, 0
      %v1827 = vsel %vm832, %v1808, 0
      %v1830 = vsel %vm832, %v1809, 0
      %v1833 = vsel %vm832, %v1810, 0
      %1835 = vmatprep.subr.bf16.mxu0 0
      %1836 = vmatpush1.bf16.msra.mxu0 %v1812
      %1837 = vmatprep.subr.bf16.mxu0 0
      %1838 = vmatpush1.bf16.msra.mxu0 %v1814
      %1839 = vmatprep.subr.bf16.mxu0 0
      %1840 = vmatpush1.bf16.msra.mxu0 %v1816
      %1841 = vmatprep.subr.bf16.mxu0 0
      %1842 = vmatpush1.bf16.msra.mxu0 %v1818
      %1843 = vmatprep.subr.bf16.mxu0 0
      %1844 = vmatpush1.bf16.msra.mxu0 0
      %1845 = vmatprep.subr.bf16.mxu0 0
      %1846 = vmatpush1.bf16.msra.mxu0 0
      %1847 = vmatprep.subr.bf16.mxu0 0
      %1848 = vmatpush1.bf16.msra.mxu0 0
      %1849 = vmatprep.subr.bf16.mxu0 0
      %1850 = vmatpush1.bf16.msra.mxu0 0
      %1851 = vmatprep.subr.bf16.mxu0 0
      %1852 = vmatpush1.bf16.msra.mxu0 0
      %1853 = vmatprep.subr.bf16.mxu0 0
      %1854 = vmatpush1.bf16.msra.mxu0 0
      %1855 = vmatprep.subr.bf16.mxu0 0
      %1856 = vmatpush1.bf16.msra.mxu0 0
      %1857 = vmatprep.subr.bf16.mxu0 0
      %1858 = vmatpush1.bf16.msra.mxu0 0
      %1859 = vmatprep.subr.bf16.mxu0 0
      %1860 = vmatpush1.bf16.msra.mxu0 0
      %1861 = vmatprep.subr.bf16.mxu0 0
      %1862 = vmatpush1.bf16.msra.mxu0 0
      %1863 = vmatprep.subr.bf16.mxu0 0
      %1864 = vmatpush1.bf16.msra.mxu0 0
      %1865 = vmatprep.subr.bf16.mxu0 0
      %1866 = vmatpush1.bf16.msra.mxu0 0
      %1867 = vmatprep.mubr.bf16.mxu0 0
      %1868 = vmatmul.mubr.bf16.gmra.mrb[0].mxu0 %v1824
      %v1869 = vpop.f32.mrb[0].mxu0
      %v1870 = vadd.f32 0.0, %v1869
      %v1871 = vpop.f32.mrb[0].mxu0
      %v1872 = vpop.f32.mrb[0].mxu0
      %v1873 = vadd.f32 0.0, %v1872
      %v1874 = vpop.f32.mrb[0].mxu0
      %1875 = vmatprep.mubr.bf16.mxu0 0
      %1876 = vmatmul.mubr.bf16.gmra.mrb[0].mxu0 %v1827
      %v1877 = vpop.f32.mrb[0].mxu0
      %v1878 = vadd.f32 0.0, %v1877
      %v1879 = vpop.f32.mrb[0].mxu0
      %v1880 = vpop.f32.mrb[0].mxu0
      %v1881 = vadd.f32 0.0, %v1880
      %v1882 = vpop.f32.mrb[0].mxu0
      %1883 = vmatprep.mubr.bf16.mxu0 0
      %1884 = vmatmul.mubr.bf16.gmra.mrb[0].mxu0 %v1830
      %v1885 = vpop.f32.mrb[0].mxu0
      %v1886 = vadd.f32 0.0, %v1885
      %v1887 = vpop.f32.mrb[0].mxu0
      %v1888 = vpop.f32.mrb[0].mxu0
      %v1889 = vadd.f32 0.0, %v1888
      %v1890 = vpop.f32.mrb[0].mxu0
      %1891 = vmatprep.mubr.bf16.mxu0 0
      %1892 = vmatmul.mubr.bf16.gmra.mrb[0].mxu0 %v1833
      %v1893 = vpop.f32.mrb[0].mxu0
      %v1894 = vadd.f32 0.0, %v1893
      %v1895 = vpop.f32.mrb[0].mxu0
      %v1896 = vpop.f32.mrb[0].mxu0
      %v1897 = vadd.f32 0.0, %v1896
      %v1898 = vpop.f32.mrb[0].mxu0
      %1899 = vdwg.mxu0
      %1908 = vrot.lane.b32.xlu0 %v1282, 32
      %v1909 = vpop.permute.xlu0 %1908
      %1910 = vrot.lane.b32.xlu0 %v1285, 32
      %v1911 = vpop.permute.xlu0 %1910
      %1912 = vrot.lane.b32.xlu0 %v1290, 32
      %v1913 = vpop.permute.xlu0 %1912
      %1914 = vrot.lane.b32.xlu0 %v1293, 32
      %v1915 = vpop.permute.xlu0 %1914
      %1916 = vrot.lane.b32.xlu0 %v1298, 32
      %v1917 = vpop.permute.xlu0 %1916
      %1918 = vrot.lane.b32.xlu0 %v1301, 32
      %v1919 = vpop.permute.xlu0 %1918
      %1920 = vrot.lane.b32.xlu0 %v1306, 32
      %v1921 = vpop.permute.xlu0 %1920
      %1922 = vrot.lane.b32.xlu0 %v1309, 32
      %v1923 = vpop.permute.xlu0 %1922
      %1940 = vrot.lane.b32.xlu0 %v1576, 64
      %v1941 = vpop.permute.xlu0 %1940
      %1942 = vrot.lane.b32.xlu0 %v1579, 64
      %v1943 = vpop.permute.xlu0 %1942
      %1944 = vrot.lane.b32.xlu0 %v1584, 64
      %v1945 = vpop.permute.xlu0 %1944
      %1946 = vrot.lane.b32.xlu0 %v1587, 64
      %v1947 = vpop.permute.xlu0 %1946
      %1948 = vrot.lane.b32.xlu0 %v1592, 64
      %v1949 = vpop.permute.xlu0 %1948
      %1950 = vrot.lane.b32.xlu0 %v1595, 64
      %v1951 = vpop.permute.xlu0 %1950
      %1952 = vrot.lane.b32.xlu0 %v1600, 64
      %v1953 = vpop.permute.xlu0 %1952
      %1954 = vrot.lane.b32.xlu0 %v1603, 64
      %v1955 = vpop.permute.xlu0 %1954
      %1972 = vrot.lane.b32.xlu0 %v1870, 96
      %v1973 = vpop.permute.xlu0 %1972
      %1974 = vrot.lane.b32.xlu0 %v1873, 96
      %v1975 = vpop.permute.xlu0 %1974
      %1976 = vrot.lane.b32.xlu0 %v1878, 96
      %v1977 = vpop.permute.xlu0 %1976
      %1978 = vrot.lane.b32.xlu0 %v1881, 96
      %v1979 = vpop.permute.xlu0 %1978
      %1980 = vrot.lane.b32.xlu0 %v1886, 96
      %v1981 = vpop.permute.xlu0 %1980
      %1982 = vrot.lane.b32.xlu0 %v1889, 96
      %v1983 = vpop.permute.xlu0 %1982
      %1984 = vrot.lane.b32.xlu0 %v1894, 96
      %v1985 = vpop.permute.xlu0 %1984
      %1986 = vrot.lane.b32.xlu0 %v1897, 96
      %v1987 = vpop.permute.xlu0 %1986
      %v1996 = vsel %vm734, %v976, %v1909
      %v1997 = vsel %vm734, %v979, %v1911
      %v1998 = vsel %vm734, %v984, %v1913
      %v1999 = vsel %vm734, %v987, %v1915
      %v2000 = vsel %vm734, %v992, %v1917
      %v2001 = vsel %vm734, %v995, %v1919
      %v2002 = vsel %vm734, %v1000, %v1921
      %v2003 = vsel %vm734, %v1003, %v1923
      %v2004 = vsel %vm832, %v1996, %v1941
      %v2005 = vsel %vm832, %v1997, %v1943
      %v2006 = vsel %vm832, %v1998, %v1945
      %v2007 = vsel %vm832, %v1999, %v1947
      %v2008 = vsel %vm832, %v2000, %v1949
      %v2009 = vsel %vm832, %v2001, %v1951
      %v2010 = vsel %vm832, %v2002, %v1953
      %v2011 = vsel %vm832, %v2003, %v1955
      %vm2012 = vcmask 785408
      %v2013 = vsel %vm2012, %v2004, %v1973
      %v2014 = vsel %vm2012, %v2005, %v1975
      %v2015 = vsel %vm2012, %v2006, %v1977
      %v2016 = vsel %vm2012, %v2007, %v1979
      %v2017 = vsel %vm2012, %v2008, %v1981
      %v2018 = vsel %vm2012, %v2009, %v1983
      %v2019 = vsel %vm2012, %v2010, %v1985
      %v2020 = vsel %vm2012, %v2011, %v1987
      %v2021 = vpack.c.bf16 %v2014, %v2013
      %v2022 = vpack.c.bf16 %v2016, %v2015
      %v2023 = vpack.c.bf16 %v2018, %v2017
      %v2024 = vpack.c.bf16 %v2020, %v2019
      %v2025 = vld [vmem:[%s5] sm:$0xf]
      %v2026 = vld [vmem:[%s5 + $0x4] sm:$0xf]
      %v2027 = vld [vmem:[%s5 + $0x8] sm:$0xf]
      %v2028 = vld [vmem:[%s5 + $0xc] sm:$0xf]
      %v2029 = vld [vmem:[%s5 + $0x10] sm:$0xf]
      %v2030 = vld [vmem:[%s5 + $0x14] sm:$0xf]
      %v2031 = vld [vmem:[%s5 + $0x18] sm:$0xf]
      %v2032 = vld [vmem:[%s5 + $0x1c] sm:$0xf]
      %v2033 = vld [vmem:[%s5 + $0x20] sm:$0xf]
      %v2034 = vld [vmem:[%s5 + $0x24] sm:$0xf]
      %v2035 = vld [vmem:[%s5 + $0x28] sm:$0xf]
      %v2036 = vld [vmem:[%s5 + $0x2c] sm:$0xf]
      %v2037 = vld [vmem:[%s5 + $0x30] sm:$0xf]
      %v2038 = vld [vmem:[%s5 + $0x34] sm:$0xf]
      %v2039 = vld [vmem:[%s5 + $0x38] sm:$0xf]
      %v2040 = vld [vmem:[%s5 + $0x3c] sm:$0xf]
      %v2041 = vld [vmem:[%s6] sm:$0x1]
      %v2043 = vlaneseq
      %v2044 = vshrl.u32 %v2043, 7
      %v2045 = vsub.s32 0, %v2044
      %v2046 = vrot.slane %v2041, %v2045
      %v2064 = vunpack.c.l.b16 %v2025
      %v2065 = vunpack.c.l.b16 %v2026
      %v2066 = vunpack.c.l.b16 %v2027
      %v2067 = vunpack.c.l.b16 %v2028
      %v2068 = vunpack.c.l.b16 %v2029
      %v2069 = vunpack.c.l.b16 %v2030
      %v2070 = vunpack.c.l.b16 %v2031
      %v2071 = vunpack.c.l.b16 %v2032
      %v2072 = vunpack.c.l.b16 %v2033
      %v2073 = vunpack.c.l.b16 %v2034
      %v2074 = vunpack.c.l.b16 %v2035
      %v2075 = vunpack.c.l.b16 %v2036
      %v2076 = vunpack.c.l.b16 %v2037
      %v2077 = vunpack.c.l.b16 %v2038
      %v2078 = vunpack.c.l.b16 %v2039
      %v2079 = vunpack.c.l.b16 %v2040
      %v2080 = vpack.c.b16 %v2065, %v2064
      %v2081 = vpack.c.b16 %v2067, %v2066
      %v2082 = vpack.c.b16 %v2069, %v2068
      %v2083 = vpack.c.b16 %v2071, %v2070
      %v2084 = vpack.c.b16 %v2073, %v2072
      %v2085 = vpack.c.b16 %v2075, %v2074
      %v2086 = vpack.c.b16 %v2077, %v2076
      %v2087 = vpack.c.b16 %v2079, %v2078
      %2096 = vmatprep.subr.bf16.mxu0 0
      %2097 = vmatpush1.bf16.msra.mxu0 %v2080
      %2098 = vmatprep.subr.bf16.mxu0 0
      %2099 = vmatpush1.bf16.msra.mxu0 %v2081
      %2100 = vmatprep.subr.bf16.mxu0 0
      %2101 = vmatpush1.bf16.msra.mxu0 %v2082
      %2102 = vmatprep.subr.bf16.mxu0 0
      %2103 = vmatpush1.bf16.msra.mxu0 %v2083
      %2104 = vmatprep.subr.bf16.mxu0 0
      %2105 = vmatpush1.bf16.msra.mxu0 %v2084
      %2106 = vmatprep.subr.bf16.mxu0 0
      %2107 = vmatpush1.bf16.msra.mxu0 %v2085
      %2108 = vmatprep.subr.bf16.mxu0 0
      %2109 = vmatpush1.bf16.msra.mxu0 %v2086
      %2110 = vmatprep.subr.bf16.mxu0 0
      %2111 = vmatpush1.bf16.msra.mxu0 %v2087
      %2112 = vmatprep.subr.bf16.mxu0 0
      %2113 = vmatpush1.bf16.msra.mxu0 0
      %2114 = vmatprep.subr.bf16.mxu0 0
      %2115 = vmatpush1.bf16.msra.mxu0 0
      %2116 = vmatprep.subr.bf16.mxu0 0
      %2117 = vmatpush1.bf16.msra.mxu0 0
      %2118 = vmatprep.subr.bf16.mxu0 0
      %2119 = vmatpush1.bf16.msra.mxu0 0
      %2120 = vmatprep.subr.bf16.mxu0 0
      %2121 = vmatpush1.bf16.msra.mxu0 0
      %2122 = vmatprep.subr.bf16.mxu0 0
      %2123 = vmatpush1.bf16.msra.mxu0 0
      %2124 = vmatprep.subr.bf16.mxu0 0
      %2125 = vmatpush1.bf16.msra.mxu0 0
      %2126 = vmatprep.subr.bf16.mxu0 0
      %2127 = vmatpush1.bf16.msra.mxu0 0
      %2128 = vmatprep.mubr.bf16.mxu0 0
      %2129 = vmatmul.mubr.bf16.gmra.mrb[0].mxu0 %v2021
      %v2130 = vpop.f32.mrb[0].mxu0
      %v2131 = vadd.f32 %v2046, %v2130
      %v2132 = vpop.f32.mrb[0].mxu0
      %v2133 = vpop.f32.mrb[0].mxu0
      %v2134 = vadd.f32 %v2046, %v2133
      %v2135 = vpop.f32.mrb[0].mxu0
      %2136 = vmatprep.mubr.bf16.mxu0 0
      %2137 = vmatmul.mubr.bf16.gmra.mrb[0].mxu0 %v2022
      %v2138 = vpop.f32.mrb[0].mxu0
      %v2139 = vadd.f32 %v2046, %v2138
      %v2140 = vpop.f32.mrb[0].mxu0
      %v2141 = vpop.f32.mrb[0].mxu0
      %v2142 = vadd.f32 %v2046, %v2141
      %v2143 = vpop.f32.mrb[0].mxu0
      %2144 = vmatprep.mubr.bf16.mxu0 0
      %2145 = vmatmul.mubr.bf16.gmra.mrb[0].mxu0 %v2023
      %v2146 = vpop.f32.mrb[0].mxu0
      %v2147 = vadd.f32 %v2046, %v2146
      %v2148 = vpop.f32.mrb[0].mxu0
      %v2149 = vpop.f32.mrb[0].mxu0
      %v2150 = vadd.f32 %v2046, %v2149
      %v2151 = vpop.f32.mrb[0].mxu0
      %2152 = vmatprep.mubr.bf16.mxu0 0
      %2153 = vmatmul.mubr.bf16.gmra.mrb[0].mxu0 %v2024
      %v2154 = vpop.f32.mrb[0].mxu0
      %v2155 = vadd.f32 %v2046, %v2154
      %v2156 = vpop.f32.mrb[0].mxu0
      %v2157 = vpop.f32.mrb[0].mxu0
      %v2158 = vadd.f32 %v2046, %v2157
      %v2159 = vpop.f32.mrb[0].mxu0
      %2160 = vdwg.mxu0
      %v2161 = vadd.f32 %v280, %v2131
      %v2162 = vadd.f32 %v281, %v2134
      %v2163 = vadd.f32 %v282, %v2139
      %v2164 = vadd.f32 %v283, %v2142
      %v2165 = vadd.f32 %v284, %v2147
      %v2166 = vadd.f32 %v285, %v2150
      %v2167 = vadd.f32 %v286, %v2155
      %v2168 = vadd.f32 %v287, %v2158
      %2169 = vst [vmem:[%s278] sm:$0xff] %v2161
      %2170 = vst [vmem:[%s278 + $0x8] sm:$0xff] %v2162
      %2171 = vst [vmem:[%s278 + $0x10] sm:$0xff] %v2163
      %2172 = vst [vmem:[%s278 + $0x18] sm:$0xff] %v2164
      %2173 = vst [vmem:[%s278 + $0x20] sm:$0xff] %v2165
      %2174 = vst [vmem:[%s278 + $0x28] sm:$0xff] %v2166
      %2175 = vst [vmem:[%s278 + $0x30] sm:$0xff] %v2167
      %2176 = vst [vmem:[%s278 + $0x38] sm:$0xff] %v2168
      %p2177 = scmp.lt.s32.totalorder %s18, 1
      %s2178 = scalar_select %p2177, %s18, 1
      %s2179 = smul.addr %s2178, 8
      %s2180 = smul.addr %s2179, 8
      %s2181 = scalar_lea.vmem %s7, %s2180
      // Predicated region
      $region49: #{_lambda_.11} parent=47 // pred_check
        %p2182 = pneg %p188
      $region50: #{_lambda_.11} parent=47 // pred_check_branch
        %2184 = sbr.rel (%p2182) target = $region52
      $region51: #{_lambda_.11} parent=47 // pred_region
        _
      $region52: #{_lambda_.11} parent=47 // pred_fallthru
        _
    $region48: #{_lambda_.11} parent=5 // pred_fallthru
      _
    %p2185 = scmp.le.s32.totalorder 2, %s13
    // Predicated region
    $region53: #{_lambda_.11} parent=5 // pred_check
      %p2186 = pneg %p2185
    $region54: #{_lambda_.11} parent=5 // pred_check_branch
      %2188 = sbr.rel (%p2186) target = $region56
    $region55: #{_lambda_.11} parent=5 // pred_region
      %s2189 = ssub.s32 %s13, 2
      // Predicated region
      $region57: #{_lambda_.11} parent=55 // pred_check
        %p2190 = pneg %p194
      $region58: #{_lambda_.11} parent=55 // pred_check_branch
        %2192 = sbr.rel (%p2190) target = $region60
      $region59: #{_lambda_.11} parent=55 // pred_region
        %p2193 = scmp.lt.s32.totalorder %s19, 1
        %s2194 = scalar_select %p2193, %s19, 1
        %s2195 = smul.addr %s2194, 8
        %s2196 = smul.addr %s2195, 8
        %s2197 = scalar_lea.vmem %s7, %s2196
      $region60: #{_lambda_.11} parent=55 // pred_fallthru
        _
    $region56: #{_lambda_.11} parent=5 // pred_fallthru
      _
  $region6: #{_lambda_.11} parent=0 // loop_footer
    %s17 = sadd.s32 1, %s13
  $region7: #{_lambda_.11} parent=0 // loop_footer_branch
    %12 = sbr.rel target = $region3
  $region8: #{_lambda_.11} parent=0 // loop_exit
    _

// kernel: _lambda_.12
$region0: #{_lambda_.12}
  #allocation0 [shape = 'u32[]', space=smem, size = 0x4, offset = 0x4, fixed_abs, tag = 'smem constant byte address 0x4 - core index']
  #allocation1 [shape = 'u32[144,128]{1,0:T(1,128)}', space=vmem, size = 0x12000, scoped, tag = 'internal scratch']
  %s0 = inlined_call_operand.vmem [shape: f32[2,64,128], index: 0, kind: input, shape index: {}]
  %s1 = inlined_call_operand.vmem [shape: f32[1,128], index: 1, kind: input, shape index: {}]
  %s2 = inlined_call_operand.vmem [shape: f32[1,128], index: 2, kind: input, shape index: {}, may-alias: {2,6}]
  %s3 = inlined_call_operand.vmem [shape: bf16[128,256], index: 3, kind: input, shape index: {}]
  %s4 = inlined_call_operand.vmem [shape: f32[1,256], index: 4, kind: input, shape index: {}]
  %s5 = inlined_call_operand.vmem [shape: bf16[256,128], index: 5, kind: input, shape index: {}]
  %s6 = inlined_call_operand.vmem [shape: f32[1,128], index: 6, kind: input, shape index: {}, may-alias: {2,6}]
  %s7 = inlined_call_operand.vmem [shape: f32[2,64,128], index: 7, kind: output, shape index: {}]
  %s8 = sld [smem:[#allocation0]]
  $region61: #{_lambda_.12} parent=0
    _
  %s10 = ssub.s32 1, %s8
  %s11 = scalar_select 0, %s10, %s8
  loop: start=0, step=1, limit=4
  $region2: #{_lambda_.12} parent=0 // loop_pre_header
    _
  $region3: #{_lambda_.12} parent=0 // loop_header
    %s13 = sphi 0, %s17
    %p14 = scmp.ge.s32.totalorder %s13, 4
    %s23 = sphi 0, %s25
    %s26 = sphi 0, %s23
    %s27 = sphi 0, %s26
    %s43 = sphi 0, %s27
    %s47 = sphi 0, %s47
    %s49 = sphi 0, %s47
    %s50 = sphi 0, %s49
    %s64 = sphi 0, %s50
    %s68 = sphi 0, %s68
    %s70 = sphi 0, %s68
    %s71 = sphi 0, %s70
    %s85 = sphi 0, %s71
    %s89 = sphi 0, %s89
    %s91 = sphi 0, %s89
    %s92 = sphi 0, %s91
    %s106 = sphi 0, %s92
    %s110 = sphi 0, %s110
    %s112 = sphi 0, %s110
    %s113 = sphi 0, %s112
    %s127 = sphi 0, %s113
    %s131 = sphi 0, %s131
    %s133 = sphi 0, %s131
    %s134 = sphi 0, %s133
    %s148 = sphi 0, %s134
    %s152 = sphi 0, %s152
    %s154 = sphi 0, %s152
    %s155 = sphi 0, %s154
    %s169 = sphi 0, %s155
    %s175 = sphi 0, %s177
    %s178 = sphi 0, %s175
    %s179 = sphi 0, %s178
    %s195 = sphi 0, %s179
  $region4: #{_lambda_.12} parent=0 // loop_header_branch
    %16 = sbr.rel (%p14) target = $region8
  $region5: #{_lambda_.12} parent=0 // loop_body
    %s18 = ssub.s32 %s13, 1
    %s19 = ssub.s32 %s13, 2
    %s20 = sadd.s32 %s13, 1
    %s21 = ssub.s32 %s13, %s20
    %p22 = scmp.eq.s32.totalorder %s21, 0
    %s24 = sadd.s32 %s23, 1
    %s25 = scalar_select %p22, %s23, %s24
    %p28 = pneg %p22
    %p29 = scmp.eq.s32.totalorder %s13, 1
    %p30 = por %p28, %p29
    %p31 = scmp.ne.s32.totalorder %s23, %s26
    %p32 = scmp.eq.s32.totalorder %s13, 0
    %p33 = por %p31, %p32
    %p34 = scmp.ne.s32.totalorder %s23, %s26
    %p35 = scmp.eq.s32.totalorder %s18, 1
    %p36 = por %p34, %p35
    %p37 = scmp.ne.s32.totalorder %s26, %s27
    %p38 = scmp.eq.s32.totalorder %s18, 0
    %p39 = por %p37, %p38
    %p40 = scmp.ne.s32.totalorder %s26, %s27
    %p41 = scmp.eq.s32.totalorder %s19, 1
    %p42 = por %p40, %p41
    %p44 = scmp.ne.s32.totalorder %s27, %s43
    %p45 = scmp.eq.s32.totalorder %s19, 0
    %p46 = por %p44, %p45
    %s48 = sadd.s32 %s47, 1
    %p51 = scmp.eq.s32.totalorder %s13, 1
    %p52 = scmp.ne.s32.totalorder %s47, %s49
    %p53 = scmp.eq.s32.totalorder %s13, 0
    %p54 = por %p52, %p53
    %p55 = scmp.ne.s32.totalorder %s47, %s49
    %p56 = scmp.eq.s32.totalorder %s18, 1
    %p57 = por %p55, %p56
    %p58 = scmp.ne.s32.totalorder %s49, %s50
    %p59 = scmp.eq.s32.totalorder %s18, 0
    %p60 = por %p58, %p59
    %p61 = scmp.ne.s32.totalorder %s49, %s50
    %p62 = scmp.eq.s32.totalorder %s19, 1
    %p63 = por %p61, %p62
    %p65 = scmp.ne.s32.totalorder %s50, %s64
    %p66 = scmp.eq.s32.totalorder %s19, 0
    %p67 = por %p65, %p66
    %s69 = sadd.s32 %s68, 1
    %p72 = scmp.eq.s32.totalorder %s13, 1
    %p73 = scmp.ne.s32.totalorder %s68, %s70
    %p74 = scmp.eq.s32.totalorder %s13, 0
    %p75 = por %p73, %p74
    %p76 = scmp.ne.s32.totalorder %s68, %s70
    %p77 = scmp.eq.s32.totalorder %s18, 1
    %p78 = por %p76, %p77
    %p79 = scmp.ne.s32.totalorder %s70, %s71
    %p80 = scmp.eq.s32.totalorder %s18, 0
    %p81 = por %p79, %p80
    %p82 = scmp.ne.s32.totalorder %s70, %s71
    %p83 = scmp.eq.s32.totalorder %s19, 1
    %p84 = por %p82, %p83
    %p86 = scmp.ne.s32.totalorder %s71, %s85
    %p87 = scmp.eq.s32.totalorder %s19, 0
    %p88 = por %p86, %p87
    %s90 = sadd.s32 %s89, 1
    %p93 = scmp.eq.s32.totalorder %s13, 1
    %p94 = scmp.ne.s32.totalorder %s89, %s91
    %p95 = scmp.eq.s32.totalorder %s13, 0
    %p96 = por %p94, %p95
    %p97 = scmp.ne.s32.totalorder %s89, %s91
    %p98 = scmp.eq.s32.totalorder %s18, 1
    %p99 = por %p97, %p98
    %p100 = scmp.ne.s32.totalorder %s91, %s92
    %p101 = scmp.eq.s32.totalorder %s18, 0
    %p102 = por %p100, %p101
    %p103 = scmp.ne.s32.totalorder %s91, %s92
    %p104 = scmp.eq.s32.totalorder %s19, 1
    %p105 = por %p103, %p104
    %p107 = scmp.ne.s32.totalorder %s92, %s106
    %p108 = scmp.eq.s32.totalorder %s19, 0
    %p109 = por %p107, %p108
    %s111 = sadd.s32 %s110, 1
    %p114 = scmp.eq.s32.totalorder %s13, 1
    %p115 = scmp.ne.s32.totalorder %s110, %s112
    %p116 = scmp.eq.s32.totalorder %s13, 0
    %p117 = por %p115, %p116
    %p118 = scmp.ne.s32.totalorder %s110, %s112
    %p119 = scmp.eq.s32.totalorder %s18, 1
    %p120 = por %p118, %p119
    %p121 = scmp.ne.s32.totalorder %s112, %s113
    %p122 = scmp.eq.s32.totalorder %s18, 0
    %p123 = por %p121, %p122
    %p124 = scmp.ne.s32.totalorder %s112, %s113
    %p125 = scmp.eq.s32.totalorder %s19, 1
    %p126 = por %p124, %p125
    %p128 = scmp.ne.s32.totalorder %s113, %s127
    %p129 = scmp.eq.s32.totalorder %s19, 0
    %p130 = por %p128, %p129
    %s132 = sadd.s32 %s131, 1
    %p135 = scmp.eq.s32.totalorder %s13, 1
    %p136 = scmp.ne.s32.totalorder %s131, %s133
    %p137 = scmp.eq.s32.totalorder %s13, 0
    %p138 = por %p136, %p137
    %p139 = scmp.ne.s32.totalorder %s131, %s133
    %p140 = scmp.eq.s32.totalorder %s18, 1
    %p141 = por %p139, %p140
    %p142 = scmp.ne.s32.totalorder %s133, %s134
    %p143 = scmp.eq.s32.totalorder %s18, 0
    %p144 = por %p142, %p143
    %p145 = scmp.ne.s32.totalorder %s133, %s134
    %p146 = scmp.eq.s32.totalorder %s19, 1
    %p147 = por %p145, %p146
    %p149 = scmp.ne.s32.totalorder %s134, %s148
    %p150 = scmp.eq.s32.totalorder %s19, 0
    %p151 = por %p149, %p150
    %s153 = sadd.s32 %s152, 1
    %p156 = scmp.eq.s32.totalorder %s13, 1
    %p157 = scmp.ne.s32.totalorder %s152, %s154
    %p158 = scmp.eq.s32.totalorder %s13, 0
    %p159 = por %p157, %p158
    %p160 = scmp.ne.s32.totalorder %s152, %s154
    %p161 = scmp.eq.s32.totalorder %s18, 1
    %p162 = por %p160, %p161
    %p163 = scmp.ne.s32.totalorder %s154, %s155
    %p164 = scmp.eq.s32.totalorder %s18, 0
    %p165 = por %p163, %p164
    %p166 = scmp.ne.s32.totalorder %s154, %s155
    %p167 = scmp.eq.s32.totalorder %s19, 1
    %p168 = por %p166, %p167
    %p170 = scmp.ne.s32.totalorder %s155, %s169
    %p171 = scmp.eq.s32.totalorder %s19, 0
    %p172 = por %p170, %p171
    %s173 = ssub.s32 %s13, %s20
    %p174 = scmp.eq.s32.totalorder %s173, 0
    %s176 = sadd.s32 %s175, 1
    %s177 = scalar_select %p174, %s175, %s176
    %p180 = pneg %p174
    %p181 = scmp.eq.s32.totalorder %s13, 1
    %p182 = por %p180, %p181
    %p183 = scmp.ne.s32.totalorder %s175, %s178
    %p184 = scmp.eq.s32.totalorder %s13, 0
    %p185 = por %p183, %p184
    %p186 = scmp.ne.s32.totalorder %s175, %s178
    %p187 = scmp.eq.s32.totalorder %s18, 1
    %p188 = por %p186, %p187
    %p189 = scmp.ne.s32.totalorder %s178, %s179
    %p190 = scmp.eq.s32.totalorder %s18, 0
    %p191 = por %p189, %p190
    %p192 = scmp.ne.s32.totalorder %s178, %s179
    %p193 = scmp.eq.s32.totalorder %s19, 1
    %p194 = por %p192, %p193
    %p196 = scmp.ne.s32.totalorder %s179, %s195
    %p197 = scmp.eq.s32.totalorder %s19, 0
    %p198 = por %p196, %p197
    %p199 = scmp.le.s32.totalorder 1, %s13
    %p200 = scmp.lt.s32.totalorder %s13, 3
    %p201 = pnand %p199, %p200
    %p202 = pneg %p201
    // Predicated region
    $region9: #{_lambda_.12} parent=5 // pred_check
      _
    $region10: #{_lambda_.12} parent=5 // pred_check_branch
      %204 = sbr.rel (%p201) target = $region12
    $region11: #{_lambda_.12} parent=5 // pred_region
      %s205 = ssub.s32 %s13, 1
      // Predicated region
      $region13: #{_lambda_.12} parent=11 // pred_check
        %p206 = pneg %p60
      $region14: #{_lambda_.12} parent=11 // pred_check_branch
        %208 = sbr.rel (%p206) target = $region16
      $region15: #{_lambda_.12} parent=11 // pred_region
        _
      $region16: #{_lambda_.12} parent=11 // pred_fallthru
        _
      // Predicated region
      $region17: #{_lambda_.12} parent=11 // pred_check
        %p209 = pneg %p81
      $region18: #{_lambda_.12} parent=11 // pred_check_branch
        %211 = sbr.rel (%p209) target = $region20
      $region19: #{_lambda_.12} parent=11 // pred_region
        _
      $region20: #{_lambda_.12} parent=11 // pred_fallthru
        _
      // Predicated region
      $region21: #{_lambda_.12} parent=11 // pred_check
        %p212 = pneg %p102
      $region22: #{_lambda_.12} parent=11 // pred_check_branch
        %214 = sbr.rel (%p212) target = $region24
      $region23: #{_lambda_.12} parent=11 // pred_region
        _
      $region24: #{_lambda_.12} parent=11 // pred_fallthru
        _
      // Predicated region
      $region25: #{_lambda_.12} parent=11 // pred_check
        %p215 = pneg %p123
      $region26: #{_lambda_.12} parent=11 // pred_check_branch
        %217 = sbr.rel (%p215) target = $region28
      $region27: #{_lambda_.12} parent=11 // pred_region
        _
      $region28: #{_lambda_.12} parent=11 // pred_fallthru
        _
      // Predicated region
      $region29: #{_lambda_.12} parent=11 // pred_check
        %p218 = pneg %p144
      $region30: #{_lambda_.12} parent=11 // pred_check_branch
        %220 = sbr.rel (%p218) target = $region32
      $region31: #{_lambda_.12} parent=11 // pred_region
        _
      $region32: #{_lambda_.12} parent=11 // pred_fallthru
        _
      // Predicated region
      $region33: #{_lambda_.12} parent=11 // pred_check
        %p221 = pneg %p165
      $region34: #{_lambda_.12} parent=11 // pred_check_branch
        %223 = sbr.rel (%p221) target = $region36
      $region35: #{_lambda_.12} parent=11 // pred_region
        _
      $region36: #{_lambda_.12} parent=11 // pred_fallthru
        _
    $region12: #{_lambda_.12} parent=5 // pred_fallthru
      _
    %p224 = scmp.lt.s32.totalorder %s13, 2
    // Predicated region
    $region37: #{_lambda_.12} parent=5 // pred_check
      %p225 = pneg %p224
    $region38: #{_lambda_.12} parent=5 // pred_check_branch
      %227 = sbr.rel (%p225) target = $region40
    $region39: #{_lambda_.12} parent=5 // pred_region
      // Predicated region
      $region41: #{_lambda_.12} parent=39 // pred_check
        %p228 = pneg %p33
      $region42: #{_lambda_.12} parent=39 // pred_check_branch
        %230 = sbr.rel (%p228) target = $region44
      $region43: #{_lambda_.12} parent=39 // pred_region
        %p231 = scmp.lt.s32.totalorder %s13, 1
        %s232 = scalar_select %p231, %s13, 1
        %s233 = smul.addr %s232, 8
        %s234 = smul.addr %s233, 8
        %s235 = scalar_lea.vmem %s0, %s234
      $region44: #{_lambda_.12} parent=39 // pred_fallthru
        _
    $region40: #{_lambda_.12} parent=5 // pred_fallthru
      _
    %p236 = scmp.le.s32.totalorder 1, %s13
    %p237 = scmp.lt.s32.totalorder %s13, 3
    %p238 = pnand %p236, %p237
    %p239 = pneg %p238
    // Predicated region
    $region45: #{_lambda_.12} parent=5 // pred_check
      _
    $region46: #{_lambda_.12} parent=5 // pred_check_branch
      %241 = sbr.rel (%p238) target = $region48
    $region47: #{_lambda_.12} parent=5 // pred_region
      %s242 = ssub.s32 %s13, 1
      %p243 = scmp.lt.s32.totalorder %s18, 1
      %s244 = scalar_select %p243, %s18, 1
      %s245 = smul.addr %s244, 8
      %s246 = smul.addr %s245, 8
      %s247 = scalar_lea.vmem %s0, %s246
      %p248 = pneg %p39
      %p249 = pneg %p36
      %p250 = pneg %p60
      %p251 = pneg %p57
      %p252 = pneg %p81
      %p253 = pneg %p78
      %p254 = pneg %p102
      %p255 = pneg %p99
      %p256 = pneg %p123
      %p257 = pneg %p120
      %p258 = pneg %p144
      %p259 = pneg %p141
      %p260 = pneg %p165
      %p261 = pneg %p162
      %p262 = pneg %p191
      %p263 = pneg %p188
      %p264 = scmp.lt.s32.totalorder %s18, 1
      %s265 = scalar_select %p264, %s18, 1
      %s266 = smul.addr %s265, 8
      %s267 = smul.addr %s266, 8
      %s268 = scalar_lea.vmem %s7, %s267
      %p269 = scmp.lt.s32.totalorder %s18, 1
      %s270 = scalar_select %p269, %s18, 1
      %s271 = smul.addr %s270, 8
      %s272 = smul.addr %s271, 8
      %s273 = scalar_lea.vmem %s0, %s272
      %p274 = scmp.lt.s32.totalorder %s18, 1
      %s275 = scalar_select %p274, %s18, 1
      %s276 = smul.addr %s275, 8
      %s277 = smul.addr %s276, 8
      %s278 = scalar_lea.vmem %s7, %s277
      %v280 = vld [vmem:[%s273] sm:$0xff]
      %v281 = vld [vmem:[%s273 + $0x8] sm:$0xff]
      %v282 = vld [vmem:[%s273 + $0x10] sm:$0xff]
      %v283 = vld [vmem:[%s273 + $0x18] sm:$0xff]
      %v284 = vld [vmem:[%s273 + $0x20] sm:$0xff]
      %v285 = vld [vmem:[%s273 + $0x28] sm:$0xff]
      %v286 = vld [vmem:[%s273 + $0x30] sm:$0xff]
      %v287 = vld [vmem:[%s273 + $0x38] sm:$0xff]
      %v288 = vld [vmem:[%s1] sm:$0x1]
      %v289 = vld [vmem:[%s2] sm:$0x1]
      %290 = vadd.xlane.f32.xlu0 %v280
      %v291 = vpop.xlane.xlu0 %290
      %292 = vadd.xlane.f32.xlu0 %v281
      %v293 = vpop.xlane.xlu0 %292
      %294 = vadd.xlane.f32.xlu0 %v282
      %v295 = vpop.xlane.xlu0 %294
      %296 = vadd.xlane.f32.xlu0 %v283
      %v297 = vpop.xlane.xlu0 %296
      %298 = vadd.xlane.f32.xlu0 %v284
      %v299 = vpop.xlane.xlu0 %298
      %300 = vadd.xlane.f32.xlu0 %v285
      %v301 = vpop.xlane.xlu0 %300
      %302 = vadd.xlane.f32.xlu0 %v286
      %v303 = vpop.xlane.xlu0 %302
      %304 = vadd.xlane.f32.xlu0 %v287
      %v305 = vpop.xlane.xlu0 %304
      %v306 = vrcp.pop 128.0
      %v307 = vmul.f32 %v291, %v306
      %v308 = vmul.f32 %v293, %v306
      %v309 = vmul.f32 %v295, %v306
      %v310 = vmul.f32 %v297, %v306
      %v311 = vmul.f32 %v299, %v306
      %v312 = vmul.f32 %v301, %v306
      %v313 = vmul.f32 %v303, %v306
      %v314 = vmul.f32 %v305, %v306
      %v315 = vsub.f32 %v280, %v307
      %v316 = vsub.f32 %v281, %v308
      %v317 = vsub.f32 %v282, %v309
      %v318 = vsub.f32 %v283, %v310
      %v319 = vsub.f32 %v284, %v311
      %v320 = vsub.f32 %v285, %v312
      %v321 = vsub.f32 %v286, %v313
      %v322 = vsub.f32 %v287, %v314
      %v323 = vmul.f32 %v315, %v315
      %v324 = vmul.f32 %v316, %v316
      %v325 = vmul.f32 %v317, %v317
      %v326 = vmul.f32 %v318, %v318
      %v327 = vmul.f32 %v319, %v319
      %v328 = vmul.f32 %v320, %v320
      %v329 = vmul.f32 %v321, %v321
      %v330 = vmul.f32 %v322, %v322
      %331 = vadd.xlane.f32.xlu0 %v323
      %v332 = vpop.xlane.xlu0 %331
      %333 = vadd.xlane.f32.xlu0 %v324
      %v334 = vpop.xlane.xlu0 %333
      %335 = vadd.xlane.f32.xlu0 %v325
      %v336 = vpop.xlane.xlu0 %335
      %337 = vadd.xlane.f32.xlu0 %v326
      %v338 = vpop.xlane.xlu0 %337
      %339 = vadd.xlane.f32.xlu0 %v327
      %v340 = vpop.xlane.xlu0 %339
      %341 = vadd.xlane.f32.xlu0 %v328
      %v342 = vpop.xlane.xlu0 %341
      %343 = vadd.xlane.f32.xlu0 %v329
      %v344 = vpop.xlane.xlu0 %343
      %345 = vadd.xlane.f32.xlu0 %v330
      %v346 = vpop.xlane.xlu0 %345
      %v347 = vmul.f32 %v332, %v306
      %v348 = vmul.f32 %v334, %v306
      %v349 = vmul.f32 %v336, %v306
      %v350 = vmul.f32 %v338, %v306
      %v351 = vmul.f32 %v340, %v306
      %v352 = vmul.f32 %v342, %v306
      %v353 = vmul.f32 %v344, %v306
      %v354 = vmul.f32 %v346, %v306
      %v355 = vadd.f32 %v347, 1e-05
      %v356 = vadd.f32 %v348, 1e-05
      %v357 = vadd.f32 %v349, 1e-05
      %v358 = vadd.f32 %v350, 1e-05
      %v359 = vadd.f32 %v351, 1e-05
      %v360 = vadd.f32 %v352, 1e-05
      %v361 = vadd.f32 %v353, 1e-05
      %v362 = vadd.f32 %v354, 1e-05
      %v363 = vrsqrt.pop %v355
      %v364 = vrsqrt.pop %v356
      %v365 = vrsqrt.pop %v357
      %v366 = vrsqrt.pop %v358
      %v367 = vrsqrt.pop %v359
      %v368 = vrsqrt.pop %v360
      %v369 = vrsqrt.pop %v361
      %v370 = vrsqrt.pop %v362
      %v371 = vmul.f32 %v315, %v363
      %v372 = vmul.f32 %v316, %v364
      %v373 = vmul.f32 %v317, %v365
      %v374 = vmul.f32 %v318, %v366
      %v375 = vmul.f32 %v319, %v367
      %v376 = vmul.f32 %v320, %v368
      %v377 = vmul.f32 %v321, %v369
      %v378 = vmul.f32 %v322, %v370
      %v380 = vlaneseq
      %v381 = vshrl.u32 %v380, 7
      %v382 = vsub.s32 0, %v381
      %v383 = vrot.slane %v288, %v382
      %v385 = vmul.f32 %v371, %v383
      %v386 = vmul.f32 %v372, %v383
      %v387 = vmul.f32 %v373, %v383
      %v388 = vmul.f32 %v374, %v383
      %v389 = vmul.f32 %v375, %v383
      %v390 = vmul.f32 %v376, %v383
      %v391 = vmul.f32 %v377, %v383
      %v392 = vmul.f32 %v378, %v383
      %v394 = vlaneseq
      %v395 = vshrl.u32 %v394, 7
      %v396 = vsub.s32 0, %v395
      %v397 = vrot.slane %v289, %v396
      %v399 = vadd.f32 %v385, %v397
      %v400 = vadd.f32 %v386, %v397
      %v401 = vadd.f32 %v387, %v397
      %v402 = vadd.f32 %v388, %v397
      %v403 = vadd.f32 %v389, %v397
      %v404 = vadd.f32 %v390, %v397
      %v405 = vadd.f32 %v391, %v397
      %v406 = vadd.f32 %v392, %v397
      %v407 = vpack.c.bf16 %v400, %v399
      %v408 = vpack.c.bf16 %v402, %v401
      %v409 = vpack.c.bf16 %v404, %v403
      %v410 = vpack.c.bf16 %v406, %v405
      %v411 = vld [vmem:[%s3] sm:$0xff]
      %v412 = vld [vmem:[%s3 + $0x8] sm:$0xff]
      %v413 = vld [vmem:[%s3 + $0x10] sm:$0xff]
      %v414 = vld [vmem:[%s3 + $0x18] sm:$0xff]
      %v415 = vld [vmem:[%s3 + $0x20] sm:$0xff]
      %v416 = vld [vmem:[%s3 + $0x28] sm:$0xff]
      %v417 = vld [vmem:[%s3 + $0x30] sm:$0xff]
      %v418 = vld [vmem:[%s3 + $0x38] sm:$0xff]
      %v419 = vld [vmem:[%s3 + $0x40] sm:$0xff]
      %v420 = vld [vmem:[%s3 + $0x48] sm:$0xff]
      %v421 = vld [vmem:[%s3 + $0x50] sm:$0xff]
      %v422 = vld [vmem:[%s3 + $0x58] sm:$0xff]
      %v423 = vld [vmem:[%s3 + $0x60] sm:$0xff]
      %v424 = vld [vmem:[%s3 + $0x68] sm:$0xff]
      %v425 = vld [vmem:[%s3 + $0x70] sm:$0xff]
      %v426 = vld [vmem:[%s3 + $0x78] sm:$0xff]
      %v427 = vld [vmem:[%s4] sm:$0x3]
      %v429 = vlaneseq
      %v430 = vshrl.u32 %v429, 7
      %v431 = vsub.s32 0, %v430
      %v432 = vrot.slane %v427, %v431
      %v433 = vlaneseq
      %v434 = vshrl.u32 %v433, 7
      %v435 = vsub.s32 1, %v434
      %v436 = vrot.slane %v427, %v435
      %v455 = vunpack.c.l.b16 %v411
      %v456 = vunpack.c.h.b16 %v411
      %v457 = vunpack.c.l.b16 %v412
      %v458 = vunpack.c.h.b16 %v412
      %v459 = vunpack.c.l.b16 %v413
      %v460 = vunpack.c.h.b16 %v413
      %v461 = vunpack.c.l.b16 %v414
      %v462 = vunpack.c.h.b16 %v414
      %v463 = vunpack.c.l.b16 %v415
      %v464 = vunpack.c.h.b16 %v415
      %v465 = vunpack.c.l.b16 %v416
      %v466 = vunpack.c.h.b16 %v416
      %v467 = vunpack.c.l.b16 %v417
      %v468 = vunpack.c.h.b16 %v417
      %v469 = vunpack.c.l.b16 %v418
      %v470 = vunpack.c.h.b16 %v418
      %v471 = vunpack.c.l.b16 %v419
      %v472 = vunpack.c.h.b16 %v419
      %v473 = vunpack.c.l.b16 %v420
      %v474 = vunpack.c.h.b16 %v420
      %v475 = vunpack.c.l.b16 %v421
      %v476 = vunpack.c.h.b16 %v421
      %v477 = vunpack.c.l.b16 %v422
      %v478 = vunpack.c.h.b16 %v422
      %v479 = vunpack.c.l.b16 %v423
      %v480 = vunpack.c.h.b16 %v423
      %v481 = vunpack.c.l.b16 %v424
      %v482 = vunpack.c.h.b16 %v424
      %v483 = vunpack.c.l.b16 %v425
      %v484 = vunpack.c.h.b16 %v425
      %v485 = vunpack.c.l.b16 %v426
      %v486 = vunpack.c.h.b16 %v426
      %v487 = vpack.c.b16 %v457, %v455
      %v488 = vpack.c.b16 %v458, %v456
      %v489 = vpack.c.b16 %v461, %v459
      %v490 = vpack.c.b16 %v462, %v460
      %v491 = vpack.c.b16 %v465, %v463
      %v492 = vpack.c.b16 %v466, %v464
      %v493 = vpack.c.b16 %v469, %v467
      %v494 = vpack.c.b16 %v470, %v468
      %v495 = vpack.c.b16 %v473, %v471
      %v496 = vpack.c.b16 %v474, %v472
      %v497 = vpack.c.b16 %v477, %v475
      %v498 = vpack.c.b16 %v478, %v476
      %v499 = vpack.c.b16 %v481, %v479
      %v500 = vpack.c.b16 %v482, %v480
      %v501 = vpack.c.b16 %v485, %v483
      %v502 = vpack.c.b16 %v486, %v484
      %519 = vmatprep.subr.bf16.mxu0 %v488
      %520 = vmatpush1.bf16.msra.mxu0 %v487
      %521 = vmatprep.subr.bf16.mxu0 %v490
      %522 = vmatpush1.bf16.msra.mxu0 %v489
      %523 = vmatprep.subr.bf16.mxu0 %v492
      %524 = vmatpush1.bf16.msra.mxu0 %v491
      %525 = vmatprep.subr.bf16.mxu0 %v494
      %526 = vmatpush1.bf16.msra.mxu0 %v493
      %527 = vmatprep.subr.bf16.mxu0 %v496
      %528 = vmatpush1.bf16.msra.mxu0 %v495
      %529 = vmatprep.subr.bf16.mxu0 %v498
      %530 = vmatpush1.bf16.msra.mxu0 %v497
      %531 = vmatprep.subr.bf16.mxu0 %v500
      %532 = vmatpush1.bf16.msra.mxu0 %v499
      %533 = vmatprep.subr.bf16.mxu0 %v502
      %534 = vmatpush1.bf16.msra.mxu0 %v501
      %535 = vmatprep.subr.bf16.mxu0 0
      %536 = vmatpush1.bf16.msra.mxu0 0
      %537 = vmatprep.subr.bf16.mxu0 0
      %538 = vmatpush1.bf16.msra.mxu0 0
      %539 = vmatprep.subr.bf16.mxu0 0
      %540 = vmatpush1.bf16.msra.mxu0 0
      %541 = vmatprep.subr.bf16.mxu0 0
      %542 = vmatpush1.bf16.msra.mxu0 0
      %543 = vmatprep.subr.bf16.mxu0 0
      %544 = vmatpush1.bf16.msra.mxu0 0
      %545 = vmatprep.subr.bf16.mxu0 0
      %546 = vmatpush1.bf16.msra.mxu0 0
      %547 = vmatprep.subr.bf16.mxu0 0
      %548 = vmatpush1.bf16.msra.mxu0 0
      %549 = vmatprep.subr.bf16.mxu0 0
      %550 = vmatpush1.bf16.msra.mxu0 0
      %551 = vmatprep.mubr.bf16.mxu0 0
      %552 = vmatmul.mubr.bf16.gmra.mrb[0].mxu0 %v407
      %v553 = vpop.f32.mrb[0].mxu0
      %v554 = vadd.f32 %v432, %v553
      %v555 = vpop.f32.mrb[0].mxu0
      %v556 = vadd.f32 %v436, %v555
      %v557 = vpop.f32.mrb[0].mxu0
      %v558 = vadd.f32 %v432, %v557
      %v559 = vpop.f32.mrb[0].mxu0
      %v560 = vadd.f32 %v436, %v559
      %561 = vmatprep.mubr.bf16.mxu0 0
      %562 = vmatmul.mubr.bf16.gmra.mrb[0].mxu0 %v408
      %v563 = vpop.f32.mrb[0].mxu0
      %v564 = vadd.f32 %v432, %v563
      %v565 = vpop.f32.mrb[0].mxu0
      %v566 = vadd.f32 %v436, %v565
      %v567 = vpop.f32.mrb[0].mxu0
      %v568 = vadd.f32 %v432, %v567
      %v569 = vpop.f32.mrb[0].mxu0
      %v570 = vadd.f32 %v436, %v569
      %571 = vmatprep.mubr.bf16.mxu0 0
      %572 = vmatmul.mubr.bf16.gmra.mrb[0].mxu0 %v409
      %v573 = vpop.f32.mrb[0].mxu0
      %v574 = vadd.f32 %v432, %v573
      %v575 = vpop.f32.mrb[0].mxu0
      %v576 = vadd.f32 %v436, %v575
      %v577 = vpop.f32.mrb[0].mxu0
      %v578 = vadd.f32 %v432, %v577
      %v579 = vpop.f32.mrb[0].mxu0
      %v580 = vadd.f32 %v436, %v579
      %581 = vmatprep.mubr.bf16.mxu0 0
      %582 = vmatmul.mubr.bf16.gmra.mrb[0].mxu0 %v410
      %v583 = vpop.f32.mrb[0].mxu0
      %v584 = vadd.f32 %v432, %v583
      %v585 = vpop.f32.mrb[0].mxu0
      %v586 = vadd.f32 %v436, %v585
      %v587 = vpop.f32.mrb[0].mxu0
      %v588 = vadd.f32 %v432, %v587
      %v589 = vpop.f32.mrb[0].mxu0
      %v590 = vadd.f32 %v436, %v589
      %591 = vdwg.mxu0
      %v592 = vmul.f32 %v554, %v554
      %v593 = vmul.f32 %v556, %v556
      %v594 = vmul.f32 %v558, %v558
      %v595 = vmul.f32 %v560, %v560
      %v596 = vmul.f32 %v564, %v564
      %v597 = vmul.f32 %v566, %v566
      %v598 = vmul.f32 %v568, %v568
      %v599 = vmul.f32 %v570, %v570
      %v600 = vmul.f32 %v574, %v574
      %v601 = vmul.f32 %v576, %v576
      %v602 = vmul.f32 %v578, %v578
      %v603 = vmul.f32 %v580, %v580
      %v604 = vmul.f32 %v584, %v584
      %v605 = vmul.f32 %v586, %v586
      %v606 = vmul.f32 %v588, %v588
      %v607 = vmul.f32 %v590, %v590
      %v608 = vmul.f32 %v554, %v592
      %v609 = vmul.f32 %v556, %v593
      %v610 = vmul.f32 %v558, %v594
      %v611 = vmul.f32 %v560, %v595
      %v612 = vmul.f32 %v564, %v596
      %v613 = vmul.f32 %v566, %v597
      %v614 = vmul.f32 %v568, %v598
      %v615 = vmul.f32 %v570, %v599
      %v616 = vmul.f32 %v574, %v600
      %v617 = vmul.f32 %v576, %v601
      %v618 = vmul.f32 %v578, %v602
      %v619 = vmul.f32 %v580, %v603
      %v620 = vmul.f32 %v584, %v604
      %v621 = vmul.f32 %v586, %v605
      %v622 = vmul.f32 %v588, %v606
      %v623 = vmul.f32 %v590, %v607
      %v624 = vmul.f32 %v608, 0.044715
      %v625 = vmul.f32 %v609, 0.044715
      %v626 = vmul.f32 %v610, 0.044715
      %v627 = vmul.f32 %v611, 0.044715
      %v628 = vmul.f32 %v612, 0.044715
      %v629 = vmul.f32 %v613, 0.044715
      %v630 = vmul.f32 %v614, 0.044715
      %v631 = vmul.f32 %v615, 0.044715
      %v632 = vmul.f32 %v616, 0.044715
      %v633 = vmul.f32 %v617, 0.044715
      %v634 = vmul.f32 %v618, 0.044715
      %v635 = vmul.f32 %v619, 0.044715
      %v636 = vmul.f32 %v620, 0.044715
      %v637 = vmul.f32 %v621, 0.044715
      %v638 = vmul.f32 %v622, 0.044715
      %v639 = vmul.f32 %v623, 0.044715
      %v640 = vadd.f32 %v554, %v624
      %v641 = vadd.f32 %v556, %v625
      %v642 = vadd.f32 %v558, %v626
      %v643 = vadd.f32 %v560, %v627
      %v644 = vadd.f32 %v564, %v628
      %v645 = vadd.f32 %v566, %v629
      %v646 = vadd.f32 %v568, %v630
      %v647 = vadd.f32 %v570, %v631
      %v648 = vadd.f32 %v574, %v632
      %v649 = vadd.f32 %v576, %v633
      %v650 = vadd.f32 %v578, %v634
      %v651 = vadd.f32 %v580, %v635
      %v652 = vadd.f32 %v584, %v636
      %v653 = vadd.f32 %v586, %v637
      %v654 = vadd.f32 %v588, %v638
      %v655 = vadd.f32 %v590, %v639
      %v656 = vmul.f32 %v640, 0.7978846
      %v657 = vmul.f32 %v641, 0.7978846
      %v658 = vmul.f32 %v642, 0.7978846
      %v659 = vmul.f32 %v643, 0.7978846
      %v660 = vmul.f32 %v644, 0.7978846
      %v661 = vmul.f32 %v645, 0.7978846
      %v662 = vmul.f32 %v646, 0.7978846
      %v663 = vmul.f32 %v647, 0.7978846
      %v664 = vmul.f32 %v648, 0.7978846
      %v665 = vmul.f32 %v649, 0.7978846
      %v666 = vmul.f32 %v650, 0.7978846
      %v667 = vmul.f32 %v651, 0.7978846
      %v668 = vmul.f32 %v652, 0.7978846
      %v669 = vmul.f32 %v653, 0.7978846
      %v670 = vmul.f32 %v654, 0.7978846
      %v671 = vmul.f32 %v655, 0.7978846
      %v672 = vtanh.pop %v656
      %v673 = vtanh.pop %v657
      %v674 = vtanh.pop %v658
      %v675 = vtanh.pop %v659
      %v676 = vtanh.pop %v660
      %v677 = vtanh.pop %v661
      %v678 = vtanh.pop %v662
      %v679 = vtanh.pop %v663
      %v680 = vtanh.pop %v664
      %v681 = vtanh.pop %v665
      %v682 = vtanh.pop %v666
      %v683 = vtanh.pop %v667
      %v684 = vtanh.pop %v668
      %v685 = vtanh.pop %v669
      %v686 = vtanh.pop %v670
      %v687 = vtanh.pop %v671
      %v688 = vadd.f32 %v672, 1.0
      %v689 = vadd.f32 %v673, 1.0
      %v690 = vadd.f32 %v674, 1.0
      %v691 = vadd.f32 %v675, 1.0
      %v692 = vadd.f32 %v676, 1.0
      %v693 = vadd.f32 %v677, 1.0
      %v694 = vadd.f32 %v678, 1.0
      %v695 = vadd.f32 %v679, 1.0
      %v696 = vadd.f32 %v680, 1.0
      %v697 = vadd.f32 %v681, 1.0
      %v698 = vadd.f32 %v682, 1.0
      %v699 = vadd.f32 %v683, 1.0
      %v700 = vadd.f32 %v684, 1.0
      %v701 = vadd.f32 %v685, 1.0
      %v702 = vadd.f32 %v686, 1.0
      %v703 = vadd.f32 %v687, 1.0
      %v704 = vmul.f32 %v688, 0.5
      %v705 = vmul.f32 %v689, 0.5
      %v706 = vmul.f32 %v690, 0.5
      %v707 = vmul.f32 %v691, 0.5
      %v708 = vmul.f32 %v692, 0.5
      %v709 = vmul.f32 %v693, 0.5
      %v710 = vmul.f32 %v694, 0.5
      %v711 = vmul.f32 %v695, 0.5
      %v712 = vmul.f32 %v696, 0.5
      %v713 = vmul.f32 %v697, 0.5
      %v714 = vmul.f32 %v698, 0.5
      %v715 = vmul.f32 %v699, 0.5
      %v716 = vmul.f32 %v700, 0.5
      %v717 = vmul.f32 %v701, 0.5
      %v718 = vmul.f32 %v702, 0.5
      %v719 = vmul.f32 %v703, 0.5
      %v720 = vmul.f32 %v554, %v704
      %v721 = vmul.f32 %v556, %v705
      %v722 = vmul.f32 %v558, %v706
      %v723 = vmul.f32 %v560, %v707
      %v724 = vmul.f32 %v564, %v708
      %v725 = vmul.f32 %v566, %v709
      %v726 = vmul.f32 %v568, %v710
      %v727 = vmul.f32 %v570, %v711
      %v728 = vmul.f32 %v574, %v712
      %v729 = vmul.f32 %v576, %v713
      %v730 = vmul.f32 %v578, %v714
      %v731 = vmul.f32 %v580, %v715
      %v732 = vmul.f32 %v584, %v716
      %v733 = vmul.f32 %v586, %v717
      %v734 = vmul.f32 %v588, %v718
      %v735 = vmul.f32 %v590, %v719
      %v736 = vpack.c.bf16 %v722, %v720
      %v737 = vpack.c.bf16 %v723, %v721
      %v738 = vpack.c.bf16 %v726, %v724
      %v739 = vpack.c.bf16 %v727, %v725
      %v740 = vpack.c.bf16 %v730, %v728
      %v741 = vpack.c.bf16 %v731, %v729
      %v742 = vpack.c.bf16 %v734, %v732
      %v743 = vpack.c.bf16 %v735, %v733
      %v744 = vld [vmem:[%s5] sm:$0xf]
      %v745 = vld [vmem:[%s5 + $0x4] sm:$0xf]
      %v746 = vld [vmem:[%s5 + $0x8] sm:$0xf]
      %v747 = vld [vmem:[%s5 + $0xc] sm:$0xf]
      %v748 = vld [vmem:[%s5 + $0x10] sm:$0xf]
      %v749 = vld [vmem:[%s5 + $0x14] sm:$0xf]
      %v750 = vld [vmem:[%s5 + $0x18] sm:$0xf]
      %v751 = vld [vmem:[%s5 + $0x1c] sm:$0xf]
      %v752 = vld [vmem:[%s5 + $0x20] sm:$0xf]
      %v753 = vld [vmem:[%s5 + $0x24] sm:$0xf]
      %v754 = vld [vmem:[%s5 + $0x28] sm:$0xf]
      %v755 = vld [vmem:[%s5 + $0x2c] sm:$0xf]
      %v756 = vld [vmem:[%s5 + $0x30] sm:$0xf]
      %v757 = vld [vmem:[%s5 + $0x34] sm:$0xf]
      %v758 = vld [vmem:[%s5 + $0x38] sm:$0xf]
      %v759 = vld [vmem:[%s5 + $0x3c] sm:$0xf]
      %v760 = vld [vmem:[%s5 + $0x40] sm:$0xf]
      %v761 = vld [vmem:[%s5 + $0x44] sm:$0xf]
      %v762 = vld [vmem:[%s5 + $0x48] sm:$0xf]
      %v763 = vld [vmem:[%s5 + $0x4c] sm:$0xf]
      %v764 = vld [vmem:[%s5 + $0x50] sm:$0xf]
      %v765 = vld [vmem:[%s5 + $0x54] sm:$0xf]
      %v766 = vld [vmem:[%s5 + $0x58] sm:$0xf]
      %v767 = vld [vmem:[%s5 + $0x5c] sm:$0xf]
      %v768 = vld [vmem:[%s5 + $0x60] sm:$0xf]
      %v769 = vld [vmem:[%s5 + $0x64] sm:$0xf]
      %v770 = vld [vmem:[%s5 + $0x68] sm:$0xf]
      %v771 = vld [vmem:[%s5 + $0x6c] sm:$0xf]
      %v772 = vld [vmem:[%s5 + $0x70] sm:$0xf]
      %v773 = vld [vmem:[%s5 + $0x74] sm:$0xf]
      %v774 = vld [vmem:[%s5 + $0x78] sm:$0xf]
      %v775 = vld [vmem:[%s5 + $0x7c] sm:$0xf]
      %v776 = vld [vmem:[%s6] sm:$0x1]
      %v778 = vlaneseq
      %v779 = vshrl.u32 %v778, 7
      %v780 = vsub.s32 0, %v779
      %v781 = vrot.slane %v776, %v780
      %v815 = vunpack.c.l.b16 %v744
      %v816 = vunpack.c.l.b16 %v745
      %v817 = vunpack.c.l.b16 %v746
      %v818 = vunpack.c.l.b16 %v747
      %v819 = vunpack.c.l.b16 %v748
      %v820 = vunpack.c.l.b16 %v749
      %v821 = vunpack.c.l.b16 %v750
      %v822 = vunpack.c.l.b16 %v751
      %v823 = vunpack.c.l.b16 %v752
      %v824 = vunpack.c.l.b16 %v753
      %v825 = vunpack.c.l.b16 %v754
      %v826 = vunpack.c.l.b16 %v755
      %v827 = vunpack.c.l.b16 %v756
      %v828 = vunpack.c.l.b16 %v757
      %v829 = vunpack.c.l.b16 %v758
      %v830 = vunpack.c.l.b16 %v759
      %v831 = vunpack.c.l.b16 %v760
      %v832 = vunpack.c.l.b16 %v761
      %v833 = vunpack.c.l.b16 %v762
      %v834 = vunpack.c.l.b16 %v763
      %v835 = vunpack.c.l.b16 %v764
      %v836 = vunpack.c.l.b16 %v765
      %v837 = vunpack.c.l.b16 %v766
      %v838 = vunpack.c.l.b16 %v767
      %v839 = vunpack.c.l.b16 %v768
      %v840 = vunpack.c.l.b16 %v769
      %v841 = vunpack.c.l.b16 %v770
      %v842 = vunpack.c.l.b16 %v771
      %v843 = vunpack.c.l.b16 %v772
      %v844 = vunpack.c.l.b16 %v773
      %v845 = vunpack.c.l.b16 %v774
      %v846 = vunpack.c.l.b16 %v775
      %v847 = vpack.c.b16 %v816, %v815
      %v848 = vpack.c.b16 %v818, %v817
      %v849 = vpack.c.b16 %v820, %v819
      %v850 = vpack.c.b16 %v822, %v821
      %v851 = vpack.c.b16 %v824, %v823
      %v852 = vpack.c.b16 %v826, %v825
      %v853 = vpack.c.b16 %v828, %v827
      %v854 = vpack.c.b16 %v830, %v829
      %v855 = vpack.c.b16 %v832, %v831
      %v856 = vpack.c.b16 %v834, %v833
      %v857 = vpack.c.b16 %v836, %v835
      %v858 = vpack.c.b16 %v838, %v837
      %v859 = vpack.c.b16 %v840, %v839
      %v860 = vpack.c.b16 %v842, %v841
      %v861 = vpack.c.b16 %v844, %v843
      %v862 = vpack.c.b16 %v846, %v845
      %879 = vmatprep.subr.bf16.mxu0 0
      %880 = vmatpush1.bf16.msra.mxu0 %v847
      %881 = vmatprep.subr.bf16.mxu0 0
      %882 = vmatpush1.bf16.msra.mxu0 %v848
      %883 = vmatprep.subr.bf16.mxu0 0
      %884 = vmatpush1.bf16.msra.mxu0 %v849
      %885 = vmatprep.subr.bf16.mxu0 0
      %886 = vmatpush1.bf16.msra.mxu0 %v850
      %887 = vmatprep.subr.bf16.mxu0 0
      %888 = vmatpush1.bf16.msra.mxu0 %v851
      %889 = vmatprep.subr.bf16.mxu0 0
      %890 = vmatpush1.bf16.msra.mxu0 %v852
      %891 = vmatprep.subr.bf16.mxu0 0
      %892 = vmatpush1.bf16.msra.mxu0 %v853
      %893 = vmatprep.subr.bf16.mxu0 0
      %894 = vmatpush1.bf16.msra.mxu0 %v854
      %895 = vmatprep.subr.bf16.mxu0 0
      %896 = vmatpush1.bf16.msra.mxu0 %v855
      %897 = vmatprep.subr.bf16.mxu0 0
      %898 = vmatpush1.bf16.msra.mxu0 %v856
      %899 = vmatprep.subr.bf16.mxu0 0
      %900 = vmatpush1.bf16.msra.mxu0 %v857
      %901 = vmatprep.subr.bf16.mxu0 0
      %902 = vmatpush1.bf16.msra.mxu0 %v858
      %903 = vmatprep.subr.bf16.mxu0 0
      %904 = vmatpush1.bf16.msra.mxu0 %v859
      %905 = vmatprep.subr.bf16.mxu0 0
      %906 = vmatpush1.bf16.msra.mxu0 %v860
      %907 = vmatprep.subr.bf16.mxu0 0
      %908 = vmatpush1.bf16.msra.mxu0 %v861
      %909 = vmatprep.subr.bf16.mxu0 0
      %910 = vmatpush1.bf16.msra.mxu0 %v862
      %911 = vmatprep.mubr.bf16.mxu0 %v737
      %912 = vmatmul.mubr.bf16.gmra.mrb[0].mxu0 %v736
      %v913 = vpop.f32.mrb[0].mxu0
      %v914 = vadd.f32 %v781, %v913
      %v915 = vpop.f32.mrb[0].mxu0
      %v916 = vpop.f32.mrb[0].mxu0
      %v917 = vadd.f32 %v781, %v916
      %v918 = vpop.f32.mrb[0].mxu0
      %919 = vmatprep.mubr.bf16.mxu0 %v739
      %920 = vmatmul.mubr.bf16.gmra.mrb[0].mxu0 %v738
      %v921 = vpop.f32.mrb[0].mxu0
      %v922 = vadd.f32 %v781, %v921
      %v923 = vpop.f32.mrb[0].mxu0
      %v924 = vpop.f32.mrb[0].mxu0
      %v925 = vadd.f32 %v781, %v924
      %v926 = vpop.f32.mrb[0].mxu0
      %927 = vmatprep.mubr.bf16.mxu0 %v741
      %928 = vmatmul.mubr.bf16.gmra.mrb[0].mxu0 %v740
      %v929 = vpop.f32.mrb[0].mxu0
      %v930 = vadd.f32 %v781, %v929
      %v931 = vpop.f32.mrb[0].mxu0
      %v932 = vpop.f32.mrb[0].mxu0
      %v933 = vadd.f32 %v781, %v932
      %v934 = vpop.f32.mrb[0].mxu0
      %935 = vmatprep.mubr.bf16.mxu0 %v743
      %936 = vmatmul.mubr.bf16.gmra.mrb[0].mxu0 %v742
      %v937 = vpop.f32.mrb[0].mxu0
      %v938 = vadd.f32 %v781, %v937
      %v939 = vpop.f32.mrb[0].mxu0
      %v940 = vpop.f32.mrb[0].mxu0
      %v941 = vadd.f32 %v781, %v940
      %v942 = vpop.f32.mrb[0].mxu0
      %943 = vdwg.mxu0
      %v944 = vadd.f32 %v280, %v914
      %v945 = vadd.f32 %v281, %v917
      %v946 = vadd.f32 %v282, %v922
      %v947 = vadd.f32 %v283, %v925
      %v948 = vadd.f32 %v284, %v930
      %v949 = vadd.f32 %v285, %v933
      %v950 = vadd.f32 %v286, %v938
      %v951 = vadd.f32 %v287, %v941
      %952 = vst [vmem:[%s278] sm:$0xff] %v944
      %953 = vst [vmem:[%s278 + $0x8] sm:$0xff] %v945
      %954 = vst [vmem:[%s278 + $0x10] sm:$0xff] %v946
      %955 = vst [vmem:[%s278 + $0x18] sm:$0xff] %v947
      %956 = vst [vmem:[%s278 + $0x20] sm:$0xff] %v948
      %957 = vst [vmem:[%s278 + $0x28] sm:$0xff] %v949
      %958 = vst [vmem:[%s278 + $0x30] sm:$0xff] %v950
      %959 = vst [vmem:[%s278 + $0x38] sm:$0xff] %v951
      %p960 = scmp.lt.s32.totalorder %s18, 1
      %s961 = scalar_select %p960, %s18, 1
      %s962 = smul.addr %s961, 8
      %s963 = smul.addr %s962, 8
      %s964 = scalar_lea.vmem %s7, %s963
      // Predicated region
      $region49: #{_lambda_.12} parent=47 // pred_check
        %p965 = pneg %p188
      $region50: #{_lambda_.12} parent=47 // pred_check_branch
        %967 = sbr.rel (%p965) target = $region52
      $region51: #{_lambda_.12} parent=47 // pred_region
        _
      $region52: #{_lambda_.12} parent=47 // pred_fallthru
        _
    $region48: #{_lambda_.12} parent=5 // pred_fallthru
      _
    %p968 = scmp.le.s32.totalorder 2, %s13
    // Predicated region
    $region53: #{_lambda_.12} parent=5 // pred_check
      %p969 = pneg %p968
    $region54: #{_lambda_.12} parent=5 // pred_check_branch
      %971 = sbr.rel (%p969) target = $region56
    $region55: #{_lambda_.12} parent=5 // pred_region
      %s972 = ssub.s32 %s13, 2
      // Predicated region
      $region57: #{_lambda_.12} parent=55 // pred_check
        %p973 = pneg %p194
      $region58: #{_lambda_.12} parent=55 // pred_check_branch
        %975 = sbr.rel (%p973) target = $region60
      $region59: #{_lambda_.12} parent=55 // pred_region
        %p976 = scmp.lt.s32.totalorder %s19, 1
        %s977 = scalar_select %p976, %s19, 1
        %s978 = smul.addr %s977, 8
        %s979 = smul.addr %s978, 8
        %s980 = scalar_lea.vmem %s7, %s979
      $region60: #{_lambda_.12} parent=55 // pred_fallthru
        _
    $region56: #{_lambda_.12} parent=5 // pred_fallthru
      _
  $region6: #{_lambda_.12} parent=0 // loop_footer
    %s17 = sadd.s32 1, %s13
  $region7: #{_lambda_.12} parent=0 // loop_footer_branch
    %12 = sbr.rel target = $region3
  $region8: #{_lambda_.12} parent=0 // loop_exit
    _

</llo_original>
